<compile_context>
chip_gen: v5e
topology: v5e:2x2
jax: 0.10.0
libtpu: 0.0.40
codegen_flags: <defaults>
</compile_context>

<pallas_src>
import jax
import jax.numpy as jnp
from jax.experimental import pallas as pl
from jax.experimental.pallas import tpu as pltpu


def _round_up(x, m):
    return ((x + m - 1) // m) * m


def _pad_gate_cols(w, H, Hp):
    """[..., 4H] -> [..., 4Hp]: gate k moves to columns [k*Hp, k*Hp+H)."""
    if Hp == H:
        return w
    parts = []
    for k in range(4):
        blk = w[..., k * H:(k + 1) * H]
        pad = [(0, 0)] * (w.ndim - 1) + [(0, Hp - H)]
        parts.append(jnp.pad(blk, pad))
    return jnp.concatenate(parts, axis=-1)


def decoder_kernel(
    featproj_ref,   # [Bt, R, Hp]   bf16  feats @ W1_feat + b1 (zero-padded)
    feats_ref,      # [Bt, R, F]    bf16  flattened image features
    emb_gates_ref,  # [T, Bt, 4Hp]  bf16  emb @ Wih_emb + (b_ih + b_hh), gate-padded
    w1h_ref,        # [Hp, Hp]      bf16  hidden part of attention layer 1
    w2_ref,         # [1, 1, Hp]    f32   attention layer 2 weight
    w_x_ref,        # [Fp+Hp, 4Hp]  bf16  packed [wih_ctx ; 0 ; w_hh ; 0]
    h_all_ref,      # [T, Bt, Hp]   f32   output: hidden state per timestep
    attn_ref,       # [T, Bt, Rp]   f32   output: attention weights (lane-padded)
    x_scratch,      # [Bt, Fp+Hp]   bf16  persistent packed [context | h]
):
    Bt, R, Hp = featproj_ref.shape
    T = emb_gates_ref.shape[0]
    F = feats_ref.shape[2]
    Fp = x_scratch.shape[1] - Hp
    Rp = attn_ref.shape[2]

    # Zero once per batch tile: pad columns of the packed [context | h] scratch
    # (uninitialized VMEM * zero weight could be NaN) and the lane padding of
    # the attention output block (so its lane-dense HBM writeback is clean).
    x_scratch[...] = jnp.zeros_like(x_scratch)
    if Rp > R:
        attn_ref[...] = jnp.zeros_like(attn_ref)

    # Hoist the w2 broadcast out of the T loop (JAX does not CSE broadcast_in_dim).
    w2b = jnp.broadcast_to(w2_ref[...], (Bt, R, Hp))

    def step(t, carry):
        h, c = carry                                              # [Bt, Hp] f32

        # ---- attention ----
        hid_proj = jnp.dot(h.astype(jnp.bfloat16), w1h_ref[...],
                           preferred_element_type=jnp.float32)    # [Bt, Hp]
        # TODO(synk): on v6e/v7x this tanh over [Bt, R, Hp] can run in bf16 to
        # double EUP throughput; kept f32 here for tight toy-shape numerics
        # (and because v5e has no bf16 VPU/EUP).
        att_hid = jnp.tanh(featproj_ref[...].astype(jnp.float32)
                           + hid_proj[:, None, :])                # [Bt, R, Hp]
        # H -> 1 projection as VPU multiply + lane reduce (attn_b2 omitted:
        # softmax is invariant to adding a constant to every score).
        scores = jnp.sum(att_hid * w2b, axis=-1)                  # [Bt, R]
        scores = scores - jnp.max(scores, axis=1, keepdims=True)
        e = jnp.exp(scores)
        attn = e * pl.reciprocal(jnp.sum(e, axis=1, keepdims=True), approx=True)
        context = jnp.sum(feats_ref[...].astype(jnp.float32)
                          * attn[:, :, None], axis=1)             # [Bt, F]

        # ---- LSTM cell: one fused [context | h] x [Fp+Hp, 4Hp] MXU matmul ----
        x_scratch[:, :F] = context.astype(jnp.bfloat16)
        x_scratch[:, Fp:] = h.astype(jnp.bfloat16)
        gates = emb_gates_ref[t].astype(jnp.float32) + jnp.dot(
            x_scratch[...], w_x_ref[...], preferred_element_type=jnp.float32)
        i_g = jax.nn.sigmoid(gates[:, 0 * Hp:1 * Hp])
        f_g = jax.nn.sigmoid(gates[:, 1 * Hp:2 * Hp])
        g_g = jnp.tanh(gates[:, 2 * Hp:3 * Hp])
        o_g = jax.nn.sigmoid(gates[:, 3 * Hp:4 * Hp])
        c_new = f_g * c + i_g * g_g
        h_new = o_g * jnp.tanh(c_new)

        h_all_ref[t] = h_new
        if Rp > R:
            attn_ref[t, :, :R] = attn
        else:
            attn_ref[t] = attn
        return h_new, c_new

    h0 = jnp.zeros((Bt, Hp), jnp.float32)
    c0 = jnp.zeros((Bt, Hp), jnp.float32)
    # Full unroll only for small T; modest unroll at realistic T to bound code
    # size / vreg live ranges.
    jax.lax.fori_loop(0, T, step, (h0, c0), unroll=(T if T <= 8 else 4))


@jax.jit
def lstm_decoder_forward(features, captions, params):
    """features: [B, F, S, S] float32 (NCHW); captions: [B, T] int32."""
    B, Fdim, S, _ = features.shape
    T = captions.shape[1]
    R = S * S
    E = params["embedding"].shape[1]
    H = params["w_hh"].shape[0]
    V = params["fc_w"].shape[1]
    Hp = _round_up(H, 128)
    Fp = _round_up(Fdim, 128)
    Rp = _round_up(R, 128)
    G = 4 * Hp

    # Batch tile: multiple of 8 sublanes; 128 rows per MXU push is the sweet
    # spot.  Per-generation tuning: up to ~256 on v6e (128 MiB VMEM), ~half on
    # v7x (64 MiB), smallest on v5e (16 MiB scoped default, ~0.8 TB/s HBM).
    B_TILE = min(_round_up(B, 8), 128)
    B_pad = _round_up(B, B_TILE)
    n_b = B_pad // B_TILE

    feats_flat = jnp.transpose(features.reshape(B, Fdim, R), (0, 2, 1))    # [B, R, F]

    # --- hoisted attention feature projection (loop-invariant) ---
    w1 = params["attn_w1"]                        # [F+H, H], (in, out)
    w1_feat, w1_hid = w1[:Fdim], w1[Fdim:]
    featproj = feats_flat @ w1_feat + params["attn_b1"]                    # [B, R, H]
    featproj = jnp.pad(featproj,
                       ((0, B_pad - B), (0, 0), (0, Hp - H))).astype(jnp.bfloat16)
    feats_p = jnp.pad(feats_flat, ((0, B_pad - B), (0, 0), (0, 0))).astype(jnp.bfloat16)
    w1h_pad = jnp.pad(w1_hid, ((0, Hp - H), (0, Hp - H))).astype(jnp.bfloat16)
    w2_pad = jnp.pad(params["attn_w2"][:, 0][None, None, :],
                     ((0, 0), (0, 0), (0, Hp - H)))                        # [1,1,Hp] f32

    # --- hoisted embedding contribution to the LSTM gates (all timesteps) ---
    # NOTE: all gate/hidden pad rows & columns below are exactly zero; this is
    # what keeps the padded h/c columns identically zero inside the kernel.
    wih = params["w_ih"]                          # [E+F, 4H]
    wih_emb, wih_ctx = wih[:E], wih[E:]
    emb = params["embedding"][captions]                                     # [B, T, E]
    emb_t = jnp.transpose(emb, (1, 0, 2))                                   # [T, B, E]
    emb_gates = emb_t.reshape(T * B, E) @ wih_emb + params["b_lstm"]        # [T*B, 4H]
    emb_gates = _pad_gate_cols(emb_gates, H, Hp).reshape(T, B, G)
    emb_gates = jnp.pad(emb_gates,
                        ((0, 0), (0, B_pad - B), (0, 0))).astype(jnp.bfloat16)

    # packed [context | h] input weight, lane-aligned at row offsets 0 / Fp
    wih_ctx_g = _pad_gate_cols(wih_ctx, H, Hp)                              # [F, 4Hp]
    whh_g = _pad_gate_cols(params["w_hh"], H, Hp)                           # [H, 4Hp]
    w_x = jnp.zeros((Fp + Hp, G), jnp.float32)
    w_x = w_x.at[:Fdim].set(wih_ctx_g).at[Fp:Fp + H].set(whh_g).astype(jnp.bfloat16)

    h_all, attn = pl.pallas_call(
        decoder_kernel,
        grid_spec=pltpu.PrefetchScalarGridSpec(
            num_scalar_prefetch=0,
            grid=(n_b,),
            in_specs=[
                pl.BlockSpec((B_TILE, R, Hp), lambda i: (i, 0, 0)),
                pl.BlockSpec((B_TILE, R, Fdim), lambda i: (i, 0, 0)),
                pl.BlockSpec((T, B_TILE, G), lambda i: (0, i, 0)),
                pl.BlockSpec((Hp, Hp), lambda i: (0, 0)),
                pl.BlockSpec((1, 1, Hp), lambda i: (0, 0, 0)),
                pl.BlockSpec((Fp + Hp, G), lambda i: (0, 0)),
            ],
            out_specs=[
                pl.BlockSpec((T, B_TILE, Hp), lambda i: (0, i, 0)),
                pl.BlockSpec((T, B_TILE, Rp), lambda i: (0, i, 0)),
            ],
            scratch_shapes=[pltpu.VMEM((B_TILE, Fp + Hp), jnp.bfloat16)],
        ),
        out_shape=(
            jax.ShapeDtypeStruct((T, B_pad, Hp), jnp.float32),
            jax.ShapeDtypeStruct((T, B_pad, Rp), jnp.float32),
        ),
        compiler_params=pltpu.CompilerParams(
            dimension_semantics=("parallel",),
            vmem_limit_bytes=48 * 1024 * 1024),
    )(featproj, feats_p, emb_gates, w1h_pad, w2_pad, w_x)

    # FC head outside the kernel: one [T*B, H] x [H, V] matmul (dropout == identity).
    logits = (h_all[:, :B, :H].reshape(T * B, H) @ params["fc_w"]
              + params["fc_b"]).reshape(T, B, V)

    # back to PyTorch convention: [B, T, V], [B, T, R]
    return (jnp.transpose(logits, (1, 0, 2)),
            jnp.transpose(attn[:, :B, :R], (1, 0, 2)))


def reference_forward(features, captions, params):
    """Pure-JAX reference mirroring the PyTorch forward (eval mode)."""
    B, Fdim, S, _ = features.shape
    T = captions.shape[1]
    R = S * S
    H = params["w_hh"].shape[0]
    feats = jnp.transpose(features.reshape(B, Fdim, R), (0, 2, 1))
    emb = params["embedding"][captions]
    h = jnp.zeros((B, H), jnp.float32)
    c = jnp.zeros((B, H), jnp.float32)
    outs, attns = [], []
    for t in range(T):
        h_exp = jnp.broadcast_to(h[:, None, :], (B, R, H))
        att_in = jnp.concatenate([feats, h_exp], axis=2)
        hid = jnp.tanh(att_in @ params["attn_w1"] + params["attn_b1"])
        scores = (hid @ params["attn_w2"])[..., 0] + params["attn_b2"][0, 0]
        w = jax.nn.softmax(scores, axis=1)
        ctx = jnp.sum(feats * w[:, :, None], axis=1)
        x = jnp.concatenate([emb[:, t, :], ctx], axis=1)
        gates = x @ params["w_ih"] + h @ params["w_hh"] + params["b_lstm"]
        i_g = jax.nn.sigmoid(gates[:, :H])
        f_g = jax.nn.sigmoid(gates[:, H:2 * H])
        g_g = jnp.tanh(gates[:, 2 * H:3 * H])
        o_g = jax.nn.sigmoid(gates[:, 3 * H:4 * H])
        c = f_g * c + i_g * g_g
        h = o_g * jnp.tanh(c)
        outs.append(h @ params["fc_w"] + params["fc_b"])
        attns.append(w)
    return jnp.stack(outs, axis=1), jnp.stack(attns, axis=1)


def init_params(key, vocab_size, embed_dim, hidden_dim, feature_dim):
    """Deterministic synthetic parameters (linear weights stored as (in, out))."""
    ks = jax.random.split(key, 11)
    s = 0.1
    return {
        "embedding": s * jax.random.normal(ks[0], (vocab_size, embed_dim), jnp.float32),
        "attn_w1": s * jax.random.normal(ks[1], (feature_dim + hidden_dim, hidden_dim), jnp.float32),
        "attn_b1": s * jax.random.normal(ks[2], (1, hidden_dim), jnp.float32),
        "attn_w2": s * jax.random.normal(ks[3], (hidden_dim, 1), jnp.float32),
        "attn_b2": s * jax.random.normal(ks[4], (1, 1), jnp.float32),
        "w_ih": s * jax.random.normal(ks[5], (embed_dim + feature_dim, 4 * hidden_dim), jnp.float32),
        "w_hh": s * jax.random.normal(ks[6], (hidden_dim, 4 * hidden_dim), jnp.float32),
        "b_lstm": s * jax.random.normal(ks[7], (1, 4 * hidden_dim), jnp.float32),  # b_ih + b_hh folded
        "fc_w": s * jax.random.normal(ks[8], (hidden_dim, vocab_size), jnp.float32),
        "fc_b": s * jax.random.normal(ks[9], (1, vocab_size), jnp.float32),
    }


if __name__ == "__main__":
    # small shapes consistent with the module
    vocab_size, embed_dim, hidden_dim, feature_dim = 32, 16, 32, 32
    batch, spatial, max_len = 2, 4, 8

    key = jax.random.PRNGKey(0)
    kf, kc, kp = jax.random.split(key, 3)
    features = jax.random.normal(kf, (batch, feature_dim, spatial, spatial), jnp.float32)
    captions = jax.random.randint(kc, (batch, max_len), 0, vocab_size, jnp.int32)
    params = init_params(kp, vocab_size, embed_dim, hidden_dim, feature_dim)

    outputs, attn_weights = lstm_decoder_forward(features, captions, params)
    outputs = jax.block_until_ready(outputs)
    attn_weights = jax.block_until_ready(attn_weights)

    ref_out, ref_attn = reference_forward(features, captions, params)
    assert outputs.shape == (batch, max_len, vocab_size)
    assert attn_weights.shape == (batch, max_len, spatial * spatial)
    # Tolerance loosened to 2e-2 vs the f32 reference: MXU operands / largest
    # resident tensors are bf16 (f32 accumulation), and the softmax denominator
    # uses the EUP approximate reciprocal (pl.reciprocal(approx=True)).
    assert jnp.allclose(outputs, ref_out, rtol=2e-2, atol=2e-2)
    assert jnp.allclose(attn_weights, ref_attn, rtol=2e-2, atol=2e-2)

    print("KERNEL_OK")
</pallas_src>

<mosaic_0001>
module attributes {stable_mosaic.version = 11 : i64} {
  func.func @decoder_kernel(%arg0: i32, %arg1: memref<8x16x128xbf16, #tpu.memory_space<vmem>>, %arg2: memref<8x16x32xbf16, #tpu.memory_space<vmem>>, %arg3: memref<8x8x512xbf16, #tpu.memory_space<vmem>>, %arg4: memref<128x128xbf16, #tpu.memory_space<vmem>>, %arg5: memref<1x1x128xf32, #tpu.memory_space<vmem>>, %arg6: memref<256x512xbf16, #tpu.memory_space<vmem>>, %arg7: memref<8x8x128xf32, #tpu.memory_space<vmem>>, %arg8: memref<8x8x128xf32, #tpu.memory_space<vmem>>, %arg9: memref<8x256xbf16, #tpu.memory_space<vmem>>) attributes {dimension_semantics = [#tpu.dimension_semantics<parallel>], iteration_bounds = array<i64: 1>, scalar_prefetch = 0 : i64, scratch_operands = 1 : i64, tpu.core_type = #tpu.core_type<tc>, window_params = [{transform_indices = @transform_0, window_bounds = array<i64: 8, 16, 128>}, {transform_indices = @transform_1, window_bounds = array<i64: 8, 16, 32>}, {transform_indices = @transform_2, window_bounds = array<i64: 8, 8, 512>}, {pipeline_mode = #tpu.pipeline_mode<synchronous>, transform_indices = @transform_3, window_bounds = array<i64: 128, 128>}, {pipeline_mode = #tpu.pipeline_mode<synchronous>, transform_indices = @transform_4, window_bounds = array<i64: 1, 1, 128>}, {pipeline_mode = #tpu.pipeline_mode<synchronous>, transform_indices = @transform_5, window_bounds = array<i64: 256, 512>}, {transform_indices = @transform_6, window_bounds = array<i64: 8, 8, 128>}, {transform_indices = @transform_7, window_bounds = array<i64: 8, 8, 128>}]} {
    %cst = arith.constant 0.000000e+00 : bf16
    %0 = vector.broadcast %cst : bf16 to vector<8x256xbf16>
    %c0 = arith.constant 0 : index
    %c0_0 = arith.constant 0 : index
    %1 = vector.load %arg9[%c0, %c0_0] : memref<8x256xbf16, #tpu.memory_space<vmem>>, vector<8x256xbf16>
    tpu.vector_store %arg9[%c0, %c0_0], %0 {strides = array<i32>} : memref<8x256xbf16, #tpu.memory_space<vmem>>, vector<8x256xbf16>,
    %cst_1 = arith.constant 0.000000e+00 : f32
    %2 = vector.broadcast %cst_1 : f32 to vector<8x8x128xf32>
    %c0_2 = arith.constant 0 : index
    %c0_3 = arith.constant 0 : index
    %c0_4 = arith.constant 0 : index
    %3 = vector.load %arg8[%c0_2, %c0_3, %c0_4] : memref<8x8x128xf32, #tpu.memory_space<vmem>>, vector<8x8x128xf32>
    tpu.vector_store %arg8[%c0_2, %c0_3, %c0_4], %2 {strides = array<i32>} : memref<8x8x128xf32, #tpu.memory_space<vmem>>, vector<8x8x128xf32>,
    %c0_5 = arith.constant 0 : index
    %c0_6 = arith.constant 0 : index
    %c0_7 = arith.constant 0 : index
    %4 = vector.load %arg5[%c0_5, %c0_6, %c0_7] : memref<1x1x128xf32, #tpu.memory_space<vmem>>, vector<1x1x128xf32>
    %5 = vector.shape_cast %4 : vector<1x1x128xf32> to vector<1x1x128xf32>
    %6 = vector.broadcast %5 : vector<1x1x128xf32> to vector<8x16x128xf32>
    %cst_8 = arith.constant 0.000000e+00 : f32
    %7 = vector.broadcast %cst_8 : f32 to vector<8x128xf32>
    %cst_9 = arith.constant 0.000000e+00 : f32
    %8 = vector.broadcast %cst_9 : f32 to vector<8x128xf32>
    %c0_i32 = arith.constant 0 : i32
    %9 = arith.truncf %7 : vector<8x128xf32> to vector<8x128xbf16>
    %c0_10 = arith.constant 0 : index
    %c0_11 = arith.constant 0 : index
    %10 = vector.load %arg4[%c0_10, %c0_11] : memref<128x128xbf16, #tpu.memory_space<vmem>>, vector<128x128xbf16>
    %cst_12 = arith.constant dense<0.000000e+00> : vector<8x128xf32>
    %11 = tpu.matmul %9, %10, %cst_12 {dimension_numbers = #tpu.dot_dimension_numbers<[1], [0], [0], [1], [0, 0, 1, 1], [], []>} : vector<8x128xbf16>, vector<128x128xbf16>, vector<8x128xf32> -> vector<8x128xf32>
    %c0_13 = arith.constant 0 : index
    %c0_14 = arith.constant 0 : index
    %c0_15 = arith.constant 0 : index
    %12 = vector.load %arg1[%c0_13, %c0_14, %c0_15] : memref<8x16x128xbf16, #tpu.memory_space<vmem>>, vector<8x16x128xbf16>
    %13 = arith.extf %12 : vector<8x16x128xbf16> to vector<8x16x128xf32>
    %14 = vector.shape_cast %11 : vector<8x128xf32> to vector<8x1x128xf32>
    %15 = vector.broadcast %14 : vector<8x1x128xf32> to vector<8x16x128xf32>
    %16 = arith.addf %13, %15 : vector<8x16x128xf32>
    %17 = math.tanh %16 : vector<8x16x128xf32>
    %18 = arith.mulf %17, %6 : vector<8x16x128xf32>
    %cst_16 = arith.constant dense<0.000000e+00> : vector<8x16xf32>
    %19 = vector.multi_reduction <add>, %18, %cst_16 [2] : vector<8x16x128xf32> to vector<8x16xf32>
    %cst_17 = arith.constant dense<0xFF800000> : vector<8xf32>
    %20 = vector.multi_reduction <maximumf>, %19, %cst_17 [1] : vector<8x16xf32> to vector<8xf32>
    %21 = vector.shape_cast %20 : vector<8xf32> to vector<8x1xf32>
    %22 = vector.broadcast %21 : vector<8x1xf32> to vector<8x16xf32>
    %23 = arith.subf %19, %22 : vector<8x16xf32>
    %24 = math.exp %23 : vector<8x16xf32>
    %cst_18 = arith.constant dense<0.000000e+00> : vector<8xf32>
    %25 = vector.multi_reduction <add>, %24, %cst_18 [1] : vector<8x16xf32> to vector<8xf32>
    %26 = vector.shape_cast %25 : vector<8xf32> to vector<8x1xf32>
    %27 = tpu.reciprocal %26 {approx = true} : vector<8x1xf32> -> vector<8x1xf32>
    %28 = vector.broadcast %27 : vector<8x1xf32> to vector<8x16xf32>
    %29 = arith.mulf %24, %28 : vector<8x16xf32>
    %c0_19 = arith.constant 0 : index
    %c0_20 = arith.constant 0 : index
    %c0_21 = arith.constant 0 : index
    %30 = vector.load %arg2[%c0_19, %c0_20, %c0_21] : memref<8x16x32xbf16, #tpu.memory_space<vmem>>, vector<8x16x32xbf16>
    %31 = arith.extf %30 : vector<8x16x32xbf16> to vector<8x16x32xf32>
    %32 = vector.shape_cast %29 : vector<8x16xf32> to vector<8x16x1xf32>
    %33 = vector.broadcast %32 : vector<8x16x1xf32> to vector<8x16x32xf32>
    %34 = arith.mulf %31, %33 : vector<8x16x32xf32>
    %cst_22 = arith.constant dense<0.000000e+00> : vector<8x32xf32>
    %35 = vector.multi_reduction <add>, %34, %cst_22 [1] : vector<8x16x32xf32> to vector<8x32xf32>
    %36 = arith.truncf %35 : vector<8x32xf32> to vector<8x32xbf16>
    %c0_23 = arith.constant 0 : index
    %c0_24 = arith.constant 0 : index
    %37 = vector.load %arg9[%c0_23, %c0_24] : memref<8x256xbf16, #tpu.memory_space<vmem>>, vector<8x32xbf16>
    tpu.vector_store %arg9[%c0_23, %c0_24], %36 {strides = array<i32>} : memref<8x256xbf16, #tpu.memory_space<vmem>>, vector<8x32xbf16>,
    %38 = arith.truncf %7 : vector<8x128xf32> to vector<8x128xbf16>
    %c0_25 = arith.constant 0 : index
    %c128 = arith.constant 128 : index
    %39 = vector.load %arg9[%c0_25, %c128] : memref<8x256xbf16, #tpu.memory_space<vmem>>, vector<8x128xbf16>
    tpu.vector_store %arg9[%c0_25, %c128], %38 {strides = array<i32>} : memref<8x256xbf16, #tpu.memory_space<vmem>>, vector<8x128xbf16>,
    %40 = arith.index_cast %c0_i32 : i32 to index
    %c0_26 = arith.constant 0 : index
    %c0_27 = arith.constant 0 : index
    %41 = vector.load %arg3[%40, %c0_26, %c0_27] : memref<8x8x512xbf16, #tpu.memory_space<vmem>>, vector<1x8x512xbf16>
    %42 = vector.shape_cast %41 : vector<1x8x512xbf16> to vector<8x512xbf16>
    %43 = arith.extf %42 : vector<8x512xbf16> to vector<8x512xf32>
    %c0_28 = arith.constant 0 : index
    %c0_29 = arith.constant 0 : index
    %44 = vector.load %arg9[%c0_28, %c0_29] : memref<8x256xbf16, #tpu.memory_space<vmem>>, vector<8x256xbf16>
    %c0_30 = arith.constant 0 : index
    %c0_31 = arith.constant 0 : index
    %45 = vector.load %arg6[%c0_30, %c0_31] : memref<256x512xbf16, #tpu.memory_space<vmem>>, vector<256x512xbf16>
    %cst_32 = arith.constant dense<0.000000e+00> : vector<8x512xf32>
    %46 = tpu.matmul %44, %45, %cst_32 {dimension_numbers = #tpu.dot_dimension_numbers<[1], [0], [0], [1], [0, 0, 1, 1], [], []>} : vector<8x256xbf16>, vector<256x512xbf16>, vector<8x512xf32> -> vector<8x512xf32>
    %47 = arith.addf %43, %46 : vector<8x512xf32>
    %48 = vector.extract_strided_slice %47 {offsets = [0, 0], sizes = [8, 128], strides = [1, 1]} : vector<8x512xf32> to vector<8x128xf32>
    %49 = arith.negf %48 : vector<8x128xf32>
    %50 = math.exp %49 : vector<8x128xf32>
    %cst_33 = arith.constant 1.000000e+00 : f32
    %51 = vector.broadcast %cst_33 : f32 to vector<8x128xf32>
    %52 = arith.addf %51, %50 : vector<8x128xf32>
    %53 = arith.divf %51, %52 : vector<8x128xf32>
    %54 = vector.extract_strided_slice %47 {offsets = [0, 128], sizes = [8, 128], strides = [1, 1]} : vector<8x512xf32> to vector<8x128xf32>
    %55 = arith.negf %54 : vector<8x128xf32>
    %56 = math.exp %55 : vector<8x128xf32>
    %cst_34 = arith.constant 1.000000e+00 : f32
    %57 = vector.broadcast %cst_34 : f32 to vector<8x128xf32>
    %58 = arith.addf %57, %56 : vector<8x128xf32>
    %59 = arith.divf %57, %58 : vector<8x128xf32>
    %60 = vector.extract_strided_slice %47 {offsets = [0, 256], sizes = [8, 128], strides = [1, 1]} : vector<8x512xf32> to vector<8x128xf32>
    %61 = math.tanh %60 : vector<8x128xf32>
    %62 = vector.extract_strided_slice %47 {offsets = [0, 384], sizes = [8, 128], strides = [1, 1]} : vector<8x512xf32> to vector<8x128xf32>
    %63 = arith.negf %62 : vector<8x128xf32>
    %64 = math.exp %63 : vector<8x128xf32>
    %cst_35 = arith.constant 1.000000e+00 : f32
    %65 = vector.broadcast %cst_35 : f32 to vector<8x128xf32>
    %66 = arith.addf %65, %64 : vector<8x128xf32>
    %67 = arith.divf %65, %66 : vector<8x128xf32>
    %68 = arith.mulf %59, %8 : vector<8x128xf32>
    %69 = arith.mulf %53, %61 : vector<8x128xf32>
    %70 = arith.addf %68, %69 : vector<8x128xf32>
    %71 = math.tanh %70 : vector<8x128xf32>
    %72 = arith.mulf %67, %71 : vector<8x128xf32>
    %73 = arith.index_cast %c0_i32 : i32 to index
    %c0_36 = arith.constant 0 : index
    %c0_37 = arith.constant 0 : index
    %74 = vector.load %arg7[%73, %c0_36, %c0_37] : memref<8x8x128xf32, #tpu.memory_space<vmem>>, vector<1x8x128xf32>
    %75 = vector.shape_cast %74 : vector<1x8x128xf32> to vector<8x128xf32>
    %76 = vector.shape_cast %72 : vector<8x128xf32> to vector<1x8x128xf32>
    tpu.vector_store %arg7[%73, %c0_36, %c0_37], %76 {strides = array<i32>} : memref<8x8x128xf32, #tpu.memory_space<vmem>>, vector<1x8x128xf32>,
    %77 = arith.index_cast %c0_i32 : i32 to index
    %c0_38 = arith.constant 0 : index
    %c0_39 = arith.constant 0 : index
    %78 = vector.load %arg8[%77, %c0_38, %c0_39] : memref<8x8x128xf32, #tpu.memory_space<vmem>>, vector<1x8x16xf32>
    %79 = vector.shape_cast %78 : vector<1x8x16xf32> to vector<8x16xf32>
    %80 = vector.shape_cast %29 : vector<8x16xf32> to vector<1x8x16xf32>
    tpu.vector_store %arg8[%77, %c0_38, %c0_39], %80 {strides = array<i32>} : memref<8x8x128xf32, #tpu.memory_space<vmem>>, vector<1x8x16xf32>,
    %c1_i32 = arith.constant 1 : i32
    %81 = arith.truncf %72 : vector<8x128xf32> to vector<8x128xbf16>
    %c0_40 = arith.constant 0 : index
    %c0_41 = arith.constant 0 : index
    %82 = vector.load %arg4[%c0_40, %c0_41] : memref<128x128xbf16, #tpu.memory_space<vmem>>, vector<128x128xbf16>
    %cst_42 = arith.constant dense<0.000000e+00> : vector<8x128xf32>
    %83 = tpu.matmul %81, %82, %cst_42 {dimension_numbers = #tpu.dot_dimension_numbers<[1], [0], [0], [1], [0, 0, 1, 1], [], []>} : vector<8x128xbf16>, vector<128x128xbf16>, vector<8x128xf32> -> vector<8x128xf32>
    %c0_43 = arith.constant 0 : index
    %c0_44 = arith.constant 0 : index
    %c0_45 = arith.constant 0 : index
    %84 = vector.load %arg1[%c0_43, %c0_44, %c0_45] : memref<8x16x128xbf16, #tpu.memory_space<vmem>>, vector<8x16x128xbf16>
    %85 = arith.extf %84 : vector<8x16x128xbf16> to vector<8x16x128xf32>
    %86 = vector.shape_cast %83 : vector<8x128xf32> to vector<8x1x128xf32>
    %87 = vector.broadcast %86 : vector<8x1x128xf32> to vector<8x16x128xf32>
    %88 = arith.addf %85, %87 : vector<8x16x128xf32>
    %89 = math.tanh %88 : vector<8x16x128xf32>
    %90 = arith.mulf %89, %6 : vector<8x16x128xf32>
    %cst_46 = arith.constant dense<0.000000e+00> : vector<8x16xf32>
    %91 = vector.multi_reduction <add>, %90, %cst_46 [2] : vector<8x16x128xf32> to vector<8x16xf32>
    %cst_47 = arith.constant dense<0xFF800000> : vector<8xf32>
    %92 = vector.multi_reduction <maximumf>, %91, %cst_47 [1] : vector<8x16xf32> to vector<8xf32>
    %93 = vector.shape_cast %92 : vector<8xf32> to vector<8x1xf32>
    %94 = vector.broadcast %93 : vector<8x1xf32> to vector<8x16xf32>
    %95 = arith.subf %91, %94 : vector<8x16xf32>
    %96 = math.exp %95 : vector<8x16xf32>
    %cst_48 = arith.constant dense<0.000000e+00> : vector<8xf32>
    %97 = vector.multi_reduction <add>, %96, %cst_48 [1] : vector<8x16xf32> to vector<8xf32>
    %98 = vector.shape_cast %97 : vector<8xf32> to vector<8x1xf32>
    %99 = tpu.reciprocal %98 {approx = true} : vector<8x1xf32> -> vector<8x1xf32>
    %100 = vector.broadcast %99 : vector<8x1xf32> to vector<8x16xf32>
    %101 = arith.mulf %96, %100 : vector<8x16xf32>
    %c0_49 = arith.constant 0 : index
    %c0_50 = arith.constant 0 : index
    %c0_51 = arith.constant 0 : index
    %102 = vector.load %arg2[%c0_49, %c0_50, %c0_51] : memref<8x16x32xbf16, #tpu.memory_space<vmem>>, vector<8x16x32xbf16>
    %103 = arith.extf %102 : vector<8x16x32xbf16> to vector<8x16x32xf32>
    %104 = vector.shape_cast %101 : vector<8x16xf32> to vector<8x16x1xf32>
    %105 = vector.broadcast %104 : vector<8x16x1xf32> to vector<8x16x32xf32>
    %106 = arith.mulf %103, %105 : vector<8x16x32xf32>
    %cst_52 = arith.constant dense<0.000000e+00> : vector<8x32xf32>
    %107 = vector.multi_reduction <add>, %106, %cst_52 [1] : vector<8x16x32xf32> to vector<8x32xf32>
    %108 = arith.truncf %107 : vector<8x32xf32> to vector<8x32xbf16>
    %c0_53 = arith.constant 0 : index
    %c0_54 = arith.constant 0 : index
    %109 = vector.load %arg9[%c0_53, %c0_54] : memref<8x256xbf16, #tpu.memory_space<vmem>>, vector<8x32xbf16>
    tpu.vector_store %arg9[%c0_53, %c0_54], %108 {strides = array<i32>} : memref<8x256xbf16, #tpu.memory_space<vmem>>, vector<8x32xbf16>,
    %110 = arith.truncf %72 : vector<8x128xf32> to vector<8x128xbf16>
    %c0_55 = arith.constant 0 : index
    %c128_56 = arith.constant 128 : index
    %111 = vector.load %arg9[%c0_55, %c128_56] : memref<8x256xbf16, #tpu.memory_space<vmem>>, vector<8x128xbf16>
    tpu.vector_store %arg9[%c0_55, %c128_56], %110 {strides = array<i32>} : memref<8x256xbf16, #tpu.memory_space<vmem>>, vector<8x128xbf16>,
    %112 = arith.index_cast %c1_i32 : i32 to index
    %c0_57 = arith.constant 0 : index
    %c0_58 = arith.constant 0 : index
    %113 = vector.load %arg3[%112, %c0_57, %c0_58] : memref<8x8x512xbf16, #tpu.memory_space<vmem>>, vector<1x8x512xbf16>
    %114 = vector.shape_cast %113 : vector<1x8x512xbf16> to vector<8x512xbf16>
    %115 = arith.extf %114 : vector<8x512xbf16> to vector<8x512xf32>
    %c0_59 = arith.constant 0 : index
    %c0_60 = arith.constant 0 : index
    %116 = vector.load %arg9[%c0_59, %c0_60] : memref<8x256xbf16, #tpu.memory_space<vmem>>, vector<8x256xbf16>
    %c0_61 = arith.constant 0 : index
    %c0_62 = arith.constant 0 : index
    %117 = vector.load %arg6[%c0_61, %c0_62] : memref<256x512xbf16, #tpu.memory_space<vmem>>, vector<256x512xbf16>
    %cst_63 = arith.constant dense<0.000000e+00> : vector<8x512xf32>
    %118 = tpu.matmul %116, %117, %cst_63 {dimension_numbers = #tpu.dot_dimension_numbers<[1], [0], [0], [1], [0, 0, 1, 1], [], []>} : vector<8x256xbf16>, vector<256x512xbf16>, vector<8x512xf32> -> vector<8x512xf32>
    %119 = arith.addf %115, %118 : vector<8x512xf32>
    %120 = vector.extract_strided_slice %119 {offsets = [0, 0], sizes = [8, 128], strides = [1, 1]} : vector<8x512xf32> to vector<8x128xf32>
    %121 = arith.negf %120 : vector<8x128xf32>
    %122 = math.exp %121 : vector<8x128xf32>
    %cst_64 = arith.constant 1.000000e+00 : f32
    %123 = vector.broadcast %cst_64 : f32 to vector<8x128xf32>
    %124 = arith.addf %123, %122 : vector<8x128xf32>
    %125 = arith.divf %123, %124 : vector<8x128xf32>
    %126 = vector.extract_strided_slice %119 {offsets = [0, 128], sizes = [8, 128], strides = [1, 1]} : vector<8x512xf32> to vector<8x128xf32>
    %127 = arith.negf %126 : vector<8x128xf32>
    %128 = math.exp %127 : vector<8x128xf32>
    %cst_65 = arith.constant 1.000000e+00 : f32
    %129 = vector.broadcast %cst_65 : f32 to vector<8x128xf32>
    %130 = arith.addf %129, %128 : vector<8x128xf32>
    %131 = arith.divf %129, %130 : vector<8x128xf32>
    %132 = vector.extract_strided_slice %119 {offsets = [0, 256], sizes = [8, 128], strides = [1, 1]} : vector<8x512xf32> to vector<8x128xf32>
    %133 = math.tanh %132 : vector<8x128xf32>
    %134 = vector.extract_strided_slice %119 {offsets = [0, 384], sizes = [8, 128], strides = [1, 1]} : vector<8x512xf32> to vector<8x128xf32>
    %135 = arith.negf %134 : vector<8x128xf32>
    %136 = math.exp %135 : vector<8x128xf32>
    %cst_66 = arith.constant 1.000000e+00 : f32
    %137 = vector.broadcast %cst_66 : f32 to vector<8x128xf32>
    %138 = arith.addf %137, %136 : vector<8x128xf32>
    %139 = arith.divf %137, %138 : vector<8x128xf32>
    %140 = arith.mulf %131, %70 : vector<8x128xf32>
    %141 = arith.mulf %125, %133 : vector<8x128xf32>
    %142 = arith.addf %140, %141 : vector<8x128xf32>
    %143 = math.tanh %142 : vector<8x128xf32>
    %144 = arith.mulf %139, %143 : vector<8x128xf32>
    %145 = arith.index_cast %c1_i32 : i32 to index
    %c0_67 = arith.constant 0 : index
    %c0_68 = arith.constant 0 : index
    %146 = vector.load %arg7[%145, %c0_67, %c0_68] : memref<8x8x128xf32, #tpu.memory_space<vmem>>, vector<1x8x128xf32>
    %147 = vector.shape_cast %146 : vector<1x8x128xf32> to vector<8x128xf32>
    %148 = vector.shape_cast %144 : vector<8x128xf32> to vector<1x8x128xf32>
    tpu.vector_store %arg7[%145, %c0_67, %c0_68], %148 {strides = array<i32>} : memref<8x8x128xf32, #tpu.memory_space<vmem>>, vector<1x8x128xf32>,
    %149 = arith.index_cast %c1_i32 : i32 to index
    %c0_69 = arith.constant 0 : index
    %c0_70 = arith.constant 0 : index
    %150 = vector.load %arg8[%149, %c0_69, %c0_70] : memref<8x8x128xf32, #tpu.memory_space<vmem>>, vector<1x8x16xf32>
    %151 = vector.shape_cast %150 : vector<1x8x16xf32> to vector<8x16xf32>
    %152 = vector.shape_cast %101 : vector<8x16xf32> to vector<1x8x16xf32>
    tpu.vector_store %arg8[%149, %c0_69, %c0_70], %152 {strides = array<i32>} : memref<8x8x128xf32, #tpu.memory_space<vmem>>, vector<1x8x16xf32>,
    %c2_i32 = arith.constant 2 : i32
    %153 = arith.truncf %144 : vector<8x128xf32> to vector<8x128xbf16>
    %c0_71 = arith.constant 0 : index
    %c0_72 = arith.constant 0 : index
    %154 = vector.load %arg4[%c0_71, %c0_72] : memref<128x128xbf16, #tpu.memory_space<vmem>>, vector<128x128xbf16>
    %cst_73 = arith.constant dense<0.000000e+00> : vector<8x128xf32>
    %155 = tpu.matmul %153, %154, %cst_73 {dimension_numbers = #tpu.dot_dimension_numbers<[1], [0], [0], [1], [0, 0, 1, 1], [], []>} : vector<8x128xbf16>, vector<128x128xbf16>, vector<8x128xf32> -> vector<8x128xf32>
    %c0_74 = arith.constant 0 : index
    %c0_75 = arith.constant 0 : index
    %c0_76 = arith.constant 0 : index
    %156 = vector.load %arg1[%c0_74, %c0_75, %c0_76] : memref<8x16x128xbf16, #tpu.memory_space<vmem>>, vector<8x16x128xbf16>
    %157 = arith.extf %156 : vector<8x16x128xbf16> to vector<8x16x128xf32>
    %158 = vector.shape_cast %155 : vector<8x128xf32> to vector<8x1x128xf32>
    %159 = vector.broadcast %158 : vector<8x1x128xf32> to vector<8x16x128xf32>
    %160 = arith.addf %157, %159 : vector<8x16x128xf32>
    %161 = math.tanh %160 : vector<8x16x128xf32>
    %162 = arith.mulf %161, %6 : vector<8x16x128xf32>
    %cst_77 = arith.constant dense<0.000000e+00> : vector<8x16xf32>
    %163 = vector.multi_reduction <add>, %162, %cst_77 [2] : vector<8x16x128xf32> to vector<8x16xf32>
    %cst_78 = arith.constant dense<0xFF800000> : vector<8xf32>
    %164 = vector.multi_reduction <maximumf>, %163, %cst_78 [1] : vector<8x16xf32> to vector<8xf32>
    %165 = vector.shape_cast %164 : vector<8xf32> to vector<8x1xf32>
    %166 = vector.broadcast %165 : vector<8x1xf32> to vector<8x16xf32>
    %167 = arith.subf %163, %166 : vector<8x16xf32>
    %168 = math.exp %167 : vector<8x16xf32>
    %cst_79 = arith.constant dense<0.000000e+00> : vector<8xf32>
    %169 = vector.multi_reduction <add>, %168, %cst_79 [1] : vector<8x16xf32> to vector<8xf32>
    %170 = vector.shape_cast %169 : vector<8xf32> to vector<8x1xf32>
    %171 = tpu.reciprocal %170 {approx = true} : vector<8x1xf32> -> vector<8x1xf32>
    %172 = vector.broadcast %171 : vector<8x1xf32> to vector<8x16xf32>
    %173 = arith.mulf %168, %172 : vector<8x16xf32>
    %c0_80 = arith.constant 0 : index
    %c0_81 = arith.constant 0 : index
    %c0_82 = arith.constant 0 : index
    %174 = vector.load %arg2[%c0_80, %c0_81, %c0_82] : memref<8x16x32xbf16, #tpu.memory_space<vmem>>, vector<8x16x32xbf16>
    %175 = arith.extf %174 : vector<8x16x32xbf16> to vector<8x16x32xf32>
    %176 = vector.shape_cast %173 : vector<8x16xf32> to vector<8x16x1xf32>
    %177 = vector.broadcast %176 : vector<8x16x1xf32> to vector<8x16x32xf32>
    %178 = arith.mulf %175, %177 : vector<8x16x32xf32>
    %cst_83 = arith.constant dense<0.000000e+00> : vector<8x32xf32>
    %179 = vector.multi_reduction <add>, %178, %cst_83 [1] : vector<8x16x32xf32> to vector<8x32xf32>
    %180 = arith.truncf %179 : vector<8x32xf32> to vector<8x32xbf16>
    %c0_84 = arith.constant 0 : index
    %c0_85 = arith.constant 0 : index
    %181 = vector.load %arg9[%c0_84, %c0_85] : memref<8x256xbf16, #tpu.memory_space<vmem>>, vector<8x32xbf16>
    tpu.vector_store %arg9[%c0_84, %c0_85], %180 {strides = array<i32>} : memref<8x256xbf16, #tpu.memory_space<vmem>>, vector<8x32xbf16>,
    %182 = arith.truncf %144 : vector<8x128xf32> to vector<8x128xbf16>
    %c0_86 = arith.constant 0 : index
    %c128_87 = arith.constant 128 : index
    %183 = vector.load %arg9[%c0_86, %c128_87] : memref<8x256xbf16, #tpu.memory_space<vmem>>, vector<8x128xbf16>
    tpu.vector_store %arg9[%c0_86, %c128_87], %182 {strides = array<i32>} : memref<8x256xbf16, #tpu.memory_space<vmem>>, vector<8x128xbf16>,
    %184 = arith.index_cast %c2_i32 : i32 to index
    %c0_88 = arith.constant 0 : index
    %c0_89 = arith.constant 0 : index
    %185 = vector.load %arg3[%184, %c0_88, %c0_89] : memref<8x8x512xbf16, #tpu.memory_space<vmem>>, vector<1x8x512xbf16>
    %186 = vector.shape_cast %185 : vector<1x8x512xbf16> to vector<8x512xbf16>
    %187 = arith.extf %186 : vector<8x512xbf16> to vector<8x512xf32>
    %c0_90 = arith.constant 0 : index
    %c0_91 = arith.constant 0 : index
    %188 = vector.load %arg9[%c0_90, %c0_91] : memref<8x256xbf16, #tpu.memory_space<vmem>>, vector<8x256xbf16>
    %c0_92 = arith.constant 0 : index
    %c0_93 = arith.constant 0 : index
    %189 = vector.load %arg6[%c0_92, %c0_93] : memref<256x512xbf16, #tpu.memory_space<vmem>>, vector<256x512xbf16>
    %cst_94 = arith.constant dense<0.000000e+00> : vector<8x512xf32>
    %190 = tpu.matmul %188, %189, %cst_94 {dimension_numbers = #tpu.dot_dimension_numbers<[1], [0], [0], [1], [0, 0, 1, 1], [], []>} : vector<8x256xbf16>, vector<256x512xbf16>, vector<8x512xf32> -> vector<8x512xf32>
    %191 = arith.addf %187, %190 : vector<8x512xf32>
    %192 = vector.extract_strided_slice %191 {offsets = [0, 0], sizes = [8, 128], strides = [1, 1]} : vector<8x512xf32> to vector<8x128xf32>
    %193 = arith.negf %192 : vector<8x128xf32>
    %194 = math.exp %193 : vector<8x128xf32>
    %cst_95 = arith.constant 1.000000e+00 : f32
    %195 = vector.broadcast %cst_95 : f32 to vector<8x128xf32>
    %196 = arith.addf %195, %194 : vector<8x128xf32>
    %197 = arith.divf %195, %196 : vector<8x128xf32>
    %198 = vector.extract_strided_slice %191 {offsets = [0, 128], sizes = [8, 128], strides = [1, 1]} : vector<8x512xf32> to vector<8x128xf32>
    %199 = arith.negf %198 : vector<8x128xf32>
    %200 = math.exp %199 : vector<8x128xf32>
    %cst_96 = arith.constant 1.000000e+00 : f32
    %201 = vector.broadcast %cst_96 : f32 to vector<8x128xf32>
    %202 = arith.addf %201, %200 : vector<8x128xf32>
    %203 = arith.divf %201, %202 : vector<8x128xf32>
    %204 = vector.extract_strided_slice %191 {offsets = [0, 256], sizes = [8, 128], strides = [1, 1]} : vector<8x512xf32> to vector<8x128xf32>
    %205 = math.tanh %204 : vector<8x128xf32>
    %206 = vector.extract_strided_slice %191 {offsets = [0, 384], sizes = [8, 128], strides = [1, 1]} : vector<8x512xf32> to vector<8x128xf32>
    %207 = arith.negf %206 : vector<8x128xf32>
    %208 = math.exp %207 : vector<8x128xf32>
    %cst_97 = arith.constant 1.000000e+00 : f32
    %209 = vector.broadcast %cst_97 : f32 to vector<8x128xf32>
    %210 = arith.addf %209, %208 : vector<8x128xf32>
    %211 = arith.divf %209, %210 : vector<8x128xf32>
    %212 = arith.mulf %203, %142 : vector<8x128xf32>
    %213 = arith.mulf %197, %205 : vector<8x128xf32>
    %214 = arith.addf %212, %213 : vector<8x128xf32>
    %215 = math.tanh %214 : vector<8x128xf32>
    %216 = arith.mulf %211, %215 : vector<8x128xf32>
    %217 = arith.index_cast %c2_i32 : i32 to index
    %c0_98 = arith.constant 0 : index
    %c0_99 = arith.constant 0 : index
    %218 = vector.load %arg7[%217, %c0_98, %c0_99] : memref<8x8x128xf32, #tpu.memory_space<vmem>>, vector<1x8x128xf32>
    %219 = vector.shape_cast %218 : vector<1x8x128xf32> to vector<8x128xf32>
    %220 = vector.shape_cast %216 : vector<8x128xf32> to vector<1x8x128xf32>
    tpu.vector_store %arg7[%217, %c0_98, %c0_99], %220 {strides = array<i32>} : memref<8x8x128xf32, #tpu.memory_space<vmem>>, vector<1x8x128xf32>,
    %221 = arith.index_cast %c2_i32 : i32 to index
    %c0_100 = arith.constant 0 : index
    %c0_101 = arith.constant 0 : index
    %222 = vector.load %arg8[%221, %c0_100, %c0_101] : memref<8x8x128xf32, #tpu.memory_space<vmem>>, vector<1x8x16xf32>
    %223 = vector.shape_cast %222 : vector<1x8x16xf32> to vector<8x16xf32>
    %224 = vector.shape_cast %173 : vector<8x16xf32> to vector<1x8x16xf32>
    tpu.vector_store %arg8[%221, %c0_100, %c0_101], %224 {strides = array<i32>} : memref<8x8x128xf32, #tpu.memory_space<vmem>>, vector<1x8x16xf32>,
    %c3_i32 = arith.constant 3 : i32
    %225 = arith.truncf %216 : vector<8x128xf32> to vector<8x128xbf16>
    %c0_102 = arith.constant 0 : index
    %c0_103 = arith.constant 0 : index
    %226 = vector.load %arg4[%c0_102, %c0_103] : memref<128x128xbf16, #tpu.memory_space<vmem>>, vector<128x128xbf16>
    %cst_104 = arith.constant dense<0.000000e+00> : vector<8x128xf32>
    %227 = tpu.matmul %225, %226, %cst_104 {dimension_numbers = #tpu.dot_dimension_numbers<[1], [0], [0], [1], [0, 0, 1, 1], [], []>} : vector<8x128xbf16>, vector<128x128xbf16>, vector<8x128xf32> -> vector<8x128xf32>
    %c0_105 = arith.constant 0 : index
    %c0_106 = arith.constant 0 : index
    %c0_107 = arith.constant 0 : index
    %228 = vector.load %arg1[%c0_105, %c0_106, %c0_107] : memref<8x16x128xbf16, #tpu.memory_space<vmem>>, vector<8x16x128xbf16>
    %229 = arith.extf %228 : vector<8x16x128xbf16> to vector<8x16x128xf32>
    %230 = vector.shape_cast %227 : vector<8x128xf32> to vector<8x1x128xf32>
    %231 = vector.broadcast %230 : vector<8x1x128xf32> to vector<8x16x128xf32>
    %232 = arith.addf %229, %231 : vector<8x16x128xf32>
    %233 = math.tanh %232 : vector<8x16x128xf32>
    %234 = arith.mulf %233, %6 : vector<8x16x128xf32>
    %cst_108 = arith.constant dense<0.000000e+00> : vector<8x16xf32>
    %235 = vector.multi_reduction <add>, %234, %cst_108 [2] : vector<8x16x128xf32> to vector<8x16xf32>
    %cst_109 = arith.constant dense<0xFF800000> : vector<8xf32>
    %236 = vector.multi_reduction <maximumf>, %235, %cst_109 [1] : vector<8x16xf32> to vector<8xf32>
    %237 = vector.shape_cast %236 : vector<8xf32> to vector<8x1xf32>
    %238 = vector.broadcast %237 : vector<8x1xf32> to vector<8x16xf32>
    %239 = arith.subf %235, %238 : vector<8x16xf32>
    %240 = math.exp %239 : vector<8x16xf32>
    %cst_110 = arith.constant dense<0.000000e+00> : vector<8xf32>
    %241 = vector.multi_reduction <add>, %240, %cst_110 [1] : vector<8x16xf32> to vector<8xf32>
    %242 = vector.shape_cast %241 : vector<8xf32> to vector<8x1xf32>
    %243 = tpu.reciprocal %242 {approx = true} : vector<8x1xf32> -> vector<8x1xf32>
    %244 = vector.broadcast %243 : vector<8x1xf32> to vector<8x16xf32>
    %245 = arith.mulf %240, %244 : vector<8x16xf32>
    %c0_111 = arith.constant 0 : index
    %c0_112 = arith.constant 0 : index
    %c0_113 = arith.constant 0 : index
    %246 = vector.load %arg2[%c0_111, %c0_112, %c0_113] : memref<8x16x32xbf16, #tpu.memory_space<vmem>>, vector<8x16x32xbf16>
    %247 = arith.extf %246 : vector<8x16x32xbf16> to vector<8x16x32xf32>
    %248 = vector.shape_cast %245 : vector<8x16xf32> to vector<8x16x1xf32>
    %249 = vector.broadcast %248 : vector<8x16x1xf32> to vector<8x16x32xf32>
    %250 = arith.mulf %247, %249 : vector<8x16x32xf32>
    %cst_114 = arith.constant dense<0.000000e+00> : vector<8x32xf32>
    %251 = vector.multi_reduction <add>, %250, %cst_114 [1] : vector<8x16x32xf32> to vector<8x32xf32>
    %252 = arith.truncf %251 : vector<8x32xf32> to vector<8x32xbf16>
    %c0_115 = arith.constant 0 : index
    %c0_116 = arith.constant 0 : index
    %253 = vector.load %arg9[%c0_115, %c0_116] : memref<8x256xbf16, #tpu.memory_space<vmem>>, vector<8x32xbf16>
    tpu.vector_store %arg9[%c0_115, %c0_116], %252 {strides = array<i32>} : memref<8x256xbf16, #tpu.memory_space<vmem>>, vector<8x32xbf16>,
    %254 = arith.truncf %216 : vector<8x128xf32> to vector<8x128xbf16>
    %c0_117 = arith.constant 0 : index
    %c128_118 = arith.constant 128 : index
    %255 = vector.load %arg9[%c0_117, %c128_118] : memref<8x256xbf16, #tpu.memory_space<vmem>>, vector<8x128xbf16>
    tpu.vector_store %arg9[%c0_117, %c128_118], %254 {strides = array<i32>} : memref<8x256xbf16, #tpu.memory_space<vmem>>, vector<8x128xbf16>,
    %256 = arith.index_cast %c3_i32 : i32 to index
    %c0_119 = arith.constant 0 : index
    %c0_120 = arith.constant 0 : index
    %257 = vector.load %arg3[%256, %c0_119, %c0_120] : memref<8x8x512xbf16, #tpu.memory_space<vmem>>, vector<1x8x512xbf16>
    %258 = vector.shape_cast %257 : vector<1x8x512xbf16> to vector<8x512xbf16>
    %259 = arith.extf %258 : vector<8x512xbf16> to vector<8x512xf32>
    %c0_121 = arith.constant 0 : index
    %c0_122 = arith.constant 0 : index
    %260 = vector.load %arg9[%c0_121, %c0_122] : memref<8x256xbf16, #tpu.memory_space<vmem>>, vector<8x256xbf16>
    %c0_123 = arith.constant 0 : index
    %c0_124 = arith.constant 0 : index
    %261 = vector.load %arg6[%c0_123, %c0_124] : memref<256x512xbf16, #tpu.memory_space<vmem>>, vector<256x512xbf16>
    %cst_125 = arith.constant dense<0.000000e+00> : vector<8x512xf32>
    %262 = tpu.matmul %260, %261, %cst_125 {dimension_numbers = #tpu.dot_dimension_numbers<[1], [0], [0], [1], [0, 0, 1, 1], [], []>} : vector<8x256xbf16>, vector<256x512xbf16>, vector<8x512xf32> -> vector<8x512xf32>
    %263 = arith.addf %259, %262 : vector<8x512xf32>
    %264 = vector.extract_strided_slice %263 {offsets = [0, 0], sizes = [8, 128], strides = [1, 1]} : vector<8x512xf32> to vector<8x128xf32>
    %265 = arith.negf %264 : vector<8x128xf32>
    %266 = math.exp %265 : vector<8x128xf32>
    %cst_126 = arith.constant 1.000000e+00 : f32
    %267 = vector.broadcast %cst_126 : f32 to vector<8x128xf32>
    %268 = arith.addf %267, %266 : vector<8x128xf32>
    %269 = arith.divf %267, %268 : vector<8x128xf32>
    %270 = vector.extract_strided_slice %263 {offsets = [0, 128], sizes = [8, 128], strides = [1, 1]} : vector<8x512xf32> to vector<8x128xf32>
    %271 = arith.negf %270 : vector<8x128xf32>
    %272 = math.exp %271 : vector<8x128xf32>
    %cst_127 = arith.constant 1.000000e+00 : f32
    %273 = vector.broadcast %cst_127 : f32 to vector<8x128xf32>
    %274 = arith.addf %273, %272 : vector<8x128xf32>
    %275 = arith.divf %273, %274 : vector<8x128xf32>
    %276 = vector.extract_strided_slice %263 {offsets = [0, 256], sizes = [8, 128], strides = [1, 1]} : vector<8x512xf32> to vector<8x128xf32>
    %277 = math.tanh %276 : vector<8x128xf32>
    %278 = vector.extract_strided_slice %263 {offsets = [0, 384], sizes = [8, 128], strides = [1, 1]} : vector<8x512xf32> to vector<8x128xf32>
    %279 = arith.negf %278 : vector<8x128xf32>
    %280 = math.exp %279 : vector<8x128xf32>
    %cst_128 = arith.constant 1.000000e+00 : f32
    %281 = vector.broadcast %cst_128 : f32 to vector<8x128xf32>
    %282 = arith.addf %281, %280 : vector<8x128xf32>
    %283 = arith.divf %281, %282 : vector<8x128xf32>
    %284 = arith.mulf %275, %214 : vector<8x128xf32>
    %285 = arith.mulf %269, %277 : vector<8x128xf32>
    %286 = arith.addf %284, %285 : vector<8x128xf32>
    %287 = math.tanh %286 : vector<8x128xf32>
    %288 = arith.mulf %283, %287 : vector<8x128xf32>
    %289 = arith.index_cast %c3_i32 : i32 to index
    %c0_129 = arith.constant 0 : index
    %c0_130 = arith.constant 0 : index
    %290 = vector.load %arg7[%289, %c0_129, %c0_130] : memref<8x8x128xf32, #tpu.memory_space<vmem>>, vector<1x8x128xf32>
    %291 = vector.shape_cast %290 : vector<1x8x128xf32> to vector<8x128xf32>
    %292 = vector.shape_cast %288 : vector<8x128xf32> to vector<1x8x128xf32>
    tpu.vector_store %arg7[%289, %c0_129, %c0_130], %292 {strides = array<i32>} : memref<8x8x128xf32, #tpu.memory_space<vmem>>, vector<1x8x128xf32>,
    %293 = arith.index_cast %c3_i32 : i32 to index
    %c0_131 = arith.constant 0 : index
    %c0_132 = arith.constant 0 : index
    %294 = vector.load %arg8[%293, %c0_131, %c0_132] : memref<8x8x128xf32, #tpu.memory_space<vmem>>, vector<1x8x16xf32>
    %295 = vector.shape_cast %294 : vector<1x8x16xf32> to vector<8x16xf32>
    %296 = vector.shape_cast %245 : vector<8x16xf32> to vector<1x8x16xf32>
    tpu.vector_store %arg8[%293, %c0_131, %c0_132], %296 {strides = array<i32>} : memref<8x8x128xf32, #tpu.memory_space<vmem>>, vector<1x8x16xf32>,
    %c4_i32 = arith.constant 4 : i32
    %297 = arith.truncf %288 : vector<8x128xf32> to vector<8x128xbf16>
    %c0_133 = arith.constant 0 : index
    %c0_134 = arith.constant 0 : index
    %298 = vector.load %arg4[%c0_133, %c0_134] : memref<128x128xbf16, #tpu.memory_space<vmem>>, vector<128x128xbf16>
    %cst_135 = arith.constant dense<0.000000e+00> : vector<8x128xf32>
    %299 = tpu.matmul %297, %298, %cst_135 {dimension_numbers = #tpu.dot_dimension_numbers<[1], [0], [0], [1], [0, 0, 1, 1], [], []>} : vector<8x128xbf16>, vector<128x128xbf16>, vector<8x128xf32> -> vector<8x128xf32>
    %c0_136 = arith.constant 0 : index
    %c0_137 = arith.constant 0 : index
    %c0_138 = arith.constant 0 : index
    %300 = vector.load %arg1[%c0_136, %c0_137, %c0_138] : memref<8x16x128xbf16, #tpu.memory_space<vmem>>, vector<8x16x128xbf16>
    %301 = arith.extf %300 : vector<8x16x128xbf16> to vector<8x16x128xf32>
    %302 = vector.shape_cast %299 : vector<8x128xf32> to vector<8x1x128xf32>
    %303 = vector.broadcast %302 : vector<8x1x128xf32> to vector<8x16x128xf32>
    %304 = arith.addf %301, %303 : vector<8x16x128xf32>
    %305 = math.tanh %304 : vector<8x16x128xf32>
    %306 = arith.mulf %305, %6 : vector<8x16x128xf32>
    %cst_139 = arith.constant dense<0.000000e+00> : vector<8x16xf32>
    %307 = vector.multi_reduction <add>, %306, %cst_139 [2] : vector<8x16x128xf32> to vector<8x16xf32>
    %cst_140 = arith.constant dense<0xFF800000> : vector<8xf32>
    %308 = vector.multi_reduction <maximumf>, %307, %cst_140 [1] : vector<8x16xf32> to vector<8xf32>
    %309 = vector.shape_cast %308 : vector<8xf32> to vector<8x1xf32>
    %310 = vector.broadcast %309 : vector<8x1xf32> to vector<8x16xf32>
    %311 = arith.subf %307, %310 : vector<8x16xf32>
    %312 = math.exp %311 : vector<8x16xf32>
    %cst_141 = arith.constant dense<0.000000e+00> : vector<8xf32>
    %313 = vector.multi_reduction <add>, %312, %cst_141 [1] : vector<8x16xf32> to vector<8xf32>
    %314 = vector.shape_cast %313 : vector<8xf32> to vector<8x1xf32>
    %315 = tpu.reciprocal %314 {approx = true} : vector<8x1xf32> -> vector<8x1xf32>
    %316 = vector.broadcast %315 : vector<8x1xf32> to vector<8x16xf32>
    %317 = arith.mulf %312, %316 : vector<8x16xf32>
    %c0_142 = arith.constant 0 : index
    %c0_143 = arith.constant 0 : index
    %c0_144 = arith.constant 0 : index
    %318 = vector.load %arg2[%c0_142, %c0_143, %c0_144] : memref<8x16x32xbf16, #tpu.memory_space<vmem>>, vector<8x16x32xbf16>
    %319 = arith.extf %318 : vector<8x16x32xbf16> to vector<8x16x32xf32>
    %320 = vector.shape_cast %317 : vector<8x16xf32> to vector<8x16x1xf32>
    %321 = vector.broadcast %320 : vector<8x16x1xf32> to vector<8x16x32xf32>
    %322 = arith.mulf %319, %321 : vector<8x16x32xf32>
    %cst_145 = arith.constant dense<0.000000e+00> : vector<8x32xf32>
    %323 = vector.multi_reduction <add>, %322, %cst_145 [1] : vector<8x16x32xf32> to vector<8x32xf32>
    %324 = arith.truncf %323 : vector<8x32xf32> to vector<8x32xbf16>
    %c0_146 = arith.constant 0 : index
    %c0_147 = arith.constant 0 : index
    %325 = vector.load %arg9[%c0_146, %c0_147] : memref<8x256xbf16, #tpu.memory_space<vmem>>, vector<8x32xbf16>
    tpu.vector_store %arg9[%c0_146, %c0_147], %324 {strides = array<i32>} : memref<8x256xbf16, #tpu.memory_space<vmem>>, vector<8x32xbf16>,
    %326 = arith.truncf %288 : vector<8x128xf32> to vector<8x128xbf16>
    %c0_148 = arith.constant 0 : index
    %c128_149 = arith.constant 128 : index
    %327 = vector.load %arg9[%c0_148, %c128_149] : memref<8x256xbf16, #tpu.memory_space<vmem>>, vector<8x128xbf16>
    tpu.vector_store %arg9[%c0_148, %c128_149], %326 {strides = array<i32>} : memref<8x256xbf16, #tpu.memory_space<vmem>>, vector<8x128xbf16>,
    %328 = arith.index_cast %c4_i32 : i32 to index
    %c0_150 = arith.constant 0 : index
    %c0_151 = arith.constant 0 : index
    %329 = vector.load %arg3[%328, %c0_150, %c0_151] : memref<8x8x512xbf16, #tpu.memory_space<vmem>>, vector<1x8x512xbf16>
    %330 = vector.shape_cast %329 : vector<1x8x512xbf16> to vector<8x512xbf16>
    %331 = arith.extf %330 : vector<8x512xbf16> to vector<8x512xf32>
    %c0_152 = arith.constant 0 : index
    %c0_153 = arith.constant 0 : index
    %332 = vector.load %arg9[%c0_152, %c0_153] : memref<8x256xbf16, #tpu.memory_space<vmem>>, vector<8x256xbf16>
    %c0_154 = arith.constant 0 : index
    %c0_155 = arith.constant 0 : index
    %333 = vector.load %arg6[%c0_154, %c0_155] : memref<256x512xbf16, #tpu.memory_space<vmem>>, vector<256x512xbf16>
    %cst_156 = arith.constant dense<0.000000e+00> : vector<8x512xf32>
    %334 = tpu.matmul %332, %333, %cst_156 {dimension_numbers = #tpu.dot_dimension_numbers<[1], [0], [0], [1], [0, 0, 1, 1], [], []>} : vector<8x256xbf16>, vector<256x512xbf16>, vector<8x512xf32> -> vector<8x512xf32>
    %335 = arith.addf %331, %334 : vector<8x512xf32>
    %336 = vector.extract_strided_slice %335 {offsets = [0, 0], sizes = [8, 128], strides = [1, 1]} : vector<8x512xf32> to vector<8x128xf32>
    %337 = arith.negf %336 : vector<8x128xf32>
    %338 = math.exp %337 : vector<8x128xf32>
    %cst_157 = arith.constant 1.000000e+00 : f32
    %339 = vector.broadcast %cst_157 : f32 to vector<8x128xf32>
    %340 = arith.addf %339, %338 : vector<8x128xf32>
    %341 = arith.divf %339, %340 : vector<8x128xf32>
    %342 = vector.extract_strided_slice %335 {offsets = [0, 128], sizes = [8, 128], strides = [1, 1]} : vector<8x512xf32> to vector<8x128xf32>
    %343 = arith.negf %342 : vector<8x128xf32>
    %344 = math.exp %343 : vector<8x128xf32>
    %cst_158 = arith.constant 1.000000e+00 : f32
    %345 = vector.broadcast %cst_158 : f32 to vector<8x128xf32>
    %346 = arith.addf %345, %344 : vector<8x128xf32>
    %347 = arith.divf %345, %346 : vector<8x128xf32>
    %348 = vector.extract_strided_slice %335 {offsets = [0, 256], sizes = [8, 128], strides = [1, 1]} : vector<8x512xf32> to vector<8x128xf32>
    %349 = math.tanh %348 : vector<8x128xf32>
    %350 = vector.extract_strided_slice %335 {offsets = [0, 384], sizes = [8, 128], strides = [1, 1]} : vector<8x512xf32> to vector<8x128xf32>
    %351 = arith.negf %350 : vector<8x128xf32>
    %352 = math.exp %351 : vector<8x128xf32>
    %cst_159 = arith.constant 1.000000e+00 : f32
    %353 = vector.broadcast %cst_159 : f32 to vector<8x128xf32>
    %354 = arith.addf %353, %352 : vector<8x128xf32>
    %355 = arith.divf %353, %354 : vector<8x128xf32>
    %356 = arith.mulf %347, %286 : vector<8x128xf32>
    %357 = arith.mulf %341, %349 : vector<8x128xf32>
    %358 = arith.addf %356, %357 : vector<8x128xf32>
    %359 = math.tanh %358 : vector<8x128xf32>
    %360 = arith.mulf %355, %359 : vector<8x128xf32>
    %361 = arith.index_cast %c4_i32 : i32 to index
    %c0_160 = arith.constant 0 : index
    %c0_161 = arith.constant 0 : index
    %362 = vector.load %arg7[%361, %c0_160, %c0_161] : memref<8x8x128xf32, #tpu.memory_space<vmem>>, vector<1x8x128xf32>
    %363 = vector.shape_cast %362 : vector<1x8x128xf32> to vector<8x128xf32>
    %364 = vector.shape_cast %360 : vector<8x128xf32> to vector<1x8x128xf32>
    tpu.vector_store %arg7[%361, %c0_160, %c0_161], %364 {strides = array<i32>} : memref<8x8x128xf32, #tpu.memory_space<vmem>>, vector<1x8x128xf32>,
    %365 = arith.index_cast %c4_i32 : i32 to index
    %c0_162 = arith.constant 0 : index
    %c0_163 = arith.constant 0 : index
    %366 = vector.load %arg8[%365, %c0_162, %c0_163] : memref<8x8x128xf32, #tpu.memory_space<vmem>>, vector<1x8x16xf32>
    %367 = vector.shape_cast %366 : vector<1x8x16xf32> to vector<8x16xf32>
    %368 = vector.shape_cast %317 : vector<8x16xf32> to vector<1x8x16xf32>
    tpu.vector_store %arg8[%365, %c0_162, %c0_163], %368 {strides = array<i32>} : memref<8x8x128xf32, #tpu.memory_space<vmem>>, vector<1x8x16xf32>,
    %c5_i32 = arith.constant 5 : i32
    %369 = arith.truncf %360 : vector<8x128xf32> to vector<8x128xbf16>
    %c0_164 = arith.constant 0 : index
    %c0_165 = arith.constant 0 : index
    %370 = vector.load %arg4[%c0_164, %c0_165] : memref<128x128xbf16, #tpu.memory_space<vmem>>, vector<128x128xbf16>
    %cst_166 = arith.constant dense<0.000000e+00> : vector<8x128xf32>
    %371 = tpu.matmul %369, %370, %cst_166 {dimension_numbers = #tpu.dot_dimension_numbers<[1], [0], [0], [1], [0, 0, 1, 1], [], []>} : vector<8x128xbf16>, vector<128x128xbf16>, vector<8x128xf32> -> vector<8x128xf32>
    %c0_167 = arith.constant 0 : index
    %c0_168 = arith.constant 0 : index
    %c0_169 = arith.constant 0 : index
    %372 = vector.load %arg1[%c0_167, %c0_168, %c0_169] : memref<8x16x128xbf16, #tpu.memory_space<vmem>>, vector<8x16x128xbf16>
    %373 = arith.extf %372 : vector<8x16x128xbf16> to vector<8x16x128xf32>
    %374 = vector.shape_cast %371 : vector<8x128xf32> to vector<8x1x128xf32>
    %375 = vector.broadcast %374 : vector<8x1x128xf32> to vector<8x16x128xf32>
    %376 = arith.addf %373, %375 : vector<8x16x128xf32>
    %377 = math.tanh %376 : vector<8x16x128xf32>
    %378 = arith.mulf %377, %6 : vector<8x16x128xf32>
    %cst_170 = arith.constant dense<0.000000e+00> : vector<8x16xf32>
    %379 = vector.multi_reduction <add>, %378, %cst_170 [2] : vector<8x16x128xf32> to vector<8x16xf32>
    %cst_171 = arith.constant dense<0xFF800000> : vector<8xf32>
    %380 = vector.multi_reduction <maximumf>, %379, %cst_171 [1] : vector<8x16xf32> to vector<8xf32>
    %381 = vector.shape_cast %380 : vector<8xf32> to vector<8x1xf32>
    %382 = vector.broadcast %381 : vector<8x1xf32> to vector<8x16xf32>
    %383 = arith.subf %379, %382 : vector<8x16xf32>
    %384 = math.exp %383 : vector<8x16xf32>
    %cst_172 = arith.constant dense<0.000000e+00> : vector<8xf32>
    %385 = vector.multi_reduction <add>, %384, %cst_172 [1] : vector<8x16xf32> to vector<8xf32>
    %386 = vector.shape_cast %385 : vector<8xf32> to vector<8x1xf32>
    %387 = tpu.reciprocal %386 {approx = true} : vector<8x1xf32> -> vector<8x1xf32>
    %388 = vector.broadcast %387 : vector<8x1xf32> to vector<8x16xf32>
    %389 = arith.mulf %384, %388 : vector<8x16xf32>
    %c0_173 = arith.constant 0 : index
    %c0_174 = arith.constant 0 : index
    %c0_175 = arith.constant 0 : index
    %390 = vector.load %arg2[%c0_173, %c0_174, %c0_175] : memref<8x16x32xbf16, #tpu.memory_space<vmem>>, vector<8x16x32xbf16>
    %391 = arith.extf %390 : vector<8x16x32xbf16> to vector<8x16x32xf32>
    %392 = vector.shape_cast %389 : vector<8x16xf32> to vector<8x16x1xf32>
    %393 = vector.broadcast %392 : vector<8x16x1xf32> to vector<8x16x32xf32>
    %394 = arith.mulf %391, %393 : vector<8x16x32xf32>
    %cst_176 = arith.constant dense<0.000000e+00> : vector<8x32xf32>
    %395 = vector.multi_reduction <add>, %394, %cst_176 [1] : vector<8x16x32xf32> to vector<8x32xf32>
    %396 = arith.truncf %395 : vector<8x32xf32> to vector<8x32xbf16>
    %c0_177 = arith.constant 0 : index
    %c0_178 = arith.constant 0 : index
    %397 = vector.load %arg9[%c0_177, %c0_178] : memref<8x256xbf16, #tpu.memory_space<vmem>>, vector<8x32xbf16>
    tpu.vector_store %arg9[%c0_177, %c0_178], %396 {strides = array<i32>} : memref<8x256xbf16, #tpu.memory_space<vmem>>, vector<8x32xbf16>,
    %398 = arith.truncf %360 : vector<8x128xf32> to vector<8x128xbf16>
    %c0_179 = arith.constant 0 : index
    %c128_180 = arith.constant 128 : index
    %399 = vector.load %arg9[%c0_179, %c128_180] : memref<8x256xbf16, #tpu.memory_space<vmem>>, vector<8x128xbf16>
    tpu.vector_store %arg9[%c0_179, %c128_180], %398 {strides = array<i32>} : memref<8x256xbf16, #tpu.memory_space<vmem>>, vector<8x128xbf16>,
    %400 = arith.index_cast %c5_i32 : i32 to index
    %c0_181 = arith.constant 0 : index
    %c0_182 = arith.constant 0 : index
    %401 = vector.load %arg3[%400, %c0_181, %c0_182] : memref<8x8x512xbf16, #tpu.memory_space<vmem>>, vector<1x8x512xbf16>
    %402 = vector.shape_cast %401 : vector<1x8x512xbf16> to vector<8x512xbf16>
    %403 = arith.extf %402 : vector<8x512xbf16> to vector<8x512xf32>
    %c0_183 = arith.constant 0 : index
    %c0_184 = arith.constant 0 : index
    %404 = vector.load %arg9[%c0_183, %c0_184] : memref<8x256xbf16, #tpu.memory_space<vmem>>, vector<8x256xbf16>
    %c0_185 = arith.constant 0 : index
    %c0_186 = arith.constant 0 : index
    %405 = vector.load %arg6[%c0_185, %c0_186] : memref<256x512xbf16, #tpu.memory_space<vmem>>, vector<256x512xbf16>
    %cst_187 = arith.constant dense<0.000000e+00> : vector<8x512xf32>
    %406 = tpu.matmul %404, %405, %cst_187 {dimension_numbers = #tpu.dot_dimension_numbers<[1], [0], [0], [1], [0, 0, 1, 1], [], []>} : vector<8x256xbf16>, vector<256x512xbf16>, vector<8x512xf32> -> vector<8x512xf32>
    %407 = arith.addf %403, %406 : vector<8x512xf32>
    %408 = vector.extract_strided_slice %407 {offsets = [0, 0], sizes = [8, 128], strides = [1, 1]} : vector<8x512xf32> to vector<8x128xf32>
    %409 = arith.negf %408 : vector<8x128xf32>
    %410 = math.exp %409 : vector<8x128xf32>
    %cst_188 = arith.constant 1.000000e+00 : f32
    %411 = vector.broadcast %cst_188 : f32 to vector<8x128xf32>
    %412 = arith.addf %411, %410 : vector<8x128xf32>
    %413 = arith.divf %411, %412 : vector<8x128xf32>
    %414 = vector.extract_strided_slice %407 {offsets = [0, 128], sizes = [8, 128], strides = [1, 1]} : vector<8x512xf32> to vector<8x128xf32>
    %415 = arith.negf %414 : vector<8x128xf32>
    %416 = math.exp %415 : vector<8x128xf32>
    %cst_189 = arith.constant 1.000000e+00 : f32
    %417 = vector.broadcast %cst_189 : f32 to vector<8x128xf32>
    %418 = arith.addf %417, %416 : vector<8x128xf32>
    %419 = arith.divf %417, %418 : vector<8x128xf32>
    %420 = vector.extract_strided_slice %407 {offsets = [0, 256], sizes = [8, 128], strides = [1, 1]} : vector<8x512xf32> to vector<8x128xf32>
    %421 = math.tanh %420 : vector<8x128xf32>
    %422 = vector.extract_strided_slice %407 {offsets = [0, 384], sizes = [8, 128], strides = [1, 1]} : vector<8x512xf32> to vector<8x128xf32>
    %423 = arith.negf %422 : vector<8x128xf32>
    %424 = math.exp %423 : vector<8x128xf32>
    %cst_190 = arith.constant 1.000000e+00 : f32
    %425 = vector.broadcast %cst_190 : f32 to vector<8x128xf32>
    %426 = arith.addf %425, %424 : vector<8x128xf32>
    %427 = arith.divf %425, %426 : vector<8x128xf32>
    %428 = arith.mulf %419, %358 : vector<8x128xf32>
    %429 = arith.mulf %413, %421 : vector<8x128xf32>
    %430 = arith.addf %428, %429 : vector<8x128xf32>
    %431 = math.tanh %430 : vector<8x128xf32>
    %432 = arith.mulf %427, %431 : vector<8x128xf32>
    %433 = arith.index_cast %c5_i32 : i32 to index
    %c0_191 = arith.constant 0 : index
    %c0_192 = arith.constant 0 : index
    %434 = vector.load %arg7[%433, %c0_191, %c0_192] : memref<8x8x128xf32, #tpu.memory_space<vmem>>, vector<1x8x128xf32>
    %435 = vector.shape_cast %434 : vector<1x8x128xf32> to vector<8x128xf32>
    %436 = vector.shape_cast %432 : vector<8x128xf32> to vector<1x8x128xf32>
    tpu.vector_store %arg7[%433, %c0_191, %c0_192], %436 {strides = array<i32>} : memref<8x8x128xf32, #tpu.memory_space<vmem>>, vector<1x8x128xf32>,
    %437 = arith.index_cast %c5_i32 : i32 to index
    %c0_193 = arith.constant 0 : index
    %c0_194 = arith.constant 0 : index
    %438 = vector.load %arg8[%437, %c0_193, %c0_194] : memref<8x8x128xf32, #tpu.memory_space<vmem>>, vector<1x8x16xf32>
    %439 = vector.shape_cast %438 : vector<1x8x16xf32> to vector<8x16xf32>
    %440 = vector.shape_cast %389 : vector<8x16xf32> to vector<1x8x16xf32>
    tpu.vector_store %arg8[%437, %c0_193, %c0_194], %440 {strides = array<i32>} : memref<8x8x128xf32, #tpu.memory_space<vmem>>, vector<1x8x16xf32>,
    %c6_i32 = arith.constant 6 : i32
    %441 = arith.truncf %432 : vector<8x128xf32> to vector<8x128xbf16>
    %c0_195 = arith.constant 0 : index
    %c0_196 = arith.constant 0 : index
    %442 = vector.load %arg4[%c0_195, %c0_196] : memref<128x128xbf16, #tpu.memory_space<vmem>>, vector<128x128xbf16>
    %cst_197 = arith.constant dense<0.000000e+00> : vector<8x128xf32>
    %443 = tpu.matmul %441, %442, %cst_197 {dimension_numbers = #tpu.dot_dimension_numbers<[1], [0], [0], [1], [0, 0, 1, 1], [], []>} : vector<8x128xbf16>, vector<128x128xbf16>, vector<8x128xf32> -> vector<8x128xf32>
    %c0_198 = arith.constant 0 : index
    %c0_199 = arith.constant 0 : index
    %c0_200 = arith.constant 0 : index
    %444 = vector.load %arg1[%c0_198, %c0_199, %c0_200] : memref<8x16x128xbf16, #tpu.memory_space<vmem>>, vector<8x16x128xbf16>
    %445 = arith.extf %444 : vector<8x16x128xbf16> to vector<8x16x128xf32>
    %446 = vector.shape_cast %443 : vector<8x128xf32> to vector<8x1x128xf32>
    %447 = vector.broadcast %446 : vector<8x1x128xf32> to vector<8x16x128xf32>
    %448 = arith.addf %445, %447 : vector<8x16x128xf32>
    %449 = math.tanh %448 : vector<8x16x128xf32>
    %450 = arith.mulf %449, %6 : vector<8x16x128xf32>
    %cst_201 = arith.constant dense<0.000000e+00> : vector<8x16xf32>
    %451 = vector.multi_reduction <add>, %450, %cst_201 [2] : vector<8x16x128xf32> to vector<8x16xf32>
    %cst_202 = arith.constant dense<0xFF800000> : vector<8xf32>
    %452 = vector.multi_reduction <maximumf>, %451, %cst_202 [1] : vector<8x16xf32> to vector<8xf32>
    %453 = vector.shape_cast %452 : vector<8xf32> to vector<8x1xf32>
    %454 = vector.broadcast %453 : vector<8x1xf32> to vector<8x16xf32>
    %455 = arith.subf %451, %454 : vector<8x16xf32>
    %456 = math.exp %455 : vector<8x16xf32>
    %cst_203 = arith.constant dense<0.000000e+00> : vector<8xf32>
    %457 = vector.multi_reduction <add>, %456, %cst_203 [1] : vector<8x16xf32> to vector<8xf32>
    %458 = vector.shape_cast %457 : vector<8xf32> to vector<8x1xf32>
    %459 = tpu.reciprocal %458 {approx = true} : vector<8x1xf32> -> vector<8x1xf32>
    %460 = vector.broadcast %459 : vector<8x1xf32> to vector<8x16xf32>
    %461 = arith.mulf %456, %460 : vector<8x16xf32>
    %c0_204 = arith.constant 0 : index
    %c0_205 = arith.constant 0 : index
    %c0_206 = arith.constant 0 : index
    %462 = vector.load %arg2[%c0_204, %c0_205, %c0_206] : memref<8x16x32xbf16, #tpu.memory_space<vmem>>, vector<8x16x32xbf16>
    %463 = arith.extf %462 : vector<8x16x32xbf16> to vector<8x16x32xf32>
    %464 = vector.shape_cast %461 : vector<8x16xf32> to vector<8x16x1xf32>
    %465 = vector.broadcast %464 : vector<8x16x1xf32> to vector<8x16x32xf32>
    %466 = arith.mulf %463, %465 : vector<8x16x32xf32>
    %cst_207 = arith.constant dense<0.000000e+00> : vector<8x32xf32>
    %467 = vector.multi_reduction <add>, %466, %cst_207 [1] : vector<8x16x32xf32> to vector<8x32xf32>
    %468 = arith.truncf %467 : vector<8x32xf32> to vector<8x32xbf16>
    %c0_208 = arith.constant 0 : index
    %c0_209 = arith.constant 0 : index
    %469 = vector.load %arg9[%c0_208, %c0_209] : memref<8x256xbf16, #tpu.memory_space<vmem>>, vector<8x32xbf16>
    tpu.vector_store %arg9[%c0_208, %c0_209], %468 {strides = array<i32>} : memref<8x256xbf16, #tpu.memory_space<vmem>>, vector<8x32xbf16>,
    %470 = arith.truncf %432 : vector<8x128xf32> to vector<8x128xbf16>
    %c0_210 = arith.constant 0 : index
    %c128_211 = arith.constant 128 : index
    %471 = vector.load %arg9[%c0_210, %c128_211] : memref<8x256xbf16, #tpu.memory_space<vmem>>, vector<8x128xbf16>
    tpu.vector_store %arg9[%c0_210, %c128_211], %470 {strides = array<i32>} : memref<8x256xbf16, #tpu.memory_space<vmem>>, vector<8x128xbf16>,
    %472 = arith.index_cast %c6_i32 : i32 to index
    %c0_212 = arith.constant 0 : index
    %c0_213 = arith.constant 0 : index
    %473 = vector.load %arg3[%472, %c0_212, %c0_213] : memref<8x8x512xbf16, #tpu.memory_space<vmem>>, vector<1x8x512xbf16>
    %474 = vector.shape_cast %473 : vector<1x8x512xbf16> to vector<8x512xbf16>
    %475 = arith.extf %474 : vector<8x512xbf16> to vector<8x512xf32>
    %c0_214 = arith.constant 0 : index
    %c0_215 = arith.constant 0 : index
    %476 = vector.load %arg9[%c0_214, %c0_215] : memref<8x256xbf16, #tpu.memory_space<vmem>>, vector<8x256xbf16>
    %c0_216 = arith.constant 0 : index
    %c0_217 = arith.constant 0 : index
    %477 = vector.load %arg6[%c0_216, %c0_217] : memref<256x512xbf16, #tpu.memory_space<vmem>>, vector<256x512xbf16>
    %cst_218 = arith.constant dense<0.000000e+00> : vector<8x512xf32>
    %478 = tpu.matmul %476, %477, %cst_218 {dimension_numbers = #tpu.dot_dimension_numbers<[1], [0], [0], [1], [0, 0, 1, 1], [], []>} : vector<8x256xbf16>, vector<256x512xbf16>, vector<8x512xf32> -> vector<8x512xf32>
    %479 = arith.addf %475, %478 : vector<8x512xf32>
    %480 = vector.extract_strided_slice %479 {offsets = [0, 0], sizes = [8, 128], strides = [1, 1]} : vector<8x512xf32> to vector<8x128xf32>
    %481 = arith.negf %480 : vector<8x128xf32>
    %482 = math.exp %481 : vector<8x128xf32>
    %cst_219 = arith.constant 1.000000e+00 : f32
    %483 = vector.broadcast %cst_219 : f32 to vector<8x128xf32>
    %484 = arith.addf %483, %482 : vector<8x128xf32>
    %485 = arith.divf %483, %484 : vector<8x128xf32>
    %486 = vector.extract_strided_slice %479 {offsets = [0, 128], sizes = [8, 128], strides = [1, 1]} : vector<8x512xf32> to vector<8x128xf32>
    %487 = arith.negf %486 : vector<8x128xf32>
    %488 = math.exp %487 : vector<8x128xf32>
    %cst_220 = arith.constant 1.000000e+00 : f32
    %489 = vector.broadcast %cst_220 : f32 to vector<8x128xf32>
    %490 = arith.addf %489, %488 : vector<8x128xf32>
    %491 = arith.divf %489, %490 : vector<8x128xf32>
    %492 = vector.extract_strided_slice %479 {offsets = [0, 256], sizes = [8, 128], strides = [1, 1]} : vector<8x512xf32> to vector<8x128xf32>
    %493 = math.tanh %492 : vector<8x128xf32>
    %494 = vector.extract_strided_slice %479 {offsets = [0, 384], sizes = [8, 128], strides = [1, 1]} : vector<8x512xf32> to vector<8x128xf32>
    %495 = arith.negf %494 : vector<8x128xf32>
    %496 = math.exp %495 : vector<8x128xf32>
    %cst_221 = arith.constant 1.000000e+00 : f32
    %497 = vector.broadcast %cst_221 : f32 to vector<8x128xf32>
    %498 = arith.addf %497, %496 : vector<8x128xf32>
    %499 = arith.divf %497, %498 : vector<8x128xf32>
    %500 = arith.mulf %491, %430 : vector<8x128xf32>
    %501 = arith.mulf %485, %493 : vector<8x128xf32>
    %502 = arith.addf %500, %501 : vector<8x128xf32>
    %503 = math.tanh %502 : vector<8x128xf32>
    %504 = arith.mulf %499, %503 : vector<8x128xf32>
    %505 = arith.index_cast %c6_i32 : i32 to index
    %c0_222 = arith.constant 0 : index
    %c0_223 = arith.constant 0 : index
    %506 = vector.load %arg7[%505, %c0_222, %c0_223] : memref<8x8x128xf32, #tpu.memory_space<vmem>>, vector<1x8x128xf32>
    %507 = vector.shape_cast %506 : vector<1x8x128xf32> to vector<8x128xf32>
    %508 = vector.shape_cast %504 : vector<8x128xf32> to vector<1x8x128xf32>
    tpu.vector_store %arg7[%505, %c0_222, %c0_223], %508 {strides = array<i32>} : memref<8x8x128xf32, #tpu.memory_space<vmem>>, vector<1x8x128xf32>,
    %509 = arith.index_cast %c6_i32 : i32 to index
    %c0_224 = arith.constant 0 : index
    %c0_225 = arith.constant 0 : index
    %510 = vector.load %arg8[%509, %c0_224, %c0_225] : memref<8x8x128xf32, #tpu.memory_space<vmem>>, vector<1x8x16xf32>
    %511 = vector.shape_cast %510 : vector<1x8x16xf32> to vector<8x16xf32>
    %512 = vector.shape_cast %461 : vector<8x16xf32> to vector<1x8x16xf32>
    tpu.vector_store %arg8[%509, %c0_224, %c0_225], %512 {strides = array<i32>} : memref<8x8x128xf32, #tpu.memory_space<vmem>>, vector<1x8x16xf32>,
    %c7_i32 = arith.constant 7 : i32
    %513 = arith.truncf %504 : vector<8x128xf32> to vector<8x128xbf16>
    %c0_226 = arith.constant 0 : index
    %c0_227 = arith.constant 0 : index
    %514 = vector.load %arg4[%c0_226, %c0_227] : memref<128x128xbf16, #tpu.memory_space<vmem>>, vector<128x128xbf16>
    %cst_228 = arith.constant dense<0.000000e+00> : vector<8x128xf32>
    %515 = tpu.matmul %513, %514, %cst_228 {dimension_numbers = #tpu.dot_dimension_numbers<[1], [0], [0], [1], [0, 0, 1, 1], [], []>} : vector<8x128xbf16>, vector<128x128xbf16>, vector<8x128xf32> -> vector<8x128xf32>
    %c0_229 = arith.constant 0 : index
    %c0_230 = arith.constant 0 : index
    %c0_231 = arith.constant 0 : index
    %516 = vector.load %arg1[%c0_229, %c0_230, %c0_231] : memref<8x16x128xbf16, #tpu.memory_space<vmem>>, vector<8x16x128xbf16>
    %517 = arith.extf %516 : vector<8x16x128xbf16> to vector<8x16x128xf32>
    %518 = vector.shape_cast %515 : vector<8x128xf32> to vector<8x1x128xf32>
    %519 = vector.broadcast %518 : vector<8x1x128xf32> to vector<8x16x128xf32>
    %520 = arith.addf %517, %519 : vector<8x16x128xf32>
    %521 = math.tanh %520 : vector<8x16x128xf32>
    %522 = arith.mulf %521, %6 : vector<8x16x128xf32>
    %cst_232 = arith.constant dense<0.000000e+00> : vector<8x16xf32>
    %523 = vector.multi_reduction <add>, %522, %cst_232 [2] : vector<8x16x128xf32> to vector<8x16xf32>
    %cst_233 = arith.constant dense<0xFF800000> : vector<8xf32>
    %524 = vector.multi_reduction <maximumf>, %523, %cst_233 [1] : vector<8x16xf32> to vector<8xf32>
    %525 = vector.shape_cast %524 : vector<8xf32> to vector<8x1xf32>
    %526 = vector.broadcast %525 : vector<8x1xf32> to vector<8x16xf32>
    %527 = arith.subf %523, %526 : vector<8x16xf32>
    %528 = math.exp %527 : vector<8x16xf32>
    %cst_234 = arith.constant dense<0.000000e+00> : vector<8xf32>
    %529 = vector.multi_reduction <add>, %528, %cst_234 [1] : vector<8x16xf32> to vector<8xf32>
    %530 = vector.shape_cast %529 : vector<8xf32> to vector<8x1xf32>
    %531 = tpu.reciprocal %530 {approx = true} : vector<8x1xf32> -> vector<8x1xf32>
    %532 = vector.broadcast %531 : vector<8x1xf32> to vector<8x16xf32>
    %533 = arith.mulf %528, %532 : vector<8x16xf32>
    %c0_235 = arith.constant 0 : index
    %c0_236 = arith.constant 0 : index
    %c0_237 = arith.constant 0 : index
    %534 = vector.load %arg2[%c0_235, %c0_236, %c0_237] : memref<8x16x32xbf16, #tpu.memory_space<vmem>>, vector<8x16x32xbf16>
    %535 = arith.extf %534 : vector<8x16x32xbf16> to vector<8x16x32xf32>
    %536 = vector.shape_cast %533 : vector<8x16xf32> to vector<8x16x1xf32>
    %537 = vector.broadcast %536 : vector<8x16x1xf32> to vector<8x16x32xf32>
    %538 = arith.mulf %535, %537 : vector<8x16x32xf32>
    %cst_238 = arith.constant dense<0.000000e+00> : vector<8x32xf32>
    %539 = vector.multi_reduction <add>, %538, %cst_238 [1] : vector<8x16x32xf32> to vector<8x32xf32>
    %540 = arith.truncf %539 : vector<8x32xf32> to vector<8x32xbf16>
    %c0_239 = arith.constant 0 : index
    %c0_240 = arith.constant 0 : index
    %541 = vector.load %arg9[%c0_239, %c0_240] : memref<8x256xbf16, #tpu.memory_space<vmem>>, vector<8x32xbf16>
    tpu.vector_store %arg9[%c0_239, %c0_240], %540 {strides = array<i32>} : memref<8x256xbf16, #tpu.memory_space<vmem>>, vector<8x32xbf16>,
    %542 = arith.truncf %504 : vector<8x128xf32> to vector<8x128xbf16>
    %c0_241 = arith.constant 0 : index
    %c128_242 = arith.constant 128 : index
    %543 = vector.load %arg9[%c0_241, %c128_242] : memref<8x256xbf16, #tpu.memory_space<vmem>>, vector<8x128xbf16>
    tpu.vector_store %arg9[%c0_241, %c128_242], %542 {strides = array<i32>} : memref<8x256xbf16, #tpu.memory_space<vmem>>, vector<8x128xbf16>,
    %544 = arith.index_cast %c7_i32 : i32 to index
    %c0_243 = arith.constant 0 : index
    %c0_244 = arith.constant 0 : index
    %545 = vector.load %arg3[%544, %c0_243, %c0_244] : memref<8x8x512xbf16, #tpu.memory_space<vmem>>, vector<1x8x512xbf16>
    %546 = vector.shape_cast %545 : vector<1x8x512xbf16> to vector<8x512xbf16>
    %547 = arith.extf %546 : vector<8x512xbf16> to vector<8x512xf32>
    %c0_245 = arith.constant 0 : index
    %c0_246 = arith.constant 0 : index
    %548 = vector.load %arg9[%c0_245, %c0_246] : memref<8x256xbf16, #tpu.memory_space<vmem>>, vector<8x256xbf16>
    %c0_247 = arith.constant 0 : index
    %c0_248 = arith.constant 0 : index
    %549 = vector.load %arg6[%c0_247, %c0_248] : memref<256x512xbf16, #tpu.memory_space<vmem>>, vector<256x512xbf16>
    %cst_249 = arith.constant dense<0.000000e+00> : vector<8x512xf32>
    %550 = tpu.matmul %548, %549, %cst_249 {dimension_numbers = #tpu.dot_dimension_numbers<[1], [0], [0], [1], [0, 0, 1, 1], [], []>} : vector<8x256xbf16>, vector<256x512xbf16>, vector<8x512xf32> -> vector<8x512xf32>
    %551 = arith.addf %547, %550 : vector<8x512xf32>
    %552 = vector.extract_strided_slice %551 {offsets = [0, 0], sizes = [8, 128], strides = [1, 1]} : vector<8x512xf32> to vector<8x128xf32>
    %553 = arith.negf %552 : vector<8x128xf32>
    %554 = math.exp %553 : vector<8x128xf32>
    %cst_250 = arith.constant 1.000000e+00 : f32
    %555 = vector.broadcast %cst_250 : f32 to vector<8x128xf32>
    %556 = arith.addf %555, %554 : vector<8x128xf32>
    %557 = arith.divf %555, %556 : vector<8x128xf32>
    %558 = vector.extract_strided_slice %551 {offsets = [0, 128], sizes = [8, 128], strides = [1, 1]} : vector<8x512xf32> to vector<8x128xf32>
    %559 = arith.negf %558 : vector<8x128xf32>
    %560 = math.exp %559 : vector<8x128xf32>
    %cst_251 = arith.constant 1.000000e+00 : f32
    %561 = vector.broadcast %cst_251 : f32 to vector<8x128xf32>
    %562 = arith.addf %561, %560 : vector<8x128xf32>
    %563 = arith.divf %561, %562 : vector<8x128xf32>
    %564 = vector.extract_strided_slice %551 {offsets = [0, 256], sizes = [8, 128], strides = [1, 1]} : vector<8x512xf32> to vector<8x128xf32>
    %565 = math.tanh %564 : vector<8x128xf32>
    %566 = vector.extract_strided_slice %551 {offsets = [0, 384], sizes = [8, 128], strides = [1, 1]} : vector<8x512xf32> to vector<8x128xf32>
    %567 = arith.negf %566 : vector<8x128xf32>
    %568 = math.exp %567 : vector<8x128xf32>
    %cst_252 = arith.constant 1.000000e+00 : f32
    %569 = vector.broadcast %cst_252 : f32 to vector<8x128xf32>
    %570 = arith.addf %569, %568 : vector<8x128xf32>
    %571 = arith.divf %569, %570 : vector<8x128xf32>
    %572 = arith.mulf %563, %502 : vector<8x128xf32>
    %573 = arith.mulf %557, %565 : vector<8x128xf32>
    %574 = arith.addf %572, %573 : vector<8x128xf32>
    %575 = math.tanh %574 : vector<8x128xf32>
    %576 = arith.mulf %571, %575 : vector<8x128xf32>
    %577 = arith.index_cast %c7_i32 : i32 to index
    %c0_253 = arith.constant 0 : index
    %c0_254 = arith.constant 0 : index
    %578 = vector.load %arg7[%577, %c0_253, %c0_254] : memref<8x8x128xf32, #tpu.memory_space<vmem>>, vector<1x8x128xf32>
    %579 = vector.shape_cast %578 : vector<1x8x128xf32> to vector<8x128xf32>
    %580 = vector.shape_cast %576 : vector<8x128xf32> to vector<1x8x128xf32>
    tpu.vector_store %arg7[%577, %c0_253, %c0_254], %580 {strides = array<i32>} : memref<8x8x128xf32, #tpu.memory_space<vmem>>, vector<1x8x128xf32>,
    %581 = arith.index_cast %c7_i32 : i32 to index
    %c0_255 = arith.constant 0 : index
    %c0_256 = arith.constant 0 : index
    %582 = vector.load %arg8[%581, %c0_255, %c0_256] : memref<8x8x128xf32, #tpu.memory_space<vmem>>, vector<1x8x16xf32>
    %583 = vector.shape_cast %582 : vector<1x8x16xf32> to vector<8x16xf32>
    %584 = vector.shape_cast %533 : vector<8x16xf32> to vector<1x8x16xf32>
    tpu.vector_store %arg8[%581, %c0_255, %c0_256], %584 {strides = array<i32>} : memref<8x8x128xf32, #tpu.memory_space<vmem>>, vector<1x8x16xf32>,
    %c8_i32 = arith.constant 8 : i32
    return
  }
  func.func @transform_0(%arg0: i32) -> (i32, i32, i32) {
    %c0_i32 = arith.constant 0 : i32
    %c0_i32_0 = arith.constant 0 : i32
    %c0_i32_1 = arith.constant 0 : i32
    return %arg0, %c0_i32, %c0_i32_0 : i32, i32, i32
  }
  func.func @transform_1(%arg0: i32) -> (i32, i32, i32) {
    %c0_i32 = arith.constant 0 : i32
    %c0_i32_0 = arith.constant 0 : i32
    %c0_i32_1 = arith.constant 0 : i32
    return %arg0, %c0_i32, %c0_i32_0 : i32, i32, i32
  }
  func.func @transform_2(%arg0: i32) -> (i32, i32, i32) {
    %c0_i32 = arith.constant 0 : i32
    %c0_i32_0 = arith.constant 0 : i32
    %c0_i32_1 = arith.constant 0 : i32
    return %c0_i32, %arg0, %c0_i32_0 : i32, i32, i32
  }
  func.func @transform_3(%arg0: i32) -> (i32, i32) {
    %c0_i32 = arith.constant 0 : i32
    %c0_i32_0 = arith.constant 0 : i32
    %c0_i32_1 = arith.constant 0 : i32
    return %c0_i32, %c0_i32_0 : i32, i32
  }
  func.func @transform_4(%arg0: i32) -> (i32, i32, i32) {
    %c0_i32 = arith.constant 0 : i32
    %c0_i32_0 = arith.constant 0 : i32
    %c0_i32_1 = arith.constant 0 : i32
    %c0_i32_2 = arith.constant 0 : i32
    return %c0_i32, %c0_i32_0, %c0_i32_1 : i32, i32, i32
  }
  func.func @transform_5(%arg0: i32) -> (i32, i32) {
    %c0_i32 = arith.constant 0 : i32
    %c0_i32_0 = arith.constant 0 : i32
    %c0_i32_1 = arith.constant 0 : i32
    return %c0_i32, %c0_i32_0 : i32, i32
  }
  func.func @transform_6(%arg0: i32) -> (i32, i32, i32) {
    %c0_i32 = arith.constant 0 : i32
    %c0_i32_0 = arith.constant 0 : i32
    %c0_i32_1 = arith.constant 0 : i32
    return %c0_i32, %arg0, %c0_i32_0 : i32, i32, i32
  }
  func.func @transform_7(%arg0: i32) -> (i32, i32, i32) {
    %c0_i32 = arith.constant 0 : i32
    %c0_i32_0 = arith.constant 0 : i32
    %c0_i32_1 = arith.constant 0 : i32
    return %c0_i32, %arg0, %c0_i32_0 : i32, i32, i32
  }
}

</mosaic_0001>

<llo_original>
// kernel: lstm_decoder_forward.1
$region0: #{lstm_decoder_forward.1}
  #allocation0 [shape = 'u32[]', space=smem, size = 0x4, offset = 0x4, fixed_abs, tag = 'smem constant byte address 0x4 - core index']
  #allocation1 [shape = 'u32[72,128]{1,0:T(1,128)}', space=vmem, size = 0x9000, scoped, tag = 'internal scratch']
  #allocation2 [shape = 'bf16[8,256]{1,0:T(8,128)(2,1)}', space=vmem, size = 0x1000, scoped, tag = 'scratch operand']
  %s0 = inlined_call_operand.vmem [shape: bf16[8,16,128], index: 0, kind: input, shape index: {}]
  %s1 = inlined_call_operand.vmem [shape: bf16[8,16,32], index: 1, kind: input, shape index: {}]
  %s2 = inlined_call_operand.vmem [shape: bf16[8,8,512], index: 2, kind: input, shape index: {}]
  %s3 = inlined_call_operand.vmem [shape: bf16[128,128], index: 3, kind: input, shape index: {}]
  %s4 = inlined_call_operand.vmem [shape: f32[1,1,128], index: 4, kind: input, shape index: {}]
  %s5 = inlined_call_operand.vmem [shape: bf16[256,512], index: 5, kind: input, shape index: {}]
  %s6 = inlined_call_operand.vmem [shape: f32[8,8,128], index: 6, kind: output, shape index: {0}]
  %s7 = inlined_call_operand.vmem [shape: f32[8,8,128], index: 7, kind: output, shape index: {1}]
  %8 = xla_tuple %s6, %s7
  %s9 = sld [smem:[#allocation0]]
  $region42: #{lstm_decoder_forward.1} parent=0
    _
  %s11 = ssub.s32 1, %s9
  %s12 = scalar_select 0, %s11, %s9
  // Predicated region
  $region2: #{lstm_decoder_forward.1} parent=0 // pred_check
    _
  $region3: #{lstm_decoder_forward.1} parent=0 // pred_check_branch
    %14 = sbr.rel (0) target = $region5
  $region4: #{lstm_decoder_forward.1} parent=0 // pred_region
    _
  $region5: #{lstm_decoder_forward.1} parent=0 // pred_fallthru
    _
  // Predicated region
  $region6: #{lstm_decoder_forward.1} parent=0 // pred_check
    _
  $region7: #{lstm_decoder_forward.1} parent=0 // pred_check_branch
    %16 = sbr.rel (0) target = $region9
  $region8: #{lstm_decoder_forward.1} parent=0 // pred_region
    _
  $region9: #{lstm_decoder_forward.1} parent=0 // pred_fallthru
    _
  // Predicated region
  $region10: #{lstm_decoder_forward.1} parent=0 // pred_check
    _
  $region11: #{lstm_decoder_forward.1} parent=0 // pred_check_branch
    %18 = sbr.rel (0) target = $region13
  $region12: #{lstm_decoder_forward.1} parent=0 // pred_region
    _
  $region13: #{lstm_decoder_forward.1} parent=0 // pred_fallthru
    _
  // Predicated region
  $region14: #{lstm_decoder_forward.1} parent=0 // pred_check
    _
  $region15: #{lstm_decoder_forward.1} parent=0 // pred_check_branch
    %20 = sbr.rel (0) target = $region17
  $region16: #{lstm_decoder_forward.1} parent=0 // pred_region
    _
  $region17: #{lstm_decoder_forward.1} parent=0 // pred_fallthru
    _
  // Predicated region
  $region18: #{lstm_decoder_forward.1} parent=0 // pred_check
    _
  $region19: #{lstm_decoder_forward.1} parent=0 // pred_check_branch
    %22 = sbr.rel (0) target = $region21
  $region20: #{lstm_decoder_forward.1} parent=0 // pred_region
    _
  $region21: #{lstm_decoder_forward.1} parent=0 // pred_fallthru
    _
  // Predicated region
  $region22: #{lstm_decoder_forward.1} parent=0 // pred_check
    _
  $region23: #{lstm_decoder_forward.1} parent=0 // pred_check_branch
    %24 = sbr.rel (0) target = $region25
  $region24: #{lstm_decoder_forward.1} parent=0 // pred_region
    _
  $region25: #{lstm_decoder_forward.1} parent=0 // pred_fallthru
    _
  %26 = vst [vmem:[#allocation2] sm:$0xff] 0
  %27 = vst [vmem:[%s7] sm:$0xff] 0.0
  %28 = vst [vmem:[%s7 + $0x8] sm:$0xff] 0.0
  %29 = vst [vmem:[%s7 + $0x10] sm:$0xff] 0.0
  %30 = vst [vmem:[%s7 + $0x18] sm:$0xff] 0.0
  %31 = vst [vmem:[%s7 + $0x20] sm:$0xff] 0.0
  %32 = vst [vmem:[%s7 + $0x28] sm:$0xff] 0.0
  %33 = vst [vmem:[%s7 + $0x30] sm:$0xff] 0.0
  %34 = vst [vmem:[%s7 + $0x38] sm:$0xff] 0.0
  %v35 = vld [vmem:[%s4] sm:$0x1]
  %v37 = vperm.slane %v35, 0
  %v39 = vld [vmem:[%s3] sm:$0xf]
  %v40 = vld [vmem:[%s3 + $0x4] sm:$0xf]
  %v41 = vld [vmem:[%s3 + $0x8] sm:$0xf]
  %v42 = vld [vmem:[%s3 + $0xc] sm:$0xf]
  %v43 = vld [vmem:[%s3 + $0x10] sm:$0xf]
  %v44 = vld [vmem:[%s3 + $0x14] sm:$0xf]
  %v45 = vld [vmem:[%s3 + $0x18] sm:$0xf]
  %v46 = vld [vmem:[%s3 + $0x1c] sm:$0xf]
  %v47 = vld [vmem:[%s3 + $0x20] sm:$0xf]
  %v48 = vld [vmem:[%s3 + $0x24] sm:$0xf]
  %v49 = vld [vmem:[%s3 + $0x28] sm:$0xf]
  %v50 = vld [vmem:[%s3 + $0x2c] sm:$0xf]
  %v51 = vld [vmem:[%s3 + $0x30] sm:$0xf]
  %v52 = vld [vmem:[%s3 + $0x34] sm:$0xf]
  %v53 = vld [vmem:[%s3 + $0x38] sm:$0xf]
  %v54 = vld [vmem:[%s3 + $0x3c] sm:$0xf]
  %v71 = vunpack.c.l.b16 %v39
  %v72 = vunpack.c.l.b16 %v40
  %v73 = vunpack.c.l.b16 %v41
  %v74 = vunpack.c.l.b16 %v42
  %v75 = vunpack.c.l.b16 %v43
  %v76 = vunpack.c.l.b16 %v44
  %v77 = vunpack.c.l.b16 %v45
  %v78 = vunpack.c.l.b16 %v46
  %v79 = vunpack.c.l.b16 %v47
  %v80 = vunpack.c.l.b16 %v48
  %v81 = vunpack.c.l.b16 %v49
  %v82 = vunpack.c.l.b16 %v50
  %v83 = vunpack.c.l.b16 %v51
  %v84 = vunpack.c.l.b16 %v52
  %v85 = vunpack.c.l.b16 %v53
  %v86 = vunpack.c.l.b16 %v54
  %v87 = vpack.c.b16 %v72, %v71
  %v88 = vpack.c.b16 %v74, %v73
  %v89 = vpack.c.b16 %v76, %v75
  %v90 = vpack.c.b16 %v78, %v77
  %v91 = vpack.c.b16 %v80, %v79
  %v92 = vpack.c.b16 %v82, %v81
  %v93 = vpack.c.b16 %v84, %v83
  %v94 = vpack.c.b16 %v86, %v85
  %103 = vmatpush.bf16.msra.mxu0 %v94
  %104 = vmatpush.bf16.msra.mxu0 %v93
  %105 = vmatpush.bf16.msra.mxu0 %v92
  %106 = vmatpush.bf16.msra.mxu0 %v91
  %107 = vmatpush.bf16.msra.mxu0 %v90
  %108 = vmatpush.bf16.msra.mxu0 %v89
  %109 = vmatpush.bf16.msra.mxu0 %v88
  %110 = vmatpush.bf16.msra.mxu0 %v87
  %111 = vmatmul.bf16.gmra.mxu0 0
  %v112 = vpop.f32.mrf.mxu0
  %v113 = vadd.f32 0.0, %v112
  %v114 = vpop.f32.mrf.mxu0
  %115 = vdwg.mxu0
  %v116 = vld [vmem:[%s0] sm:$0xf]
  %v117 = vld [vmem:[%s0 + $0x4] sm:$0xf]
  %v118 = vld [vmem:[%s0 + $0x8] sm:$0xf]
  %v119 = vld [vmem:[%s0 + $0xc] sm:$0xf]
  %v120 = vld [vmem:[%s0 + $0x10] sm:$0xf]
  %v121 = vld [vmem:[%s0 + $0x14] sm:$0xf]
  %v122 = vld [vmem:[%s0 + $0x18] sm:$0xf]
  %v123 = vld [vmem:[%s0 + $0x1c] sm:$0xf]
  %v124 = vld [vmem:[%s0 + $0x20] sm:$0xf]
  %v125 = vld [vmem:[%s0 + $0x24] sm:$0xf]
  %v126 = vld [vmem:[%s0 + $0x28] sm:$0xf]
  %v127 = vld [vmem:[%s0 + $0x2c] sm:$0xf]
  %v128 = vld [vmem:[%s0 + $0x30] sm:$0xf]
  %v129 = vld [vmem:[%s0 + $0x34] sm:$0xf]
  %v130 = vld [vmem:[%s0 + $0x38] sm:$0xf]
  %v131 = vld [vmem:[%s0 + $0x3c] sm:$0xf]
  %v132 = vunpack.c.l.bf16 %v116
  %v133 = vunpack.c.l.bf16 %v117
  %v134 = vunpack.c.l.bf16 %v118
  %v135 = vunpack.c.l.bf16 %v119
  %v136 = vunpack.c.l.bf16 %v120
  %v137 = vunpack.c.l.bf16 %v121
  %v138 = vunpack.c.l.bf16 %v122
  %v139 = vunpack.c.l.bf16 %v123
  %v140 = vunpack.c.l.bf16 %v124
  %v141 = vunpack.c.l.bf16 %v125
  %v142 = vunpack.c.l.bf16 %v126
  %v143 = vunpack.c.l.bf16 %v127
  %v144 = vunpack.c.l.bf16 %v128
  %v145 = vunpack.c.l.bf16 %v129
  %v146 = vunpack.c.l.bf16 %v130
  %v147 = vunpack.c.l.bf16 %v131
  %v149 = vrot.slane %v113, 1
  %v150 = vrot.slane %v113, 2
  %v151 = vrot.slane %v113, 3
  %v152 = vrot.slane %v113, 4
  %v153 = vrot.slane %v113, 5
  %v154 = vrot.slane %v113, 6
  %v155 = vrot.slane %v113, 7
  %v156 = vperm.slane %v113, 0
  %v157 = vperm.slane %v149, 0
  %v158 = vperm.slane %v150, 0
  %v159 = vperm.slane %v151, 0
  %v160 = vperm.slane %v152, 0
  %v161 = vperm.slane %v153, 0
  %v162 = vperm.slane %v154, 0
  %v163 = vperm.slane %v155, 0
  %v172 = vadd.f32 %v132, %v156
  %v173 = vadd.f32 %v133, %v156
  %v174 = vadd.f32 %v134, %v157
  %v175 = vadd.f32 %v135, %v157
  %v176 = vadd.f32 %v136, %v158
  %v177 = vadd.f32 %v137, %v158
  %v178 = vadd.f32 %v138, %v159
  %v179 = vadd.f32 %v139, %v159
  %v180 = vadd.f32 %v140, %v160
  %v181 = vadd.f32 %v141, %v160
  %v182 = vadd.f32 %v142, %v161
  %v183 = vadd.f32 %v143, %v161
  %v184 = vadd.f32 %v144, %v162
  %v185 = vadd.f32 %v145, %v162
  %v186 = vadd.f32 %v146, %v163
  %v187 = vadd.f32 %v147, %v163
  %v188 = vtanh.pop %v172
  %v189 = vtanh.pop %v173
  %v190 = vtanh.pop %v174
  %v191 = vtanh.pop %v175
  %v192 = vtanh.pop %v176
  %v193 = vtanh.pop %v177
  %v194 = vtanh.pop %v178
  %v195 = vtanh.pop %v179
  %v196 = vtanh.pop %v180
  %v197 = vtanh.pop %v181
  %v198 = vtanh.pop %v182
  %v199 = vtanh.pop %v183
  %v200 = vtanh.pop %v184
  %v201 = vtanh.pop %v185
  %v202 = vtanh.pop %v186
  %v203 = vtanh.pop %v187
  %v204 = vmul.f32 %v188, %v37
  %v205 = vmul.f32 %v189, %v37
  %v206 = vmul.f32 %v190, %v37
  %v207 = vmul.f32 %v191, %v37
  %v208 = vmul.f32 %v192, %v37
  %v209 = vmul.f32 %v193, %v37
  %v210 = vmul.f32 %v194, %v37
  %v211 = vmul.f32 %v195, %v37
  %v212 = vmul.f32 %v196, %v37
  %v213 = vmul.f32 %v197, %v37
  %v214 = vmul.f32 %v198, %v37
  %v215 = vmul.f32 %v199, %v37
  %v216 = vmul.f32 %v200, %v37
  %v217 = vmul.f32 %v201, %v37
  %v218 = vmul.f32 %v202, %v37
  %v219 = vmul.f32 %v203, %v37
  %220 = vadd.xlane.f32.xlu0 %v204
  %v221 = vpop.xlane.xlu0 %220
  %222 = vadd.xlane.f32.xlu0 %v205
  %v223 = vpop.xlane.xlu0 %222
  %224 = vadd.xlane.f32.xlu0 %v206
  %v225 = vpop.xlane.xlu0 %224
  %226 = vadd.xlane.f32.xlu0 %v207
  %v227 = vpop.xlane.xlu0 %226
  %228 = vadd.xlane.f32.xlu0 %v208
  %v229 = vpop.xlane.xlu0 %228
  %230 = vadd.xlane.f32.xlu0 %v209
  %v231 = vpop.xlane.xlu0 %230
  %232 = vadd.xlane.f32.xlu0 %v210
  %v233 = vpop.xlane.xlu0 %232
  %234 = vadd.xlane.f32.xlu0 %v211
  %v235 = vpop.xlane.xlu0 %234
  %236 = vadd.xlane.f32.xlu0 %v212
  %v237 = vpop.xlane.xlu0 %236
  %238 = vadd.xlane.f32.xlu0 %v213
  %v239 = vpop.xlane.xlu0 %238
  %240 = vadd.xlane.f32.xlu0 %v214
  %v241 = vpop.xlane.xlu0 %240
  %242 = vadd.xlane.f32.xlu0 %v215
  %v243 = vpop.xlane.xlu0 %242
  %244 = vadd.xlane.f32.xlu0 %v216
  %v245 = vpop.xlane.xlu0 %244
  %246 = vadd.xlane.f32.xlu0 %v217
  %v247 = vpop.xlane.xlu0 %246
  %248 = vadd.xlane.f32.xlu0 %v218
  %v249 = vpop.xlane.xlu0 %248
  %250 = vadd.xlane.f32.xlu0 %v219
  %v251 = vpop.xlane.xlu0 %250
  %v268 = vlaneseq
  %v269 = vand.u32 %v268, 127
  %v270 = vperm.slane %v221, %v269
  %v271 = vadd.s32 %v269, 4294967288
  %v272 = vperm.slane %v223, %v271
  %vm273 = vcmask 130112
  %v274 = vsel %vm273, %v272, %v270
  %v275 = vperm.slane %v225, %v269
  %v276 = vperm.slane %v227, %v271
  %v277 = vsel %vm273, %v276, %v275
  %v278 = vperm.slane %v229, %v269
  %v279 = vperm.slane %v231, %v271
  %v280 = vsel %vm273, %v279, %v278
  %v281 = vperm.slane %v233, %v269
  %v282 = vperm.slane %v235, %v271
  %v283 = vsel %vm273, %v282, %v281
  %v284 = vperm.slane %v237, %v269
  %v285 = vperm.slane %v239, %v271
  %v286 = vsel %vm273, %v285, %v284
  %v287 = vperm.slane %v241, %v269
  %v288 = vperm.slane %v243, %v271
  %v289 = vsel %vm273, %v288, %v287
  %v290 = vperm.slane %v245, %v269
  %v291 = vperm.slane %v247, %v271
  %v292 = vsel %vm273, %v291, %v290
  %v293 = vperm.slane %v249, %v269
  %v294 = vperm.slane %v251, %v271
  %v295 = vsel %vm273, %v294, %v293
  %vm296 = vcmask 1041409
  %v297 = vsel %vm296, %v277, %v274
  %vm298 = vcmask 1042434
  %v299 = vsel %vm298, %v280, %v297
  %vm300 = vcmask 1043459
  %v301 = vsel %vm300, %v283, %v299
  %vm302 = vcmask 1044484
  %v303 = vsel %vm302, %v286, %v301
  %vm304 = vcmask 1045509
  %v305 = vsel %vm304, %v289, %v303
  %vm306 = vcmask 1046534
  %v307 = vsel %vm306, %v292, %v305
  %vm308 = vcmask 1047559
  %v309 = vsel %vm308, %v295, %v307
  %vm311 = vcmask 130048
  %v312 = vsel %vm311, %v309, -inf
  %313 = vmax.xlane.f32.xlu0 %v312
  %v314 = vpop.xlane.xlu0 %313
  %v316 = vperm.slane %v314, 0
  %v317 = vperm.slane %v314, 1
  %v318 = vperm.slane %v314, 2
  %v319 = vperm.slane %v314, 3
  %v320 = vperm.slane %v314, 4
  %v321 = vperm.slane %v314, 5
  %v322 = vperm.slane %v314, 6
  %v323 = vperm.slane %v314, 7
  %v332 = vsub.f32 %v221, %v316
  %v333 = vsub.f32 %v223, %v316
  %v334 = vsub.f32 %v225, %v317
  %v335 = vsub.f32 %v227, %v317
  %v336 = vsub.f32 %v229, %v318
  %v337 = vsub.f32 %v231, %v318
  %v338 = vsub.f32 %v233, %v319
  %v339 = vsub.f32 %v235, %v319
  %v340 = vsub.f32 %v237, %v320
  %v341 = vsub.f32 %v239, %v320
  %v342 = vsub.f32 %v241, %v321
  %v343 = vsub.f32 %v243, %v321
  %v344 = vsub.f32 %v245, %v322
  %v345 = vsub.f32 %v247, %v322
  %v346 = vsub.f32 %v249, %v323
  %v347 = vsub.f32 %v251, %v323
  %v348 = vmul.f32 %v332, 1.442695
  %v349 = vpow.pop %v348
  %v350 = vmul.f32 %v333, 1.442695
  %v351 = vpow.pop %v350
  %v352 = vmul.f32 %v334, 1.442695
  %v353 = vpow.pop %v352
  %v354 = vmul.f32 %v335, 1.442695
  %v355 = vpow.pop %v354
  %v356 = vmul.f32 %v336, 1.442695
  %v357 = vpow.pop %v356
  %v358 = vmul.f32 %v337, 1.442695
  %v359 = vpow.pop %v358
  %v360 = vmul.f32 %v338, 1.442695
  %v361 = vpow.pop %v360
  %v362 = vmul.f32 %v339, 1.442695
  %v363 = vpow.pop %v362
  %v364 = vmul.f32 %v340, 1.442695
  %v365 = vpow.pop %v364
  %v366 = vmul.f32 %v341, 1.442695
  %v367 = vpow.pop %v366
  %v368 = vmul.f32 %v342, 1.442695
  %v369 = vpow.pop %v368
  %v370 = vmul.f32 %v343, 1.442695
  %v371 = vpow.pop %v370
  %v372 = vmul.f32 %v344, 1.442695
  %v373 = vpow.pop %v372
  %v374 = vmul.f32 %v345, 1.442695
  %v375 = vpow.pop %v374
  %v376 = vmul.f32 %v346, 1.442695
  %v377 = vpow.pop %v376
  %v378 = vmul.f32 %v347, 1.442695
  %v379 = vpow.pop %v378
  %396 = vset.pattern.permute.xlu0 0
  %397 = vperm.xlu0 %396, %v349
  %v398 = vpop.permute.xlu0 %397
  %399 = vset.pattern.permute.xlu0 0
  %400 = vperm.xlu0 %399, %v351
  %v401 = vpop.permute.xlu0 %400
  %402 = vset.pattern.permute.xlu0 0
  %403 = vperm.xlu0 %402, %v353
  %v404 = vpop.permute.xlu0 %403
  %405 = vset.pattern.permute.xlu0 0
  %406 = vperm.xlu0 %405, %v355
  %v407 = vpop.permute.xlu0 %406
  %408 = vset.pattern.permute.xlu0 0
  %409 = vperm.xlu0 %408, %v357
  %v410 = vpop.permute.xlu0 %409
  %411 = vset.pattern.permute.xlu0 0
  %412 = vperm.xlu0 %411, %v359
  %v413 = vpop.permute.xlu0 %412
  %414 = vset.pattern.permute.xlu0 0
  %415 = vperm.xlu0 %414, %v361
  %v416 = vpop.permute.xlu0 %415
  %417 = vset.pattern.permute.xlu0 0
  %418 = vperm.xlu0 %417, %v363
  %v419 = vpop.permute.xlu0 %418
  %420 = vset.pattern.permute.xlu0 0
  %421 = vperm.xlu0 %420, %v365
  %v422 = vpop.permute.xlu0 %421
  %423 = vset.pattern.permute.xlu0 0
  %424 = vperm.xlu0 %423, %v367
  %v425 = vpop.permute.xlu0 %424
  %426 = vset.pattern.permute.xlu0 0
  %427 = vperm.xlu0 %426, %v369
  %v428 = vpop.permute.xlu0 %427
  %429 = vset.pattern.permute.xlu0 0
  %430 = vperm.xlu0 %429, %v371
  %v431 = vpop.permute.xlu0 %430
  %432 = vset.pattern.permute.xlu0 0
  %433 = vperm.xlu0 %432, %v373
  %v434 = vpop.permute.xlu0 %433
  %435 = vset.pattern.permute.xlu0 0
  %436 = vperm.xlu0 %435, %v375
  %v437 = vpop.permute.xlu0 %436
  %438 = vset.pattern.permute.xlu0 0
  %439 = vperm.xlu0 %438, %v377
  %v440 = vpop.permute.xlu0 %439
  %441 = vset.pattern.permute.xlu0 0
  %442 = vperm.xlu0 %441, %v379
  %v443 = vpop.permute.xlu0 %442
  %v444 = vperm.slane %v398, %v269
  %v445 = vperm.slane %v401, %v271
  %v446 = vsel %vm273, %v445, %v444
  %v447 = vperm.slane %v404, %v269
  %v448 = vperm.slane %v407, %v271
  %v449 = vsel %vm273, %v448, %v447
  %v450 = vperm.slane %v410, %v269
  %v451 = vperm.slane %v413, %v271
  %v452 = vsel %vm273, %v451, %v450
  %v453 = vperm.slane %v416, %v269
  %v454 = vperm.slane %v419, %v271
  %v455 = vsel %vm273, %v454, %v453
  %v456 = vperm.slane %v422, %v269
  %v457 = vperm.slane %v425, %v271
  %v458 = vsel %vm273, %v457, %v456
  %v459 = vperm.slane %v428, %v269
  %v460 = vperm.slane %v431, %v271
  %v461 = vsel %vm273, %v460, %v459
  %v462 = vperm.slane %v434, %v269
  %v463 = vperm.slane %v437, %v271
  %v464 = vsel %vm273, %v463, %v462
  %v465 = vperm.slane %v440, %v269
  %v466 = vperm.slane %v443, %v271
  %v467 = vsel %vm273, %v466, %v465
  %v468 = vsel %vm296, %v449, %v446
  %v469 = vsel %vm298, %v452, %v468
  %v470 = vsel %vm300, %v455, %v469
  %v471 = vsel %vm302, %v458, %v470
  %v472 = vsel %vm304, %v461, %v471
  %v473 = vsel %vm306, %v464, %v472
  %v474 = vsel %vm308, %v467, %v473
  %v476 = vsel %vm311, %v474, 0.0
  %477 = vadd.xlane.f32.xlu0 %v476
  %v478 = vpop.xlane.xlu0 %477
  %v479 = vrcp.pop %v478
  %v481 = vperm.slane %v479, 0
  %v482 = vperm.slane %v479, 1
  %v483 = vperm.slane %v479, 2
  %v484 = vperm.slane %v479, 3
  %v485 = vperm.slane %v479, 4
  %v486 = vperm.slane %v479, 5
  %v487 = vperm.slane %v479, 6
  %v488 = vperm.slane %v479, 7
  %v497 = vmul.f32 %v349, %v481
  %v498 = vmul.f32 %v351, %v481
  %v499 = vmul.f32 %v353, %v482
  %v500 = vmul.f32 %v355, %v482
  %v501 = vmul.f32 %v357, %v483
  %v502 = vmul.f32 %v359, %v483
  %v503 = vmul.f32 %v361, %v484
  %v504 = vmul.f32 %v363, %v484
  %v505 = vmul.f32 %v365, %v485
  %v506 = vmul.f32 %v367, %v485
  %v507 = vmul.f32 %v369, %v486
  %v508 = vmul.f32 %v371, %v486
  %v509 = vmul.f32 %v373, %v487
  %v510 = vmul.f32 %v375, %v487
  %v511 = vmul.f32 %v377, %v488
  %v512 = vmul.f32 %v379, %v488
  %v513 = vld [vmem:[%s1] sm:$0xf]
  %v514 = vld [vmem:[%s1 + $0x4] sm:$0xf]
  %v515 = vld [vmem:[%s1 + $0x8] sm:$0xf]
  %v516 = vld [vmem:[%s1 + $0xc] sm:$0xf]
  %v517 = vld [vmem:[%s1 + $0x10] sm:$0xf]
  %v518 = vld [vmem:[%s1 + $0x14] sm:$0xf]
  %v519 = vld [vmem:[%s1 + $0x18] sm:$0xf]
  %v520 = vld [vmem:[%s1 + $0x1c] sm:$0xf]
  %v521 = vld [vmem:[%s1 + $0x20] sm:$0xf]
  %v522 = vld [vmem:[%s1 + $0x24] sm:$0xf]
  %v523 = vld [vmem:[%s1 + $0x28] sm:$0xf]
  %v524 = vld [vmem:[%s1 + $0x2c] sm:$0xf]
  %v525 = vld [vmem:[%s1 + $0x30] sm:$0xf]
  %v526 = vld [vmem:[%s1 + $0x34] sm:$0xf]
  %v527 = vld [vmem:[%s1 + $0x38] sm:$0xf]
  %v528 = vld [vmem:[%s1 + $0x3c] sm:$0xf]
  %v529 = vunpack.c.l.bf16 %v513
  %v530 = vunpack.c.l.bf16 %v514
  %v531 = vunpack.c.l.bf16 %v515
  %v532 = vunpack.c.l.bf16 %v516
  %v533 = vunpack.c.l.bf16 %v517
  %v534 = vunpack.c.l.bf16 %v518
  %v535 = vunpack.c.l.bf16 %v519
  %v536 = vunpack.c.l.bf16 %v520
  %v537 = vunpack.c.l.bf16 %v521
  %v538 = vunpack.c.l.bf16 %v522
  %v539 = vunpack.c.l.bf16 %v523
  %v540 = vunpack.c.l.bf16 %v524
  %v541 = vunpack.c.l.bf16 %v525
  %v542 = vunpack.c.l.bf16 %v526
  %v543 = vunpack.c.l.bf16 %v527
  %v544 = vunpack.c.l.bf16 %v528
  %546 = vset.pattern.permute.xlu0 0
  %547 = vperm.xlu0 %546, %v497
  %v548 = vpop.permute.xlu0 %547
  %551 = vset.pattern.permute.xlu0 0
  %552 = vperm.xlu0 %551, %v498
  %v553 = vpop.permute.xlu0 %552
  %556 = vset.pattern.permute.xlu0 0
  %557 = vperm.xlu0 %556, %v499
  %v558 = vpop.permute.xlu0 %557
  %561 = vset.pattern.permute.xlu0 0
  %562 = vperm.xlu0 %561, %v500
  %v563 = vpop.permute.xlu0 %562
  %566 = vset.pattern.permute.xlu0 0
  %567 = vperm.xlu0 %566, %v501
  %v568 = vpop.permute.xlu0 %567
  %571 = vset.pattern.permute.xlu0 0
  %572 = vperm.xlu0 %571, %v502
  %v573 = vpop.permute.xlu0 %572
  %576 = vset.pattern.permute.xlu0 0
  %577 = vperm.xlu0 %576, %v503
  %v578 = vpop.permute.xlu0 %577
  %581 = vset.pattern.permute.xlu0 0
  %582 = vperm.xlu0 %581, %v504
  %v583 = vpop.permute.xlu0 %582
  %586 = vset.pattern.permute.xlu0 0
  %587 = vperm.xlu0 %586, %v505
  %v588 = vpop.permute.xlu0 %587
  %591 = vset.pattern.permute.xlu0 0
  %592 = vperm.xlu0 %591, %v506
  %v593 = vpop.permute.xlu0 %592
  %596 = vset.pattern.permute.xlu0 0
  %597 = vperm.xlu0 %596, %v507
  %v598 = vpop.permute.xlu0 %597
  %601 = vset.pattern.permute.xlu0 0
  %602 = vperm.xlu0 %601, %v508
  %v603 = vpop.permute.xlu0 %602
  %606 = vset.pattern.permute.xlu0 0
  %607 = vperm.xlu0 %606, %v509
  %v608 = vpop.permute.xlu0 %607
  %611 = vset.pattern.permute.xlu0 0
  %612 = vperm.xlu0 %611, %v510
  %v613 = vpop.permute.xlu0 %612
  %616 = vset.pattern.permute.xlu0 0
  %617 = vperm.xlu0 %616, %v511
  %v618 = vpop.permute.xlu0 %617
  %621 = vset.pattern.permute.xlu0 0
  %622 = vperm.xlu0 %621, %v512
  %v623 = vpop.permute.xlu0 %622
  %v625 = vmul.f32 %v529, %v548
  %v626 = vmul.f32 %v530, %v553
  %v627 = vmul.f32 %v531, %v558
  %v628 = vmul.f32 %v532, %v563
  %v629 = vmul.f32 %v533, %v568
  %v630 = vmul.f32 %v534, %v573
  %v631 = vmul.f32 %v535, %v578
  %v632 = vmul.f32 %v536, %v583
  %v633 = vmul.f32 %v537, %v588
  %v634 = vmul.f32 %v538, %v593
  %v635 = vmul.f32 %v539, %v598
  %v636 = vmul.f32 %v540, %v603
  %v637 = vmul.f32 %v541, %v608
  %v638 = vmul.f32 %v542, %v613
  %v639 = vmul.f32 %v543, %v618
  %v640 = vmul.f32 %v544, %v623
  %vm641 = vcmask 261120
  %v642 = vsel %vm641, %v625, 0.0
  %v643 = vsel %vm641, %v626, 0.0
  %v644 = vadd.f32 %v642, %v643
  %v645 = vrot.slane %v644, 4
  %v646 = vadd.f32 %v644, %v645
  %v647 = vrot.slane %v646, 2
  %v648 = vadd.f32 %v646, %v647
  %v649 = vrot.slane %v648, 1
  %v650 = vadd.f32 %v648, %v649
  %v651 = vsel %vm641, %v627, 0.0
  %v652 = vsel %vm641, %v628, 0.0
  %v653 = vadd.f32 %v651, %v652
  %v654 = vrot.slane %v653, 4
  %v655 = vadd.f32 %v653, %v654
  %v656 = vrot.slane %v655, 2
  %v657 = vadd.f32 %v655, %v656
  %v658 = vrot.slane %v657, 1
  %v659 = vadd.f32 %v657, %v658
  %v660 = vsel %vm641, %v629, 0.0
  %v661 = vsel %vm641, %v630, 0.0
  %v662 = vadd.f32 %v660, %v661
  %v663 = vrot.slane %v662, 4
  %v664 = vadd.f32 %v662, %v663
  %v665 = vrot.slane %v664, 2
  %v666 = vadd.f32 %v664, %v665
  %v667 = vrot.slane %v666, 1
  %v668 = vadd.f32 %v666, %v667
  %v669 = vsel %vm641, %v631, 0.0
  %v670 = vsel %vm641, %v632, 0.0
  %v671 = vadd.f32 %v669, %v670
  %v672 = vrot.slane %v671, 4
  %v673 = vadd.f32 %v671, %v672
  %v674 = vrot.slane %v673, 2
  %v675 = vadd.f32 %v673, %v674
  %v676 = vrot.slane %v675, 1
  %v677 = vadd.f32 %v675, %v676
  %v678 = vsel %vm641, %v633, 0.0
  %v679 = vsel %vm641, %v634, 0.0
  %v680 = vadd.f32 %v678, %v679
  %v681 = vrot.slane %v680, 4
  %v682 = vadd.f32 %v680, %v681
  %v683 = vrot.slane %v682, 2
  %v684 = vadd.f32 %v682, %v683
  %v685 = vrot.slane %v684, 1
  %v686 = vadd.f32 %v684, %v685
  %v687 = vsel %vm641, %v635, 0.0
  %v688 = vsel %vm641, %v636, 0.0
  %v689 = vadd.f32 %v687, %v688
  %v690 = vrot.slane %v689, 4
  %v691 = vadd.f32 %v689, %v690
  %v692 = vrot.slane %v691, 2
  %v693 = vadd.f32 %v691, %v692
  %v694 = vrot.slane %v693, 1
  %v695 = vadd.f32 %v693, %v694
  %v696 = vsel %vm641, %v637, 0.0
  %v697 = vsel %vm641, %v638, 0.0
  %v698 = vadd.f32 %v696, %v697
  %v699 = vrot.slane %v698, 4
  %v700 = vadd.f32 %v698, %v699
  %v701 = vrot.slane %v700, 2
  %v702 = vadd.f32 %v700, %v701
  %v703 = vrot.slane %v702, 1
  %v704 = vadd.f32 %v702, %v703
  %v705 = vsel %vm641, %v639, 0.0
  %v706 = vsel %vm641, %v640, 0.0
  %v707 = vadd.f32 %v705, %v706
  %v708 = vrot.slane %v707, 4
  %v709 = vadd.f32 %v707, %v708
  %v710 = vrot.slane %v709, 2
  %v711 = vadd.f32 %v709, %v710
  %v712 = vrot.slane %v711, 1
  %v713 = vadd.f32 %v711, %v712
  %v714 = vpack.c.bf16 %v650, %v650
  %v715 = vpack.c.bf16 %v659, %v659
  %v716 = vpack.c.bf16 %v668, %v668
  %v717 = vpack.c.bf16 %v677, %v677
  %v718 = vpack.c.bf16 %v686, %v686
  %v719 = vpack.c.bf16 %v695, %v695
  %v720 = vpack.c.bf16 %v704, %v704
  %v721 = vpack.c.bf16 %v713, %v713
  %v730 = vunpack.c.l.b16 %v714
  %v731 = vunpack.c.l.b16 %v715
  %v732 = vunpack.c.l.b16 %v716
  %v733 = vunpack.c.l.b16 %v717
  %v734 = vunpack.c.l.b16 %v718
  %v735 = vunpack.c.l.b16 %v719
  %v736 = vunpack.c.l.b16 %v720
  %v737 = vunpack.c.l.b16 %v721
  %v738 = vsel %vm296, %v731, %v730
  %v739 = vsel %vm298, %v732, %v738
  %v740 = vsel %vm300, %v733, %v739
  %v741 = vsel %vm302, %v734, %v740
  %v742 = vsel %vm304, %v735, %v741
  %v743 = vsel %vm306, %v736, %v742
  %v744 = vsel %vm308, %v737, %v743
  %v745 = vpack.c.b16 %v744, %v744
  %vm747 = vcmask 257024
  %748 = vst.msk [vmem:[#allocation2] sm:$0xf] %vm747, %v745
  %749 = vst [vmem:[#allocation2 + $0x4] sm:$0xf] 0
  %v750 = vld [vmem:[%s2] sm:$0xff]
  %v751 = vld [vmem:[%s2 + $0x8] sm:$0xff]
  %v752 = vunpack.c.l.bf16 %v750
  %v753 = vunpack.c.h.bf16 %v750
  %v754 = vunpack.c.l.bf16 %v751
  %v755 = vunpack.c.h.bf16 %v751
  %v756 = vld [vmem:[#allocation2] sm:$0xff]
  %v757 = vld [vmem:[%s5] sm:$0xff]
  %v758 = vld [vmem:[%s5 + $0x8] sm:$0xff]
  %v759 = vld [vmem:[%s5 + $0x10] sm:$0xff]
  %v760 = vld [vmem:[%s5 + $0x18] sm:$0xff]
  %v761 = vld [vmem:[%s5 + $0x20] sm:$0xff]
  %v762 = vld [vmem:[%s5 + $0x28] sm:$0xff]
  %v763 = vld [vmem:[%s5 + $0x30] sm:$0xff]
  %v764 = vld [vmem:[%s5 + $0x38] sm:$0xff]
  %v765 = vld [vmem:[%s5 + $0x40] sm:$0xff]
  %v766 = vld [vmem:[%s5 + $0x48] sm:$0xff]
  %v767 = vld [vmem:[%s5 + $0x50] sm:$0xff]
  %v768 = vld [vmem:[%s5 + $0x58] sm:$0xff]
  %v769 = vld [vmem:[%s5 + $0x60] sm:$0xff]
  %v770 = vld [vmem:[%s5 + $0x68] sm:$0xff]
  %v771 = vld [vmem:[%s5 + $0x70] sm:$0xff]
  %v772 = vld [vmem:[%s5 + $0x78] sm:$0xff]
  %v773 = vld [vmem:[%s5 + $0x80] sm:$0xff]
  %v774 = vld [vmem:[%s5 + $0x88] sm:$0xff]
  %v775 = vld [vmem:[%s5 + $0x90] sm:$0xff]
  %v776 = vld [vmem:[%s5 + $0x98] sm:$0xff]
  %v777 = vld [vmem:[%s5 + $0xa0] sm:$0xff]
  %v778 = vld [vmem:[%s5 + $0xa8] sm:$0xff]
  %v779 = vld [vmem:[%s5 + $0xb0] sm:$0xff]
  %v780 = vld [vmem:[%s5 + $0xb8] sm:$0xff]
  %v781 = vld [vmem:[%s5 + $0xc0] sm:$0xff]
  %v782 = vld [vmem:[%s5 + $0xc8] sm:$0xff]
  %v783 = vld [vmem:[%s5 + $0xd0] sm:$0xff]
  %v784 = vld [vmem:[%s5 + $0xd8] sm:$0xff]
  %v785 = vld [vmem:[%s5 + $0xe0] sm:$0xff]
  %v786 = vld [vmem:[%s5 + $0xe8] sm:$0xff]
  %v787 = vld [vmem:[%s5 + $0xf0] sm:$0xff]
  %v788 = vld [vmem:[%s5 + $0xf8] sm:$0xff]
  %v789 = vld [vmem:[%s5 + $0x100] sm:$0xff]
  %v790 = vld [vmem:[%s5 + $0x108] sm:$0xff]
  %v791 = vld [vmem:[%s5 + $0x110] sm:$0xff]
  %v792 = vld [vmem:[%s5 + $0x118] sm:$0xff]
  %v793 = vld [vmem:[%s5 + $0x120] sm:$0xff]
  %v794 = vld [vmem:[%s5 + $0x128] sm:$0xff]
  %v795 = vld [vmem:[%s5 + $0x130] sm:$0xff]
  %v796 = vld [vmem:[%s5 + $0x138] sm:$0xff]
  %v797 = vld [vmem:[%s5 + $0x140] sm:$0xff]
  %v798 = vld [vmem:[%s5 + $0x148] sm:$0xff]
  %v799 = vld [vmem:[%s5 + $0x150] sm:$0xff]
  %v800 = vld [vmem:[%s5 + $0x158] sm:$0xff]
  %v801 = vld [vmem:[%s5 + $0x160] sm:$0xff]
  %v802 = vld [vmem:[%s5 + $0x168] sm:$0xff]
  %v803 = vld [vmem:[%s5 + $0x170] sm:$0xff]
  %v804 = vld [vmem:[%s5 + $0x178] sm:$0xff]
  %v805 = vld [vmem:[%s5 + $0x180] sm:$0xff]
  %v806 = vld [vmem:[%s5 + $0x188] sm:$0xff]
  %v807 = vld [vmem:[%s5 + $0x190] sm:$0xff]
  %v808 = vld [vmem:[%s5 + $0x198] sm:$0xff]
  %v809 = vld [vmem:[%s5 + $0x1a0] sm:$0xff]
  %v810 = vld [vmem:[%s5 + $0x1a8] sm:$0xff]
  %v811 = vld [vmem:[%s5 + $0x1b0] sm:$0xff]
  %v812 = vld [vmem:[%s5 + $0x1b8] sm:$0xff]
  %v813 = vld [vmem:[%s5 + $0x1c0] sm:$0xff]
  %v814 = vld [vmem:[%s5 + $0x1c8] sm:$0xff]
  %v815 = vld [vmem:[%s5 + $0x1d0] sm:$0xff]
  %v816 = vld [vmem:[%s5 + $0x1d8] sm:$0xff]
  %v817 = vld [vmem:[%s5 + $0x1e0] sm:$0xff]
  %v818 = vld [vmem:[%s5 + $0x1e8] sm:$0xff]
  %v819 = vld [vmem:[%s5 + $0x1f0] sm:$0xff]
  %v820 = vld [vmem:[%s5 + $0x1f8] sm:$0xff]
  %v822 = vunpack.c.l.b16 %v756
  %v823 = vunpack.c.h.b16 %v756
  %v824 = vpack.c.b16 %v822, %v822
  %v825 = vpack.c.b16 %v823, %v823
  %v892 = vunpack.c.l.b16 %v757
  %v893 = vunpack.c.h.b16 %v757
  %v894 = vunpack.c.l.b16 %v758
  %v895 = vunpack.c.h.b16 %v758
  %v896 = vunpack.c.l.b16 %v759
  %v897 = vunpack.c.h.b16 %v759
  %v898 = vunpack.c.l.b16 %v760
  %v899 = vunpack.c.h.b16 %v760
  %v900 = vunpack.c.l.b16 %v761
  %v901 = vunpack.c.h.b16 %v761
  %v902 = vunpack.c.l.b16 %v762
  %v903 = vunpack.c.h.b16 %v762
  %v904 = vunpack.c.l.b16 %v763
  %v905 = vunpack.c.h.b16 %v763
  %v906 = vunpack.c.l.b16 %v764
  %v907 = vunpack.c.h.b16 %v764
  %v908 = vunpack.c.l.b16 %v765
  %v909 = vunpack.c.h.b16 %v765
  %v910 = vunpack.c.l.b16 %v766
  %v911 = vunpack.c.h.b16 %v766
  %v912 = vunpack.c.l.b16 %v767
  %v913 = vunpack.c.h.b16 %v767
  %v914 = vunpack.c.l.b16 %v768
  %v915 = vunpack.c.h.b16 %v768
  %v916 = vunpack.c.l.b16 %v769
  %v917 = vunpack.c.h.b16 %v769
  %v918 = vunpack.c.l.b16 %v770
  %v919 = vunpack.c.h.b16 %v770
  %v920 = vunpack.c.l.b16 %v771
  %v921 = vunpack.c.h.b16 %v771
  %v922 = vunpack.c.l.b16 %v772
  %v923 = vunpack.c.h.b16 %v772
  %v924 = vunpack.c.l.b16 %v773
  %v925 = vunpack.c.h.b16 %v773
  %v926 = vunpack.c.l.b16 %v774
  %v927 = vunpack.c.h.b16 %v774
  %v928 = vunpack.c.l.b16 %v775
  %v929 = vunpack.c.h.b16 %v775
  %v930 = vunpack.c.l.b16 %v776
  %v931 = vunpack.c.h.b16 %v776
  %v932 = vunpack.c.l.b16 %v777
  %v933 = vunpack.c.h.b16 %v777
  %v934 = vunpack.c.l.b16 %v778
  %v935 = vunpack.c.h.b16 %v778
  %v936 = vunpack.c.l.b16 %v779
  %v937 = vunpack.c.h.b16 %v779
  %v938 = vunpack.c.l.b16 %v780
  %v939 = vunpack.c.h.b16 %v780
  %v940 = vunpack.c.l.b16 %v781
  %v941 = vunpack.c.h.b16 %v781
  %v942 = vunpack.c.l.b16 %v782
  %v943 = vunpack.c.h.b16 %v782
  %v944 = vunpack.c.l.b16 %v783
  %v945 = vunpack.c.h.b16 %v783
  %v946 = vunpack.c.l.b16 %v784
  %v947 = vunpack.c.h.b16 %v784
  %v948 = vunpack.c.l.b16 %v785
  %v949 = vunpack.c.h.b16 %v785
  %v950 = vunpack.c.l.b16 %v786
  %v951 = vunpack.c.h.b16 %v786
  %v952 = vunpack.c.l.b16 %v787
  %v953 = vunpack.c.h.b16 %v787
  %v954 = vunpack.c.l.b16 %v788
  %v955 = vunpack.c.h.b16 %v788
  %v956 = vunpack.c.l.b16 %v789
  %v957 = vunpack.c.h.b16 %v789
  %v958 = vunpack.c.l.b16 %v790
  %v959 = vunpack.c.h.b16 %v790
  %v960 = vunpack.c.l.b16 %v791
  %v961 = vunpack.c.h.b16 %v791
  %v962 = vunpack.c.l.b16 %v792
  %v963 = vunpack.c.h.b16 %v792
  %v964 = vunpack.c.l.b16 %v793
  %v965 = vunpack.c.h.b16 %v793
  %v966 = vunpack.c.l.b16 %v794
  %v967 = vunpack.c.h.b16 %v794
  %v968 = vunpack.c.l.b16 %v795
  %v969 = vunpack.c.h.b16 %v795
  %v970 = vunpack.c.l.b16 %v796
  %v971 = vunpack.c.h.b16 %v796
  %v972 = vunpack.c.l.b16 %v797
  %v973 = vunpack.c.h.b16 %v797
  %v974 = vunpack.c.l.b16 %v798
  %v975 = vunpack.c.h.b16 %v798
  %v976 = vunpack.c.l.b16 %v799
  %v977 = vunpack.c.h.b16 %v799
  %v978 = vunpack.c.l.b16 %v800
  %v979 = vunpack.c.h.b16 %v800
  %v980 = vunpack.c.l.b16 %v801
  %v981 = vunpack.c.h.b16 %v801
  %v982 = vunpack.c.l.b16 %v802
  %v983 = vunpack.c.h.b16 %v802
  %v984 = vunpack.c.l.b16 %v803
  %v985 = vunpack.c.h.b16 %v803
  %v986 = vunpack.c.l.b16 %v804
  %v987 = vunpack.c.h.b16 %v804
  %v988 = vunpack.c.l.b16 %v805
  %v989 = vunpack.c.h.b16 %v805
  %v990 = vunpack.c.l.b16 %v806
  %v991 = vunpack.c.h.b16 %v806
  %v992 = vunpack.c.l.b16 %v807
  %v993 = vunpack.c.h.b16 %v807
  %v994 = vunpack.c.l.b16 %v808
  %v995 = vunpack.c.h.b16 %v808
  %v996 = vunpack.c.l.b16 %v809
  %v997 = vunpack.c.h.b16 %v809
  %v998 = vunpack.c.l.b16 %v810
  %v999 = vunpack.c.h.b16 %v810
  %v1000 = vunpack.c.l.b16 %v811
  %v1001 = vunpack.c.h.b16 %v811
  %v1002 = vunpack.c.l.b16 %v812
  %v1003 = vunpack.c.h.b16 %v812
  %v1004 = vunpack.c.l.b16 %v813
  %v1005 = vunpack.c.h.b16 %v813
  %v1006 = vunpack.c.l.b16 %v814
  %v1007 = vunpack.c.h.b16 %v814
  %v1008 = vunpack.c.l.b16 %v815
  %v1009 = vunpack.c.h.b16 %v815
  %v1010 = vunpack.c.l.b16 %v816
  %v1011 = vunpack.c.h.b16 %v816
  %v1012 = vunpack.c.l.b16 %v817
  %v1013 = vunpack.c.h.b16 %v817
  %v1014 = vunpack.c.l.b16 %v818
  %v1015 = vunpack.c.h.b16 %v818
  %v1016 = vunpack.c.l.b16 %v819
  %v1017 = vunpack.c.h.b16 %v819
  %v1018 = vunpack.c.l.b16 %v820
  %v1019 = vunpack.c.h.b16 %v820
  %v1020 = vpack.c.b16 %v896, %v892
  %v1021 = vpack.c.b16 %v897, %v893
  %v1022 = vpack.c.b16 %v898, %v894
  %v1023 = vpack.c.b16 %v899, %v895
  %v1024 = vpack.c.b16 %v904, %v900
  %v1025 = vpack.c.b16 %v905, %v901
  %v1026 = vpack.c.b16 %v906, %v902
  %v1027 = vpack.c.b16 %v907, %v903
  %v1028 = vpack.c.b16 %v912, %v908
  %v1029 = vpack.c.b16 %v913, %v909
  %v1030 = vpack.c.b16 %v914, %v910
  %v1031 = vpack.c.b16 %v915, %v911
  %v1032 = vpack.c.b16 %v920, %v916
  %v1033 = vpack.c.b16 %v921, %v917
  %v1034 = vpack.c.b16 %v922, %v918
  %v1035 = vpack.c.b16 %v923, %v919
  %v1036 = vpack.c.b16 %v928, %v924
  %v1037 = vpack.c.b16 %v929, %v925
  %v1038 = vpack.c.b16 %v930, %v926
  %v1039 = vpack.c.b16 %v931, %v927
  %v1040 = vpack.c.b16 %v936, %v932
  %v1041 = vpack.c.b16 %v937, %v933
  %v1042 = vpack.c.b16 %v938, %v934
  %v1043 = vpack.c.b16 %v939, %v935
  %v1044 = vpack.c.b16 %v944, %v940
  %v1045 = vpack.c.b16 %v945, %v941
  %v1046 = vpack.c.b16 %v946, %v942
  %v1047 = vpack.c.b16 %v947, %v943
  %v1048 = vpack.c.b16 %v952, %v948
  %v1049 = vpack.c.b16 %v953, %v949
  %v1050 = vpack.c.b16 %v954, %v950
  %v1051 = vpack.c.b16 %v955, %v951
  %v1052 = vpack.c.b16 %v960, %v956
  %v1053 = vpack.c.b16 %v961, %v957
  %v1054 = vpack.c.b16 %v962, %v958
  %v1055 = vpack.c.b16 %v963, %v959
  %v1056 = vpack.c.b16 %v968, %v964
  %v1057 = vpack.c.b16 %v969, %v965
  %v1058 = vpack.c.b16 %v970, %v966
  %v1059 = vpack.c.b16 %v971, %v967
  %v1060 = vpack.c.b16 %v976, %v972
  %v1061 = vpack.c.b16 %v977, %v973
  %v1062 = vpack.c.b16 %v978, %v974
  %v1063 = vpack.c.b16 %v979, %v975
  %v1064 = vpack.c.b16 %v984, %v980
  %v1065 = vpack.c.b16 %v985, %v981
  %v1066 = vpack.c.b16 %v986, %v982
  %v1067 = vpack.c.b16 %v987, %v983
  %v1068 = vpack.c.b16 %v992, %v988
  %v1069 = vpack.c.b16 %v993, %v989
  %v1070 = vpack.c.b16 %v994, %v990
  %v1071 = vpack.c.b16 %v995, %v991
  %v1072 = vpack.c.b16 %v1000, %v996
  %v1073 = vpack.c.b16 %v1001, %v997
  %v1074 = vpack.c.b16 %v1002, %v998
  %v1075 = vpack.c.b16 %v1003, %v999
  %v1076 = vpack.c.b16 %v1008, %v1004
  %v1077 = vpack.c.b16 %v1009, %v1005
  %v1078 = vpack.c.b16 %v1010, %v1006
  %v1079 = vpack.c.b16 %v1011, %v1007
  %v1080 = vpack.c.b16 %v1016, %v1012
  %v1081 = vpack.c.b16 %v1017, %v1013
  %v1082 = vpack.c.b16 %v1018, %v1014
  %v1083 = vpack.c.b16 %v1019, %v1015
  %1148 = vmatpush.bf16.msra.mxu0 %v1048
  %1149 = vmatpush.bf16.msra.mxu0 %v1044
  %1150 = vmatpush.bf16.msra.mxu0 %v1040
  %1151 = vmatpush.bf16.msra.mxu0 %v1036
  %1152 = vmatpush.bf16.msra.mxu0 %v1032
  %1153 = vmatpush.bf16.msra.mxu0 %v1028
  %1154 = vmatpush.bf16.msra.mxu0 %v1024
  %1155 = vmatpush.bf16.msra.mxu0 %v1020
  %1156 = vmatmul.bf16.gmra.mxu0 %v824
  %v1157 = vpop.f32.mrf.mxu0
  %v1158 = vadd.f32 0.0, %v1157
  %v1159 = vpop.f32.mrf.mxu0
  %1160 = vdwg.mxu0
  %1161 = vmatpush.bf16.msra.mxu0 %v1080
  %1162 = vmatpush.bf16.msra.mxu0 %v1076
  %1163 = vmatpush.bf16.msra.mxu0 %v1072
  %1164 = vmatpush.bf16.msra.mxu0 %v1068
  %1165 = vmatpush.bf16.msra.mxu0 %v1064
  %1166 = vmatpush.bf16.msra.mxu0 %v1060
  %1167 = vmatpush.bf16.msra.mxu0 %v1056
  %1168 = vmatpush.bf16.msra.mxu0 %v1052
  %1169 = vmatmul.bf16.gmra.mxu0 %v825
  %v1170 = vpop.f32.mrf.mxu0
  %v1171 = vadd.f32 %v1158, %v1170
  %v1172 = vpop.f32.mrf.mxu0
  %1173 = vdwg.mxu0
  %1174 = vmatpush.bf16.msra.mxu0 %v1049
  %1175 = vmatpush.bf16.msra.mxu0 %v1045
  %1176 = vmatpush.bf16.msra.mxu0 %v1041
  %1177 = vmatpush.bf16.msra.mxu0 %v1037
  %1178 = vmatpush.bf16.msra.mxu0 %v1033
  %1179 = vmatpush.bf16.msra.mxu0 %v1029
  %1180 = vmatpush.bf16.msra.mxu0 %v1025
  %1181 = vmatpush.bf16.msra.mxu0 %v1021
  %1182 = vmatmul.bf16.gmra.mxu0 %v824
  %v1183 = vpop.f32.mrf.mxu0
  %v1184 = vadd.f32 0.0, %v1183
  %v1185 = vpop.f32.mrf.mxu0
  %1186 = vdwg.mxu0
  %1187 = vmatpush.bf16.msra.mxu0 %v1081
  %1188 = vmatpush.bf16.msra.mxu0 %v1077
  %1189 = vmatpush.bf16.msra.mxu0 %v1073
  %1190 = vmatpush.bf16.msra.mxu0 %v1069
  %1191 = vmatpush.bf16.msra.mxu0 %v1065
  %1192 = vmatpush.bf16.msra.mxu0 %v1061
  %1193 = vmatpush.bf16.msra.mxu0 %v1057
  %1194 = vmatpush.bf16.msra.mxu0 %v1053
  %1195 = vmatmul.bf16.gmra.mxu0 %v825
  %v1196 = vpop.f32.mrf.mxu0
  %v1197 = vadd.f32 %v1184, %v1196
  %v1198 = vpop.f32.mrf.mxu0
  %1199 = vdwg.mxu0
  %1200 = vmatpush.bf16.msra.mxu0 %v1050
  %1201 = vmatpush.bf16.msra.mxu0 %v1046
  %1202 = vmatpush.bf16.msra.mxu0 %v1042
  %1203 = vmatpush.bf16.msra.mxu0 %v1038
  %1204 = vmatpush.bf16.msra.mxu0 %v1034
  %1205 = vmatpush.bf16.msra.mxu0 %v1030
  %1206 = vmatpush.bf16.msra.mxu0 %v1026
  %1207 = vmatpush.bf16.msra.mxu0 %v1022
  %1208 = vmatmul.bf16.gmra.mxu0 %v824
  %v1209 = vpop.f32.mrf.mxu0
  %v1210 = vadd.f32 0.0, %v1209
  %v1211 = vpop.f32.mrf.mxu0
  %1212 = vdwg.mxu0
  %1213 = vmatpush.bf16.msra.mxu0 %v1082
  %1214 = vmatpush.bf16.msra.mxu0 %v1078
  %1215 = vmatpush.bf16.msra.mxu0 %v1074
  %1216 = vmatpush.bf16.msra.mxu0 %v1070
  %1217 = vmatpush.bf16.msra.mxu0 %v1066
  %1218 = vmatpush.bf16.msra.mxu0 %v1062
  %1219 = vmatpush.bf16.msra.mxu0 %v1058
  %1220 = vmatpush.bf16.msra.mxu0 %v1054
  %1221 = vmatmul.bf16.gmra.mxu0 %v825
  %v1222 = vpop.f32.mrf.mxu0
  %v1223 = vadd.f32 %v1210, %v1222
  %v1224 = vpop.f32.mrf.mxu0
  %1225 = vdwg.mxu0
  %1226 = vmatpush.bf16.msra.mxu0 %v1051
  %1227 = vmatpush.bf16.msra.mxu0 %v1047
  %1228 = vmatpush.bf16.msra.mxu0 %v1043
  %1229 = vmatpush.bf16.msra.mxu0 %v1039
  %1230 = vmatpush.bf16.msra.mxu0 %v1035
  %1231 = vmatpush.bf16.msra.mxu0 %v1031
  %1232 = vmatpush.bf16.msra.mxu0 %v1027
  %1233 = vmatpush.bf16.msra.mxu0 %v1023
  %1234 = vmatmul.bf16.gmra.mxu0 %v824
  %v1235 = vpop.f32.mrf.mxu0
  %v1236 = vadd.f32 0.0, %v1235
  %v1237 = vpop.f32.mrf.mxu0
  %1238 = vdwg.mxu0
  %1239 = vmatpush.bf16.msra.mxu0 %v1083
  %1240 = vmatpush.bf16.msra.mxu0 %v1079
  %1241 = vmatpush.bf16.msra.mxu0 %v1075
  %1242 = vmatpush.bf16.msra.mxu0 %v1071
  %1243 = vmatpush.bf16.msra.mxu0 %v1067
  %1244 = vmatpush.bf16.msra.mxu0 %v1063
  %1245 = vmatpush.bf16.msra.mxu0 %v1059
  %1246 = vmatpush.bf16.msra.mxu0 %v1055
  %1247 = vmatmul.bf16.gmra.mxu0 %v825
  %v1248 = vpop.f32.mrf.mxu0
  %v1249 = vadd.f32 %v1236, %v1248
  %v1250 = vpop.f32.mrf.mxu0
  %1251 = vdwg.mxu0
  %v1252 = vadd.f32 %v752, %v1171
  %v1253 = vadd.f32 %v753, %v1197
  %v1254 = vadd.f32 %v754, %v1223
  %v1255 = vadd.f32 %v755, %v1249
  %v1256 = vxor.u32 %v1252, 2147483648
  %v1257 = vmul.f32 %v1256, 1.442695
  %v1258 = vpow.pop %v1257
  %v1259 = vadd.f32 %v1258, 1.0
  %v1260 = vrcp.pop %v1259
  %v1261 = vmul.f32 %v1259, %v1260
  %v1262 = vsub.f32 1.0, %v1261
  %v1263 = vmul.f32 %v1260, %v1262
  %v1264 = vadd.f32 %v1260, %v1263
  %vm1265 = vweird.f32 %v1259
  %vm1266 = vweird.f32 %v1260
  %vm1267 = vmor %vm1265, %vm1266
  %v1268 = vsel %vm1267, %v1260, %v1264
  %v1269 = vand.u32 2147483647, %v1259
  %vm1270 = vcmp.eq.f32.partialorder %v1269, 8.507059e+37
  %v1271 = vand.u32 %v1259, 2147483648
  %v1272 = vor.u32 1.1754944e-38, %v1271
  %v1273 = vsel %vm1270, %v1272, %v1268
  %v1274 = vmul.f32 1.0, %v1273
  %v1275 = vxor.u32 %v1253, 2147483648
  %v1276 = vmul.f32 %v1275, 1.442695
  %v1277 = vpow.pop %v1276
  %v1278 = vadd.f32 %v1277, 1.0
  %v1279 = vrcp.pop %v1278
  %v1280 = vmul.f32 %v1278, %v1279
  %v1281 = vsub.f32 1.0, %v1280
  %v1282 = vmul.f32 %v1279, %v1281
  %v1283 = vadd.f32 %v1279, %v1282
  %vm1284 = vweird.f32 %v1278
  %vm1285 = vweird.f32 %v1279
  %vm1286 = vmor %vm1284, %vm1285
  %v1287 = vsel %vm1286, %v1279, %v1283
  %v1288 = vand.u32 2147483647, %v1278
  %vm1289 = vcmp.eq.f32.partialorder %v1288, 8.507059e+37
  %v1290 = vand.u32 %v1278, 2147483648
  %v1291 = vor.u32 1.1754944e-38, %v1290
  %v1292 = vsel %vm1289, %v1291, %v1287
  %v1293 = vmul.f32 1.0, %v1292
  %v1294 = vtanh.pop %v1254
  %v1295 = vxor.u32 %v1255, 2147483648
  %v1296 = vmul.f32 %v1295, 1.442695
  %v1297 = vpow.pop %v1296
  %v1298 = vadd.f32 %v1297, 1.0
  %v1299 = vrcp.pop %v1298
  %v1300 = vmul.f32 %v1298, %v1299
  %v1301 = vsub.f32 1.0, %v1300
  %v1302 = vmul.f32 %v1299, %v1301
  %v1303 = vadd.f32 %v1299, %v1302
  %vm1304 = vweird.f32 %v1298
  %vm1305 = vweird.f32 %v1299
  %vm1306 = vmor %vm1304, %vm1305
  %v1307 = vsel %vm1306, %v1299, %v1303
  %v1308 = vand.u32 2147483647, %v1298
  %vm1309 = vcmp.eq.f32.partialorder %v1308, 8.507059e+37
  %v1310 = vand.u32 %v1298, 2147483648
  %v1311 = vor.u32 1.1754944e-38, %v1310
  %v1312 = vsel %vm1309, %v1311, %v1307
  %v1313 = vmul.f32 1.0, %v1312
  %v1314 = vmul.f32 %v1293, 0.0
  %v1315 = vmul.f32 %v1274, %v1294
  %v1316 = vadd.f32 %v1314, %v1315
  %v1317 = vtanh.pop %v1316
  %v1318 = vmul.f32 %v1313, %v1317
  %1319 = vst [vmem:[%s6] sm:$0xff] %v1318
  %v1320 = vperm.slane %v548, %v269
  %v1321 = vperm.slane %v553, %v271
  %v1322 = vsel %vm273, %v1321, %v1320
  %v1323 = vperm.slane %v558, %v269
  %v1324 = vperm.slane %v563, %v271
  %v1325 = vsel %vm273, %v1324, %v1323
  %v1326 = vperm.slane %v568, %v269
  %v1327 = vperm.slane %v573, %v271
  %v1328 = vsel %vm273, %v1327, %v1326
  %v1329 = vperm.slane %v578, %v269
  %v1330 = vperm.slane %v583, %v271
  %v1331 = vsel %vm273, %v1330, %v1329
  %v1332 = vperm.slane %v588, %v269
  %v1333 = vperm.slane %v593, %v271
  %v1334 = vsel %vm273, %v1333, %v1332
  %v1335 = vperm.slane %v598, %v269
  %v1336 = vperm.slane %v603, %v271
  %v1337 = vsel %vm273, %v1336, %v1335
  %v1338 = vperm.slane %v608, %v269
  %v1339 = vperm.slane %v613, %v271
  %v1340 = vsel %vm273, %v1339, %v1338
  %v1341 = vperm.slane %v618, %v269
  %v1342 = vperm.slane %v623, %v271
  %v1343 = vsel %vm273, %v1342, %v1341
  %v1344 = vsel %vm296, %v1325, %v1322
  %v1345 = vsel %vm298, %v1328, %v1344
  %v1346 = vsel %vm300, %v1331, %v1345
  %v1347 = vsel %vm302, %v1334, %v1346
  %v1348 = vsel %vm304, %v1337, %v1347
  %v1349 = vsel %vm306, %v1340, %v1348
  %v1350 = vsel %vm308, %v1343, %v1349
  %1352 = vst.msk [vmem:[%s7] sm:$0xff] %vm311, %v1350
  %v1353 = vpack.c.bf16 %v1318, %v1318
  %v1354 = vld [vmem:[%s3] sm:$0xf]
  %v1355 = vld [vmem:[%s3 + $0x4] sm:$0xf]
  %v1356 = vld [vmem:[%s3 + $0x8] sm:$0xf]
  %v1357 = vld [vmem:[%s3 + $0xc] sm:$0xf]
  %v1358 = vld [vmem:[%s3 + $0x10] sm:$0xf]
  %v1359 = vld [vmem:[%s3 + $0x14] sm:$0xf]
  %v1360 = vld [vmem:[%s3 + $0x18] sm:$0xf]
  %v1361 = vld [vmem:[%s3 + $0x1c] sm:$0xf]
  %v1362 = vld [vmem:[%s3 + $0x20] sm:$0xf]
  %v1363 = vld [vmem:[%s3 + $0x24] sm:$0xf]
  %v1364 = vld [vmem:[%s3 + $0x28] sm:$0xf]
  %v1365 = vld [vmem:[%s3 + $0x2c] sm:$0xf]
  %v1366 = vld [vmem:[%s3 + $0x30] sm:$0xf]
  %v1367 = vld [vmem:[%s3 + $0x34] sm:$0xf]
  %v1368 = vld [vmem:[%s3 + $0x38] sm:$0xf]
  %v1369 = vld [vmem:[%s3 + $0x3c] sm:$0xf]
  %v1386 = vunpack.c.l.b16 %v1354
  %v1387 = vunpack.c.l.b16 %v1355
  %v1388 = vunpack.c.l.b16 %v1356
  %v1389 = vunpack.c.l.b16 %v1357
  %v1390 = vunpack.c.l.b16 %v1358
  %v1391 = vunpack.c.l.b16 %v1359
  %v1392 = vunpack.c.l.b16 %v1360
  %v1393 = vunpack.c.l.b16 %v1361
  %v1394 = vunpack.c.l.b16 %v1362
  %v1395 = vunpack.c.l.b16 %v1363
  %v1396 = vunpack.c.l.b16 %v1364
  %v1397 = vunpack.c.l.b16 %v1365
  %v1398 = vunpack.c.l.b16 %v1366
  %v1399 = vunpack.c.l.b16 %v1367
  %v1400 = vunpack.c.l.b16 %v1368
  %v1401 = vunpack.c.l.b16 %v1369
  %v1402 = vpack.c.b16 %v1387, %v1386
  %v1403 = vpack.c.b16 %v1389, %v1388
  %v1404 = vpack.c.b16 %v1391, %v1390
  %v1405 = vpack.c.b16 %v1393, %v1392
  %v1406 = vpack.c.b16 %v1395, %v1394
  %v1407 = vpack.c.b16 %v1397, %v1396
  %v1408 = vpack.c.b16 %v1399, %v1398
  %v1409 = vpack.c.b16 %v1401, %v1400
  %1418 = vmatpush.bf16.msra.mxu0 %v1409
  %1419 = vmatpush.bf16.msra.mxu0 %v1408
  %1420 = vmatpush.bf16.msra.mxu0 %v1407
  %1421 = vmatpush.bf16.msra.mxu0 %v1406
  %1422 = vmatpush.bf16.msra.mxu0 %v1405
  %1423 = vmatpush.bf16.msra.mxu0 %v1404
  %1424 = vmatpush.bf16.msra.mxu0 %v1403
  %1425 = vmatpush.bf16.msra.mxu0 %v1402
  %1426 = vmatmul.bf16.gmra.mxu0 %v1353
  %v1427 = vpop.f32.mrf.mxu0
  %v1428 = vadd.f32 0.0, %v1427
  %v1429 = vpop.f32.mrf.mxu0
  %1430 = vdwg.mxu0
  %v1431 = vld [vmem:[%s0] sm:$0xf]
  %v1432 = vld [vmem:[%s0 + $0x4] sm:$0xf]
  %v1433 = vld [vmem:[%s0 + $0x8] sm:$0xf]
  %v1434 = vld [vmem:[%s0 + $0xc] sm:$0xf]
  %v1435 = vld [vmem:[%s0 + $0x10] sm:$0xf]
  %v1436 = vld [vmem:[%s0 + $0x14] sm:$0xf]
  %v1437 = vld [vmem:[%s0 + $0x18] sm:$0xf]
  %v1438 = vld [vmem:[%s0 + $0x1c] sm:$0xf]
  %v1439 = vld [vmem:[%s0 + $0x20] sm:$0xf]
  %v1440 = vld [vmem:[%s0 + $0x24] sm:$0xf]
  %v1441 = vld [vmem:[%s0 + $0x28] sm:$0xf]
  %v1442 = vld [vmem:[%s0 + $0x2c] sm:$0xf]
  %v1443 = vld [vmem:[%s0 + $0x30] sm:$0xf]
  %v1444 = vld [vmem:[%s0 + $0x34] sm:$0xf]
  %v1445 = vld [vmem:[%s0 + $0x38] sm:$0xf]
  %v1446 = vld [vmem:[%s0 + $0x3c] sm:$0xf]
  %v1447 = vunpack.c.l.bf16 %v1431
  %v1448 = vunpack.c.l.bf16 %v1432
  %v1449 = vunpack.c.l.bf16 %v1433
  %v1450 = vunpack.c.l.bf16 %v1434
  %v1451 = vunpack.c.l.bf16 %v1435
  %v1452 = vunpack.c.l.bf16 %v1436
  %v1453 = vunpack.c.l.bf16 %v1437
  %v1454 = vunpack.c.l.bf16 %v1438
  %v1455 = vunpack.c.l.bf16 %v1439
  %v1456 = vunpack.c.l.bf16 %v1440
  %v1457 = vunpack.c.l.bf16 %v1441
  %v1458 = vunpack.c.l.bf16 %v1442
  %v1459 = vunpack.c.l.bf16 %v1443
  %v1460 = vunpack.c.l.bf16 %v1444
  %v1461 = vunpack.c.l.bf16 %v1445
  %v1462 = vunpack.c.l.bf16 %v1446
  %v1464 = vrot.slane %v1428, 1
  %v1465 = vrot.slane %v1428, 2
  %v1466 = vrot.slane %v1428, 3
  %v1467 = vrot.slane %v1428, 4
  %v1468 = vrot.slane %v1428, 5
  %v1469 = vrot.slane %v1428, 6
  %v1470 = vrot.slane %v1428, 7
  %v1471 = vperm.slane %v1428, 0
  %v1472 = vperm.slane %v1464, 0
  %v1473 = vperm.slane %v1465, 0
  %v1474 = vperm.slane %v1466, 0
  %v1475 = vperm.slane %v1467, 0
  %v1476 = vperm.slane %v1468, 0
  %v1477 = vperm.slane %v1469, 0
  %v1478 = vperm.slane %v1470, 0
  %v1487 = vadd.f32 %v1447, %v1471
  %v1488 = vadd.f32 %v1448, %v1471
  %v1489 = vadd.f32 %v1449, %v1472
  %v1490 = vadd.f32 %v1450, %v1472
  %v1491 = vadd.f32 %v1451, %v1473
  %v1492 = vadd.f32 %v1452, %v1473
  %v1493 = vadd.f32 %v1453, %v1474
  %v1494 = vadd.f32 %v1454, %v1474
  %v1495 = vadd.f32 %v1455, %v1475
  %v1496 = vadd.f32 %v1456, %v1475
  %v1497 = vadd.f32 %v1457, %v1476
  %v1498 = vadd.f32 %v1458, %v1476
  %v1499 = vadd.f32 %v1459, %v1477
  %v1500 = vadd.f32 %v1460, %v1477
  %v1501 = vadd.f32 %v1461, %v1478
  %v1502 = vadd.f32 %v1462, %v1478
  %v1503 = vtanh.pop %v1487
  %v1504 = vtanh.pop %v1488
  %v1505 = vtanh.pop %v1489
  %v1506 = vtanh.pop %v1490
  %v1507 = vtanh.pop %v1491
  %v1508 = vtanh.pop %v1492
  %v1509 = vtanh.pop %v1493
  %v1510 = vtanh.pop %v1494
  %v1511 = vtanh.pop %v1495
  %v1512 = vtanh.pop %v1496
  %v1513 = vtanh.pop %v1497
  %v1514 = vtanh.pop %v1498
  %v1515 = vtanh.pop %v1499
  %v1516 = vtanh.pop %v1500
  %v1517 = vtanh.pop %v1501
  %v1518 = vtanh.pop %v1502
  %v1519 = vmul.f32 %v1503, %v37
  %v1520 = vmul.f32 %v1504, %v37
  %v1521 = vmul.f32 %v1505, %v37
  %v1522 = vmul.f32 %v1506, %v37
  %v1523 = vmul.f32 %v1507, %v37
  %v1524 = vmul.f32 %v1508, %v37
  %v1525 = vmul.f32 %v1509, %v37
  %v1526 = vmul.f32 %v1510, %v37
  %v1527 = vmul.f32 %v1511, %v37
  %v1528 = vmul.f32 %v1512, %v37
  %v1529 = vmul.f32 %v1513, %v37
  %v1530 = vmul.f32 %v1514, %v37
  %v1531 = vmul.f32 %v1515, %v37
  %v1532 = vmul.f32 %v1516, %v37
  %v1533 = vmul.f32 %v1517, %v37
  %v1534 = vmul.f32 %v1518, %v37
  %1535 = vadd.xlane.f32.xlu0 %v1519
  %v1536 = vpop.xlane.xlu0 %1535
  %1537 = vadd.xlane.f32.xlu0 %v1520
  %v1538 = vpop.xlane.xlu0 %1537
  %1539 = vadd.xlane.f32.xlu0 %v1521
  %v1540 = vpop.xlane.xlu0 %1539
  %1541 = vadd.xlane.f32.xlu0 %v1522
  %v1542 = vpop.xlane.xlu0 %1541
  %1543 = vadd.xlane.f32.xlu0 %v1523
  %v1544 = vpop.xlane.xlu0 %1543
  %1545 = vadd.xlane.f32.xlu0 %v1524
  %v1546 = vpop.xlane.xlu0 %1545
  %1547 = vadd.xlane.f32.xlu0 %v1525
  %v1548 = vpop.xlane.xlu0 %1547
  %1549 = vadd.xlane.f32.xlu0 %v1526
  %v1550 = vpop.xlane.xlu0 %1549
  %1551 = vadd.xlane.f32.xlu0 %v1527
  %v1552 = vpop.xlane.xlu0 %1551
  %1553 = vadd.xlane.f32.xlu0 %v1528
  %v1554 = vpop.xlane.xlu0 %1553
  %1555 = vadd.xlane.f32.xlu0 %v1529
  %v1556 = vpop.xlane.xlu0 %1555
  %1557 = vadd.xlane.f32.xlu0 %v1530
  %v1558 = vpop.xlane.xlu0 %1557
  %1559 = vadd.xlane.f32.xlu0 %v1531
  %v1560 = vpop.xlane.xlu0 %1559
  %1561 = vadd.xlane.f32.xlu0 %v1532
  %v1562 = vpop.xlane.xlu0 %1561
  %1563 = vadd.xlane.f32.xlu0 %v1533
  %v1564 = vpop.xlane.xlu0 %1563
  %1565 = vadd.xlane.f32.xlu0 %v1534
  %v1566 = vpop.xlane.xlu0 %1565
  %v1583 = vperm.slane %v1536, %v269
  %v1584 = vperm.slane %v1538, %v271
  %v1585 = vsel %vm273, %v1584, %v1583
  %v1586 = vperm.slane %v1540, %v269
  %v1587 = vperm.slane %v1542, %v271
  %v1588 = vsel %vm273, %v1587, %v1586
  %v1589 = vperm.slane %v1544, %v269
  %v1590 = vperm.slane %v1546, %v271
  %v1591 = vsel %vm273, %v1590, %v1589
  %v1592 = vperm.slane %v1548, %v269
  %v1593 = vperm.slane %v1550, %v271
  %v1594 = vsel %vm273, %v1593, %v1592
  %v1595 = vperm.slane %v1552, %v269
  %v1596 = vperm.slane %v1554, %v271
  %v1597 = vsel %vm273, %v1596, %v1595
  %v1598 = vperm.slane %v1556, %v269
  %v1599 = vperm.slane %v1558, %v271
  %v1600 = vsel %vm273, %v1599, %v1598
  %v1601 = vperm.slane %v1560, %v269
  %v1602 = vperm.slane %v1562, %v271
  %v1603 = vsel %vm273, %v1602, %v1601
  %v1604 = vperm.slane %v1564, %v269
  %v1605 = vperm.slane %v1566, %v271
  %v1606 = vsel %vm273, %v1605, %v1604
  %v1607 = vsel %vm296, %v1588, %v1585
  %v1608 = vsel %vm298, %v1591, %v1607
  %v1609 = vsel %vm300, %v1594, %v1608
  %v1610 = vsel %vm302, %v1597, %v1609
  %v1611 = vsel %vm304, %v1600, %v1610
  %v1612 = vsel %vm306, %v1603, %v1611
  %v1613 = vsel %vm308, %v1606, %v1612
  %v1615 = vsel %vm311, %v1613, -inf
  %1616 = vmax.xlane.f32.xlu0 %v1615
  %v1617 = vpop.xlane.xlu0 %1616
  %v1619 = vperm.slane %v1617, 0
  %v1620 = vperm.slane %v1617, 1
  %v1621 = vperm.slane %v1617, 2
  %v1622 = vperm.slane %v1617, 3
  %v1623 = vperm.slane %v1617, 4
  %v1624 = vperm.slane %v1617, 5
  %v1625 = vperm.slane %v1617, 6
  %v1626 = vperm.slane %v1617, 7
  %v1635 = vsub.f32 %v1536, %v1619
  %v1636 = vsub.f32 %v1538, %v1619
  %v1637 = vsub.f32 %v1540, %v1620
  %v1638 = vsub.f32 %v1542, %v1620
  %v1639 = vsub.f32 %v1544, %v1621
  %v1640 = vsub.f32 %v1546, %v1621
  %v1641 = vsub.f32 %v1548, %v1622
  %v1642 = vsub.f32 %v1550, %v1622
  %v1643 = vsub.f32 %v1552, %v1623
  %v1644 = vsub.f32 %v1554, %v1623
  %v1645 = vsub.f32 %v1556, %v1624
  %v1646 = vsub.f32 %v1558, %v1624
  %v1647 = vsub.f32 %v1560, %v1625
  %v1648 = vsub.f32 %v1562, %v1625
  %v1649 = vsub.f32 %v1564, %v1626
  %v1650 = vsub.f32 %v1566, %v1626
  %v1651 = vmul.f32 %v1635, 1.442695
  %v1652 = vpow.pop %v1651
  %v1653 = vmul.f32 %v1636, 1.442695
  %v1654 = vpow.pop %v1653
  %v1655 = vmul.f32 %v1637, 1.442695
  %v1656 = vpow.pop %v1655
  %v1657 = vmul.f32 %v1638, 1.442695
  %v1658 = vpow.pop %v1657
  %v1659 = vmul.f32 %v1639, 1.442695
  %v1660 = vpow.pop %v1659
  %v1661 = vmul.f32 %v1640, 1.442695
  %v1662 = vpow.pop %v1661
  %v1663 = vmul.f32 %v1641, 1.442695
  %v1664 = vpow.pop %v1663
  %v1665 = vmul.f32 %v1642, 1.442695
  %v1666 = vpow.pop %v1665
  %v1667 = vmul.f32 %v1643, 1.442695
  %v1668 = vpow.pop %v1667
  %v1669 = vmul.f32 %v1644, 1.442695
  %v1670 = vpow.pop %v1669
  %v1671 = vmul.f32 %v1645, 1.442695
  %v1672 = vpow.pop %v1671
  %v1673 = vmul.f32 %v1646, 1.442695
  %v1674 = vpow.pop %v1673
  %v1675 = vmul.f32 %v1647, 1.442695
  %v1676 = vpow.pop %v1675
  %v1677 = vmul.f32 %v1648, 1.442695
  %v1678 = vpow.pop %v1677
  %v1679 = vmul.f32 %v1649, 1.442695
  %v1680 = vpow.pop %v1679
  %v1681 = vmul.f32 %v1650, 1.442695
  %v1682 = vpow.pop %v1681
  %1699 = vset.pattern.permute.xlu0 0
  %1700 = vperm.xlu0 %1699, %v1652
  %v1701 = vpop.permute.xlu0 %1700
  %1702 = vset.pattern.permute.xlu0 0
  %1703 = vperm.xlu0 %1702, %v1654
  %v1704 = vpop.permute.xlu0 %1703
  %1705 = vset.pattern.permute.xlu0 0
  %1706 = vperm.xlu0 %1705, %v1656
  %v1707 = vpop.permute.xlu0 %1706
  %1708 = vset.pattern.permute.xlu0 0
  %1709 = vperm.xlu0 %1708, %v1658
  %v1710 = vpop.permute.xlu0 %1709
  %1711 = vset.pattern.permute.xlu0 0
  %1712 = vperm.xlu0 %1711, %v1660
  %v1713 = vpop.permute.xlu0 %1712
  %1714 = vset.pattern.permute.xlu0 0
  %1715 = vperm.xlu0 %1714, %v1662
  %v1716 = vpop.permute.xlu0 %1715
  %1717 = vset.pattern.permute.xlu0 0
  %1718 = vperm.xlu0 %1717, %v1664
  %v1719 = vpop.permute.xlu0 %1718
  %1720 = vset.pattern.permute.xlu0 0
  %1721 = vperm.xlu0 %1720, %v1666
  %v1722 = vpop.permute.xlu0 %1721
  %1723 = vset.pattern.permute.xlu0 0
  %1724 = vperm.xlu0 %1723, %v1668
  %v1725 = vpop.permute.xlu0 %1724
  %1726 = vset.pattern.permute.xlu0 0
  %1727 = vperm.xlu0 %1726, %v1670
  %v1728 = vpop.permute.xlu0 %1727
  %1729 = vset.pattern.permute.xlu0 0
  %1730 = vperm.xlu0 %1729, %v1672
  %v1731 = vpop.permute.xlu0 %1730
  %1732 = vset.pattern.permute.xlu0 0
  %1733 = vperm.xlu0 %1732, %v1674
  %v1734 = vpop.permute.xlu0 %1733
  %1735 = vset.pattern.permute.xlu0 0
  %1736 = vperm.xlu0 %1735, %v1676
  %v1737 = vpop.permute.xlu0 %1736
  %1738 = vset.pattern.permute.xlu0 0
  %1739 = vperm.xlu0 %1738, %v1678
  %v1740 = vpop.permute.xlu0 %1739
  %1741 = vset.pattern.permute.xlu0 0
  %1742 = vperm.xlu0 %1741, %v1680
  %v1743 = vpop.permute.xlu0 %1742
  %1744 = vset.pattern.permute.xlu0 0
  %1745 = vperm.xlu0 %1744, %v1682
  %v1746 = vpop.permute.xlu0 %1745
  %v1747 = vperm.slane %v1701, %v269
  %v1748 = vperm.slane %v1704, %v271
  %v1749 = vsel %vm273, %v1748, %v1747
  %v1750 = vperm.slane %v1707, %v269
  %v1751 = vperm.slane %v1710, %v271
  %v1752 = vsel %vm273, %v1751, %v1750
  %v1753 = vperm.slane %v1713, %v269
  %v1754 = vperm.slane %v1716, %v271
  %v1755 = vsel %vm273, %v1754, %v1753
  %v1756 = vperm.slane %v1719, %v269
  %v1757 = vperm.slane %v1722, %v271
  %v1758 = vsel %vm273, %v1757, %v1756
  %v1759 = vperm.slane %v1725, %v269
  %v1760 = vperm.slane %v1728, %v271
  %v1761 = vsel %vm273, %v1760, %v1759
  %v1762 = vperm.slane %v1731, %v269
  %v1763 = vperm.slane %v1734, %v271
  %v1764 = vsel %vm273, %v1763, %v1762
  %v1765 = vperm.slane %v1737, %v269
  %v1766 = vperm.slane %v1740, %v271
  %v1767 = vsel %vm273, %v1766, %v1765
  %v1768 = vperm.slane %v1743, %v269
  %v1769 = vperm.slane %v1746, %v271
  %v1770 = vsel %vm273, %v1769, %v1768
  %v1771 = vsel %vm296, %v1752, %v1749
  %v1772 = vsel %vm298, %v1755, %v1771
  %v1773 = vsel %vm300, %v1758, %v1772
  %v1774 = vsel %vm302, %v1761, %v1773
  %v1775 = vsel %vm304, %v1764, %v1774
  %v1776 = vsel %vm306, %v1767, %v1775
  %v1777 = vsel %vm308, %v1770, %v1776
  %v1779 = vsel %vm311, %v1777, 0.0
  %1780 = vadd.xlane.f32.xlu0 %v1779
  %v1781 = vpop.xlane.xlu0 %1780
  %v1782 = vrcp.pop %v1781
  %v1784 = vperm.slane %v1782, 0
  %v1785 = vperm.slane %v1782, 1
  %v1786 = vperm.slane %v1782, 2
  %v1787 = vperm.slane %v1782, 3
  %v1788 = vperm.slane %v1782, 4
  %v1789 = vperm.slane %v1782, 5
  %v1790 = vperm.slane %v1782, 6
  %v1791 = vperm.slane %v1782, 7
  %v1800 = vmul.f32 %v1652, %v1784
  %v1801 = vmul.f32 %v1654, %v1784
  %v1802 = vmul.f32 %v1656, %v1785
  %v1803 = vmul.f32 %v1658, %v1785
  %v1804 = vmul.f32 %v1660, %v1786
  %v1805 = vmul.f32 %v1662, %v1786
  %v1806 = vmul.f32 %v1664, %v1787
  %v1807 = vmul.f32 %v1666, %v1787
  %v1808 = vmul.f32 %v1668, %v1788
  %v1809 = vmul.f32 %v1670, %v1788
  %v1810 = vmul.f32 %v1672, %v1789
  %v1811 = vmul.f32 %v1674, %v1789
  %v1812 = vmul.f32 %v1676, %v1790
  %v1813 = vmul.f32 %v1678, %v1790
  %v1814 = vmul.f32 %v1680, %v1791
  %v1815 = vmul.f32 %v1682, %v1791
  %v1816 = vld [vmem:[%s1] sm:$0xf]
  %v1817 = vld [vmem:[%s1 + $0x4] sm:$0xf]
  %v1818 = vld [vmem:[%s1 + $0x8] sm:$0xf]
  %v1819 = vld [vmem:[%s1 + $0xc] sm:$0xf]
  %v1820 = vld [vmem:[%s1 + $0x10] sm:$0xf]
  %v1821 = vld [vmem:[%s1 + $0x14] sm:$0xf]
  %v1822 = vld [vmem:[%s1 + $0x18] sm:$0xf]
  %v1823 = vld [vmem:[%s1 + $0x1c] sm:$0xf]
  %v1824 = vld [vmem:[%s1 + $0x20] sm:$0xf]
  %v1825 = vld [vmem:[%s1 + $0x24] sm:$0xf]
  %v1826 = vld [vmem:[%s1 + $0x28] sm:$0xf]
  %v1827 = vld [vmem:[%s1 + $0x2c] sm:$0xf]
  %v1828 = vld [vmem:[%s1 + $0x30] sm:$0xf]
  %v1829 = vld [vmem:[%s1 + $0x34] sm:$0xf]
  %v1830 = vld [vmem:[%s1 + $0x38] sm:$0xf]
  %v1831 = vld [vmem:[%s1 + $0x3c] sm:$0xf]
  %v1832 = vunpack.c.l.bf16 %v1816
  %v1833 = vunpack.c.l.bf16 %v1817
  %v1834 = vunpack.c.l.bf16 %v1818
  %v1835 = vunpack.c.l.bf16 %v1819
  %v1836 = vunpack.c.l.bf16 %v1820
  %v1837 = vunpack.c.l.bf16 %v1821
  %v1838 = vunpack.c.l.bf16 %v1822
  %v1839 = vunpack.c.l.bf16 %v1823
  %v1840 = vunpack.c.l.bf16 %v1824
  %v1841 = vunpack.c.l.bf16 %v1825
  %v1842 = vunpack.c.l.bf16 %v1826
  %v1843 = vunpack.c.l.bf16 %v1827
  %v1844 = vunpack.c.l.bf16 %v1828
  %v1845 = vunpack.c.l.bf16 %v1829
  %v1846 = vunpack.c.l.bf16 %v1830
  %v1847 = vunpack.c.l.bf16 %v1831
  %1849 = vset.pattern.permute.xlu0 0
  %1850 = vperm.xlu0 %1849, %v1800
  %v1851 = vpop.permute.xlu0 %1850
  %1854 = vset.pattern.permute.xlu0 0
  %1855 = vperm.xlu0 %1854, %v1801
  %v1856 = vpop.permute.xlu0 %1855
  %1859 = vset.pattern.permute.xlu0 0
  %1860 = vperm.xlu0 %1859, %v1802
  %v1861 = vpop.permute.xlu0 %1860
  %1864 = vset.pattern.permute.xlu0 0
  %1865 = vperm.xlu0 %1864, %v1803
  %v1866 = vpop.permute.xlu0 %1865
  %1869 = vset.pattern.permute.xlu0 0
  %1870 = vperm.xlu0 %1869, %v1804
  %v1871 = vpop.permute.xlu0 %1870
  %1874 = vset.pattern.permute.xlu0 0
  %1875 = vperm.xlu0 %1874, %v1805
  %v1876 = vpop.permute.xlu0 %1875
  %1879 = vset.pattern.permute.xlu0 0
  %1880 = vperm.xlu0 %1879, %v1806
  %v1881 = vpop.permute.xlu0 %1880
  %1884 = vset.pattern.permute.xlu0 0
  %1885 = vperm.xlu0 %1884, %v1807
  %v1886 = vpop.permute.xlu0 %1885
  %1889 = vset.pattern.permute.xlu0 0
  %1890 = vperm.xlu0 %1889, %v1808
  %v1891 = vpop.permute.xlu0 %1890
  %1894 = vset.pattern.permute.xlu0 0
  %1895 = vperm.xlu0 %1894, %v1809
  %v1896 = vpop.permute.xlu0 %1895
  %1899 = vset.pattern.permute.xlu0 0
  %1900 = vperm.xlu0 %1899, %v1810
  %v1901 = vpop.permute.xlu0 %1900
  %1904 = vset.pattern.permute.xlu0 0
  %1905 = vperm.xlu0 %1904, %v1811
  %v1906 = vpop.permute.xlu0 %1905
  %1909 = vset.pattern.permute.xlu0 0
  %1910 = vperm.xlu0 %1909, %v1812
  %v1911 = vpop.permute.xlu0 %1910
  %1914 = vset.pattern.permute.xlu0 0
  %1915 = vperm.xlu0 %1914, %v1813
  %v1916 = vpop.permute.xlu0 %1915
  %1919 = vset.pattern.permute.xlu0 0
  %1920 = vperm.xlu0 %1919, %v1814
  %v1921 = vpop.permute.xlu0 %1920
  %1924 = vset.pattern.permute.xlu0 0
  %1925 = vperm.xlu0 %1924, %v1815
  %v1926 = vpop.permute.xlu0 %1925
  %v1928 = vmul.f32 %v1832, %v1851
  %v1929 = vmul.f32 %v1833, %v1856
  %v1930 = vmul.f32 %v1834, %v1861
  %v1931 = vmul.f32 %v1835, %v1866
  %v1932 = vmul.f32 %v1836, %v1871
  %v1933 = vmul.f32 %v1837, %v1876
  %v1934 = vmul.f32 %v1838, %v1881
  %v1935 = vmul.f32 %v1839, %v1886
  %v1936 = vmul.f32 %v1840, %v1891
  %v1937 = vmul.f32 %v1841, %v1896
  %v1938 = vmul.f32 %v1842, %v1901
  %v1939 = vmul.f32 %v1843, %v1906
  %v1940 = vmul.f32 %v1844, %v1911
  %v1941 = vmul.f32 %v1845, %v1916
  %v1942 = vmul.f32 %v1846, %v1921
  %v1943 = vmul.f32 %v1847, %v1926
  %v1944 = vsel %vm641, %v1928, 0.0
  %v1945 = vsel %vm641, %v1929, 0.0
  %v1946 = vadd.f32 %v1944, %v1945
  %v1947 = vrot.slane %v1946, 4
  %v1948 = vadd.f32 %v1946, %v1947
  %v1949 = vrot.slane %v1948, 2
  %v1950 = vadd.f32 %v1948, %v1949
  %v1951 = vrot.slane %v1950, 1
  %v1952 = vadd.f32 %v1950, %v1951
  %v1953 = vsel %vm641, %v1930, 0.0
  %v1954 = vsel %vm641, %v1931, 0.0
  %v1955 = vadd.f32 %v1953, %v1954
  %v1956 = vrot.slane %v1955, 4
  %v1957 = vadd.f32 %v1955, %v1956
  %v1958 = vrot.slane %v1957, 2
  %v1959 = vadd.f32 %v1957, %v1958
  %v1960 = vrot.slane %v1959, 1
  %v1961 = vadd.f32 %v1959, %v1960
  %v1962 = vsel %vm641, %v1932, 0.0
  %v1963 = vsel %vm641, %v1933, 0.0
  %v1964 = vadd.f32 %v1962, %v1963
  %v1965 = vrot.slane %v1964, 4
  %v1966 = vadd.f32 %v1964, %v1965
  %v1967 = vrot.slane %v1966, 2
  %v1968 = vadd.f32 %v1966, %v1967
  %v1969 = vrot.slane %v1968, 1
  %v1970 = vadd.f32 %v1968, %v1969
  %v1971 = vsel %vm641, %v1934, 0.0
  %v1972 = vsel %vm641, %v1935, 0.0
  %v1973 = vadd.f32 %v1971, %v1972
  %v1974 = vrot.slane %v1973, 4
  %v1975 = vadd.f32 %v1973, %v1974
  %v1976 = vrot.slane %v1975, 2
  %v1977 = vadd.f32 %v1975, %v1976
  %v1978 = vrot.slane %v1977, 1
  %v1979 = vadd.f32 %v1977, %v1978
  %v1980 = vsel %vm641, %v1936, 0.0
  %v1981 = vsel %vm641, %v1937, 0.0
  %v1982 = vadd.f32 %v1980, %v1981
  %v1983 = vrot.slane %v1982, 4
  %v1984 = vadd.f32 %v1982, %v1983
  %v1985 = vrot.slane %v1984, 2
  %v1986 = vadd.f32 %v1984, %v1985
  %v1987 = vrot.slane %v1986, 1
  %v1988 = vadd.f32 %v1986, %v1987
  %v1989 = vsel %vm641, %v1938, 0.0
  %v1990 = vsel %vm641, %v1939, 0.0
  %v1991 = vadd.f32 %v1989, %v1990
  %v1992 = vrot.slane %v1991, 4
  %v1993 = vadd.f32 %v1991, %v1992
  %v1994 = vrot.slane %v1993, 2
  %v1995 = vadd.f32 %v1993, %v1994
  %v1996 = vrot.slane %v1995, 1
  %v1997 = vadd.f32 %v1995, %v1996
  %v1998 = vsel %vm641, %v1940, 0.0
  %v1999 = vsel %vm641, %v1941, 0.0
  %v2000 = vadd.f32 %v1998, %v1999
  %v2001 = vrot.slane %v2000, 4
  %v2002 = vadd.f32 %v2000, %v2001
  %v2003 = vrot.slane %v2002, 2
  %v2004 = vadd.f32 %v2002, %v2003
  %v2005 = vrot.slane %v2004, 1
  %v2006 = vadd.f32 %v2004, %v2005
  %v2007 = vsel %vm641, %v1942, 0.0
  %v2008 = vsel %vm641, %v1943, 0.0
  %v2009 = vadd.f32 %v2007, %v2008
  %v2010 = vrot.slane %v2009, 4
  %v2011 = vadd.f32 %v2009, %v2010
  %v2012 = vrot.slane %v2011, 2
  %v2013 = vadd.f32 %v2011, %v2012
  %v2014 = vrot.slane %v2013, 1
  %v2015 = vadd.f32 %v2013, %v2014
  %v2016 = vpack.c.bf16 %v1952, %v1952
  %v2017 = vpack.c.bf16 %v1961, %v1961
  %v2018 = vpack.c.bf16 %v1970, %v1970
  %v2019 = vpack.c.bf16 %v1979, %v1979
  %v2020 = vpack.c.bf16 %v1988, %v1988
  %v2021 = vpack.c.bf16 %v1997, %v1997
  %v2022 = vpack.c.bf16 %v2006, %v2006
  %v2023 = vpack.c.bf16 %v2015, %v2015
  %v2032 = vunpack.c.l.b16 %v2016
  %v2033 = vunpack.c.l.b16 %v2017
  %v2034 = vunpack.c.l.b16 %v2018
  %v2035 = vunpack.c.l.b16 %v2019
  %v2036 = vunpack.c.l.b16 %v2020
  %v2037 = vunpack.c.l.b16 %v2021
  %v2038 = vunpack.c.l.b16 %v2022
  %v2039 = vunpack.c.l.b16 %v2023
  %v2040 = vsel %vm296, %v2033, %v2032
  %v2041 = vsel %vm298, %v2034, %v2040
  %v2042 = vsel %vm300, %v2035, %v2041
  %v2043 = vsel %vm302, %v2036, %v2042
  %v2044 = vsel %vm304, %v2037, %v2043
  %v2045 = vsel %vm306, %v2038, %v2044
  %v2046 = vsel %vm308, %v2039, %v2045
  %v2047 = vpack.c.b16 %v2046, %v2046
  %2049 = vst.msk [vmem:[#allocation2] sm:$0xf] %vm747, %v2047
  %2050 = vst [vmem:[#allocation2 + $0x4] sm:$0xf] %v1353
  %s2051 = scalar_lea.vmem %s2, 16
  %v2052 = vld [vmem:[%s2051] sm:$0xff]
  %v2053 = vld [vmem:[%s2051 + $0x8] sm:$0xff]
  %v2054 = vunpack.c.l.bf16 %v2052
  %v2055 = vunpack.c.h.bf16 %v2052
  %v2056 = vunpack.c.l.bf16 %v2053
  %v2057 = vunpack.c.h.bf16 %v2053
  %v2058 = vld [vmem:[#allocation2] sm:$0xff]
  %v2059 = vld [vmem:[%s5] sm:$0xff]
  %v2060 = vld [vmem:[%s5 + $0x8] sm:$0xff]
  %v2061 = vld [vmem:[%s5 + $0x10] sm:$0xff]
  %v2062 = vld [vmem:[%s5 + $0x18] sm:$0xff]
  %v2063 = vld [vmem:[%s5 + $0x20] sm:$0xff]
  %v2064 = vld [vmem:[%s5 + $0x28] sm:$0xff]
  %v2065 = vld [vmem:[%s5 + $0x30] sm:$0xff]
  %v2066 = vld [vmem:[%s5 + $0x38] sm:$0xff]
  %v2067 = vld [vmem:[%s5 + $0x40] sm:$0xff]
  %v2068 = vld [vmem:[%s5 + $0x48] sm:$0xff]
  %v2069 = vld [vmem:[%s5 + $0x50] sm:$0xff]
  %v2070 = vld [vmem:[%s5 + $0x58] sm:$0xff]
  %v2071 = vld [vmem:[%s5 + $0x60] sm:$0xff]
  %v2072 = vld [vmem:[%s5 + $0x68] sm:$0xff]
  %v2073 = vld [vmem:[%s5 + $0x70] sm:$0xff]
  %v2074 = vld [vmem:[%s5 + $0x78] sm:$0xff]
  %v2075 = vld [vmem:[%s5 + $0x80] sm:$0xff]
  %v2076 = vld [vmem:[%s5 + $0x88] sm:$0xff]
  %v2077 = vld [vmem:[%s5 + $0x90] sm:$0xff]
  %v2078 = vld [vmem:[%s5 + $0x98] sm:$0xff]
  %v2079 = vld [vmem:[%s5 + $0xa0] sm:$0xff]
  %v2080 = vld [vmem:[%s5 + $0xa8] sm:$0xff]
  %v2081 = vld [vmem:[%s5 + $0xb0] sm:$0xff]
  %v2082 = vld [vmem:[%s5 + $0xb8] sm:$0xff]
  %v2083 = vld [vmem:[%s5 + $0xc0] sm:$0xff]
  %v2084 = vld [vmem:[%s5 + $0xc8] sm:$0xff]
  %v2085 = vld [vmem:[%s5 + $0xd0] sm:$0xff]
  %v2086 = vld [vmem:[%s5 + $0xd8] sm:$0xff]
  %v2087 = vld [vmem:[%s5 + $0xe0] sm:$0xff]
  %v2088 = vld [vmem:[%s5 + $0xe8] sm:$0xff]
  %v2089 = vld [vmem:[%s5 + $0xf0] sm:$0xff]
  %v2090 = vld [vmem:[%s5 + $0xf8] sm:$0xff]
  %v2091 = vld [vmem:[%s5 + $0x100] sm:$0xff]
  %v2092 = vld [vmem:[%s5 + $0x108] sm:$0xff]
  %v2093 = vld [vmem:[%s5 + $0x110] sm:$0xff]
  %v2094 = vld [vmem:[%s5 + $0x118] sm:$0xff]
  %v2095 = vld [vmem:[%s5 + $0x120] sm:$0xff]
  %v2096 = vld [vmem:[%s5 + $0x128] sm:$0xff]
  %v2097 = vld [vmem:[%s5 + $0x130] sm:$0xff]
  %v2098 = vld [vmem:[%s5 + $0x138] sm:$0xff]
  %v2099 = vld [vmem:[%s5 + $0x140] sm:$0xff]
  %v2100 = vld [vmem:[%s5 + $0x148] sm:$0xff]
  %v2101 = vld [vmem:[%s5 + $0x150] sm:$0xff]
  %v2102 = vld [vmem:[%s5 + $0x158] sm:$0xff]
  %v2103 = vld [vmem:[%s5 + $0x160] sm:$0xff]
  %v2104 = vld [vmem:[%s5 + $0x168] sm:$0xff]
  %v2105 = vld [vmem:[%s5 + $0x170] sm:$0xff]
  %v2106 = vld [vmem:[%s5 + $0x178] sm:$0xff]
  %v2107 = vld [vmem:[%s5 + $0x180] sm:$0xff]
  %v2108 = vld [vmem:[%s5 + $0x188] sm:$0xff]
  %v2109 = vld [vmem:[%s5 + $0x190] sm:$0xff]
  %v2110 = vld [vmem:[%s5 + $0x198] sm:$0xff]
  %v2111 = vld [vmem:[%s5 + $0x1a0] sm:$0xff]
  %v2112 = vld [vmem:[%s5 + $0x1a8] sm:$0xff]
  %v2113 = vld [vmem:[%s5 + $0x1b0] sm:$0xff]
  %v2114 = vld [vmem:[%s5 + $0x1b8] sm:$0xff]
  %v2115 = vld [vmem:[%s5 + $0x1c0] sm:$0xff]
  %v2116 = vld [vmem:[%s5 + $0x1c8] sm:$0xff]
  %v2117 = vld [vmem:[%s5 + $0x1d0] sm:$0xff]
  %v2118 = vld [vmem:[%s5 + $0x1d8] sm:$0xff]
  %v2119 = vld [vmem:[%s5 + $0x1e0] sm:$0xff]
  %v2120 = vld [vmem:[%s5 + $0x1e8] sm:$0xff]
  %v2121 = vld [vmem:[%s5 + $0x1f0] sm:$0xff]
  %v2122 = vld [vmem:[%s5 + $0x1f8] sm:$0xff]
  %v2124 = vunpack.c.l.b16 %v2058
  %v2125 = vunpack.c.h.b16 %v2058
  %v2126 = vpack.c.b16 %v2124, %v2124
  %v2127 = vpack.c.b16 %v2125, %v2125
  %v2194 = vunpack.c.l.b16 %v2059
  %v2195 = vunpack.c.h.b16 %v2059
  %v2196 = vunpack.c.l.b16 %v2060
  %v2197 = vunpack.c.h.b16 %v2060
  %v2198 = vunpack.c.l.b16 %v2061
  %v2199 = vunpack.c.h.b16 %v2061
  %v2200 = vunpack.c.l.b16 %v2062
  %v2201 = vunpack.c.h.b16 %v2062
  %v2202 = vunpack.c.l.b16 %v2063
  %v2203 = vunpack.c.h.b16 %v2063
  %v2204 = vunpack.c.l.b16 %v2064
  %v2205 = vunpack.c.h.b16 %v2064
  %v2206 = vunpack.c.l.b16 %v2065
  %v2207 = vunpack.c.h.b16 %v2065
  %v2208 = vunpack.c.l.b16 %v2066
  %v2209 = vunpack.c.h.b16 %v2066
  %v2210 = vunpack.c.l.b16 %v2067
  %v2211 = vunpack.c.h.b16 %v2067
  %v2212 = vunpack.c.l.b16 %v2068
  %v2213 = vunpack.c.h.b16 %v2068
  %v2214 = vunpack.c.l.b16 %v2069
  %v2215 = vunpack.c.h.b16 %v2069
  %v2216 = vunpack.c.l.b16 %v2070
  %v2217 = vunpack.c.h.b16 %v2070
  %v2218 = vunpack.c.l.b16 %v2071
  %v2219 = vunpack.c.h.b16 %v2071
  %v2220 = vunpack.c.l.b16 %v2072
  %v2221 = vunpack.c.h.b16 %v2072
  %v2222 = vunpack.c.l.b16 %v2073
  %v2223 = vunpack.c.h.b16 %v2073
  %v2224 = vunpack.c.l.b16 %v2074
  %v2225 = vunpack.c.h.b16 %v2074
  %v2226 = vunpack.c.l.b16 %v2075
  %v2227 = vunpack.c.h.b16 %v2075
  %v2228 = vunpack.c.l.b16 %v2076
  %v2229 = vunpack.c.h.b16 %v2076
  %v2230 = vunpack.c.l.b16 %v2077
  %v2231 = vunpack.c.h.b16 %v2077
  %v2232 = vunpack.c.l.b16 %v2078
  %v2233 = vunpack.c.h.b16 %v2078
  %v2234 = vunpack.c.l.b16 %v2079
  %v2235 = vunpack.c.h.b16 %v2079
  %v2236 = vunpack.c.l.b16 %v2080
  %v2237 = vunpack.c.h.b16 %v2080
  %v2238 = vunpack.c.l.b16 %v2081
  %v2239 = vunpack.c.h.b16 %v2081
  %v2240 = vunpack.c.l.b16 %v2082
  %v2241 = vunpack.c.h.b16 %v2082
  %v2242 = vunpack.c.l.b16 %v2083
  %v2243 = vunpack.c.h.b16 %v2083
  %v2244 = vunpack.c.l.b16 %v2084
  %v2245 = vunpack.c.h.b16 %v2084
  %v2246 = vunpack.c.l.b16 %v2085
  %v2247 = vunpack.c.h.b16 %v2085
  %v2248 = vunpack.c.l.b16 %v2086
  %v2249 = vunpack.c.h.b16 %v2086
  %v2250 = vunpack.c.l.b16 %v2087
  %v2251 = vunpack.c.h.b16 %v2087
  %v2252 = vunpack.c.l.b16 %v2088
  %v2253 = vunpack.c.h.b16 %v2088
  %v2254 = vunpack.c.l.b16 %v2089
  %v2255 = vunpack.c.h.b16 %v2089
  %v2256 = vunpack.c.l.b16 %v2090
  %v2257 = vunpack.c.h.b16 %v2090
  %v2258 = vunpack.c.l.b16 %v2091
  %v2259 = vunpack.c.h.b16 %v2091
  %v2260 = vunpack.c.l.b16 %v2092
  %v2261 = vunpack.c.h.b16 %v2092
  %v2262 = vunpack.c.l.b16 %v2093
  %v2263 = vunpack.c.h.b16 %v2093
  %v2264 = vunpack.c.l.b16 %v2094
  %v2265 = vunpack.c.h.b16 %v2094
  %v2266 = vunpack.c.l.b16 %v2095
  %v2267 = vunpack.c.h.b16 %v2095
  %v2268 = vunpack.c.l.b16 %v2096
  %v2269 = vunpack.c.h.b16 %v2096
  %v2270 = vunpack.c.l.b16 %v2097
  %v2271 = vunpack.c.h.b16 %v2097
  %v2272 = vunpack.c.l.b16 %v2098
  %v2273 = vunpack.c.h.b16 %v2098
  %v2274 = vunpack.c.l.b16 %v2099
  %v2275 = vunpack.c.h.b16 %v2099
  %v2276 = vunpack.c.l.b16 %v2100
  %v2277 = vunpack.c.h.b16 %v2100
  %v2278 = vunpack.c.l.b16 %v2101
  %v2279 = vunpack.c.h.b16 %v2101
  %v2280 = vunpack.c.l.b16 %v2102
  %v2281 = vunpack.c.h.b16 %v2102
  %v2282 = vunpack.c.l.b16 %v2103
  %v2283 = vunpack.c.h.b16 %v2103
  %v2284 = vunpack.c.l.b16 %v2104
  %v2285 = vunpack.c.h.b16 %v2104
  %v2286 = vunpack.c.l.b16 %v2105
  %v2287 = vunpack.c.h.b16 %v2105
  %v2288 = vunpack.c.l.b16 %v2106
  %v2289 = vunpack.c.h.b16 %v2106
  %v2290 = vunpack.c.l.b16 %v2107
  %v2291 = vunpack.c.h.b16 %v2107
  %v2292 = vunpack.c.l.b16 %v2108
  %v2293 = vunpack.c.h.b16 %v2108
  %v2294 = vunpack.c.l.b16 %v2109
  %v2295 = vunpack.c.h.b16 %v2109
  %v2296 = vunpack.c.l.b16 %v2110
  %v2297 = vunpack.c.h.b16 %v2110
  %v2298 = vunpack.c.l.b16 %v2111
  %v2299 = vunpack.c.h.b16 %v2111
  %v2300 = vunpack.c.l.b16 %v2112
  %v2301 = vunpack.c.h.b16 %v2112
  %v2302 = vunpack.c.l.b16 %v2113
  %v2303 = vunpack.c.h.b16 %v2113
  %v2304 = vunpack.c.l.b16 %v2114
  %v2305 = vunpack.c.h.b16 %v2114
  %v2306 = vunpack.c.l.b16 %v2115
  %v2307 = vunpack.c.h.b16 %v2115
  %v2308 = vunpack.c.l.b16 %v2116
  %v2309 = vunpack.c.h.b16 %v2116
  %v2310 = vunpack.c.l.b16 %v2117
  %v2311 = vunpack.c.h.b16 %v2117
  %v2312 = vunpack.c.l.b16 %v2118
  %v2313 = vunpack.c.h.b16 %v2118
  %v2314 = vunpack.c.l.b16 %v2119
  %v2315 = vunpack.c.h.b16 %v2119
  %v2316 = vunpack.c.l.b16 %v2120
  %v2317 = vunpack.c.h.b16 %v2120
  %v2318 = vunpack.c.l.b16 %v2121
  %v2319 = vunpack.c.h.b16 %v2121
  %v2320 = vunpack.c.l.b16 %v2122
  %v2321 = vunpack.c.h.b16 %v2122
  %v2322 = vpack.c.b16 %v2198, %v2194
  %v2323 = vpack.c.b16 %v2199, %v2195
  %v2324 = vpack.c.b16 %v2200, %v2196
  %v2325 = vpack.c.b16 %v2201, %v2197
  %v2326 = vpack.c.b16 %v2206, %v2202
  %v2327 = vpack.c.b16 %v2207, %v2203
  %v2328 = vpack.c.b16 %v2208, %v2204
  %v2329 = vpack.c.b16 %v2209, %v2205
  %v2330 = vpack.c.b16 %v2214, %v2210
  %v2331 = vpack.c.b16 %v2215, %v2211
  %v2332 = vpack.c.b16 %v2216, %v2212
  %v2333 = vpack.c.b16 %v2217, %v2213
  %v2334 = vpack.c.b16 %v2222, %v2218
  %v2335 = vpack.c.b16 %v2223, %v2219
  %v2336 = vpack.c.b16 %v2224, %v2220
  %v2337 = vpack.c.b16 %v2225, %v2221
  %v2338 = vpack.c.b16 %v2230, %v2226
  %v2339 = vpack.c.b16 %v2231, %v2227
  %v2340 = vpack.c.b16 %v2232, %v2228
  %v2341 = vpack.c.b16 %v2233, %v2229
  %v2342 = vpack.c.b16 %v2238, %v2234
  %v2343 = vpack.c.b16 %v2239, %v2235
  %v2344 = vpack.c.b16 %v2240, %v2236
  %v2345 = vpack.c.b16 %v2241, %v2237
  %v2346 = vpack.c.b16 %v2246, %v2242
  %v2347 = vpack.c.b16 %v2247, %v2243
  %v2348 = vpack.c.b16 %v2248, %v2244
  %v2349 = vpack.c.b16 %v2249, %v2245
  %v2350 = vpack.c.b16 %v2254, %v2250
  %v2351 = vpack.c.b16 %v2255, %v2251
  %v2352 = vpack.c.b16 %v2256, %v2252
  %v2353 = vpack.c.b16 %v2257, %v2253
  %v2354 = vpack.c.b16 %v2262, %v2258
  %v2355 = vpack.c.b16 %v2263, %v2259
  %v2356 = vpack.c.b16 %v2264, %v2260
  %v2357 = vpack.c.b16 %v2265, %v2261
  %v2358 = vpack.c.b16 %v2270, %v2266
  %v2359 = vpack.c.b16 %v2271, %v2267
  %v2360 = vpack.c.b16 %v2272, %v2268
  %v2361 = vpack.c.b16 %v2273, %v2269
  %v2362 = vpack.c.b16 %v2278, %v2274
  %v2363 = vpack.c.b16 %v2279, %v2275
  %v2364 = vpack.c.b16 %v2280, %v2276
  %v2365 = vpack.c.b16 %v2281, %v2277
  %v2366 = vpack.c.b16 %v2286, %v2282
  %v2367 = vpack.c.b16 %v2287, %v2283
  %v2368 = vpack.c.b16 %v2288, %v2284
  %v2369 = vpack.c.b16 %v2289, %v2285
  %v2370 = vpack.c.b16 %v2294, %v2290
  %v2371 = vpack.c.b16 %v2295, %v2291
  %v2372 = vpack.c.b16 %v2296, %v2292
  %v2373 = vpack.c.b16 %v2297, %v2293
  %v2374 = vpack.c.b16 %v2302, %v2298
  %v2375 = vpack.c.b16 %v2303, %v2299
  %v2376 = vpack.c.b16 %v2304, %v2300
  %v2377 = vpack.c.b16 %v2305, %v2301
  %v2378 = vpack.c.b16 %v2310, %v2306
  %v2379 = vpack.c.b16 %v2311, %v2307
  %v2380 = vpack.c.b16 %v2312, %v2308
  %v2381 = vpack.c.b16 %v2313, %v2309
  %v2382 = vpack.c.b16 %v2318, %v2314
  %v2383 = vpack.c.b16 %v2319, %v2315
  %v2384 = vpack.c.b16 %v2320, %v2316
  %v2385 = vpack.c.b16 %v2321, %v2317
  %2450 = vmatpush.bf16.msra.mxu0 %v2350
  %2451 = vmatpush.bf16.msra.mxu0 %v2346
  %2452 = vmatpush.bf16.msra.mxu0 %v2342
  %2453 = vmatpush.bf16.msra.mxu0 %v2338
  %2454 = vmatpush.bf16.msra.mxu0 %v2334
  %2455 = vmatpush.bf16.msra.mxu0 %v2330
  %2456 = vmatpush.bf16.msra.mxu0 %v2326
  %2457 = vmatpush.bf16.msra.mxu0 %v2322
  %2458 = vmatmul.bf16.gmra.mxu0 %v2126
  %v2459 = vpop.f32.mrf.mxu0
  %v2460 = vadd.f32 0.0, %v2459
  %v2461 = vpop.f32.mrf.mxu0
  %2462 = vdwg.mxu0
  %2463 = vmatpush.bf16.msra.mxu0 %v2382
  %2464 = vmatpush.bf16.msra.mxu0 %v2378
  %2465 = vmatpush.bf16.msra.mxu0 %v2374
  %2466 = vmatpush.bf16.msra.mxu0 %v2370
  %2467 = vmatpush.bf16.msra.mxu0 %v2366
  %2468 = vmatpush.bf16.msra.mxu0 %v2362
  %2469 = vmatpush.bf16.msra.mxu0 %v2358
  %2470 = vmatpush.bf16.msra.mxu0 %v2354
  %2471 = vmatmul.bf16.gmra.mxu0 %v2127
  %v2472 = vpop.f32.mrf.mxu0
  %v2473 = vadd.f32 %v2460, %v2472
  %v2474 = vpop.f32.mrf.mxu0
  %2475 = vdwg.mxu0
  %2476 = vmatpush.bf16.msra.mxu0 %v2351
  %2477 = vmatpush.bf16.msra.mxu0 %v2347
  %2478 = vmatpush.bf16.msra.mxu0 %v2343
  %2479 = vmatpush.bf16.msra.mxu0 %v2339
  %2480 = vmatpush.bf16.msra.mxu0 %v2335
  %2481 = vmatpush.bf16.msra.mxu0 %v2331
  %2482 = vmatpush.bf16.msra.mxu0 %v2327
  %2483 = vmatpush.bf16.msra.mxu0 %v2323
  %2484 = vmatmul.bf16.gmra.mxu0 %v2126
  %v2485 = vpop.f32.mrf.mxu0
  %v2486 = vadd.f32 0.0, %v2485
  %v2487 = vpop.f32.mrf.mxu0
  %2488 = vdwg.mxu0
  %2489 = vmatpush.bf16.msra.mxu0 %v2383
  %2490 = vmatpush.bf16.msra.mxu0 %v2379
  %2491 = vmatpush.bf16.msra.mxu0 %v2375
  %2492 = vmatpush.bf16.msra.mxu0 %v2371
  %2493 = vmatpush.bf16.msra.mxu0 %v2367
  %2494 = vmatpush.bf16.msra.mxu0 %v2363
  %2495 = vmatpush.bf16.msra.mxu0 %v2359
  %2496 = vmatpush.bf16.msra.mxu0 %v2355
  %2497 = vmatmul.bf16.gmra.mxu0 %v2127
  %v2498 = vpop.f32.mrf.mxu0
  %v2499 = vadd.f32 %v2486, %v2498
  %v2500 = vpop.f32.mrf.mxu0
  %2501 = vdwg.mxu0
  %2502 = vmatpush.bf16.msra.mxu0 %v2352
  %2503 = vmatpush.bf16.msra.mxu0 %v2348
  %2504 = vmatpush.bf16.msra.mxu0 %v2344
  %2505 = vmatpush.bf16.msra.mxu0 %v2340
  %2506 = vmatpush.bf16.msra.mxu0 %v2336
  %2507 = vmatpush.bf16.msra.mxu0 %v2332
  %2508 = vmatpush.bf16.msra.mxu0 %v2328
  %2509 = vmatpush.bf16.msra.mxu0 %v2324
  %2510 = vmatmul.bf16.gmra.mxu0 %v2126
  %v2511 = vpop.f32.mrf.mxu0
  %v2512 = vadd.f32 0.0, %v2511
  %v2513 = vpop.f32.mrf.mxu0
  %2514 = vdwg.mxu0
  %2515 = vmatpush.bf16.msra.mxu0 %v2384
  %2516 = vmatpush.bf16.msra.mxu0 %v2380
  %2517 = vmatpush.bf16.msra.mxu0 %v2376
  %2518 = vmatpush.bf16.msra.mxu0 %v2372
  %2519 = vmatpush.bf16.msra.mxu0 %v2368
  %2520 = vmatpush.bf16.msra.mxu0 %v2364
  %2521 = vmatpush.bf16.msra.mxu0 %v2360
  %2522 = vmatpush.bf16.msra.mxu0 %v2356
  %2523 = vmatmul.bf16.gmra.mxu0 %v2127
  %v2524 = vpop.f32.mrf.mxu0
  %v2525 = vadd.f32 %v2512, %v2524
  %v2526 = vpop.f32.mrf.mxu0
  %2527 = vdwg.mxu0
  %2528 = vmatpush.bf16.msra.mxu0 %v2353
  %2529 = vmatpush.bf16.msra.mxu0 %v2349
  %2530 = vmatpush.bf16.msra.mxu0 %v2345
  %2531 = vmatpush.bf16.msra.mxu0 %v2341
  %2532 = vmatpush.bf16.msra.mxu0 %v2337
  %2533 = vmatpush.bf16.msra.mxu0 %v2333
  %2534 = vmatpush.bf16.msra.mxu0 %v2329
  %2535 = vmatpush.bf16.msra.mxu0 %v2325
  %2536 = vmatmul.bf16.gmra.mxu0 %v2126
  %v2537 = vpop.f32.mrf.mxu0
  %v2538 = vadd.f32 0.0, %v2537
  %v2539 = vpop.f32.mrf.mxu0
  %2540 = vdwg.mxu0
  %2541 = vmatpush.bf16.msra.mxu0 %v2385
  %2542 = vmatpush.bf16.msra.mxu0 %v2381
  %2543 = vmatpush.bf16.msra.mxu0 %v2377
  %2544 = vmatpush.bf16.msra.mxu0 %v2373
  %2545 = vmatpush.bf16.msra.mxu0 %v2369
  %2546 = vmatpush.bf16.msra.mxu0 %v2365
  %2547 = vmatpush.bf16.msra.mxu0 %v2361
  %2548 = vmatpush.bf16.msra.mxu0 %v2357
  %2549 = vmatmul.bf16.gmra.mxu0 %v2127
  %v2550 = vpop.f32.mrf.mxu0
  %v2551 = vadd.f32 %v2538, %v2550
  %v2552 = vpop.f32.mrf.mxu0
  %2553 = vdwg.mxu0
  %v2554 = vadd.f32 %v2054, %v2473
  %v2555 = vadd.f32 %v2055, %v2499
  %v2556 = vadd.f32 %v2056, %v2525
  %v2557 = vadd.f32 %v2057, %v2551
  %v2558 = vxor.u32 %v2554, 2147483648
  %v2559 = vmul.f32 %v2558, 1.442695
  %v2560 = vpow.pop %v2559
  %v2561 = vadd.f32 %v2560, 1.0
  %v2562 = vrcp.pop %v2561
  %v2563 = vmul.f32 %v2561, %v2562
  %v2564 = vsub.f32 1.0, %v2563
  %v2565 = vmul.f32 %v2562, %v2564
  %v2566 = vadd.f32 %v2562, %v2565
  %vm2567 = vweird.f32 %v2561
  %vm2568 = vweird.f32 %v2562
  %vm2569 = vmor %vm2567, %vm2568
  %v2570 = vsel %vm2569, %v2562, %v2566
  %v2571 = vand.u32 2147483647, %v2561
  %vm2572 = vcmp.eq.f32.partialorder %v2571, 8.507059e+37
  %v2573 = vand.u32 %v2561, 2147483648
  %v2574 = vor.u32 1.1754944e-38, %v2573
  %v2575 = vsel %vm2572, %v2574, %v2570
  %v2576 = vmul.f32 1.0, %v2575
  %v2577 = vxor.u32 %v2555, 2147483648
  %v2578 = vmul.f32 %v2577, 1.442695
  %v2579 = vpow.pop %v2578
  %v2580 = vadd.f32 %v2579, 1.0
  %v2581 = vrcp.pop %v2580
  %v2582 = vmul.f32 %v2580, %v2581
  %v2583 = vsub.f32 1.0, %v2582
  %v2584 = vmul.f32 %v2581, %v2583
  %v2585 = vadd.f32 %v2581, %v2584
  %vm2586 = vweird.f32 %v2580
  %vm2587 = vweird.f32 %v2581
  %vm2588 = vmor %vm2586, %vm2587
  %v2589 = vsel %vm2588, %v2581, %v2585
  %v2590 = vand.u32 2147483647, %v2580
  %vm2591 = vcmp.eq.f32.partialorder %v2590, 8.507059e+37
  %v2592 = vand.u32 %v2580, 2147483648
  %v2593 = vor.u32 1.1754944e-38, %v2592
  %v2594 = vsel %vm2591, %v2593, %v2589
  %v2595 = vmul.f32 1.0, %v2594
  %v2596 = vtanh.pop %v2556
  %v2597 = vxor.u32 %v2557, 2147483648
  %v2598 = vmul.f32 %v2597, 1.442695
  %v2599 = vpow.pop %v2598
  %v2600 = vadd.f32 %v2599, 1.0
  %v2601 = vrcp.pop %v2600
  %v2602 = vmul.f32 %v2600, %v2601
  %v2603 = vsub.f32 1.0, %v2602
  %v2604 = vmul.f32 %v2601, %v2603
  %v2605 = vadd.f32 %v2601, %v2604
  %vm2606 = vweird.f32 %v2600
  %vm2607 = vweird.f32 %v2601
  %vm2608 = vmor %vm2606, %vm2607
  %v2609 = vsel %vm2608, %v2601, %v2605
  %v2610 = vand.u32 2147483647, %v2600
  %vm2611 = vcmp.eq.f32.partialorder %v2610, 8.507059e+37
  %v2612 = vand.u32 %v2600, 2147483648
  %v2613 = vor.u32 1.1754944e-38, %v2612
  %v2614 = vsel %vm2611, %v2613, %v2609
  %v2615 = vmul.f32 1.0, %v2614
  %v2616 = vmul.f32 %v2595, %v1316
  %v2617 = vmul.f32 %v2576, %v2596
  %v2618 = vadd.f32 %v2616, %v2617
  %v2619 = vtanh.pop %v2618
  %v2620 = vmul.f32 %v2615, %v2619
  %s2621 = scalar_lea.vmem %s6, 8
  %2622 = vst [vmem:[%s2621] sm:$0xff] %v2620
  %v2623 = vperm.slane %v1851, %v269
  %v2624 = vperm.slane %v1856, %v271
  %v2625 = vsel %vm273, %v2624, %v2623
  %v2626 = vperm.slane %v1861, %v269
  %v2627 = vperm.slane %v1866, %v271
  %v2628 = vsel %vm273, %v2627, %v2626
  %v2629 = vperm.slane %v1871, %v269
  %v2630 = vperm.slane %v1876, %v271
  %v2631 = vsel %vm273, %v2630, %v2629
  %v2632 = vperm.slane %v1881, %v269
  %v2633 = vperm.slane %v1886, %v271
  %v2634 = vsel %vm273, %v2633, %v2632
  %v2635 = vperm.slane %v1891, %v269
  %v2636 = vperm.slane %v1896, %v271
  %v2637 = vsel %vm273, %v2636, %v2635
  %v2638 = vperm.slane %v1901, %v269
  %v2639 = vperm.slane %v1906, %v271
  %v2640 = vsel %vm273, %v2639, %v2638
  %v2641 = vperm.slane %v1911, %v269
  %v2642 = vperm.slane %v1916, %v271
  %v2643 = vsel %vm273, %v2642, %v2641
  %v2644 = vperm.slane %v1921, %v269
  %v2645 = vperm.slane %v1926, %v271
  %v2646 = vsel %vm273, %v2645, %v2644
  %v2647 = vsel %vm296, %v2628, %v2625
  %v2648 = vsel %vm298, %v2631, %v2647
  %v2649 = vsel %vm300, %v2634, %v2648
  %v2650 = vsel %vm302, %v2637, %v2649
  %v2651 = vsel %vm304, %v2640, %v2650
  %v2652 = vsel %vm306, %v2643, %v2651
  %v2653 = vsel %vm308, %v2646, %v2652
  %s2655 = scalar_lea.vmem %s7, 8
  %2656 = vst.msk [vmem:[%s2655] sm:$0xff] %vm311, %v2653
  %v2657 = vpack.c.bf16 %v2620, %v2620
  %v2658 = vld [vmem:[%s3] sm:$0xf]
  %v2659 = vld [vmem:[%s3 + $0x4] sm:$0xf]
  %v2660 = vld [vmem:[%s3 + $0x8] sm:$0xf]
  %v2661 = vld [vmem:[%s3 + $0xc] sm:$0xf]
  %v2662 = vld [vmem:[%s3 + $0x10] sm:$0xf]
  %v2663 = vld [vmem:[%s3 + $0x14] sm:$0xf]
  %v2664 = vld [vmem:[%s3 + $0x18] sm:$0xf]
  %v2665 = vld [vmem:[%s3 + $0x1c] sm:$0xf]
  %v2666 = vld [vmem:[%s3 + $0x20] sm:$0xf]
  %v2667 = vld [vmem:[%s3 + $0x24] sm:$0xf]
  %v2668 = vld [vmem:[%s3 + $0x28] sm:$0xf]
  %v2669 = vld [vmem:[%s3 + $0x2c] sm:$0xf]
  %v2670 = vld [vmem:[%s3 + $0x30] sm:$0xf]
  %v2671 = vld [vmem:[%s3 + $0x34] sm:$0xf]
  %v2672 = vld [vmem:[%s3 + $0x38] sm:$0xf]
  %v2673 = vld [vmem:[%s3 + $0x3c] sm:$0xf]
  %v2690 = vunpack.c.l.b16 %v2658
  %v2691 = vunpack.c.l.b16 %v2659
  %v2692 = vunpack.c.l.b16 %v2660
  %v2693 = vunpack.c.l.b16 %v2661
  %v2694 = vunpack.c.l.b16 %v2662
  %v2695 = vunpack.c.l.b16 %v2663
  %v2696 = vunpack.c.l.b16 %v2664
  %v2697 = vunpack.c.l.b16 %v2665
  %v2698 = vunpack.c.l.b16 %v2666
  %v2699 = vunpack.c.l.b16 %v2667
  %v2700 = vunpack.c.l.b16 %v2668
  %v2701 = vunpack.c.l.b16 %v2669
  %v2702 = vunpack.c.l.b16 %v2670
  %v2703 = vunpack.c.l.b16 %v2671
  %v2704 = vunpack.c.l.b16 %v2672
  %v2705 = vunpack.c.l.b16 %v2673
  %v2706 = vpack.c.b16 %v2691, %v2690
  %v2707 = vpack.c.b16 %v2693, %v2692
  %v2708 = vpack.c.b16 %v2695, %v2694
  %v2709 = vpack.c.b16 %v2697, %v2696
  %v2710 = vpack.c.b16 %v2699, %v2698
  %v2711 = vpack.c.b16 %v2701, %v2700
  %v2712 = vpack.c.b16 %v2703, %v2702
  %v2713 = vpack.c.b16 %v2705, %v2704
  %2722 = vmatpush.bf16.msra.mxu0 %v2713
  %2723 = vmatpush.bf16.msra.mxu0 %v2712
  %2724 = vmatpush.bf16.msra.mxu0 %v2711
  %2725 = vmatpush.bf16.msra.mxu0 %v2710
  %2726 = vmatpush.bf16.msra.mxu0 %v2709
  %2727 = vmatpush.bf16.msra.mxu0 %v2708
  %2728 = vmatpush.bf16.msra.mxu0 %v2707
  %2729 = vmatpush.bf16.msra.mxu0 %v2706
  %2730 = vmatmul.bf16.gmra.mxu0 %v2657
  %v2731 = vpop.f32.mrf.mxu0
  %v2732 = vadd.f32 0.0, %v2731
  %v2733 = vpop.f32.mrf.mxu0
  %2734 = vdwg.mxu0
  %v2735 = vld [vmem:[%s0] sm:$0xf]
  %v2736 = vld [vmem:[%s0 + $0x4] sm:$0xf]
  %v2737 = vld [vmem:[%s0 + $0x8] sm:$0xf]
  %v2738 = vld [vmem:[%s0 + $0xc] sm:$0xf]
  %v2739 = vld [vmem:[%s0 + $0x10] sm:$0xf]
  %v2740 = vld [vmem:[%s0 + $0x14] sm:$0xf]
  %v2741 = vld [vmem:[%s0 + $0x18] sm:$0xf]
  %v2742 = vld [vmem:[%s0 + $0x1c] sm:$0xf]
  %v2743 = vld [vmem:[%s0 + $0x20] sm:$0xf]
  %v2744 = vld [vmem:[%s0 + $0x24] sm:$0xf]
  %v2745 = vld [vmem:[%s0 + $0x28] sm:$0xf]
  %v2746 = vld [vmem:[%s0 + $0x2c] sm:$0xf]
  %v2747 = vld [vmem:[%s0 + $0x30] sm:$0xf]
  %v2748 = vld [vmem:[%s0 + $0x34] sm:$0xf]
  %v2749 = vld [vmem:[%s0 + $0x38] sm:$0xf]
  %v2750 = vld [vmem:[%s0 + $0x3c] sm:$0xf]
  %v2751 = vunpack.c.l.bf16 %v2735
  %v2752 = vunpack.c.l.bf16 %v2736
  %v2753 = vunpack.c.l.bf16 %v2737
  %v2754 = vunpack.c.l.bf16 %v2738
  %v2755 = vunpack.c.l.bf16 %v2739
  %v2756 = vunpack.c.l.bf16 %v2740
  %v2757 = vunpack.c.l.bf16 %v2741
  %v2758 = vunpack.c.l.bf16 %v2742
  %v2759 = vunpack.c.l.bf16 %v2743
  %v2760 = vunpack.c.l.bf16 %v2744
  %v2761 = vunpack.c.l.bf16 %v2745
  %v2762 = vunpack.c.l.bf16 %v2746
  %v2763 = vunpack.c.l.bf16 %v2747
  %v2764 = vunpack.c.l.bf16 %v2748
  %v2765 = vunpack.c.l.bf16 %v2749
  %v2766 = vunpack.c.l.bf16 %v2750
  %v2768 = vrot.slane %v2732, 1
  %v2769 = vrot.slane %v2732, 2
  %v2770 = vrot.slane %v2732, 3
  %v2771 = vrot.slane %v2732, 4
  %v2772 = vrot.slane %v2732, 5
  %v2773 = vrot.slane %v2732, 6
  %v2774 = vrot.slane %v2732, 7
  %v2775 = vperm.slane %v2732, 0
  %v2776 = vperm.slane %v2768, 0
  %v2777 = vperm.slane %v2769, 0
  %v2778 = vperm.slane %v2770, 0
  %v2779 = vperm.slane %v2771, 0
  %v2780 = vperm.slane %v2772, 0
  %v2781 = vperm.slane %v2773, 0
  %v2782 = vperm.slane %v2774, 0
  %v2791 = vadd.f32 %v2751, %v2775
  %v2792 = vadd.f32 %v2752, %v2775
  %v2793 = vadd.f32 %v2753, %v2776
  %v2794 = vadd.f32 %v2754, %v2776
  %v2795 = vadd.f32 %v2755, %v2777
  %v2796 = vadd.f32 %v2756, %v2777
  %v2797 = vadd.f32 %v2757, %v2778
  %v2798 = vadd.f32 %v2758, %v2778
  %v2799 = vadd.f32 %v2759, %v2779
  %v2800 = vadd.f32 %v2760, %v2779
  %v2801 = vadd.f32 %v2761, %v2780
  %v2802 = vadd.f32 %v2762, %v2780
  %v2803 = vadd.f32 %v2763, %v2781
  %v2804 = vadd.f32 %v2764, %v2781
  %v2805 = vadd.f32 %v2765, %v2782
  %v2806 = vadd.f32 %v2766, %v2782
  %v2807 = vtanh.pop %v2791
  %v2808 = vtanh.pop %v2792
  %v2809 = vtanh.pop %v2793
  %v2810 = vtanh.pop %v2794
  %v2811 = vtanh.pop %v2795
  %v2812 = vtanh.pop %v2796
  %v2813 = vtanh.pop %v2797
  %v2814 = vtanh.pop %v2798
  %v2815 = vtanh.pop %v2799
  %v2816 = vtanh.pop %v2800
  %v2817 = vtanh.pop %v2801
  %v2818 = vtanh.pop %v2802
  %v2819 = vtanh.pop %v2803
  %v2820 = vtanh.pop %v2804
  %v2821 = vtanh.pop %v2805
  %v2822 = vtanh.pop %v2806
  %v2823 = vmul.f32 %v2807, %v37
  %v2824 = vmul.f32 %v2808, %v37
  %v2825 = vmul.f32 %v2809, %v37
  %v2826 = vmul.f32 %v2810, %v37
  %v2827 = vmul.f32 %v2811, %v37
  %v2828 = vmul.f32 %v2812, %v37
  %v2829 = vmul.f32 %v2813, %v37
  %v2830 = vmul.f32 %v2814, %v37
  %v2831 = vmul.f32 %v2815, %v37
  %v2832 = vmul.f32 %v2816, %v37
  %v2833 = vmul.f32 %v2817, %v37
  %v2834 = vmul.f32 %v2818, %v37
  %v2835 = vmul.f32 %v2819, %v37
  %v2836 = vmul.f32 %v2820, %v37
  %v2837 = vmul.f32 %v2821, %v37
  %v2838 = vmul.f32 %v2822, %v37
  %2839 = vadd.xlane.f32.xlu0 %v2823
  %v2840 = vpop.xlane.xlu0 %2839
  %2841 = vadd.xlane.f32.xlu0 %v2824
  %v2842 = vpop.xlane.xlu0 %2841
  %2843 = vadd.xlane.f32.xlu0 %v2825
  %v2844 = vpop.xlane.xlu0 %2843
  %2845 = vadd.xlane.f32.xlu0 %v2826
  %v2846 = vpop.xlane.xlu0 %2845
  %2847 = vadd.xlane.f32.xlu0 %v2827
  %v2848 = vpop.xlane.xlu0 %2847
  %2849 = vadd.xlane.f32.xlu0 %v2828
  %v2850 = vpop.xlane.xlu0 %2849
  %2851 = vadd.xlane.f32.xlu0 %v2829
  %v2852 = vpop.xlane.xlu0 %2851
  %2853 = vadd.xlane.f32.xlu0 %v2830
  %v2854 = vpop.xlane.xlu0 %2853
  %2855 = vadd.xlane.f32.xlu0 %v2831
  %v2856 = vpop.xlane.xlu0 %2855
  %2857 = vadd.xlane.f32.xlu0 %v2832
  %v2858 = vpop.xlane.xlu0 %2857
  %2859 = vadd.xlane.f32.xlu0 %v2833
  %v2860 = vpop.xlane.xlu0 %2859
  %2861 = vadd.xlane.f32.xlu0 %v2834
  %v2862 = vpop.xlane.xlu0 %2861
  %2863 = vadd.xlane.f32.xlu0 %v2835
  %v2864 = vpop.xlane.xlu0 %2863
  %2865 = vadd.xlane.f32.xlu0 %v2836
  %v2866 = vpop.xlane.xlu0 %2865
  %2867 = vadd.xlane.f32.xlu0 %v2837
  %v2868 = vpop.xlane.xlu0 %2867
  %2869 = vadd.xlane.f32.xlu0 %v2838
  %v2870 = vpop.xlane.xlu0 %2869
  %v2887 = vperm.slane %v2840, %v269
  %v2888 = vperm.slane %v2842, %v271
  %v2889 = vsel %vm273, %v2888, %v2887
  %v2890 = vperm.slane %v2844, %v269
  %v2891 = vperm.slane %v2846, %v271
  %v2892 = vsel %vm273, %v2891, %v2890
  %v2893 = vperm.slane %v2848, %v269
  %v2894 = vperm.slane %v2850, %v271
  %v2895 = vsel %vm273, %v2894, %v2893
  %v2896 = vperm.slane %v2852, %v269
  %v2897 = vperm.slane %v2854, %v271
  %v2898 = vsel %vm273, %v2897, %v2896
  %v2899 = vperm.slane %v2856, %v269
  %v2900 = vperm.slane %v2858, %v271
  %v2901 = vsel %vm273, %v2900, %v2899
  %v2902 = vperm.slane %v2860, %v269
  %v2903 = vperm.slane %v2862, %v271
  %v2904 = vsel %vm273, %v2903, %v2902
  %v2905 = vperm.slane %v2864, %v269
  %v2906 = vperm.slane %v2866, %v271
  %v2907 = vsel %vm273, %v2906, %v2905
  %v2908 = vperm.slane %v2868, %v269
  %v2909 = vperm.slane %v2870, %v271
  %v2910 = vsel %vm273, %v2909, %v2908
  %v2911 = vsel %vm296, %v2892, %v2889
  %v2912 = vsel %vm298, %v2895, %v2911
  %v2913 = vsel %vm300, %v2898, %v2912
  %v2914 = vsel %vm302, %v2901, %v2913
  %v2915 = vsel %vm304, %v2904, %v2914
  %v2916 = vsel %vm306, %v2907, %v2915
  %v2917 = vsel %vm308, %v2910, %v2916
  %v2919 = vsel %vm311, %v2917, -inf
  %2920 = vmax.xlane.f32.xlu0 %v2919
  %v2921 = vpop.xlane.xlu0 %2920
  %v2923 = vperm.slane %v2921, 0
  %v2924 = vperm.slane %v2921, 1
  %v2925 = vperm.slane %v2921, 2
  %v2926 = vperm.slane %v2921, 3
  %v2927 = vperm.slane %v2921, 4
  %v2928 = vperm.slane %v2921, 5
  %v2929 = vperm.slane %v2921, 6
  %v2930 = vperm.slane %v2921, 7
  %v2939 = vsub.f32 %v2840, %v2923
  %v2940 = vsub.f32 %v2842, %v2923
  %v2941 = vsub.f32 %v2844, %v2924
  %v2942 = vsub.f32 %v2846, %v2924
  %v2943 = vsub.f32 %v2848, %v2925
  %v2944 = vsub.f32 %v2850, %v2925
  %v2945 = vsub.f32 %v2852, %v2926
  %v2946 = vsub.f32 %v2854, %v2926
  %v2947 = vsub.f32 %v2856, %v2927
  %v2948 = vsub.f32 %v2858, %v2927
  %v2949 = vsub.f32 %v2860, %v2928
  %v2950 = vsub.f32 %v2862, %v2928
  %v2951 = vsub.f32 %v2864, %v2929
  %v2952 = vsub.f32 %v2866, %v2929
  %v2953 = vsub.f32 %v2868, %v2930
  %v2954 = vsub.f32 %v2870, %v2930
  %v2955 = vmul.f32 %v2939, 1.442695
  %v2956 = vpow.pop %v2955
  %v2957 = vmul.f32 %v2940, 1.442695
  %v2958 = vpow.pop %v2957
  %v2959 = vmul.f32 %v2941, 1.442695
  %v2960 = vpow.pop %v2959
  %v2961 = vmul.f32 %v2942, 1.442695
  %v2962 = vpow.pop %v2961
  %v2963 = vmul.f32 %v2943, 1.442695
  %v2964 = vpow.pop %v2963
  %v2965 = vmul.f32 %v2944, 1.442695
  %v2966 = vpow.pop %v2965
  %v2967 = vmul.f32 %v2945, 1.442695
  %v2968 = vpow.pop %v2967
  %v2969 = vmul.f32 %v2946, 1.442695
  %v2970 = vpow.pop %v2969
  %v2971 = vmul.f32 %v2947, 1.442695
  %v2972 = vpow.pop %v2971
  %v2973 = vmul.f32 %v2948, 1.442695
  %v2974 = vpow.pop %v2973
  %v2975 = vmul.f32 %v2949, 1.442695
  %v2976 = vpow.pop %v2975
  %v2977 = vmul.f32 %v2950, 1.442695
  %v2978 = vpow.pop %v2977
  %v2979 = vmul.f32 %v2951, 1.442695
  %v2980 = vpow.pop %v2979
  %v2981 = vmul.f32 %v2952, 1.442695
  %v2982 = vpow.pop %v2981
  %v2983 = vmul.f32 %v2953, 1.442695
  %v2984 = vpow.pop %v2983
  %v2985 = vmul.f32 %v2954, 1.442695
  %v2986 = vpow.pop %v2985
  %3003 = vset.pattern.permute.xlu0 0
  %3004 = vperm.xlu0 %3003, %v2956
  %v3005 = vpop.permute.xlu0 %3004
  %3006 = vset.pattern.permute.xlu0 0
  %3007 = vperm.xlu0 %3006, %v2958
  %v3008 = vpop.permute.xlu0 %3007
  %3009 = vset.pattern.permute.xlu0 0
  %3010 = vperm.xlu0 %3009, %v2960
  %v3011 = vpop.permute.xlu0 %3010
  %3012 = vset.pattern.permute.xlu0 0
  %3013 = vperm.xlu0 %3012, %v2962
  %v3014 = vpop.permute.xlu0 %3013
  %3015 = vset.pattern.permute.xlu0 0
  %3016 = vperm.xlu0 %3015, %v2964
  %v3017 = vpop.permute.xlu0 %3016
  %3018 = vset.pattern.permute.xlu0 0
  %3019 = vperm.xlu0 %3018, %v2966
  %v3020 = vpop.permute.xlu0 %3019
  %3021 = vset.pattern.permute.xlu0 0
  %3022 = vperm.xlu0 %3021, %v2968
  %v3023 = vpop.permute.xlu0 %3022
  %3024 = vset.pattern.permute.xlu0 0
  %3025 = vperm.xlu0 %3024, %v2970
  %v3026 = vpop.permute.xlu0 %3025
  %3027 = vset.pattern.permute.xlu0 0
  %3028 = vperm.xlu0 %3027, %v2972
  %v3029 = vpop.permute.xlu0 %3028
  %3030 = vset.pattern.permute.xlu0 0
  %3031 = vperm.xlu0 %3030, %v2974
  %v3032 = vpop.permute.xlu0 %3031
  %3033 = vset.pattern.permute.xlu0 0
  %3034 = vperm.xlu0 %3033, %v2976
  %v3035 = vpop.permute.xlu0 %3034
  %3036 = vset.pattern.permute.xlu0 0
  %3037 = vperm.xlu0 %3036, %v2978
  %v3038 = vpop.permute.xlu0 %3037
  %3039 = vset.pattern.permute.xlu0 0
  %3040 = vperm.xlu0 %3039, %v2980
  %v3041 = vpop.permute.xlu0 %3040
  %3042 = vset.pattern.permute.xlu0 0
  %3043 = vperm.xlu0 %3042, %v2982
  %v3044 = vpop.permute.xlu0 %3043
  %3045 = vset.pattern.permute.xlu0 0
  %3046 = vperm.xlu0 %3045, %v2984
  %v3047 = vpop.permute.xlu0 %3046
  %3048 = vset.pattern.permute.xlu0 0
  %3049 = vperm.xlu0 %3048, %v2986
  %v3050 = vpop.permute.xlu0 %3049
  %v3051 = vperm.slane %v3005, %v269
  %v3052 = vperm.slane %v3008, %v271
  %v3053 = vsel %vm273, %v3052, %v3051
  %v3054 = vperm.slane %v3011, %v269
  %v3055 = vperm.slane %v3014, %v271
  %v3056 = vsel %vm273, %v3055, %v3054
  %v3057 = vperm.slane %v3017, %v269
  %v3058 = vperm.slane %v3020, %v271
  %v3059 = vsel %vm273, %v3058, %v3057
  %v3060 = vperm.slane %v3023, %v269
  %v3061 = vperm.slane %v3026, %v271
  %v3062 = vsel %vm273, %v3061, %v3060
  %v3063 = vperm.slane %v3029, %v269
  %v3064 = vperm.slane %v3032, %v271
  %v3065 = vsel %vm273, %v3064, %v3063
  %v3066 = vperm.slane %v3035, %v269
  %v3067 = vperm.slane %v3038, %v271
  %v3068 = vsel %vm273, %v3067, %v3066
  %v3069 = vperm.slane %v3041, %v269
  %v3070 = vperm.slane %v3044, %v271
  %v3071 = vsel %vm273, %v3070, %v3069
  %v3072 = vperm.slane %v3047, %v269
  %v3073 = vperm.slane %v3050, %v271
  %v3074 = vsel %vm273, %v3073, %v3072
  %v3075 = vsel %vm296, %v3056, %v3053
  %v3076 = vsel %vm298, %v3059, %v3075
  %v3077 = vsel %vm300, %v3062, %v3076
  %v3078 = vsel %vm302, %v3065, %v3077
  %v3079 = vsel %vm304, %v3068, %v3078
  %v3080 = vsel %vm306, %v3071, %v3079
  %v3081 = vsel %vm308, %v3074, %v3080
  %v3083 = vsel %vm311, %v3081, 0.0
  %3084 = vadd.xlane.f32.xlu0 %v3083
  %v3085 = vpop.xlane.xlu0 %3084
  %v3086 = vrcp.pop %v3085
  %v3088 = vperm.slane %v3086, 0
  %v3089 = vperm.slane %v3086, 1
  %v3090 = vperm.slane %v3086, 2
  %v3091 = vperm.slane %v3086, 3
  %v3092 = vperm.slane %v3086, 4
  %v3093 = vperm.slane %v3086, 5
  %v3094 = vperm.slane %v3086, 6
  %v3095 = vperm.slane %v3086, 7
  %v3104 = vmul.f32 %v2956, %v3088
  %v3105 = vmul.f32 %v2958, %v3088
  %v3106 = vmul.f32 %v2960, %v3089
  %v3107 = vmul.f32 %v2962, %v3089
  %v3108 = vmul.f32 %v2964, %v3090
  %v3109 = vmul.f32 %v2966, %v3090
  %v3110 = vmul.f32 %v2968, %v3091
  %v3111 = vmul.f32 %v2970, %v3091
  %v3112 = vmul.f32 %v2972, %v3092
  %v3113 = vmul.f32 %v2974, %v3092
  %v3114 = vmul.f32 %v2976, %v3093
  %v3115 = vmul.f32 %v2978, %v3093
  %v3116 = vmul.f32 %v2980, %v3094
  %v3117 = vmul.f32 %v2982, %v3094
  %v3118 = vmul.f32 %v2984, %v3095
  %v3119 = vmul.f32 %v2986, %v3095
  %v3120 = vld [vmem:[%s1] sm:$0xf]
  %v3121 = vld [vmem:[%s1 + $0x4] sm:$0xf]
  %v3122 = vld [vmem:[%s1 + $0x8] sm:$0xf]
  %v3123 = vld [vmem:[%s1 + $0xc] sm:$0xf]
  %v3124 = vld [vmem:[%s1 + $0x10] sm:$0xf]
  %v3125 = vld [vmem:[%s1 + $0x14] sm:$0xf]
  %v3126 = vld [vmem:[%s1 + $0x18] sm:$0xf]
  %v3127 = vld [vmem:[%s1 + $0x1c] sm:$0xf]
  %v3128 = vld [vmem:[%s1 + $0x20] sm:$0xf]
  %v3129 = vld [vmem:[%s1 + $0x24] sm:$0xf]
  %v3130 = vld [vmem:[%s1 + $0x28] sm:$0xf]
  %v3131 = vld [vmem:[%s1 + $0x2c] sm:$0xf]
  %v3132 = vld [vmem:[%s1 + $0x30] sm:$0xf]
  %v3133 = vld [vmem:[%s1 + $0x34] sm:$0xf]
  %v3134 = vld [vmem:[%s1 + $0x38] sm:$0xf]
  %v3135 = vld [vmem:[%s1 + $0x3c] sm:$0xf]
  %v3136 = vunpack.c.l.bf16 %v3120
  %v3137 = vunpack.c.l.bf16 %v3121
  %v3138 = vunpack.c.l.bf16 %v3122
  %v3139 = vunpack.c.l.bf16 %v3123
  %v3140 = vunpack.c.l.bf16 %v3124
  %v3141 = vunpack.c.l.bf16 %v3125
  %v3142 = vunpack.c.l.bf16 %v3126
  %v3143 = vunpack.c.l.bf16 %v3127
  %v3144 = vunpack.c.l.bf16 %v3128
  %v3145 = vunpack.c.l.bf16 %v3129
  %v3146 = vunpack.c.l.bf16 %v3130
  %v3147 = vunpack.c.l.bf16 %v3131
  %v3148 = vunpack.c.l.bf16 %v3132
  %v3149 = vunpack.c.l.bf16 %v3133
  %v3150 = vunpack.c.l.bf16 %v3134
  %v3151 = vunpack.c.l.bf16 %v3135
  %3153 = vset.pattern.permute.xlu0 0
  %3154 = vperm.xlu0 %3153, %v3104
  %v3155 = vpop.permute.xlu0 %3154
  %3158 = vset.pattern.permute.xlu0 0
  %3159 = vperm.xlu0 %3158, %v3105
  %v3160 = vpop.permute.xlu0 %3159
  %3163 = vset.pattern.permute.xlu0 0
  %3164 = vperm.xlu0 %3163, %v3106
  %v3165 = vpop.permute.xlu0 %3164
  %3168 = vset.pattern.permute.xlu0 0
  %3169 = vperm.xlu0 %3168, %v3107
  %v3170 = vpop.permute.xlu0 %3169
  %3173 = vset.pattern.permute.xlu0 0
  %3174 = vperm.xlu0 %3173, %v3108
  %v3175 = vpop.permute.xlu0 %3174
  %3178 = vset.pattern.permute.xlu0 0
  %3179 = vperm.xlu0 %3178, %v3109
  %v3180 = vpop.permute.xlu0 %3179
  %3183 = vset.pattern.permute.xlu0 0
  %3184 = vperm.xlu0 %3183, %v3110
  %v3185 = vpop.permute.xlu0 %3184
  %3188 = vset.pattern.permute.xlu0 0
  %3189 = vperm.xlu0 %3188, %v3111
  %v3190 = vpop.permute.xlu0 %3189
  %3193 = vset.pattern.permute.xlu0 0
  %3194 = vperm.xlu0 %3193, %v3112
  %v3195 = vpop.permute.xlu0 %3194
  %3198 = vset.pattern.permute.xlu0 0
  %3199 = vperm.xlu0 %3198, %v3113
  %v3200 = vpop.permute.xlu0 %3199
  %3203 = vset.pattern.permute.xlu0 0
  %3204 = vperm.xlu0 %3203, %v3114
  %v3205 = vpop.permute.xlu0 %3204
  %3208 = vset.pattern.permute.xlu0 0
  %3209 = vperm.xlu0 %3208, %v3115
  %v3210 = vpop.permute.xlu0 %3209
  %3213 = vset.pattern.permute.xlu0 0
  %3214 = vperm.xlu0 %3213, %v3116
  %v3215 = vpop.permute.xlu0 %3214
  %3218 = vset.pattern.permute.xlu0 0
  %3219 = vperm.xlu0 %3218, %v3117
  %v3220 = vpop.permute.xlu0 %3219
  %3223 = vset.pattern.permute.xlu0 0
  %3224 = vperm.xlu0 %3223, %v3118
  %v3225 = vpop.permute.xlu0 %3224
  %3228 = vset.pattern.permute.xlu0 0
  %3229 = vperm.xlu0 %3228, %v3119
  %v3230 = vpop.permute.xlu0 %3229
  %v3232 = vmul.f32 %v3136, %v3155
  %v3233 = vmul.f32 %v3137, %v3160
  %v3234 = vmul.f32 %v3138, %v3165
  %v3235 = vmul.f32 %v3139, %v3170
  %v3236 = vmul.f32 %v3140, %v3175
  %v3237 = vmul.f32 %v3141, %v3180
  %v3238 = vmul.f32 %v3142, %v3185
  %v3239 = vmul.f32 %v3143, %v3190
  %v3240 = vmul.f32 %v3144, %v3195
  %v3241 = vmul.f32 %v3145, %v3200
  %v3242 = vmul.f32 %v3146, %v3205
  %v3243 = vmul.f32 %v3147, %v3210
  %v3244 = vmul.f32 %v3148, %v3215
  %v3245 = vmul.f32 %v3149, %v3220
  %v3246 = vmul.f32 %v3150, %v3225
  %v3247 = vmul.f32 %v3151, %v3230
  %v3248 = vsel %vm641, %v3232, 0.0
  %v3249 = vsel %vm641, %v3233, 0.0
  %v3250 = vadd.f32 %v3248, %v3249
  %v3251 = vrot.slane %v3250, 4
  %v3252 = vadd.f32 %v3250, %v3251
  %v3253 = vrot.slane %v3252, 2
  %v3254 = vadd.f32 %v3252, %v3253
  %v3255 = vrot.slane %v3254, 1
  %v3256 = vadd.f32 %v3254, %v3255
  %v3257 = vsel %vm641, %v3234, 0.0
  %v3258 = vsel %vm641, %v3235, 0.0
  %v3259 = vadd.f32 %v3257, %v3258
  %v3260 = vrot.slane %v3259, 4
  %v3261 = vadd.f32 %v3259, %v3260
  %v3262 = vrot.slane %v3261, 2
  %v3263 = vadd.f32 %v3261, %v3262
  %v3264 = vrot.slane %v3263, 1
  %v3265 = vadd.f32 %v3263, %v3264
  %v3266 = vsel %vm641, %v3236, 0.0
  %v3267 = vsel %vm641, %v3237, 0.0
  %v3268 = vadd.f32 %v3266, %v3267
  %v3269 = vrot.slane %v3268, 4
  %v3270 = vadd.f32 %v3268, %v3269
  %v3271 = vrot.slane %v3270, 2
  %v3272 = vadd.f32 %v3270, %v3271
  %v3273 = vrot.slane %v3272, 1
  %v3274 = vadd.f32 %v3272, %v3273
  %v3275 = vsel %vm641, %v3238, 0.0
  %v3276 = vsel %vm641, %v3239, 0.0
  %v3277 = vadd.f32 %v3275, %v3276
  %v3278 = vrot.slane %v3277, 4
  %v3279 = vadd.f32 %v3277, %v3278
  %v3280 = vrot.slane %v3279, 2
  %v3281 = vadd.f32 %v3279, %v3280
  %v3282 = vrot.slane %v3281, 1
  %v3283 = vadd.f32 %v3281, %v3282
  %v3284 = vsel %vm641, %v3240, 0.0
  %v3285 = vsel %vm641, %v3241, 0.0
  %v3286 = vadd.f32 %v3284, %v3285
  %v3287 = vrot.slane %v3286, 4
  %v3288 = vadd.f32 %v3286, %v3287
  %v3289 = vrot.slane %v3288, 2
  %v3290 = vadd.f32 %v3288, %v3289
  %v3291 = vrot.slane %v3290, 1
  %v3292 = vadd.f32 %v3290, %v3291
  %v3293 = vsel %vm641, %v3242, 0.0
  %v3294 = vsel %vm641, %v3243, 0.0
  %v3295 = vadd.f32 %v3293, %v3294
  %v3296 = vrot.slane %v3295, 4
  %v3297 = vadd.f32 %v3295, %v3296
  %v3298 = vrot.slane %v3297, 2
  %v3299 = vadd.f32 %v3297, %v3298
  %v3300 = vrot.slane %v3299, 1
  %v3301 = vadd.f32 %v3299, %v3300
  %v3302 = vsel %vm641, %v3244, 0.0
  %v3303 = vsel %vm641, %v3245, 0.0
  %v3304 = vadd.f32 %v3302, %v3303
  %v3305 = vrot.slane %v3304, 4
  %v3306 = vadd.f32 %v3304, %v3305
  %v3307 = vrot.slane %v3306, 2
  %v3308 = vadd.f32 %v3306, %v3307
  %v3309 = vrot.slane %v3308, 1
  %v3310 = vadd.f32 %v3308, %v3309
  %v3311 = vsel %vm641, %v3246, 0.0
  %v3312 = vsel %vm641, %v3247, 0.0
  %v3313 = vadd.f32 %v3311, %v3312
  %v3314 = vrot.slane %v3313, 4
  %v3315 = vadd.f32 %v3313, %v3314
  %v3316 = vrot.slane %v3315, 2
  %v3317 = vadd.f32 %v3315, %v3316
  %v3318 = vrot.slane %v3317, 1
  %v3319 = vadd.f32 %v3317, %v3318
  %v3320 = vpack.c.bf16 %v3256, %v3256
  %v3321 = vpack.c.bf16 %v3265, %v3265
  %v3322 = vpack.c.bf16 %v3274, %v3274
  %v3323 = vpack.c.bf16 %v3283, %v3283
  %v3324 = vpack.c.bf16 %v3292, %v3292
  %v3325 = vpack.c.bf16 %v3301, %v3301
  %v3326 = vpack.c.bf16 %v3310, %v3310
  %v3327 = vpack.c.bf16 %v3319, %v3319
  %v3336 = vunpack.c.l.b16 %v3320
  %v3337 = vunpack.c.l.b16 %v3321
  %v3338 = vunpack.c.l.b16 %v3322
  %v3339 = vunpack.c.l.b16 %v3323
  %v3340 = vunpack.c.l.b16 %v3324
  %v3341 = vunpack.c.l.b16 %v3325
  %v3342 = vunpack.c.l.b16 %v3326
  %v3343 = vunpack.c.l.b16 %v3327
  %v3344 = vsel %vm296, %v3337, %v3336
  %v3345 = vsel %vm298, %v3338, %v3344
  %v3346 = vsel %vm300, %v3339, %v3345
  %v3347 = vsel %vm302, %v3340, %v3346
  %v3348 = vsel %vm304, %v3341, %v3347
  %v3349 = vsel %vm306, %v3342, %v3348
  %v3350 = vsel %vm308, %v3343, %v3349
  %v3351 = vpack.c.b16 %v3350, %v3350
  %3353 = vst.msk [vmem:[#allocation2] sm:$0xf] %vm747, %v3351
  %3354 = vst [vmem:[#allocation2 + $0x4] sm:$0xf] %v2657
  %s3355 = scalar_lea.vmem %s2, 32
  %v3356 = vld [vmem:[%s3355] sm:$0xff]
  %v3357 = vld [vmem:[%s3355 + $0x8] sm:$0xff]
  %v3358 = vunpack.c.l.bf16 %v3356
  %v3359 = vunpack.c.h.bf16 %v3356
  %v3360 = vunpack.c.l.bf16 %v3357
  %v3361 = vunpack.c.h.bf16 %v3357
  %v3362 = vld [vmem:[#allocation2] sm:$0xff]
  %v3363 = vld [vmem:[%s5] sm:$0xff]
  %v3364 = vld [vmem:[%s5 + $0x8] sm:$0xff]
  %v3365 = vld [vmem:[%s5 + $0x10] sm:$0xff]
  %v3366 = vld [vmem:[%s5 + $0x18] sm:$0xff]
  %v3367 = vld [vmem:[%s5 + $0x20] sm:$0xff]
  %v3368 = vld [vmem:[%s5 + $0x28] sm:$0xff]
  %v3369 = vld [vmem:[%s5 + $0x30] sm:$0xff]
  %v3370 = vld [vmem:[%s5 + $0x38] sm:$0xff]
  %v3371 = vld [vmem:[%s5 + $0x40] sm:$0xff]
  %v3372 = vld [vmem:[%s5 + $0x48] sm:$0xff]
  %v3373 = vld [vmem:[%s5 + $0x50] sm:$0xff]
  %v3374 = vld [vmem:[%s5 + $0x58] sm:$0xff]
  %v3375 = vld [vmem:[%s5 + $0x60] sm:$0xff]
  %v3376 = vld [vmem:[%s5 + $0x68] sm:$0xff]
  %v3377 = vld [vmem:[%s5 + $0x70] sm:$0xff]
  %v3378 = vld [vmem:[%s5 + $0x78] sm:$0xff]
  %v3379 = vld [vmem:[%s5 + $0x80] sm:$0xff]
  %v3380 = vld [vmem:[%s5 + $0x88] sm:$0xff]
  %v3381 = vld [vmem:[%s5 + $0x90] sm:$0xff]
  %v3382 = vld [vmem:[%s5 + $0x98] sm:$0xff]
  %v3383 = vld [vmem:[%s5 + $0xa0] sm:$0xff]
  %v3384 = vld [vmem:[%s5 + $0xa8] sm:$0xff]
  %v3385 = vld [vmem:[%s5 + $0xb0] sm:$0xff]
  %v3386 = vld [vmem:[%s5 + $0xb8] sm:$0xff]
  %v3387 = vld [vmem:[%s5 + $0xc0] sm:$0xff]
  %v3388 = vld [vmem:[%s5 + $0xc8] sm:$0xff]
  %v3389 = vld [vmem:[%s5 + $0xd0] sm:$0xff]
  %v3390 = vld [vmem:[%s5 + $0xd8] sm:$0xff]
  %v3391 = vld [vmem:[%s5 + $0xe0] sm:$0xff]
  %v3392 = vld [vmem:[%s5 + $0xe8] sm:$0xff]
  %v3393 = vld [vmem:[%s5 + $0xf0] sm:$0xff]
  %v3394 = vld [vmem:[%s5 + $0xf8] sm:$0xff]
  %v3395 = vld [vmem:[%s5 + $0x100] sm:$0xff]
  %v3396 = vld [vmem:[%s5 + $0x108] sm:$0xff]
  %v3397 = vld [vmem:[%s5 + $0x110] sm:$0xff]
  %v3398 = vld [vmem:[%s5 + $0x118] sm:$0xff]
  %v3399 = vld [vmem:[%s5 + $0x120] sm:$0xff]
  %v3400 = vld [vmem:[%s5 + $0x128] sm:$0xff]
  %v3401 = vld [vmem:[%s5 + $0x130] sm:$0xff]
  %v3402 = vld [vmem:[%s5 + $0x138] sm:$0xff]
  %v3403 = vld [vmem:[%s5 + $0x140] sm:$0xff]
  %v3404 = vld [vmem:[%s5 + $0x148] sm:$0xff]
  %v3405 = vld [vmem:[%s5 + $0x150] sm:$0xff]
  %v3406 = vld [vmem:[%s5 + $0x158] sm:$0xff]
  %v3407 = vld [vmem:[%s5 + $0x160] sm:$0xff]
  %v3408 = vld [vmem:[%s5 + $0x168] sm:$0xff]
  %v3409 = vld [vmem:[%s5 + $0x170] sm:$0xff]
  %v3410 = vld [vmem:[%s5 + $0x178] sm:$0xff]
  %v3411 = vld [vmem:[%s5 + $0x180] sm:$0xff]
  %v3412 = vld [vmem:[%s5 + $0x188] sm:$0xff]
  %v3413 = vld [vmem:[%s5 + $0x190] sm:$0xff]
  %v3414 = vld [vmem:[%s5 + $0x198] sm:$0xff]
  %v3415 = vld [vmem:[%s5 + $0x1a0] sm:$0xff]
  %v3416 = vld [vmem:[%s5 + $0x1a8] sm:$0xff]
  %v3417 = vld [vmem:[%s5 + $0x1b0] sm:$0xff]
  %v3418 = vld [vmem:[%s5 + $0x1b8] sm:$0xff]
  %v3419 = vld [vmem:[%s5 + $0x1c0] sm:$0xff]
  %v3420 = vld [vmem:[%s5 + $0x1c8] sm:$0xff]
  %v3421 = vld [vmem:[%s5 + $0x1d0] sm:$0xff]
  %v3422 = vld [vmem:[%s5 + $0x1d8] sm:$0xff]
  %v3423 = vld [vmem:[%s5 + $0x1e0] sm:$0xff]
  %v3424 = vld [vmem:[%s5 + $0x1e8] sm:$0xff]
  %v3425 = vld [vmem:[%s5 + $0x1f0] sm:$0xff]
  %v3426 = vld [vmem:[%s5 + $0x1f8] sm:$0xff]
  %v3428 = vunpack.c.l.b16 %v3362
  %v3429 = vunpack.c.h.b16 %v3362
  %v3430 = vpack.c.b16 %v3428, %v3428
  %v3431 = vpack.c.b16 %v3429, %v3429
  %v3498 = vunpack.c.l.b16 %v3363
  %v3499 = vunpack.c.h.b16 %v3363
  %v3500 = vunpack.c.l.b16 %v3364
  %v3501 = vunpack.c.h.b16 %v3364
  %v3502 = vunpack.c.l.b16 %v3365
  %v3503 = vunpack.c.h.b16 %v3365
  %v3504 = vunpack.c.l.b16 %v3366
  %v3505 = vunpack.c.h.b16 %v3366
  %v3506 = vunpack.c.l.b16 %v3367
  %v3507 = vunpack.c.h.b16 %v3367
  %v3508 = vunpack.c.l.b16 %v3368
  %v3509 = vunpack.c.h.b16 %v3368
  %v3510 = vunpack.c.l.b16 %v3369
  %v3511 = vunpack.c.h.b16 %v3369
  %v3512 = vunpack.c.l.b16 %v3370
  %v3513 = vunpack.c.h.b16 %v3370
  %v3514 = vunpack.c.l.b16 %v3371
  %v3515 = vunpack.c.h.b16 %v3371
  %v3516 = vunpack.c.l.b16 %v3372
  %v3517 = vunpack.c.h.b16 %v3372
  %v3518 = vunpack.c.l.b16 %v3373
  %v3519 = vunpack.c.h.b16 %v3373
  %v3520 = vunpack.c.l.b16 %v3374
  %v3521 = vunpack.c.h.b16 %v3374
  %v3522 = vunpack.c.l.b16 %v3375
  %v3523 = vunpack.c.h.b16 %v3375
  %v3524 = vunpack.c.l.b16 %v3376
  %v3525 = vunpack.c.h.b16 %v3376
  %v3526 = vunpack.c.l.b16 %v3377
  %v3527 = vunpack.c.h.b16 %v3377
  %v3528 = vunpack.c.l.b16 %v3378
  %v3529 = vunpack.c.h.b16 %v3378
  %v3530 = vunpack.c.l.b16 %v3379
  %v3531 = vunpack.c.h.b16 %v3379
  %v3532 = vunpack.c.l.b16 %v3380
  %v3533 = vunpack.c.h.b16 %v3380
  %v3534 = vunpack.c.l.b16 %v3381
  %v3535 = vunpack.c.h.b16 %v3381
  %v3536 = vunpack.c.l.b16 %v3382
  %v3537 = vunpack.c.h.b16 %v3382
  %v3538 = vunpack.c.l.b16 %v3383
  %v3539 = vunpack.c.h.b16 %v3383
  %v3540 = vunpack.c.l.b16 %v3384
  %v3541 = vunpack.c.h.b16 %v3384
  %v3542 = vunpack.c.l.b16 %v3385
  %v3543 = vunpack.c.h.b16 %v3385
  %v3544 = vunpack.c.l.b16 %v3386
  %v3545 = vunpack.c.h.b16 %v3386
  %v3546 = vunpack.c.l.b16 %v3387
  %v3547 = vunpack.c.h.b16 %v3387
  %v3548 = vunpack.c.l.b16 %v3388
  %v3549 = vunpack.c.h.b16 %v3388
  %v3550 = vunpack.c.l.b16 %v3389
  %v3551 = vunpack.c.h.b16 %v3389
  %v3552 = vunpack.c.l.b16 %v3390
  %v3553 = vunpack.c.h.b16 %v3390
  %v3554 = vunpack.c.l.b16 %v3391
  %v3555 = vunpack.c.h.b16 %v3391
  %v3556 = vunpack.c.l.b16 %v3392
  %v3557 = vunpack.c.h.b16 %v3392
  %v3558 = vunpack.c.l.b16 %v3393
  %v3559 = vunpack.c.h.b16 %v3393
  %v3560 = vunpack.c.l.b16 %v3394
  %v3561 = vunpack.c.h.b16 %v3394
  %v3562 = vunpack.c.l.b16 %v3395
  %v3563 = vunpack.c.h.b16 %v3395
  %v3564 = vunpack.c.l.b16 %v3396
  %v3565 = vunpack.c.h.b16 %v3396
  %v3566 = vunpack.c.l.b16 %v3397
  %v3567 = vunpack.c.h.b16 %v3397
  %v3568 = vunpack.c.l.b16 %v3398
  %v3569 = vunpack.c.h.b16 %v3398
  %v3570 = vunpack.c.l.b16 %v3399
  %v3571 = vunpack.c.h.b16 %v3399
  %v3572 = vunpack.c.l.b16 %v3400
  %v3573 = vunpack.c.h.b16 %v3400
  %v3574 = vunpack.c.l.b16 %v3401
  %v3575 = vunpack.c.h.b16 %v3401
  %v3576 = vunpack.c.l.b16 %v3402
  %v3577 = vunpack.c.h.b16 %v3402
  %v3578 = vunpack.c.l.b16 %v3403
  %v3579 = vunpack.c.h.b16 %v3403
  %v3580 = vunpack.c.l.b16 %v3404
  %v3581 = vunpack.c.h.b16 %v3404
  %v3582 = vunpack.c.l.b16 %v3405
  %v3583 = vunpack.c.h.b16 %v3405
  %v3584 = vunpack.c.l.b16 %v3406
  %v3585 = vunpack.c.h.b16 %v3406
  %v3586 = vunpack.c.l.b16 %v3407
  %v3587 = vunpack.c.h.b16 %v3407
  %v3588 = vunpack.c.l.b16 %v3408
  %v3589 = vunpack.c.h.b16 %v3408
  %v3590 = vunpack.c.l.b16 %v3409
  %v3591 = vunpack.c.h.b16 %v3409
  %v3592 = vunpack.c.l.b16 %v3410
  %v3593 = vunpack.c.h.b16 %v3410
  %v3594 = vunpack.c.l.b16 %v3411
  %v3595 = vunpack.c.h.b16 %v3411
  %v3596 = vunpack.c.l.b16 %v3412
  %v3597 = vunpack.c.h.b16 %v3412
  %v3598 = vunpack.c.l.b16 %v3413
  %v3599 = vunpack.c.h.b16 %v3413
  %v3600 = vunpack.c.l.b16 %v3414
  %v3601 = vunpack.c.h.b16 %v3414
  %v3602 = vunpack.c.l.b16 %v3415
  %v3603 = vunpack.c.h.b16 %v3415
  %v3604 = vunpack.c.l.b16 %v3416
  %v3605 = vunpack.c.h.b16 %v3416
  %v3606 = vunpack.c.l.b16 %v3417
  %v3607 = vunpack.c.h.b16 %v3417
  %v3608 = vunpack.c.l.b16 %v3418
  %v3609 = vunpack.c.h.b16 %v3418
  %v3610 = vunpack.c.l.b16 %v3419
  %v3611 = vunpack.c.h.b16 %v3419
  %v3612 = vunpack.c.l.b16 %v3420
  %v3613 = vunpack.c.h.b16 %v3420
  %v3614 = vunpack.c.l.b16 %v3421
  %v3615 = vunpack.c.h.b16 %v3421
  %v3616 = vunpack.c.l.b16 %v3422
  %v3617 = vunpack.c.h.b16 %v3422
  %v3618 = vunpack.c.l.b16 %v3423
  %v3619 = vunpack.c.h.b16 %v3423
  %v3620 = vunpack.c.l.b16 %v3424
  %v3621 = vunpack.c.h.b16 %v3424
  %v3622 = vunpack.c.l.b16 %v3425
  %v3623 = vunpack.c.h.b16 %v3425
  %v3624 = vunpack.c.l.b16 %v3426
  %v3625 = vunpack.c.h.b16 %v3426
  %v3626 = vpack.c.b16 %v3502, %v3498
  %v3627 = vpack.c.b16 %v3503, %v3499
  %v3628 = vpack.c.b16 %v3504, %v3500
  %v3629 = vpack.c.b16 %v3505, %v3501
  %v3630 = vpack.c.b16 %v3510, %v3506
  %v3631 = vpack.c.b16 %v3511, %v3507
  %v3632 = vpack.c.b16 %v3512, %v3508
  %v3633 = vpack.c.b16 %v3513, %v3509
  %v3634 = vpack.c.b16 %v3518, %v3514
  %v3635 = vpack.c.b16 %v3519, %v3515
  %v3636 = vpack.c.b16 %v3520, %v3516
  %v3637 = vpack.c.b16 %v3521, %v3517
  %v3638 = vpack.c.b16 %v3526, %v3522
  %v3639 = vpack.c.b16 %v3527, %v3523
  %v3640 = vpack.c.b16 %v3528, %v3524
  %v3641 = vpack.c.b16 %v3529, %v3525
  %v3642 = vpack.c.b16 %v3534, %v3530
  %v3643 = vpack.c.b16 %v3535, %v3531
  %v3644 = vpack.c.b16 %v3536, %v3532
  %v3645 = vpack.c.b16 %v3537, %v3533
  %v3646 = vpack.c.b16 %v3542, %v3538
  %v3647 = vpack.c.b16 %v3543, %v3539
  %v3648 = vpack.c.b16 %v3544, %v3540
  %v3649 = vpack.c.b16 %v3545, %v3541
  %v3650 = vpack.c.b16 %v3550, %v3546
  %v3651 = vpack.c.b16 %v3551, %v3547
  %v3652 = vpack.c.b16 %v3552, %v3548
  %v3653 = vpack.c.b16 %v3553, %v3549
  %v3654 = vpack.c.b16 %v3558, %v3554
  %v3655 = vpack.c.b16 %v3559, %v3555
  %v3656 = vpack.c.b16 %v3560, %v3556
  %v3657 = vpack.c.b16 %v3561, %v3557
  %v3658 = vpack.c.b16 %v3566, %v3562
  %v3659 = vpack.c.b16 %v3567, %v3563
  %v3660 = vpack.c.b16 %v3568, %v3564
  %v3661 = vpack.c.b16 %v3569, %v3565
  %v3662 = vpack.c.b16 %v3574, %v3570
  %v3663 = vpack.c.b16 %v3575, %v3571
  %v3664 = vpack.c.b16 %v3576, %v3572
  %v3665 = vpack.c.b16 %v3577, %v3573
  %v3666 = vpack.c.b16 %v3582, %v3578
  %v3667 = vpack.c.b16 %v3583, %v3579
  %v3668 = vpack.c.b16 %v3584, %v3580
  %v3669 = vpack.c.b16 %v3585, %v3581
  %v3670 = vpack.c.b16 %v3590, %v3586
  %v3671 = vpack.c.b16 %v3591, %v3587
  %v3672 = vpack.c.b16 %v3592, %v3588
  %v3673 = vpack.c.b16 %v3593, %v3589
  %v3674 = vpack.c.b16 %v3598, %v3594
  %v3675 = vpack.c.b16 %v3599, %v3595
  %v3676 = vpack.c.b16 %v3600, %v3596
  %v3677 = vpack.c.b16 %v3601, %v3597
  %v3678 = vpack.c.b16 %v3606, %v3602
  %v3679 = vpack.c.b16 %v3607, %v3603
  %v3680 = vpack.c.b16 %v3608, %v3604
  %v3681 = vpack.c.b16 %v3609, %v3605
  %v3682 = vpack.c.b16 %v3614, %v3610
  %v3683 = vpack.c.b16 %v3615, %v3611
  %v3684 = vpack.c.b16 %v3616, %v3612
  %v3685 = vpack.c.b16 %v3617, %v3613
  %v3686 = vpack.c.b16 %v3622, %v3618
  %v3687 = vpack.c.b16 %v3623, %v3619
  %v3688 = vpack.c.b16 %v3624, %v3620
  %v3689 = vpack.c.b16 %v3625, %v3621
  %3754 = vmatpush.bf16.msra.mxu0 %v3654
  %3755 = vmatpush.bf16.msra.mxu0 %v3650
  %3756 = vmatpush.bf16.msra.mxu0 %v3646
  %3757 = vmatpush.bf16.msra.mxu0 %v3642
  %3758 = vmatpush.bf16.msra.mxu0 %v3638
  %3759 = vmatpush.bf16.msra.mxu0 %v3634
  %3760 = vmatpush.bf16.msra.mxu0 %v3630
  %3761 = vmatpush.bf16.msra.mxu0 %v3626
  %3762 = vmatmul.bf16.gmra.mxu0 %v3430
  %v3763 = vpop.f32.mrf.mxu0
  %v3764 = vadd.f32 0.0, %v3763
  %v3765 = vpop.f32.mrf.mxu0
  %3766 = vdwg.mxu0
  %3767 = vmatpush.bf16.msra.mxu0 %v3686
  %3768 = vmatpush.bf16.msra.mxu0 %v3682
  %3769 = vmatpush.bf16.msra.mxu0 %v3678
  %3770 = vmatpush.bf16.msra.mxu0 %v3674
  %3771 = vmatpush.bf16.msra.mxu0 %v3670
  %3772 = vmatpush.bf16.msra.mxu0 %v3666
  %3773 = vmatpush.bf16.msra.mxu0 %v3662
  %3774 = vmatpush.bf16.msra.mxu0 %v3658
  %3775 = vmatmul.bf16.gmra.mxu0 %v3431
  %v3776 = vpop.f32.mrf.mxu0
  %v3777 = vadd.f32 %v3764, %v3776
  %v3778 = vpop.f32.mrf.mxu0
  %3779 = vdwg.mxu0
  %3780 = vmatpush.bf16.msra.mxu0 %v3655
  %3781 = vmatpush.bf16.msra.mxu0 %v3651
  %3782 = vmatpush.bf16.msra.mxu0 %v3647
  %3783 = vmatpush.bf16.msra.mxu0 %v3643
  %3784 = vmatpush.bf16.msra.mxu0 %v3639
  %3785 = vmatpush.bf16.msra.mxu0 %v3635
  %3786 = vmatpush.bf16.msra.mxu0 %v3631
  %3787 = vmatpush.bf16.msra.mxu0 %v3627
  %3788 = vmatmul.bf16.gmra.mxu0 %v3430
  %v3789 = vpop.f32.mrf.mxu0
  %v3790 = vadd.f32 0.0, %v3789
  %v3791 = vpop.f32.mrf.mxu0
  %3792 = vdwg.mxu0
  %3793 = vmatpush.bf16.msra.mxu0 %v3687
  %3794 = vmatpush.bf16.msra.mxu0 %v3683
  %3795 = vmatpush.bf16.msra.mxu0 %v3679
  %3796 = vmatpush.bf16.msra.mxu0 %v3675
  %3797 = vmatpush.bf16.msra.mxu0 %v3671
  %3798 = vmatpush.bf16.msra.mxu0 %v3667
  %3799 = vmatpush.bf16.msra.mxu0 %v3663
  %3800 = vmatpush.bf16.msra.mxu0 %v3659
  %3801 = vmatmul.bf16.gmra.mxu0 %v3431
  %v3802 = vpop.f32.mrf.mxu0
  %v3803 = vadd.f32 %v3790, %v3802
  %v3804 = vpop.f32.mrf.mxu0
  %3805 = vdwg.mxu0
  %3806 = vmatpush.bf16.msra.mxu0 %v3656
  %3807 = vmatpush.bf16.msra.mxu0 %v3652
  %3808 = vmatpush.bf16.msra.mxu0 %v3648
  %3809 = vmatpush.bf16.msra.mxu0 %v3644
  %3810 = vmatpush.bf16.msra.mxu0 %v3640
  %3811 = vmatpush.bf16.msra.mxu0 %v3636
  %3812 = vmatpush.bf16.msra.mxu0 %v3632
  %3813 = vmatpush.bf16.msra.mxu0 %v3628
  %3814 = vmatmul.bf16.gmra.mxu0 %v3430
  %v3815 = vpop.f32.mrf.mxu0
  %v3816 = vadd.f32 0.0, %v3815
  %v3817 = vpop.f32.mrf.mxu0
  %3818 = vdwg.mxu0
  %3819 = vmatpush.bf16.msra.mxu0 %v3688
  %3820 = vmatpush.bf16.msra.mxu0 %v3684
  %3821 = vmatpush.bf16.msra.mxu0 %v3680
  %3822 = vmatpush.bf16.msra.mxu0 %v3676
  %3823 = vmatpush.bf16.msra.mxu0 %v3672
  %3824 = vmatpush.bf16.msra.mxu0 %v3668
  %3825 = vmatpush.bf16.msra.mxu0 %v3664
  %3826 = vmatpush.bf16.msra.mxu0 %v3660
  %3827 = vmatmul.bf16.gmra.mxu0 %v3431
  %v3828 = vpop.f32.mrf.mxu0
  %v3829 = vadd.f32 %v3816, %v3828
  %v3830 = vpop.f32.mrf.mxu0
  %3831 = vdwg.mxu0
  %3832 = vmatpush.bf16.msra.mxu0 %v3657
  %3833 = vmatpush.bf16.msra.mxu0 %v3653
  %3834 = vmatpush.bf16.msra.mxu0 %v3649
  %3835 = vmatpush.bf16.msra.mxu0 %v3645
  %3836 = vmatpush.bf16.msra.mxu0 %v3641
  %3837 = vmatpush.bf16.msra.mxu0 %v3637
  %3838 = vmatpush.bf16.msra.mxu0 %v3633
  %3839 = vmatpush.bf16.msra.mxu0 %v3629
  %3840 = vmatmul.bf16.gmra.mxu0 %v3430
  %v3841 = vpop.f32.mrf.mxu0
  %v3842 = vadd.f32 0.0, %v3841
  %v3843 = vpop.f32.mrf.mxu0
  %3844 = vdwg.mxu0
  %3845 = vmatpush.bf16.msra.mxu0 %v3689
  %3846 = vmatpush.bf16.msra.mxu0 %v3685
  %3847 = vmatpush.bf16.msra.mxu0 %v3681
  %3848 = vmatpush.bf16.msra.mxu0 %v3677
  %3849 = vmatpush.bf16.msra.mxu0 %v3673
  %3850 = vmatpush.bf16.msra.mxu0 %v3669
  %3851 = vmatpush.bf16.msra.mxu0 %v3665
  %3852 = vmatpush.bf16.msra.mxu0 %v3661
  %3853 = vmatmul.bf16.gmra.mxu0 %v3431
  %v3854 = vpop.f32.mrf.mxu0
  %v3855 = vadd.f32 %v3842, %v3854
  %v3856 = vpop.f32.mrf.mxu0
  %3857 = vdwg.mxu0
  %v3858 = vadd.f32 %v3358, %v3777
  %v3859 = vadd.f32 %v3359, %v3803
  %v3860 = vadd.f32 %v3360, %v3829
  %v3861 = vadd.f32 %v3361, %v3855
  %v3862 = vxor.u32 %v3858, 2147483648
  %v3863 = vmul.f32 %v3862, 1.442695
  %v3864 = vpow.pop %v3863
  %v3865 = vadd.f32 %v3864, 1.0
  %v3866 = vrcp.pop %v3865
  %v3867 = vmul.f32 %v3865, %v3866
  %v3868 = vsub.f32 1.0, %v3867
  %v3869 = vmul.f32 %v3866, %v3868
  %v3870 = vadd.f32 %v3866, %v3869
  %vm3871 = vweird.f32 %v3865
  %vm3872 = vweird.f32 %v3866
  %vm3873 = vmor %vm3871, %vm3872
  %v3874 = vsel %vm3873, %v3866, %v3870
  %v3875 = vand.u32 2147483647, %v3865
  %vm3876 = vcmp.eq.f32.partialorder %v3875, 8.507059e+37
  %v3877 = vand.u32 %v3865, 2147483648
  %v3878 = vor.u32 1.1754944e-38, %v3877
  %v3879 = vsel %vm3876, %v3878, %v3874
  %v3880 = vmul.f32 1.0, %v3879
  %v3881 = vxor.u32 %v3859, 2147483648
  %v3882 = vmul.f32 %v3881, 1.442695
  %v3883 = vpow.pop %v3882
  %v3884 = vadd.f32 %v3883, 1.0
  %v3885 = vrcp.pop %v3884
  %v3886 = vmul.f32 %v3884, %v3885
  %v3887 = vsub.f32 1.0, %v3886
  %v3888 = vmul.f32 %v3885, %v3887
  %v3889 = vadd.f32 %v3885, %v3888
  %vm3890 = vweird.f32 %v3884
  %vm3891 = vweird.f32 %v3885
  %vm3892 = vmor %vm3890, %vm3891
  %v3893 = vsel %vm3892, %v3885, %v3889
  %v3894 = vand.u32 2147483647, %v3884
  %vm3895 = vcmp.eq.f32.partialorder %v3894, 8.507059e+37
  %v3896 = vand.u32 %v3884, 2147483648
  %v3897 = vor.u32 1.1754944e-38, %v3896
  %v3898 = vsel %vm3895, %v3897, %v3893
  %v3899 = vmul.f32 1.0, %v3898
  %v3900 = vtanh.pop %v3860
  %v3901 = vxor.u32 %v3861, 2147483648
  %v3902 = vmul.f32 %v3901, 1.442695
  %v3903 = vpow.pop %v3902
  %v3904 = vadd.f32 %v3903, 1.0
  %v3905 = vrcp.pop %v3904
  %v3906 = vmul.f32 %v3904, %v3905
  %v3907 = vsub.f32 1.0, %v3906
  %v3908 = vmul.f32 %v3905, %v3907
  %v3909 = vadd.f32 %v3905, %v3908
  %vm3910 = vweird.f32 %v3904
  %vm3911 = vweird.f32 %v3905
  %vm3912 = vmor %vm3910, %vm3911
  %v3913 = vsel %vm3912, %v3905, %v3909
  %v3914 = vand.u32 2147483647, %v3904
  %vm3915 = vcmp.eq.f32.partialorder %v3914, 8.507059e+37
  %v3916 = vand.u32 %v3904, 2147483648
  %v3917 = vor.u32 1.1754944e-38, %v3916
  %v3918 = vsel %vm3915, %v3917, %v3913
  %v3919 = vmul.f32 1.0, %v3918
  %v3920 = vmul.f32 %v3899, %v2618
  %v3921 = vmul.f32 %v3880, %v3900
  %v3922 = vadd.f32 %v3920, %v3921
  %v3923 = vtanh.pop %v3922
  %v3924 = vmul.f32 %v3919, %v3923
  %s3925 = scalar_lea.vmem %s6, 16
  %3926 = vst [vmem:[%s3925] sm:$0xff] %v3924
  %v3927 = vperm.slane %v3155, %v269
  %v3928 = vperm.slane %v3160, %v271
  %v3929 = vsel %vm273, %v3928, %v3927
  %v3930 = vperm.slane %v3165, %v269
  %v3931 = vperm.slane %v3170, %v271
  %v3932 = vsel %vm273, %v3931, %v3930
  %v3933 = vperm.slane %v3175, %v269
  %v3934 = vperm.slane %v3180, %v271
  %v3935 = vsel %vm273, %v3934, %v3933
  %v3936 = vperm.slane %v3185, %v269
  %v3937 = vperm.slane %v3190, %v271
  %v3938 = vsel %vm273, %v3937, %v3936
  %v3939 = vperm.slane %v3195, %v269
  %v3940 = vperm.slane %v3200, %v271
  %v3941 = vsel %vm273, %v3940, %v3939
  %v3942 = vperm.slane %v3205, %v269
  %v3943 = vperm.slane %v3210, %v271
  %v3944 = vsel %vm273, %v3943, %v3942
  %v3945 = vperm.slane %v3215, %v269
  %v3946 = vperm.slane %v3220, %v271
  %v3947 = vsel %vm273, %v3946, %v3945
  %v3948 = vperm.slane %v3225, %v269
  %v3949 = vperm.slane %v3230, %v271
  %v3950 = vsel %vm273, %v3949, %v3948
  %v3951 = vsel %vm296, %v3932, %v3929
  %v3952 = vsel %vm298, %v3935, %v3951
  %v3953 = vsel %vm300, %v3938, %v3952
  %v3954 = vsel %vm302, %v3941, %v3953
  %v3955 = vsel %vm304, %v3944, %v3954
  %v3956 = vsel %vm306, %v3947, %v3955
  %v3957 = vsel %vm308, %v3950, %v3956
  %s3959 = scalar_lea.vmem %s7, 16
  %3960 = vst.msk [vmem:[%s3959] sm:$0xff] %vm311, %v3957
  %v3961 = vpack.c.bf16 %v3924, %v3924
  %v3962 = vld [vmem:[%s3] sm:$0xf]
  %v3963 = vld [vmem:[%s3 + $0x4] sm:$0xf]
  %v3964 = vld [vmem:[%s3 + $0x8] sm:$0xf]
  %v3965 = vld [vmem:[%s3 + $0xc] sm:$0xf]
  %v3966 = vld [vmem:[%s3 + $0x10] sm:$0xf]
  %v3967 = vld [vmem:[%s3 + $0x14] sm:$0xf]
  %v3968 = vld [vmem:[%s3 + $0x18] sm:$0xf]
  %v3969 = vld [vmem:[%s3 + $0x1c] sm:$0xf]
  %v3970 = vld [vmem:[%s3 + $0x20] sm:$0xf]
  %v3971 = vld [vmem:[%s3 + $0x24] sm:$0xf]
  %v3972 = vld [vmem:[%s3 + $0x28] sm:$0xf]
  %v3973 = vld [vmem:[%s3 + $0x2c] sm:$0xf]
  %v3974 = vld [vmem:[%s3 + $0x30] sm:$0xf]
  %v3975 = vld [vmem:[%s3 + $0x34] sm:$0xf]
  %v3976 = vld [vmem:[%s3 + $0x38] sm:$0xf]
  %v3977 = vld [vmem:[%s3 + $0x3c] sm:$0xf]
  %v3994 = vunpack.c.l.b16 %v3962
  %v3995 = vunpack.c.l.b16 %v3963
  %v3996 = vunpack.c.l.b16 %v3964
  %v3997 = vunpack.c.l.b16 %v3965
  %v3998 = vunpack.c.l.b16 %v3966
  %v3999 = vunpack.c.l.b16 %v3967
  %v4000 = vunpack.c.l.b16 %v3968
  %v4001 = vunpack.c.l.b16 %v3969
  %v4002 = vunpack.c.l.b16 %v3970
  %v4003 = vunpack.c.l.b16 %v3971
  %v4004 = vunpack.c.l.b16 %v3972
  %v4005 = vunpack.c.l.b16 %v3973
  %v4006 = vunpack.c.l.b16 %v3974
  %v4007 = vunpack.c.l.b16 %v3975
  %v4008 = vunpack.c.l.b16 %v3976
  %v4009 = vunpack.c.l.b16 %v3977
  %v4010 = vpack.c.b16 %v3995, %v3994
  %v4011 = vpack.c.b16 %v3997, %v3996
  %v4012 = vpack.c.b16 %v3999, %v3998
  %v4013 = vpack.c.b16 %v4001, %v4000
  %v4014 = vpack.c.b16 %v4003, %v4002
  %v4015 = vpack.c.b16 %v4005, %v4004
  %v4016 = vpack.c.b16 %v4007, %v4006
  %v4017 = vpack.c.b16 %v4009, %v4008
  %4026 = vmatpush.bf16.msra.mxu0 %v4017
  %4027 = vmatpush.bf16.msra.mxu0 %v4016
  %4028 = vmatpush.bf16.msra.mxu0 %v4015
  %4029 = vmatpush.bf16.msra.mxu0 %v4014
  %4030 = vmatpush.bf16.msra.mxu0 %v4013
  %4031 = vmatpush.bf16.msra.mxu0 %v4012
  %4032 = vmatpush.bf16.msra.mxu0 %v4011
  %4033 = vmatpush.bf16.msra.mxu0 %v4010
  %4034 = vmatmul.bf16.gmra.mxu0 %v3961
  %v4035 = vpop.f32.mrf.mxu0
  %v4036 = vadd.f32 0.0, %v4035
  %v4037 = vpop.f32.mrf.mxu0
  %4038 = vdwg.mxu0
  %v4039 = vld [vmem:[%s0] sm:$0xf]
  %v4040 = vld [vmem:[%s0 + $0x4] sm:$0xf]
  %v4041 = vld [vmem:[%s0 + $0x8] sm:$0xf]
  %v4042 = vld [vmem:[%s0 + $0xc] sm:$0xf]
  %v4043 = vld [vmem:[%s0 + $0x10] sm:$0xf]
  %v4044 = vld [vmem:[%s0 + $0x14] sm:$0xf]
  %v4045 = vld [vmem:[%s0 + $0x18] sm:$0xf]
  %v4046 = vld [vmem:[%s0 + $0x1c] sm:$0xf]
  %v4047 = vld [vmem:[%s0 + $0x20] sm:$0xf]
  %v4048 = vld [vmem:[%s0 + $0x24] sm:$0xf]
  %v4049 = vld [vmem:[%s0 + $0x28] sm:$0xf]
  %v4050 = vld [vmem:[%s0 + $0x2c] sm:$0xf]
  %v4051 = vld [vmem:[%s0 + $0x30] sm:$0xf]
  %v4052 = vld [vmem:[%s0 + $0x34] sm:$0xf]
  %v4053 = vld [vmem:[%s0 + $0x38] sm:$0xf]
  %v4054 = vld [vmem:[%s0 + $0x3c] sm:$0xf]
  %v4055 = vunpack.c.l.bf16 %v4039
  %v4056 = vunpack.c.l.bf16 %v4040
  %v4057 = vunpack.c.l.bf16 %v4041
  %v4058 = vunpack.c.l.bf16 %v4042
  %v4059 = vunpack.c.l.bf16 %v4043
  %v4060 = vunpack.c.l.bf16 %v4044
  %v4061 = vunpack.c.l.bf16 %v4045
  %v4062 = vunpack.c.l.bf16 %v4046
  %v4063 = vunpack.c.l.bf16 %v4047
  %v4064 = vunpack.c.l.bf16 %v4048
  %v4065 = vunpack.c.l.bf16 %v4049
  %v4066 = vunpack.c.l.bf16 %v4050
  %v4067 = vunpack.c.l.bf16 %v4051
  %v4068 = vunpack.c.l.bf16 %v4052
  %v4069 = vunpack.c.l.bf16 %v4053
  %v4070 = vunpack.c.l.bf16 %v4054
  %v4072 = vrot.slane %v4036, 1
  %v4073 = vrot.slane %v4036, 2
  %v4074 = vrot.slane %v4036, 3
  %v4075 = vrot.slane %v4036, 4
  %v4076 = vrot.slane %v4036, 5
  %v4077 = vrot.slane %v4036, 6
  %v4078 = vrot.slane %v4036, 7
  %v4079 = vperm.slane %v4036, 0
  %v4080 = vperm.slane %v4072, 0
  %v4081 = vperm.slane %v4073, 0
  %v4082 = vperm.slane %v4074, 0
  %v4083 = vperm.slane %v4075, 0
  %v4084 = vperm.slane %v4076, 0
  %v4085 = vperm.slane %v4077, 0
  %v4086 = vperm.slane %v4078, 0
  %v4095 = vadd.f32 %v4055, %v4079
  %v4096 = vadd.f32 %v4056, %v4079
  %v4097 = vadd.f32 %v4057, %v4080
  %v4098 = vadd.f32 %v4058, %v4080
  %v4099 = vadd.f32 %v4059, %v4081
  %v4100 = vadd.f32 %v4060, %v4081
  %v4101 = vadd.f32 %v4061, %v4082
  %v4102 = vadd.f32 %v4062, %v4082
  %v4103 = vadd.f32 %v4063, %v4083
  %v4104 = vadd.f32 %v4064, %v4083
  %v4105 = vadd.f32 %v4065, %v4084
  %v4106 = vadd.f32 %v4066, %v4084
  %v4107 = vadd.f32 %v4067, %v4085
  %v4108 = vadd.f32 %v4068, %v4085
  %v4109 = vadd.f32 %v4069, %v4086
  %v4110 = vadd.f32 %v4070, %v4086
  %v4111 = vtanh.pop %v4095
  %v4112 = vtanh.pop %v4096
  %v4113 = vtanh.pop %v4097
  %v4114 = vtanh.pop %v4098
  %v4115 = vtanh.pop %v4099
  %v4116 = vtanh.pop %v4100
  %v4117 = vtanh.pop %v4101
  %v4118 = vtanh.pop %v4102
  %v4119 = vtanh.pop %v4103
  %v4120 = vtanh.pop %v4104
  %v4121 = vtanh.pop %v4105
  %v4122 = vtanh.pop %v4106
  %v4123 = vtanh.pop %v4107
  %v4124 = vtanh.pop %v4108
  %v4125 = vtanh.pop %v4109
  %v4126 = vtanh.pop %v4110
  %v4127 = vmul.f32 %v4111, %v37
  %v4128 = vmul.f32 %v4112, %v37
  %v4129 = vmul.f32 %v4113, %v37
  %v4130 = vmul.f32 %v4114, %v37
  %v4131 = vmul.f32 %v4115, %v37
  %v4132 = vmul.f32 %v4116, %v37
  %v4133 = vmul.f32 %v4117, %v37
  %v4134 = vmul.f32 %v4118, %v37
  %v4135 = vmul.f32 %v4119, %v37
  %v4136 = vmul.f32 %v4120, %v37
  %v4137 = vmul.f32 %v4121, %v37
  %v4138 = vmul.f32 %v4122, %v37
  %v4139 = vmul.f32 %v4123, %v37
  %v4140 = vmul.f32 %v4124, %v37
  %v4141 = vmul.f32 %v4125, %v37
  %v4142 = vmul.f32 %v4126, %v37
  %4143 = vadd.xlane.f32.xlu0 %v4127
  %v4144 = vpop.xlane.xlu0 %4143
  %4145 = vadd.xlane.f32.xlu0 %v4128
  %v4146 = vpop.xlane.xlu0 %4145
  %4147 = vadd.xlane.f32.xlu0 %v4129
  %v4148 = vpop.xlane.xlu0 %4147
  %4149 = vadd.xlane.f32.xlu0 %v4130
  %v4150 = vpop.xlane.xlu0 %4149
  %4151 = vadd.xlane.f32.xlu0 %v4131
  %v4152 = vpop.xlane.xlu0 %4151
  %4153 = vadd.xlane.f32.xlu0 %v4132
  %v4154 = vpop.xlane.xlu0 %4153
  %4155 = vadd.xlane.f32.xlu0 %v4133
  %v4156 = vpop.xlane.xlu0 %4155
  %4157 = vadd.xlane.f32.xlu0 %v4134
  %v4158 = vpop.xlane.xlu0 %4157
  %4159 = vadd.xlane.f32.xlu0 %v4135
  %v4160 = vpop.xlane.xlu0 %4159
  %4161 = vadd.xlane.f32.xlu0 %v4136
  %v4162 = vpop.xlane.xlu0 %4161
  %4163 = vadd.xlane.f32.xlu0 %v4137
  %v4164 = vpop.xlane.xlu0 %4163
  %4165 = vadd.xlane.f32.xlu0 %v4138
  %v4166 = vpop.xlane.xlu0 %4165
  %4167 = vadd.xlane.f32.xlu0 %v4139
  %v4168 = vpop.xlane.xlu0 %4167
  %4169 = vadd.xlane.f32.xlu0 %v4140
  %v4170 = vpop.xlane.xlu0 %4169
  %4171 = vadd.xlane.f32.xlu0 %v4141
  %v4172 = vpop.xlane.xlu0 %4171
  %4173 = vadd.xlane.f32.xlu0 %v4142
  %v4174 = vpop.xlane.xlu0 %4173
  %v4191 = vperm.slane %v4144, %v269
  %v4192 = vperm.slane %v4146, %v271
  %v4193 = vsel %vm273, %v4192, %v4191
  %v4194 = vperm.slane %v4148, %v269
  %v4195 = vperm.slane %v4150, %v271
  %v4196 = vsel %vm273, %v4195, %v4194
  %v4197 = vperm.slane %v4152, %v269
  %v4198 = vperm.slane %v4154, %v271
  %v4199 = vsel %vm273, %v4198, %v4197
  %v4200 = vperm.slane %v4156, %v269
  %v4201 = vperm.slane %v4158, %v271
  %v4202 = vsel %vm273, %v4201, %v4200
  %v4203 = vperm.slane %v4160, %v269
  %v4204 = vperm.slane %v4162, %v271
  %v4205 = vsel %vm273, %v4204, %v4203
  %v4206 = vperm.slane %v4164, %v269
  %v4207 = vperm.slane %v4166, %v271
  %v4208 = vsel %vm273, %v4207, %v4206
  %v4209 = vperm.slane %v4168, %v269
  %v4210 = vperm.slane %v4170, %v271
  %v4211 = vsel %vm273, %v4210, %v4209
  %v4212 = vperm.slane %v4172, %v269
  %v4213 = vperm.slane %v4174, %v271
  %v4214 = vsel %vm273, %v4213, %v4212
  %v4215 = vsel %vm296, %v4196, %v4193
  %v4216 = vsel %vm298, %v4199, %v4215
  %v4217 = vsel %vm300, %v4202, %v4216
  %v4218 = vsel %vm302, %v4205, %v4217
  %v4219 = vsel %vm304, %v4208, %v4218
  %v4220 = vsel %vm306, %v4211, %v4219
  %v4221 = vsel %vm308, %v4214, %v4220
  %v4223 = vsel %vm311, %v4221, -inf
  %4224 = vmax.xlane.f32.xlu0 %v4223
  %v4225 = vpop.xlane.xlu0 %4224
  %v4227 = vperm.slane %v4225, 0
  %v4228 = vperm.slane %v4225, 1
  %v4229 = vperm.slane %v4225, 2
  %v4230 = vperm.slane %v4225, 3
  %v4231 = vperm.slane %v4225, 4
  %v4232 = vperm.slane %v4225, 5
  %v4233 = vperm.slane %v4225, 6
  %v4234 = vperm.slane %v4225, 7
  %v4243 = vsub.f32 %v4144, %v4227
  %v4244 = vsub.f32 %v4146, %v4227
  %v4245 = vsub.f32 %v4148, %v4228
  %v4246 = vsub.f32 %v4150, %v4228
  %v4247 = vsub.f32 %v4152, %v4229
  %v4248 = vsub.f32 %v4154, %v4229
  %v4249 = vsub.f32 %v4156, %v4230
  %v4250 = vsub.f32 %v4158, %v4230
  %v4251 = vsub.f32 %v4160, %v4231
  %v4252 = vsub.f32 %v4162, %v4231
  %v4253 = vsub.f32 %v4164, %v4232
  %v4254 = vsub.f32 %v4166, %v4232
  %v4255 = vsub.f32 %v4168, %v4233
  %v4256 = vsub.f32 %v4170, %v4233
  %v4257 = vsub.f32 %v4172, %v4234
  %v4258 = vsub.f32 %v4174, %v4234
  %v4259 = vmul.f32 %v4243, 1.442695
  %v4260 = vpow.pop %v4259
  %v4261 = vmul.f32 %v4244, 1.442695
  %v4262 = vpow.pop %v4261
  %v4263 = vmul.f32 %v4245, 1.442695
  %v4264 = vpow.pop %v4263
  %v4265 = vmul.f32 %v4246, 1.442695
  %v4266 = vpow.pop %v4265
  %v4267 = vmul.f32 %v4247, 1.442695
  %v4268 = vpow.pop %v4267
  %v4269 = vmul.f32 %v4248, 1.442695
  %v4270 = vpow.pop %v4269
  %v4271 = vmul.f32 %v4249, 1.442695
  %v4272 = vpow.pop %v4271
  %v4273 = vmul.f32 %v4250, 1.442695
  %v4274 = vpow.pop %v4273
  %v4275 = vmul.f32 %v4251, 1.442695
  %v4276 = vpow.pop %v4275
  %v4277 = vmul.f32 %v4252, 1.442695
  %v4278 = vpow.pop %v4277
  %v4279 = vmul.f32 %v4253, 1.442695
  %v4280 = vpow.pop %v4279
  %v4281 = vmul.f32 %v4254, 1.442695
  %v4282 = vpow.pop %v4281
  %v4283 = vmul.f32 %v4255, 1.442695
  %v4284 = vpow.pop %v4283
  %v4285 = vmul.f32 %v4256, 1.442695
  %v4286 = vpow.pop %v4285
  %v4287 = vmul.f32 %v4257, 1.442695
  %v4288 = vpow.pop %v4287
  %v4289 = vmul.f32 %v4258, 1.442695
  %v4290 = vpow.pop %v4289
  %4307 = vset.pattern.permute.xlu0 0
  %4308 = vperm.xlu0 %4307, %v4260
  %v4309 = vpop.permute.xlu0 %4308
  %4310 = vset.pattern.permute.xlu0 0
  %4311 = vperm.xlu0 %4310, %v4262
  %v4312 = vpop.permute.xlu0 %4311
  %4313 = vset.pattern.permute.xlu0 0
  %4314 = vperm.xlu0 %4313, %v4264
  %v4315 = vpop.permute.xlu0 %4314
  %4316 = vset.pattern.permute.xlu0 0
  %4317 = vperm.xlu0 %4316, %v4266
  %v4318 = vpop.permute.xlu0 %4317
  %4319 = vset.pattern.permute.xlu0 0
  %4320 = vperm.xlu0 %4319, %v4268
  %v4321 = vpop.permute.xlu0 %4320
  %4322 = vset.pattern.permute.xlu0 0
  %4323 = vperm.xlu0 %4322, %v4270
  %v4324 = vpop.permute.xlu0 %4323
  %4325 = vset.pattern.permute.xlu0 0
  %4326 = vperm.xlu0 %4325, %v4272
  %v4327 = vpop.permute.xlu0 %4326
  %4328 = vset.pattern.permute.xlu0 0
  %4329 = vperm.xlu0 %4328, %v4274
  %v4330 = vpop.permute.xlu0 %4329
  %4331 = vset.pattern.permute.xlu0 0
  %4332 = vperm.xlu0 %4331, %v4276
  %v4333 = vpop.permute.xlu0 %4332
  %4334 = vset.pattern.permute.xlu0 0
  %4335 = vperm.xlu0 %4334, %v4278
  %v4336 = vpop.permute.xlu0 %4335
  %4337 = vset.pattern.permute.xlu0 0
  %4338 = vperm.xlu0 %4337, %v4280
  %v4339 = vpop.permute.xlu0 %4338
  %4340 = vset.pattern.permute.xlu0 0
  %4341 = vperm.xlu0 %4340, %v4282
  %v4342 = vpop.permute.xlu0 %4341
  %4343 = vset.pattern.permute.xlu0 0
  %4344 = vperm.xlu0 %4343, %v4284
  %v4345 = vpop.permute.xlu0 %4344
  %4346 = vset.pattern.permute.xlu0 0
  %4347 = vperm.xlu0 %4346, %v4286
  %v4348 = vpop.permute.xlu0 %4347
  %4349 = vset.pattern.permute.xlu0 0
  %4350 = vperm.xlu0 %4349, %v4288
  %v4351 = vpop.permute.xlu0 %4350
  %4352 = vset.pattern.permute.xlu0 0
  %4353 = vperm.xlu0 %4352, %v4290
  %v4354 = vpop.permute.xlu0 %4353
  %v4355 = vperm.slane %v4309, %v269
  %v4356 = vperm.slane %v4312, %v271
  %v4357 = vsel %vm273, %v4356, %v4355
  %v4358 = vperm.slane %v4315, %v269
  %v4359 = vperm.slane %v4318, %v271
  %v4360 = vsel %vm273, %v4359, %v4358
  %v4361 = vperm.slane %v4321, %v269
  %v4362 = vperm.slane %v4324, %v271
  %v4363 = vsel %vm273, %v4362, %v4361
  %v4364 = vperm.slane %v4327, %v269
  %v4365 = vperm.slane %v4330, %v271
  %v4366 = vsel %vm273, %v4365, %v4364
  %v4367 = vperm.slane %v4333, %v269
  %v4368 = vperm.slane %v4336, %v271
  %v4369 = vsel %vm273, %v4368, %v4367
  %v4370 = vperm.slane %v4339, %v269
  %v4371 = vperm.slane %v4342, %v271
  %v4372 = vsel %vm273, %v4371, %v4370
  %v4373 = vperm.slane %v4345, %v269
  %v4374 = vperm.slane %v4348, %v271
  %v4375 = vsel %vm273, %v4374, %v4373
  %v4376 = vperm.slane %v4351, %v269
  %v4377 = vperm.slane %v4354, %v271
  %v4378 = vsel %vm273, %v4377, %v4376
  %v4379 = vsel %vm296, %v4360, %v4357
  %v4380 = vsel %vm298, %v4363, %v4379
  %v4381 = vsel %vm300, %v4366, %v4380
  %v4382 = vsel %vm302, %v4369, %v4381
  %v4383 = vsel %vm304, %v4372, %v4382
  %v4384 = vsel %vm306, %v4375, %v4383
  %v4385 = vsel %vm308, %v4378, %v4384
  %v4387 = vsel %vm311, %v4385, 0.0
  %4388 = vadd.xlane.f32.xlu0 %v4387
  %v4389 = vpop.xlane.xlu0 %4388
  %v4390 = vrcp.pop %v4389
  %v4392 = vperm.slane %v4390, 0
  %v4393 = vperm.slane %v4390, 1
  %v4394 = vperm.slane %v4390, 2
  %v4395 = vperm.slane %v4390, 3
  %v4396 = vperm.slane %v4390, 4
  %v4397 = vperm.slane %v4390, 5
  %v4398 = vperm.slane %v4390, 6
  %v4399 = vperm.slane %v4390, 7
  %v4408 = vmul.f32 %v4260, %v4392
  %v4409 = vmul.f32 %v4262, %v4392
  %v4410 = vmul.f32 %v4264, %v4393
  %v4411 = vmul.f32 %v4266, %v4393
  %v4412 = vmul.f32 %v4268, %v4394
  %v4413 = vmul.f32 %v4270, %v4394
  %v4414 = vmul.f32 %v4272, %v4395
  %v4415 = vmul.f32 %v4274, %v4395
  %v4416 = vmul.f32 %v4276, %v4396
  %v4417 = vmul.f32 %v4278, %v4396
  %v4418 = vmul.f32 %v4280, %v4397
  %v4419 = vmul.f32 %v4282, %v4397
  %v4420 = vmul.f32 %v4284, %v4398
  %v4421 = vmul.f32 %v4286, %v4398
  %v4422 = vmul.f32 %v4288, %v4399
  %v4423 = vmul.f32 %v4290, %v4399
  %v4424 = vld [vmem:[%s1] sm:$0xf]
  %v4425 = vld [vmem:[%s1 + $0x4] sm:$0xf]
  %v4426 = vld [vmem:[%s1 + $0x8] sm:$0xf]
  %v4427 = vld [vmem:[%s1 + $0xc] sm:$0xf]
  %v4428 = vld [vmem:[%s1 + $0x10] sm:$0xf]
  %v4429 = vld [vmem:[%s1 + $0x14] sm:$0xf]
  %v4430 = vld [vmem:[%s1 + $0x18] sm:$0xf]
  %v4431 = vld [vmem:[%s1 + $0x1c] sm:$0xf]
  %v4432 = vld [vmem:[%s1 + $0x20] sm:$0xf]
  %v4433 = vld [vmem:[%s1 + $0x24] sm:$0xf]
  %v4434 = vld [vmem:[%s1 + $0x28] sm:$0xf]
  %v4435 = vld [vmem:[%s1 + $0x2c] sm:$0xf]
  %v4436 = vld [vmem:[%s1 + $0x30] sm:$0xf]
  %v4437 = vld [vmem:[%s1 + $0x34] sm:$0xf]
  %v4438 = vld [vmem:[%s1 + $0x38] sm:$0xf]
  %v4439 = vld [vmem:[%s1 + $0x3c] sm:$0xf]
  %v4440 = vunpack.c.l.bf16 %v4424
  %v4441 = vunpack.c.l.bf16 %v4425
  %v4442 = vunpack.c.l.bf16 %v4426
  %v4443 = vunpack.c.l.bf16 %v4427
  %v4444 = vunpack.c.l.bf16 %v4428
  %v4445 = vunpack.c.l.bf16 %v4429
  %v4446 = vunpack.c.l.bf16 %v4430
  %v4447 = vunpack.c.l.bf16 %v4431
  %v4448 = vunpack.c.l.bf16 %v4432
  %v4449 = vunpack.c.l.bf16 %v4433
  %v4450 = vunpack.c.l.bf16 %v4434
  %v4451 = vunpack.c.l.bf16 %v4435
  %v4452 = vunpack.c.l.bf16 %v4436
  %v4453 = vunpack.c.l.bf16 %v4437
  %v4454 = vunpack.c.l.bf16 %v4438
  %v4455 = vunpack.c.l.bf16 %v4439
  %4457 = vset.pattern.permute.xlu0 0
  %4458 = vperm.xlu0 %4457, %v4408
  %v4459 = vpop.permute.xlu0 %4458
  %4462 = vset.pattern.permute.xlu0 0
  %4463 = vperm.xlu0 %4462, %v4409
  %v4464 = vpop.permute.xlu0 %4463
  %4467 = vset.pattern.permute.xlu0 0
  %4468 = vperm.xlu0 %4467, %v4410
  %v4469 = vpop.permute.xlu0 %4468
  %4472 = vset.pattern.permute.xlu0 0
  %4473 = vperm.xlu0 %4472, %v4411
  %v4474 = vpop.permute.xlu0 %4473
  %4477 = vset.pattern.permute.xlu0 0
  %4478 = vperm.xlu0 %4477, %v4412
  %v4479 = vpop.permute.xlu0 %4478
  %4482 = vset.pattern.permute.xlu0 0
  %4483 = vperm.xlu0 %4482, %v4413
  %v4484 = vpop.permute.xlu0 %4483
  %4487 = vset.pattern.permute.xlu0 0
  %4488 = vperm.xlu0 %4487, %v4414
  %v4489 = vpop.permute.xlu0 %4488
  %4492 = vset.pattern.permute.xlu0 0
  %4493 = vperm.xlu0 %4492, %v4415
  %v4494 = vpop.permute.xlu0 %4493
  %4497 = vset.pattern.permute.xlu0 0
  %4498 = vperm.xlu0 %4497, %v4416
  %v4499 = vpop.permute.xlu0 %4498
  %4502 = vset.pattern.permute.xlu0 0
  %4503 = vperm.xlu0 %4502, %v4417
  %v4504 = vpop.permute.xlu0 %4503
  %4507 = vset.pattern.permute.xlu0 0
  %4508 = vperm.xlu0 %4507, %v4418
  %v4509 = vpop.permute.xlu0 %4508
  %4512 = vset.pattern.permute.xlu0 0
  %4513 = vperm.xlu0 %4512, %v4419
  %v4514 = vpop.permute.xlu0 %4513
  %4517 = vset.pattern.permute.xlu0 0
  %4518 = vperm.xlu0 %4517, %v4420
  %v4519 = vpop.permute.xlu0 %4518
  %4522 = vset.pattern.permute.xlu0 0
  %4523 = vperm.xlu0 %4522, %v4421
  %v4524 = vpop.permute.xlu0 %4523
  %4527 = vset.pattern.permute.xlu0 0
  %4528 = vperm.xlu0 %4527, %v4422
  %v4529 = vpop.permute.xlu0 %4528
  %4532 = vset.pattern.permute.xlu0 0
  %4533 = vperm.xlu0 %4532, %v4423
  %v4534 = vpop.permute.xlu0 %4533
  %v4536 = vmul.f32 %v4440, %v4459
  %v4537 = vmul.f32 %v4441, %v4464
  %v4538 = vmul.f32 %v4442, %v4469
  %v4539 = vmul.f32 %v4443, %v4474
  %v4540 = vmul.f32 %v4444, %v4479
  %v4541 = vmul.f32 %v4445, %v4484
  %v4542 = vmul.f32 %v4446, %v4489
  %v4543 = vmul.f32 %v4447, %v4494
  %v4544 = vmul.f32 %v4448, %v4499
  %v4545 = vmul.f32 %v4449, %v4504
  %v4546 = vmul.f32 %v4450, %v4509
  %v4547 = vmul.f32 %v4451, %v4514
  %v4548 = vmul.f32 %v4452, %v4519
  %v4549 = vmul.f32 %v4453, %v4524
  %v4550 = vmul.f32 %v4454, %v4529
  %v4551 = vmul.f32 %v4455, %v4534
  %v4552 = vsel %vm641, %v4536, 0.0
  %v4553 = vsel %vm641, %v4537, 0.0
  %v4554 = vadd.f32 %v4552, %v4553
  %v4555 = vrot.slane %v4554, 4
  %v4556 = vadd.f32 %v4554, %v4555
  %v4557 = vrot.slane %v4556, 2
  %v4558 = vadd.f32 %v4556, %v4557
  %v4559 = vrot.slane %v4558, 1
  %v4560 = vadd.f32 %v4558, %v4559
  %v4561 = vsel %vm641, %v4538, 0.0
  %v4562 = vsel %vm641, %v4539, 0.0
  %v4563 = vadd.f32 %v4561, %v4562
  %v4564 = vrot.slane %v4563, 4
  %v4565 = vadd.f32 %v4563, %v4564
  %v4566 = vrot.slane %v4565, 2
  %v4567 = vadd.f32 %v4565, %v4566
  %v4568 = vrot.slane %v4567, 1
  %v4569 = vadd.f32 %v4567, %v4568
  %v4570 = vsel %vm641, %v4540, 0.0
  %v4571 = vsel %vm641, %v4541, 0.0
  %v4572 = vadd.f32 %v4570, %v4571
  %v4573 = vrot.slane %v4572, 4
  %v4574 = vadd.f32 %v4572, %v4573
  %v4575 = vrot.slane %v4574, 2
  %v4576 = vadd.f32 %v4574, %v4575
  %v4577 = vrot.slane %v4576, 1
  %v4578 = vadd.f32 %v4576, %v4577
  %v4579 = vsel %vm641, %v4542, 0.0
  %v4580 = vsel %vm641, %v4543, 0.0
  %v4581 = vadd.f32 %v4579, %v4580
  %v4582 = vrot.slane %v4581, 4
  %v4583 = vadd.f32 %v4581, %v4582
  %v4584 = vrot.slane %v4583, 2
  %v4585 = vadd.f32 %v4583, %v4584
  %v4586 = vrot.slane %v4585, 1
  %v4587 = vadd.f32 %v4585, %v4586
  %v4588 = vsel %vm641, %v4544, 0.0
  %v4589 = vsel %vm641, %v4545, 0.0
  %v4590 = vadd.f32 %v4588, %v4589
  %v4591 = vrot.slane %v4590, 4
  %v4592 = vadd.f32 %v4590, %v4591
  %v4593 = vrot.slane %v4592, 2
  %v4594 = vadd.f32 %v4592, %v4593
  %v4595 = vrot.slane %v4594, 1
  %v4596 = vadd.f32 %v4594, %v4595
  %v4597 = vsel %vm641, %v4546, 0.0
  %v4598 = vsel %vm641, %v4547, 0.0
  %v4599 = vadd.f32 %v4597, %v4598
  %v4600 = vrot.slane %v4599, 4
  %v4601 = vadd.f32 %v4599, %v4600
  %v4602 = vrot.slane %v4601, 2
  %v4603 = vadd.f32 %v4601, %v4602
  %v4604 = vrot.slane %v4603, 1
  %v4605 = vadd.f32 %v4603, %v4604
  %v4606 = vsel %vm641, %v4548, 0.0
  %v4607 = vsel %vm641, %v4549, 0.0
  %v4608 = vadd.f32 %v4606, %v4607
  %v4609 = vrot.slane %v4608, 4
  %v4610 = vadd.f32 %v4608, %v4609
  %v4611 = vrot.slane %v4610, 2
  %v4612 = vadd.f32 %v4610, %v4611
  %v4613 = vrot.slane %v4612, 1
  %v4614 = vadd.f32 %v4612, %v4613
  %v4615 = vsel %vm641, %v4550, 0.0
  %v4616 = vsel %vm641, %v4551, 0.0
  %v4617 = vadd.f32 %v4615, %v4616
  %v4618 = vrot.slane %v4617, 4
  %v4619 = vadd.f32 %v4617, %v4618
  %v4620 = vrot.slane %v4619, 2
  %v4621 = vadd.f32 %v4619, %v4620
  %v4622 = vrot.slane %v4621, 1
  %v4623 = vadd.f32 %v4621, %v4622
  %v4624 = vpack.c.bf16 %v4560, %v4560
  %v4625 = vpack.c.bf16 %v4569, %v4569
  %v4626 = vpack.c.bf16 %v4578, %v4578
  %v4627 = vpack.c.bf16 %v4587, %v4587
  %v4628 = vpack.c.bf16 %v4596, %v4596
  %v4629 = vpack.c.bf16 %v4605, %v4605
  %v4630 = vpack.c.bf16 %v4614, %v4614
  %v4631 = vpack.c.bf16 %v4623, %v4623
  %v4640 = vunpack.c.l.b16 %v4624
  %v4641 = vunpack.c.l.b16 %v4625
  %v4642 = vunpack.c.l.b16 %v4626
  %v4643 = vunpack.c.l.b16 %v4627
  %v4644 = vunpack.c.l.b16 %v4628
  %v4645 = vunpack.c.l.b16 %v4629
  %v4646 = vunpack.c.l.b16 %v4630
  %v4647 = vunpack.c.l.b16 %v4631
  %v4648 = vsel %vm296, %v4641, %v4640
  %v4649 = vsel %vm298, %v4642, %v4648
  %v4650 = vsel %vm300, %v4643, %v4649
  %v4651 = vsel %vm302, %v4644, %v4650
  %v4652 = vsel %vm304, %v4645, %v4651
  %v4653 = vsel %vm306, %v4646, %v4652
  %v4654 = vsel %vm308, %v4647, %v4653
  %v4655 = vpack.c.b16 %v4654, %v4654
  %4657 = vst.msk [vmem:[#allocation2] sm:$0xf] %vm747, %v4655
  %4658 = vst [vmem:[#allocation2 + $0x4] sm:$0xf] %v3961
  %s4659 = scalar_lea.vmem %s2, 48
  %v4660 = vld [vmem:[%s4659] sm:$0xff]
  %v4661 = vld [vmem:[%s4659 + $0x8] sm:$0xff]
  %v4662 = vunpack.c.l.bf16 %v4660
  %v4663 = vunpack.c.h.bf16 %v4660
  %v4664 = vunpack.c.l.bf16 %v4661
  %v4665 = vunpack.c.h.bf16 %v4661
  %v4666 = vld [vmem:[#allocation2] sm:$0xff]
  %v4667 = vld [vmem:[%s5] sm:$0xff]
  %v4668 = vld [vmem:[%s5 + $0x8] sm:$0xff]
  %v4669 = vld [vmem:[%s5 + $0x10] sm:$0xff]
  %v4670 = vld [vmem:[%s5 + $0x18] sm:$0xff]
  %v4671 = vld [vmem:[%s5 + $0x20] sm:$0xff]
  %v4672 = vld [vmem:[%s5 + $0x28] sm:$0xff]
  %v4673 = vld [vmem:[%s5 + $0x30] sm:$0xff]
  %v4674 = vld [vmem:[%s5 + $0x38] sm:$0xff]
  %v4675 = vld [vmem:[%s5 + $0x40] sm:$0xff]
  %v4676 = vld [vmem:[%s5 + $0x48] sm:$0xff]
  %v4677 = vld [vmem:[%s5 + $0x50] sm:$0xff]
  %v4678 = vld [vmem:[%s5 + $0x58] sm:$0xff]
  %v4679 = vld [vmem:[%s5 + $0x60] sm:$0xff]
  %v4680 = vld [vmem:[%s5 + $0x68] sm:$0xff]
  %v4681 = vld [vmem:[%s5 + $0x70] sm:$0xff]
  %v4682 = vld [vmem:[%s5 + $0x78] sm:$0xff]
  %v4683 = vld [vmem:[%s5 + $0x80] sm:$0xff]
  %v4684 = vld [vmem:[%s5 + $0x88] sm:$0xff]
  %v4685 = vld [vmem:[%s5 + $0x90] sm:$0xff]
  %v4686 = vld [vmem:[%s5 + $0x98] sm:$0xff]
  %v4687 = vld [vmem:[%s5 + $0xa0] sm:$0xff]
  %v4688 = vld [vmem:[%s5 + $0xa8] sm:$0xff]
  %v4689 = vld [vmem:[%s5 + $0xb0] sm:$0xff]
  %v4690 = vld [vmem:[%s5 + $0xb8] sm:$0xff]
  %v4691 = vld [vmem:[%s5 + $0xc0] sm:$0xff]
  %v4692 = vld [vmem:[%s5 + $0xc8] sm:$0xff]
  %v4693 = vld [vmem:[%s5 + $0xd0] sm:$0xff]
  %v4694 = vld [vmem:[%s5 + $0xd8] sm:$0xff]
  %v4695 = vld [vmem:[%s5 + $0xe0] sm:$0xff]
  %v4696 = vld [vmem:[%s5 + $0xe8] sm:$0xff]
  %v4697 = vld [vmem:[%s5 + $0xf0] sm:$0xff]
  %v4698 = vld [vmem:[%s5 + $0xf8] sm:$0xff]
  %v4699 = vld [vmem:[%s5 + $0x100] sm:$0xff]
  %v4700 = vld [vmem:[%s5 + $0x108] sm:$0xff]
  %v4701 = vld [vmem:[%s5 + $0x110] sm:$0xff]
  %v4702 = vld [vmem:[%s5 + $0x118] sm:$0xff]
  %v4703 = vld [vmem:[%s5 + $0x120] sm:$0xff]
  %v4704 = vld [vmem:[%s5 + $0x128] sm:$0xff]
  %v4705 = vld [vmem:[%s5 + $0x130] sm:$0xff]
  %v4706 = vld [vmem:[%s5 + $0x138] sm:$0xff]
  %v4707 = vld [vmem:[%s5 + $0x140] sm:$0xff]
  %v4708 = vld [vmem:[%s5 + $0x148] sm:$0xff]
  %v4709 = vld [vmem:[%s5 + $0x150] sm:$0xff]
  %v4710 = vld [vmem:[%s5 + $0x158] sm:$0xff]
  %v4711 = vld [vmem:[%s5 + $0x160] sm:$0xff]
  %v4712 = vld [vmem:[%s5 + $0x168] sm:$0xff]
  %v4713 = vld [vmem:[%s5 + $0x170] sm:$0xff]
  %v4714 = vld [vmem:[%s5 + $0x178] sm:$0xff]
  %v4715 = vld [vmem:[%s5 + $0x180] sm:$0xff]
  %v4716 = vld [vmem:[%s5 + $0x188] sm:$0xff]
  %v4717 = vld [vmem:[%s5 + $0x190] sm:$0xff]
  %v4718 = vld [vmem:[%s5 + $0x198] sm:$0xff]
  %v4719 = vld [vmem:[%s5 + $0x1a0] sm:$0xff]
  %v4720 = vld [vmem:[%s5 + $0x1a8] sm:$0xff]
  %v4721 = vld [vmem:[%s5 + $0x1b0] sm:$0xff]
  %v4722 = vld [vmem:[%s5 + $0x1b8] sm:$0xff]
  %v4723 = vld [vmem:[%s5 + $0x1c0] sm:$0xff]
  %v4724 = vld [vmem:[%s5 + $0x1c8] sm:$0xff]
  %v4725 = vld [vmem:[%s5 + $0x1d0] sm:$0xff]
  %v4726 = vld [vmem:[%s5 + $0x1d8] sm:$0xff]
  %v4727 = vld [vmem:[%s5 + $0x1e0] sm:$0xff]
  %v4728 = vld [vmem:[%s5 + $0x1e8] sm:$0xff]
  %v4729 = vld [vmem:[%s5 + $0x1f0] sm:$0xff]
  %v4730 = vld [vmem:[%s5 + $0x1f8] sm:$0xff]
  %v4732 = vunpack.c.l.b16 %v4666
  %v4733 = vunpack.c.h.b16 %v4666
  %v4734 = vpack.c.b16 %v4732, %v4732
  %v4735 = vpack.c.b16 %v4733, %v4733
  %v4802 = vunpack.c.l.b16 %v4667
  %v4803 = vunpack.c.h.b16 %v4667
  %v4804 = vunpack.c.l.b16 %v4668
  %v4805 = vunpack.c.h.b16 %v4668
  %v4806 = vunpack.c.l.b16 %v4669
  %v4807 = vunpack.c.h.b16 %v4669
  %v4808 = vunpack.c.l.b16 %v4670
  %v4809 = vunpack.c.h.b16 %v4670
  %v4810 = vunpack.c.l.b16 %v4671
  %v4811 = vunpack.c.h.b16 %v4671
  %v4812 = vunpack.c.l.b16 %v4672
  %v4813 = vunpack.c.h.b16 %v4672
  %v4814 = vunpack.c.l.b16 %v4673
  %v4815 = vunpack.c.h.b16 %v4673
  %v4816 = vunpack.c.l.b16 %v4674
  %v4817 = vunpack.c.h.b16 %v4674
  %v4818 = vunpack.c.l.b16 %v4675
  %v4819 = vunpack.c.h.b16 %v4675
  %v4820 = vunpack.c.l.b16 %v4676
  %v4821 = vunpack.c.h.b16 %v4676
  %v4822 = vunpack.c.l.b16 %v4677
  %v4823 = vunpack.c.h.b16 %v4677
  %v4824 = vunpack.c.l.b16 %v4678
  %v4825 = vunpack.c.h.b16 %v4678
  %v4826 = vunpack.c.l.b16 %v4679
  %v4827 = vunpack.c.h.b16 %v4679
  %v4828 = vunpack.c.l.b16 %v4680
  %v4829 = vunpack.c.h.b16 %v4680
  %v4830 = vunpack.c.l.b16 %v4681
  %v4831 = vunpack.c.h.b16 %v4681
  %v4832 = vunpack.c.l.b16 %v4682
  %v4833 = vunpack.c.h.b16 %v4682
  %v4834 = vunpack.c.l.b16 %v4683
  %v4835 = vunpack.c.h.b16 %v4683
  %v4836 = vunpack.c.l.b16 %v4684
  %v4837 = vunpack.c.h.b16 %v4684
  %v4838 = vunpack.c.l.b16 %v4685
  %v4839 = vunpack.c.h.b16 %v4685
  %v4840 = vunpack.c.l.b16 %v4686
  %v4841 = vunpack.c.h.b16 %v4686
  %v4842 = vunpack.c.l.b16 %v4687
  %v4843 = vunpack.c.h.b16 %v4687
  %v4844 = vunpack.c.l.b16 %v4688
  %v4845 = vunpack.c.h.b16 %v4688
  %v4846 = vunpack.c.l.b16 %v4689
  %v4847 = vunpack.c.h.b16 %v4689
  %v4848 = vunpack.c.l.b16 %v4690
  %v4849 = vunpack.c.h.b16 %v4690
  %v4850 = vunpack.c.l.b16 %v4691
  %v4851 = vunpack.c.h.b16 %v4691
  %v4852 = vunpack.c.l.b16 %v4692
  %v4853 = vunpack.c.h.b16 %v4692
  %v4854 = vunpack.c.l.b16 %v4693
  %v4855 = vunpack.c.h.b16 %v4693
  %v4856 = vunpack.c.l.b16 %v4694
  %v4857 = vunpack.c.h.b16 %v4694
  %v4858 = vunpack.c.l.b16 %v4695
  %v4859 = vunpack.c.h.b16 %v4695
  %v4860 = vunpack.c.l.b16 %v4696
  %v4861 = vunpack.c.h.b16 %v4696
  %v4862 = vunpack.c.l.b16 %v4697
  %v4863 = vunpack.c.h.b16 %v4697
  %v4864 = vunpack.c.l.b16 %v4698
  %v4865 = vunpack.c.h.b16 %v4698
  %v4866 = vunpack.c.l.b16 %v4699
  %v4867 = vunpack.c.h.b16 %v4699
  %v4868 = vunpack.c.l.b16 %v4700
  %v4869 = vunpack.c.h.b16 %v4700
  %v4870 = vunpack.c.l.b16 %v4701
  %v4871 = vunpack.c.h.b16 %v4701
  %v4872 = vunpack.c.l.b16 %v4702
  %v4873 = vunpack.c.h.b16 %v4702
  %v4874 = vunpack.c.l.b16 %v4703
  %v4875 = vunpack.c.h.b16 %v4703
  %v4876 = vunpack.c.l.b16 %v4704
  %v4877 = vunpack.c.h.b16 %v4704
  %v4878 = vunpack.c.l.b16 %v4705
  %v4879 = vunpack.c.h.b16 %v4705
  %v4880 = vunpack.c.l.b16 %v4706
  %v4881 = vunpack.c.h.b16 %v4706
  %v4882 = vunpack.c.l.b16 %v4707
  %v4883 = vunpack.c.h.b16 %v4707
  %v4884 = vunpack.c.l.b16 %v4708
  %v4885 = vunpack.c.h.b16 %v4708
  %v4886 = vunpack.c.l.b16 %v4709
  %v4887 = vunpack.c.h.b16 %v4709
  %v4888 = vunpack.c.l.b16 %v4710
  %v4889 = vunpack.c.h.b16 %v4710
  %v4890 = vunpack.c.l.b16 %v4711
  %v4891 = vunpack.c.h.b16 %v4711
  %v4892 = vunpack.c.l.b16 %v4712
  %v4893 = vunpack.c.h.b16 %v4712
  %v4894 = vunpack.c.l.b16 %v4713
  %v4895 = vunpack.c.h.b16 %v4713
  %v4896 = vunpack.c.l.b16 %v4714
  %v4897 = vunpack.c.h.b16 %v4714
  %v4898 = vunpack.c.l.b16 %v4715
  %v4899 = vunpack.c.h.b16 %v4715
  %v4900 = vunpack.c.l.b16 %v4716
  %v4901 = vunpack.c.h.b16 %v4716
  %v4902 = vunpack.c.l.b16 %v4717
  %v4903 = vunpack.c.h.b16 %v4717
  %v4904 = vunpack.c.l.b16 %v4718
  %v4905 = vunpack.c.h.b16 %v4718
  %v4906 = vunpack.c.l.b16 %v4719
  %v4907 = vunpack.c.h.b16 %v4719
  %v4908 = vunpack.c.l.b16 %v4720
  %v4909 = vunpack.c.h.b16 %v4720
  %v4910 = vunpack.c.l.b16 %v4721
  %v4911 = vunpack.c.h.b16 %v4721
  %v4912 = vunpack.c.l.b16 %v4722
  %v4913 = vunpack.c.h.b16 %v4722
  %v4914 = vunpack.c.l.b16 %v4723
  %v4915 = vunpack.c.h.b16 %v4723
  %v4916 = vunpack.c.l.b16 %v4724
  %v4917 = vunpack.c.h.b16 %v4724
  %v4918 = vunpack.c.l.b16 %v4725
  %v4919 = vunpack.c.h.b16 %v4725
  %v4920 = vunpack.c.l.b16 %v4726
  %v4921 = vunpack.c.h.b16 %v4726
  %v4922 = vunpack.c.l.b16 %v4727
  %v4923 = vunpack.c.h.b16 %v4727
  %v4924 = vunpack.c.l.b16 %v4728
  %v4925 = vunpack.c.h.b16 %v4728
  %v4926 = vunpack.c.l.b16 %v4729
  %v4927 = vunpack.c.h.b16 %v4729
  %v4928 = vunpack.c.l.b16 %v4730
  %v4929 = vunpack.c.h.b16 %v4730
  %v4930 = vpack.c.b16 %v4806, %v4802
  %v4931 = vpack.c.b16 %v4807, %v4803
  %v4932 = vpack.c.b16 %v4808, %v4804
  %v4933 = vpack.c.b16 %v4809, %v4805
  %v4934 = vpack.c.b16 %v4814, %v4810
  %v4935 = vpack.c.b16 %v4815, %v4811
  %v4936 = vpack.c.b16 %v4816, %v4812
  %v4937 = vpack.c.b16 %v4817, %v4813
  %v4938 = vpack.c.b16 %v4822, %v4818
  %v4939 = vpack.c.b16 %v4823, %v4819
  %v4940 = vpack.c.b16 %v4824, %v4820
  %v4941 = vpack.c.b16 %v4825, %v4821
  %v4942 = vpack.c.b16 %v4830, %v4826
  %v4943 = vpack.c.b16 %v4831, %v4827
  %v4944 = vpack.c.b16 %v4832, %v4828
  %v4945 = vpack.c.b16 %v4833, %v4829
  %v4946 = vpack.c.b16 %v4838, %v4834
  %v4947 = vpack.c.b16 %v4839, %v4835
  %v4948 = vpack.c.b16 %v4840, %v4836
  %v4949 = vpack.c.b16 %v4841, %v4837
  %v4950 = vpack.c.b16 %v4846, %v4842
  %v4951 = vpack.c.b16 %v4847, %v4843
  %v4952 = vpack.c.b16 %v4848, %v4844
  %v4953 = vpack.c.b16 %v4849, %v4845
  %v4954 = vpack.c.b16 %v4854, %v4850
  %v4955 = vpack.c.b16 %v4855, %v4851
  %v4956 = vpack.c.b16 %v4856, %v4852
  %v4957 = vpack.c.b16 %v4857, %v4853
  %v4958 = vpack.c.b16 %v4862, %v4858
  %v4959 = vpack.c.b16 %v4863, %v4859
  %v4960 = vpack.c.b16 %v4864, %v4860
  %v4961 = vpack.c.b16 %v4865, %v4861
  %v4962 = vpack.c.b16 %v4870, %v4866
  %v4963 = vpack.c.b16 %v4871, %v4867
  %v4964 = vpack.c.b16 %v4872, %v4868
  %v4965 = vpack.c.b16 %v4873, %v4869
  %v4966 = vpack.c.b16 %v4878, %v4874
  %v4967 = vpack.c.b16 %v4879, %v4875
  %v4968 = vpack.c.b16 %v4880, %v4876
  %v4969 = vpack.c.b16 %v4881, %v4877
  %v4970 = vpack.c.b16 %v4886, %v4882
  %v4971 = vpack.c.b16 %v4887, %v4883
  %v4972 = vpack.c.b16 %v4888, %v4884
  %v4973 = vpack.c.b16 %v4889, %v4885
  %v4974 = vpack.c.b16 %v4894, %v4890
  %v4975 = vpack.c.b16 %v4895, %v4891
  %v4976 = vpack.c.b16 %v4896, %v4892
  %v4977 = vpack.c.b16 %v4897, %v4893
  %v4978 = vpack.c.b16 %v4902, %v4898
  %v4979 = vpack.c.b16 %v4903, %v4899
  %v4980 = vpack.c.b16 %v4904, %v4900
  %v4981 = vpack.c.b16 %v4905, %v4901
  %v4982 = vpack.c.b16 %v4910, %v4906
  %v4983 = vpack.c.b16 %v4911, %v4907
  %v4984 = vpack.c.b16 %v4912, %v4908
  %v4985 = vpack.c.b16 %v4913, %v4909
  %v4986 = vpack.c.b16 %v4918, %v4914
  %v4987 = vpack.c.b16 %v4919, %v4915
  %v4988 = vpack.c.b16 %v4920, %v4916
  %v4989 = vpack.c.b16 %v4921, %v4917
  %v4990 = vpack.c.b16 %v4926, %v4922
  %v4991 = vpack.c.b16 %v4927, %v4923
  %v4992 = vpack.c.b16 %v4928, %v4924
  %v4993 = vpack.c.b16 %v4929, %v4925
  %5058 = vmatpush.bf16.msra.mxu0 %v4958
  %5059 = vmatpush.bf16.msra.mxu0 %v4954
  %5060 = vmatpush.bf16.msra.mxu0 %v4950
  %5061 = vmatpush.bf16.msra.mxu0 %v4946
  %5062 = vmatpush.bf16.msra.mxu0 %v4942
  %5063 = vmatpush.bf16.msra.mxu0 %v4938
  %5064 = vmatpush.bf16.msra.mxu0 %v4934
  %5065 = vmatpush.bf16.msra.mxu0 %v4930
  %5066 = vmatmul.bf16.gmra.mxu0 %v4734
  %v5067 = vpop.f32.mrf.mxu0
  %v5068 = vadd.f32 0.0, %v5067
  %v5069 = vpop.f32.mrf.mxu0
  %5070 = vdwg.mxu0
  %5071 = vmatpush.bf16.msra.mxu0 %v4990
  %5072 = vmatpush.bf16.msra.mxu0 %v4986
  %5073 = vmatpush.bf16.msra.mxu0 %v4982
  %5074 = vmatpush.bf16.msra.mxu0 %v4978
  %5075 = vmatpush.bf16.msra.mxu0 %v4974
  %5076 = vmatpush.bf16.msra.mxu0 %v4970
  %5077 = vmatpush.bf16.msra.mxu0 %v4966
  %5078 = vmatpush.bf16.msra.mxu0 %v4962
  %5079 = vmatmul.bf16.gmra.mxu0 %v4735
  %v5080 = vpop.f32.mrf.mxu0
  %v5081 = vadd.f32 %v5068, %v5080
  %v5082 = vpop.f32.mrf.mxu0
  %5083 = vdwg.mxu0
  %5084 = vmatpush.bf16.msra.mxu0 %v4959
  %5085 = vmatpush.bf16.msra.mxu0 %v4955
  %5086 = vmatpush.bf16.msra.mxu0 %v4951
  %5087 = vmatpush.bf16.msra.mxu0 %v4947
  %5088 = vmatpush.bf16.msra.mxu0 %v4943
  %5089 = vmatpush.bf16.msra.mxu0 %v4939
  %5090 = vmatpush.bf16.msra.mxu0 %v4935
  %5091 = vmatpush.bf16.msra.mxu0 %v4931
  %5092 = vmatmul.bf16.gmra.mxu0 %v4734
  %v5093 = vpop.f32.mrf.mxu0
  %v5094 = vadd.f32 0.0, %v5093
  %v5095 = vpop.f32.mrf.mxu0
  %5096 = vdwg.mxu0
  %5097 = vmatpush.bf16.msra.mxu0 %v4991
  %5098 = vmatpush.bf16.msra.mxu0 %v4987
  %5099 = vmatpush.bf16.msra.mxu0 %v4983
  %5100 = vmatpush.bf16.msra.mxu0 %v4979
  %5101 = vmatpush.bf16.msra.mxu0 %v4975
  %5102 = vmatpush.bf16.msra.mxu0 %v4971
  %5103 = vmatpush.bf16.msra.mxu0 %v4967
  %5104 = vmatpush.bf16.msra.mxu0 %v4963
  %5105 = vmatmul.bf16.gmra.mxu0 %v4735
  %v5106 = vpop.f32.mrf.mxu0
  %v5107 = vadd.f32 %v5094, %v5106
  %v5108 = vpop.f32.mrf.mxu0
  %5109 = vdwg.mxu0
  %5110 = vmatpush.bf16.msra.mxu0 %v4960
  %5111 = vmatpush.bf16.msra.mxu0 %v4956
  %5112 = vmatpush.bf16.msra.mxu0 %v4952
  %5113 = vmatpush.bf16.msra.mxu0 %v4948
  %5114 = vmatpush.bf16.msra.mxu0 %v4944
  %5115 = vmatpush.bf16.msra.mxu0 %v4940
  %5116 = vmatpush.bf16.msra.mxu0 %v4936
  %5117 = vmatpush.bf16.msra.mxu0 %v4932
  %5118 = vmatmul.bf16.gmra.mxu0 %v4734
  %v5119 = vpop.f32.mrf.mxu0
  %v5120 = vadd.f32 0.0, %v5119
  %v5121 = vpop.f32.mrf.mxu0
  %5122 = vdwg.mxu0
  %5123 = vmatpush.bf16.msra.mxu0 %v4992
  %5124 = vmatpush.bf16.msra.mxu0 %v4988
  %5125 = vmatpush.bf16.msra.mxu0 %v4984
  %5126 = vmatpush.bf16.msra.mxu0 %v4980
  %5127 = vmatpush.bf16.msra.mxu0 %v4976
  %5128 = vmatpush.bf16.msra.mxu0 %v4972
  %5129 = vmatpush.bf16.msra.mxu0 %v4968
  %5130 = vmatpush.bf16.msra.mxu0 %v4964
  %5131 = vmatmul.bf16.gmra.mxu0 %v4735
  %v5132 = vpop.f32.mrf.mxu0
  %v5133 = vadd.f32 %v5120, %v5132
  %v5134 = vpop.f32.mrf.mxu0
  %5135 = vdwg.mxu0
  %5136 = vmatpush.bf16.msra.mxu0 %v4961
  %5137 = vmatpush.bf16.msra.mxu0 %v4957
  %5138 = vmatpush.bf16.msra.mxu0 %v4953
  %5139 = vmatpush.bf16.msra.mxu0 %v4949
  %5140 = vmatpush.bf16.msra.mxu0 %v4945
  %5141 = vmatpush.bf16.msra.mxu0 %v4941
  %5142 = vmatpush.bf16.msra.mxu0 %v4937
  %5143 = vmatpush.bf16.msra.mxu0 %v4933
  %5144 = vmatmul.bf16.gmra.mxu0 %v4734
  %v5145 = vpop.f32.mrf.mxu0
  %v5146 = vadd.f32 0.0, %v5145
  %v5147 = vpop.f32.mrf.mxu0
  %5148 = vdwg.mxu0
  %5149 = vmatpush.bf16.msra.mxu0 %v4993
  %5150 = vmatpush.bf16.msra.mxu0 %v4989
  %5151 = vmatpush.bf16.msra.mxu0 %v4985
  %5152 = vmatpush.bf16.msra.mxu0 %v4981
  %5153 = vmatpush.bf16.msra.mxu0 %v4977
  %5154 = vmatpush.bf16.msra.mxu0 %v4973
  %5155 = vmatpush.bf16.msra.mxu0 %v4969
  %5156 = vmatpush.bf16.msra.mxu0 %v4965
  %5157 = vmatmul.bf16.gmra.mxu0 %v4735
  %v5158 = vpop.f32.mrf.mxu0
  %v5159 = vadd.f32 %v5146, %v5158
  %v5160 = vpop.f32.mrf.mxu0
  %5161 = vdwg.mxu0
  %v5162 = vadd.f32 %v4662, %v5081
  %v5163 = vadd.f32 %v4663, %v5107
  %v5164 = vadd.f32 %v4664, %v5133
  %v5165 = vadd.f32 %v4665, %v5159
  %v5166 = vxor.u32 %v5162, 2147483648
  %v5167 = vmul.f32 %v5166, 1.442695
  %v5168 = vpow.pop %v5167
  %v5169 = vadd.f32 %v5168, 1.0
  %v5170 = vrcp.pop %v5169
  %v5171 = vmul.f32 %v5169, %v5170
  %v5172 = vsub.f32 1.0, %v5171
  %v5173 = vmul.f32 %v5170, %v5172
  %v5174 = vadd.f32 %v5170, %v5173
  %vm5175 = vweird.f32 %v5169
  %vm5176 = vweird.f32 %v5170
  %vm5177 = vmor %vm5175, %vm5176
  %v5178 = vsel %vm5177, %v5170, %v5174
  %v5179 = vand.u32 2147483647, %v5169
  %vm5180 = vcmp.eq.f32.partialorder %v5179, 8.507059e+37
  %v5181 = vand.u32 %v5169, 2147483648
  %v5182 = vor.u32 1.1754944e-38, %v5181
  %v5183 = vsel %vm5180, %v5182, %v5178
  %v5184 = vmul.f32 1.0, %v5183
  %v5185 = vxor.u32 %v5163, 2147483648
  %v5186 = vmul.f32 %v5185, 1.442695
  %v5187 = vpow.pop %v5186
  %v5188 = vadd.f32 %v5187, 1.0
  %v5189 = vrcp.pop %v5188
  %v5190 = vmul.f32 %v5188, %v5189
  %v5191 = vsub.f32 1.0, %v5190
  %v5192 = vmul.f32 %v5189, %v5191
  %v5193 = vadd.f32 %v5189, %v5192
  %vm5194 = vweird.f32 %v5188
  %vm5195 = vweird.f32 %v5189
  %vm5196 = vmor %vm5194, %vm5195
  %v5197 = vsel %vm5196, %v5189, %v5193
  %v5198 = vand.u32 2147483647, %v5188
  %vm5199 = vcmp.eq.f32.partialorder %v5198, 8.507059e+37
  %v5200 = vand.u32 %v5188, 2147483648
  %v5201 = vor.u32 1.1754944e-38, %v5200
  %v5202 = vsel %vm5199, %v5201, %v5197
  %v5203 = vmul.f32 1.0, %v5202
  %v5204 = vtanh.pop %v5164
  %v5205 = vxor.u32 %v5165, 2147483648
  %v5206 = vmul.f32 %v5205, 1.442695
  %v5207 = vpow.pop %v5206
  %v5208 = vadd.f32 %v5207, 1.0
  %v5209 = vrcp.pop %v5208
  %v5210 = vmul.f32 %v5208, %v5209
  %v5211 = vsub.f32 1.0, %v5210
  %v5212 = vmul.f32 %v5209, %v5211
  %v5213 = vadd.f32 %v5209, %v5212
  %vm5214 = vweird.f32 %v5208
  %vm5215 = vweird.f32 %v5209
  %vm5216 = vmor %vm5214, %vm5215
  %v5217 = vsel %vm5216, %v5209, %v5213
  %v5218 = vand.u32 2147483647, %v5208
  %vm5219 = vcmp.eq.f32.partialorder %v5218, 8.507059e+37
  %v5220 = vand.u32 %v5208, 2147483648
  %v5221 = vor.u32 1.1754944e-38, %v5220
  %v5222 = vsel %vm5219, %v5221, %v5217
  %v5223 = vmul.f32 1.0, %v5222
  %v5224 = vmul.f32 %v5203, %v3922
  %v5225 = vmul.f32 %v5184, %v5204
  %v5226 = vadd.f32 %v5224, %v5225
  %v5227 = vtanh.pop %v5226
  %v5228 = vmul.f32 %v5223, %v5227
  %s5229 = scalar_lea.vmem %s6, 24
  %5230 = vst [vmem:[%s5229] sm:$0xff] %v5228
  %v5231 = vperm.slane %v4459, %v269
  %v5232 = vperm.slane %v4464, %v271
  %v5233 = vsel %vm273, %v5232, %v5231
  %v5234 = vperm.slane %v4469, %v269
  %v5235 = vperm.slane %v4474, %v271
  %v5236 = vsel %vm273, %v5235, %v5234
  %v5237 = vperm.slane %v4479, %v269
  %v5238 = vperm.slane %v4484, %v271
  %v5239 = vsel %vm273, %v5238, %v5237
  %v5240 = vperm.slane %v4489, %v269
  %v5241 = vperm.slane %v4494, %v271
  %v5242 = vsel %vm273, %v5241, %v5240
  %v5243 = vperm.slane %v4499, %v269
  %v5244 = vperm.slane %v4504, %v271
  %v5245 = vsel %vm273, %v5244, %v5243
  %v5246 = vperm.slane %v4509, %v269
  %v5247 = vperm.slane %v4514, %v271
  %v5248 = vsel %vm273, %v5247, %v5246
  %v5249 = vperm.slane %v4519, %v269
  %v5250 = vperm.slane %v4524, %v271
  %v5251 = vsel %vm273, %v5250, %v5249
  %v5252 = vperm.slane %v4529, %v269
  %v5253 = vperm.slane %v4534, %v271
  %v5254 = vsel %vm273, %v5253, %v5252
  %v5255 = vsel %vm296, %v5236, %v5233
  %v5256 = vsel %vm298, %v5239, %v5255
  %v5257 = vsel %vm300, %v5242, %v5256
  %v5258 = vsel %vm302, %v5245, %v5257
  %v5259 = vsel %vm304, %v5248, %v5258
  %v5260 = vsel %vm306, %v5251, %v5259
  %v5261 = vsel %vm308, %v5254, %v5260
  %s5263 = scalar_lea.vmem %s7, 24
  %5264 = vst.msk [vmem:[%s5263] sm:$0xff] %vm311, %v5261
  %v5265 = vpack.c.bf16 %v5228, %v5228
  %v5266 = vld [vmem:[%s3] sm:$0xf]
  %v5267 = vld [vmem:[%s3 + $0x4] sm:$0xf]
  %v5268 = vld [vmem:[%s3 + $0x8] sm:$0xf]
  %v5269 = vld [vmem:[%s3 + $0xc] sm:$0xf]
  %v5270 = vld [vmem:[%s3 + $0x10] sm:$0xf]
  %v5271 = vld [vmem:[%s3 + $0x14] sm:$0xf]
  %v5272 = vld [vmem:[%s3 + $0x18] sm:$0xf]
  %v5273 = vld [vmem:[%s3 + $0x1c] sm:$0xf]
  %v5274 = vld [vmem:[%s3 + $0x20] sm:$0xf]
  %v5275 = vld [vmem:[%s3 + $0x24] sm:$0xf]
  %v5276 = vld [vmem:[%s3 + $0x28] sm:$0xf]
  %v5277 = vld [vmem:[%s3 + $0x2c] sm:$0xf]
  %v5278 = vld [vmem:[%s3 + $0x30] sm:$0xf]
  %v5279 = vld [vmem:[%s3 + $0x34] sm:$0xf]
  %v5280 = vld [vmem:[%s3 + $0x38] sm:$0xf]
  %v5281 = vld [vmem:[%s3 + $0x3c] sm:$0xf]
  %v5298 = vunpack.c.l.b16 %v5266
  %v5299 = vunpack.c.l.b16 %v5267
  %v5300 = vunpack.c.l.b16 %v5268
  %v5301 = vunpack.c.l.b16 %v5269
  %v5302 = vunpack.c.l.b16 %v5270
  %v5303 = vunpack.c.l.b16 %v5271
  %v5304 = vunpack.c.l.b16 %v5272
  %v5305 = vunpack.c.l.b16 %v5273
  %v5306 = vunpack.c.l.b16 %v5274
  %v5307 = vunpack.c.l.b16 %v5275
  %v5308 = vunpack.c.l.b16 %v5276
  %v5309 = vunpack.c.l.b16 %v5277
  %v5310 = vunpack.c.l.b16 %v5278
  %v5311 = vunpack.c.l.b16 %v5279
  %v5312 = vunpack.c.l.b16 %v5280
  %v5313 = vunpack.c.l.b16 %v5281
  %v5314 = vpack.c.b16 %v5299, %v5298
  %v5315 = vpack.c.b16 %v5301, %v5300
  %v5316 = vpack.c.b16 %v5303, %v5302
  %v5317 = vpack.c.b16 %v5305, %v5304
  %v5318 = vpack.c.b16 %v5307, %v5306
  %v5319 = vpack.c.b16 %v5309, %v5308
  %v5320 = vpack.c.b16 %v5311, %v5310
  %v5321 = vpack.c.b16 %v5313, %v5312
  %5330 = vmatpush.bf16.msra.mxu0 %v5321
  %5331 = vmatpush.bf16.msra.mxu0 %v5320
  %5332 = vmatpush.bf16.msra.mxu0 %v5319
  %5333 = vmatpush.bf16.msra.mxu0 %v5318
  %5334 = vmatpush.bf16.msra.mxu0 %v5317
  %5335 = vmatpush.bf16.msra.mxu0 %v5316
  %5336 = vmatpush.bf16.msra.mxu0 %v5315
  %5337 = vmatpush.bf16.msra.mxu0 %v5314
  %5338 = vmatmul.bf16.gmra.mxu0 %v5265
  %v5339 = vpop.f32.mrf.mxu0
  %v5340 = vadd.f32 0.0, %v5339
  %v5341 = vpop.f32.mrf.mxu0
  %5342 = vdwg.mxu0
  %v5343 = vld [vmem:[%s0] sm:$0xf]
  %v5344 = vld [vmem:[%s0 + $0x4] sm:$0xf]
  %v5345 = vld [vmem:[%s0 + $0x8] sm:$0xf]
  %v5346 = vld [vmem:[%s0 + $0xc] sm:$0xf]
  %v5347 = vld [vmem:[%s0 + $0x10] sm:$0xf]
  %v5348 = vld [vmem:[%s0 + $0x14] sm:$0xf]
  %v5349 = vld [vmem:[%s0 + $0x18] sm:$0xf]
  %v5350 = vld [vmem:[%s0 + $0x1c] sm:$0xf]
  %v5351 = vld [vmem:[%s0 + $0x20] sm:$0xf]
  %v5352 = vld [vmem:[%s0 + $0x24] sm:$0xf]
  %v5353 = vld [vmem:[%s0 + $0x28] sm:$0xf]
  %v5354 = vld [vmem:[%s0 + $0x2c] sm:$0xf]
  %v5355 = vld [vmem:[%s0 + $0x30] sm:$0xf]
  %v5356 = vld [vmem:[%s0 + $0x34] sm:$0xf]
  %v5357 = vld [vmem:[%s0 + $0x38] sm:$0xf]
  %v5358 = vld [vmem:[%s0 + $0x3c] sm:$0xf]
  %v5359 = vunpack.c.l.bf16 %v5343
  %v5360 = vunpack.c.l.bf16 %v5344
  %v5361 = vunpack.c.l.bf16 %v5345
  %v5362 = vunpack.c.l.bf16 %v5346
  %v5363 = vunpack.c.l.bf16 %v5347
  %v5364 = vunpack.c.l.bf16 %v5348
  %v5365 = vunpack.c.l.bf16 %v5349
  %v5366 = vunpack.c.l.bf16 %v5350
  %v5367 = vunpack.c.l.bf16 %v5351
  %v5368 = vunpack.c.l.bf16 %v5352
  %v5369 = vunpack.c.l.bf16 %v5353
  %v5370 = vunpack.c.l.bf16 %v5354
  %v5371 = vunpack.c.l.bf16 %v5355
  %v5372 = vunpack.c.l.bf16 %v5356
  %v5373 = vunpack.c.l.bf16 %v5357
  %v5374 = vunpack.c.l.bf16 %v5358
  %v5376 = vrot.slane %v5340, 1
  %v5377 = vrot.slane %v5340, 2
  %v5378 = vrot.slane %v5340, 3
  %v5379 = vrot.slane %v5340, 4
  %v5380 = vrot.slane %v5340, 5
  %v5381 = vrot.slane %v5340, 6
  %v5382 = vrot.slane %v5340, 7
  %v5383 = vperm.slane %v5340, 0
  %v5384 = vperm.slane %v5376, 0
  %v5385 = vperm.slane %v5377, 0
  %v5386 = vperm.slane %v5378, 0
  %v5387 = vperm.slane %v5379, 0
  %v5388 = vperm.slane %v5380, 0
  %v5389 = vperm.slane %v5381, 0
  %v5390 = vperm.slane %v5382, 0
  %v5399 = vadd.f32 %v5359, %v5383
  %v5400 = vadd.f32 %v5360, %v5383
  %v5401 = vadd.f32 %v5361, %v5384
  %v5402 = vadd.f32 %v5362, %v5384
  %v5403 = vadd.f32 %v5363, %v5385
  %v5404 = vadd.f32 %v5364, %v5385
  %v5405 = vadd.f32 %v5365, %v5386
  %v5406 = vadd.f32 %v5366, %v5386
  %v5407 = vadd.f32 %v5367, %v5387
  %v5408 = vadd.f32 %v5368, %v5387
  %v5409 = vadd.f32 %v5369, %v5388
  %v5410 = vadd.f32 %v5370, %v5388
  %v5411 = vadd.f32 %v5371, %v5389
  %v5412 = vadd.f32 %v5372, %v5389
  %v5413 = vadd.f32 %v5373, %v5390
  %v5414 = vadd.f32 %v5374, %v5390
  %v5415 = vtanh.pop %v5399
  %v5416 = vtanh.pop %v5400
  %v5417 = vtanh.pop %v5401
  %v5418 = vtanh.pop %v5402
  %v5419 = vtanh.pop %v5403
  %v5420 = vtanh.pop %v5404
  %v5421 = vtanh.pop %v5405
  %v5422 = vtanh.pop %v5406
  %v5423 = vtanh.pop %v5407
  %v5424 = vtanh.pop %v5408
  %v5425 = vtanh.pop %v5409
  %v5426 = vtanh.pop %v5410
  %v5427 = vtanh.pop %v5411
  %v5428 = vtanh.pop %v5412
  %v5429 = vtanh.pop %v5413
  %v5430 = vtanh.pop %v5414
  %v5431 = vmul.f32 %v5415, %v37
  %v5432 = vmul.f32 %v5416, %v37
  %v5433 = vmul.f32 %v5417, %v37
  %v5434 = vmul.f32 %v5418, %v37
  %v5435 = vmul.f32 %v5419, %v37
  %v5436 = vmul.f32 %v5420, %v37
  %v5437 = vmul.f32 %v5421, %v37
  %v5438 = vmul.f32 %v5422, %v37
  %v5439 = vmul.f32 %v5423, %v37
  %v5440 = vmul.f32 %v5424, %v37
  %v5441 = vmul.f32 %v5425, %v37
  %v5442 = vmul.f32 %v5426, %v37
  %v5443 = vmul.f32 %v5427, %v37
  %v5444 = vmul.f32 %v5428, %v37
  %v5445 = vmul.f32 %v5429, %v37
  %v5446 = vmul.f32 %v5430, %v37
  %5447 = vadd.xlane.f32.xlu0 %v5431
  %v5448 = vpop.xlane.xlu0 %5447
  %5449 = vadd.xlane.f32.xlu0 %v5432
  %v5450 = vpop.xlane.xlu0 %5449
  %5451 = vadd.xlane.f32.xlu0 %v5433
  %v5452 = vpop.xlane.xlu0 %5451
  %5453 = vadd.xlane.f32.xlu0 %v5434
  %v5454 = vpop.xlane.xlu0 %5453
  %5455 = vadd.xlane.f32.xlu0 %v5435
  %v5456 = vpop.xlane.xlu0 %5455
  %5457 = vadd.xlane.f32.xlu0 %v5436
  %v5458 = vpop.xlane.xlu0 %5457
  %5459 = vadd.xlane.f32.xlu0 %v5437
  %v5460 = vpop.xlane.xlu0 %5459
  %5461 = vadd.xlane.f32.xlu0 %v5438
  %v5462 = vpop.xlane.xlu0 %5461
  %5463 = vadd.xlane.f32.xlu0 %v5439
  %v5464 = vpop.xlane.xlu0 %5463
  %5465 = vadd.xlane.f32.xlu0 %v5440
  %v5466 = vpop.xlane.xlu0 %5465
  %5467 = vadd.xlane.f32.xlu0 %v5441
  %v5468 = vpop.xlane.xlu0 %5467
  %5469 = vadd.xlane.f32.xlu0 %v5442
  %v5470 = vpop.xlane.xlu0 %5469
  %5471 = vadd.xlane.f32.xlu0 %v5443
  %v5472 = vpop.xlane.xlu0 %5471
  %5473 = vadd.xlane.f32.xlu0 %v5444
  %v5474 = vpop.xlane.xlu0 %5473
  %5475 = vadd.xlane.f32.xlu0 %v5445
  %v5476 = vpop.xlane.xlu0 %5475
  %5477 = vadd.xlane.f32.xlu0 %v5446
  %v5478 = vpop.xlane.xlu0 %5477
  %v5495 = vperm.slane %v5448, %v269
  %v5496 = vperm.slane %v5450, %v271
  %v5497 = vsel %vm273, %v5496, %v5495
  %v5498 = vperm.slane %v5452, %v269
  %v5499 = vperm.slane %v5454, %v271
  %v5500 = vsel %vm273, %v5499, %v5498
  %v5501 = vperm.slane %v5456, %v269
  %v5502 = vperm.slane %v5458, %v271
  %v5503 = vsel %vm273, %v5502, %v5501
  %v5504 = vperm.slane %v5460, %v269
  %v5505 = vperm.slane %v5462, %v271
  %v5506 = vsel %vm273, %v5505, %v5504
  %v5507 = vperm.slane %v5464, %v269
  %v5508 = vperm.slane %v5466, %v271
  %v5509 = vsel %vm273, %v5508, %v5507
  %v5510 = vperm.slane %v5468, %v269
  %v5511 = vperm.slane %v5470, %v271
  %v5512 = vsel %vm273, %v5511, %v5510
  %v5513 = vperm.slane %v5472, %v269
  %v5514 = vperm.slane %v5474, %v271
  %v5515 = vsel %vm273, %v5514, %v5513
  %v5516 = vperm.slane %v5476, %v269
  %v5517 = vperm.slane %v5478, %v271
  %v5518 = vsel %vm273, %v5517, %v5516
  %v5519 = vsel %vm296, %v5500, %v5497
  %v5520 = vsel %vm298, %v5503, %v5519
  %v5521 = vsel %vm300, %v5506, %v5520
  %v5522 = vsel %vm302, %v5509, %v5521
  %v5523 = vsel %vm304, %v5512, %v5522
  %v5524 = vsel %vm306, %v5515, %v5523
  %v5525 = vsel %vm308, %v5518, %v5524
  %v5527 = vsel %vm311, %v5525, -inf
  %5528 = vmax.xlane.f32.xlu0 %v5527
  %v5529 = vpop.xlane.xlu0 %5528
  %v5531 = vperm.slane %v5529, 0
  %v5532 = vperm.slane %v5529, 1
  %v5533 = vperm.slane %v5529, 2
  %v5534 = vperm.slane %v5529, 3
  %v5535 = vperm.slane %v5529, 4
  %v5536 = vperm.slane %v5529, 5
  %v5537 = vperm.slane %v5529, 6
  %v5538 = vperm.slane %v5529, 7
  %v5547 = vsub.f32 %v5448, %v5531
  %v5548 = vsub.f32 %v5450, %v5531
  %v5549 = vsub.f32 %v5452, %v5532
  %v5550 = vsub.f32 %v5454, %v5532
  %v5551 = vsub.f32 %v5456, %v5533
  %v5552 = vsub.f32 %v5458, %v5533
  %v5553 = vsub.f32 %v5460, %v5534
  %v5554 = vsub.f32 %v5462, %v5534
  %v5555 = vsub.f32 %v5464, %v5535
  %v5556 = vsub.f32 %v5466, %v5535
  %v5557 = vsub.f32 %v5468, %v5536
  %v5558 = vsub.f32 %v5470, %v5536
  %v5559 = vsub.f32 %v5472, %v5537
  %v5560 = vsub.f32 %v5474, %v5537
  %v5561 = vsub.f32 %v5476, %v5538
  %v5562 = vsub.f32 %v5478, %v5538
  %v5563 = vmul.f32 %v5547, 1.442695
  %v5564 = vpow.pop %v5563
  %v5565 = vmul.f32 %v5548, 1.442695
  %v5566 = vpow.pop %v5565
  %v5567 = vmul.f32 %v5549, 1.442695
  %v5568 = vpow.pop %v5567
  %v5569 = vmul.f32 %v5550, 1.442695
  %v5570 = vpow.pop %v5569
  %v5571 = vmul.f32 %v5551, 1.442695
  %v5572 = vpow.pop %v5571
  %v5573 = vmul.f32 %v5552, 1.442695
  %v5574 = vpow.pop %v5573
  %v5575 = vmul.f32 %v5553, 1.442695
  %v5576 = vpow.pop %v5575
  %v5577 = vmul.f32 %v5554, 1.442695
  %v5578 = vpow.pop %v5577
  %v5579 = vmul.f32 %v5555, 1.442695
  %v5580 = vpow.pop %v5579
  %v5581 = vmul.f32 %v5556, 1.442695
  %v5582 = vpow.pop %v5581
  %v5583 = vmul.f32 %v5557, 1.442695
  %v5584 = vpow.pop %v5583
  %v5585 = vmul.f32 %v5558, 1.442695
  %v5586 = vpow.pop %v5585
  %v5587 = vmul.f32 %v5559, 1.442695
  %v5588 = vpow.pop %v5587
  %v5589 = vmul.f32 %v5560, 1.442695
  %v5590 = vpow.pop %v5589
  %v5591 = vmul.f32 %v5561, 1.442695
  %v5592 = vpow.pop %v5591
  %v5593 = vmul.f32 %v5562, 1.442695
  %v5594 = vpow.pop %v5593
  %5611 = vset.pattern.permute.xlu0 0
  %5612 = vperm.xlu0 %5611, %v5564
  %v5613 = vpop.permute.xlu0 %5612
  %5614 = vset.pattern.permute.xlu0 0
  %5615 = vperm.xlu0 %5614, %v5566
  %v5616 = vpop.permute.xlu0 %5615
  %5617 = vset.pattern.permute.xlu0 0
  %5618 = vperm.xlu0 %5617, %v5568
  %v5619 = vpop.permute.xlu0 %5618
  %5620 = vset.pattern.permute.xlu0 0
  %5621 = vperm.xlu0 %5620, %v5570
  %v5622 = vpop.permute.xlu0 %5621
  %5623 = vset.pattern.permute.xlu0 0
  %5624 = vperm.xlu0 %5623, %v5572
  %v5625 = vpop.permute.xlu0 %5624
  %5626 = vset.pattern.permute.xlu0 0
  %5627 = vperm.xlu0 %5626, %v5574
  %v5628 = vpop.permute.xlu0 %5627
  %5629 = vset.pattern.permute.xlu0 0
  %5630 = vperm.xlu0 %5629, %v5576
  %v5631 = vpop.permute.xlu0 %5630
  %5632 = vset.pattern.permute.xlu0 0
  %5633 = vperm.xlu0 %5632, %v5578
  %v5634 = vpop.permute.xlu0 %5633
  %5635 = vset.pattern.permute.xlu0 0
  %5636 = vperm.xlu0 %5635, %v5580
  %v5637 = vpop.permute.xlu0 %5636
  %5638 = vset.pattern.permute.xlu0 0
  %5639 = vperm.xlu0 %5638, %v5582
  %v5640 = vpop.permute.xlu0 %5639
  %5641 = vset.pattern.permute.xlu0 0
  %5642 = vperm.xlu0 %5641, %v5584
  %v5643 = vpop.permute.xlu0 %5642
  %5644 = vset.pattern.permute.xlu0 0
  %5645 = vperm.xlu0 %5644, %v5586
  %v5646 = vpop.permute.xlu0 %5645
  %5647 = vset.pattern.permute.xlu0 0
  %5648 = vperm.xlu0 %5647, %v5588
  %v5649 = vpop.permute.xlu0 %5648
  %5650 = vset.pattern.permute.xlu0 0
  %5651 = vperm.xlu0 %5650, %v5590
  %v5652 = vpop.permute.xlu0 %5651
  %5653 = vset.pattern.permute.xlu0 0
  %5654 = vperm.xlu0 %5653, %v5592
  %v5655 = vpop.permute.xlu0 %5654
  %5656 = vset.pattern.permute.xlu0 0
  %5657 = vperm.xlu0 %5656, %v5594
  %v5658 = vpop.permute.xlu0 %5657
  %v5659 = vperm.slane %v5613, %v269
  %v5660 = vperm.slane %v5616, %v271
  %v5661 = vsel %vm273, %v5660, %v5659
  %v5662 = vperm.slane %v5619, %v269
  %v5663 = vperm.slane %v5622, %v271
  %v5664 = vsel %vm273, %v5663, %v5662
  %v5665 = vperm.slane %v5625, %v269
  %v5666 = vperm.slane %v5628, %v271
  %v5667 = vsel %vm273, %v5666, %v5665
  %v5668 = vperm.slane %v5631, %v269
  %v5669 = vperm.slane %v5634, %v271
  %v5670 = vsel %vm273, %v5669, %v5668
  %v5671 = vperm.slane %v5637, %v269
  %v5672 = vperm.slane %v5640, %v271
  %v5673 = vsel %vm273, %v5672, %v5671
  %v5674 = vperm.slane %v5643, %v269
  %v5675 = vperm.slane %v5646, %v271
  %v5676 = vsel %vm273, %v5675, %v5674
  %v5677 = vperm.slane %v5649, %v269
  %v5678 = vperm.slane %v5652, %v271
  %v5679 = vsel %vm273, %v5678, %v5677
  %v5680 = vperm.slane %v5655, %v269
  %v5681 = vperm.slane %v5658, %v271
  %v5682 = vsel %vm273, %v5681, %v5680
  %v5683 = vsel %vm296, %v5664, %v5661
  %v5684 = vsel %vm298, %v5667, %v5683
  %v5685 = vsel %vm300, %v5670, %v5684
  %v5686 = vsel %vm302, %v5673, %v5685
  %v5687 = vsel %vm304, %v5676, %v5686
  %v5688 = vsel %vm306, %v5679, %v5687
  %v5689 = vsel %vm308, %v5682, %v5688
  %v5691 = vsel %vm311, %v5689, 0.0
  %5692 = vadd.xlane.f32.xlu0 %v5691
  %v5693 = vpop.xlane.xlu0 %5692
  %v5694 = vrcp.pop %v5693
  %v5696 = vperm.slane %v5694, 0
  %v5697 = vperm.slane %v5694, 1
  %v5698 = vperm.slane %v5694, 2
  %v5699 = vperm.slane %v5694, 3
  %v5700 = vperm.slane %v5694, 4
  %v5701 = vperm.slane %v5694, 5
  %v5702 = vperm.slane %v5694, 6
  %v5703 = vperm.slane %v5694, 7
  %v5712 = vmul.f32 %v5564, %v5696
  %v5713 = vmul.f32 %v5566, %v5696
  %v5714 = vmul.f32 %v5568, %v5697
  %v5715 = vmul.f32 %v5570, %v5697
  %v5716 = vmul.f32 %v5572, %v5698
  %v5717 = vmul.f32 %v5574, %v5698
  %v5718 = vmul.f32 %v5576, %v5699
  %v5719 = vmul.f32 %v5578, %v5699
  %v5720 = vmul.f32 %v5580, %v5700
  %v5721 = vmul.f32 %v5582, %v5700
  %v5722 = vmul.f32 %v5584, %v5701
  %v5723 = vmul.f32 %v5586, %v5701
  %v5724 = vmul.f32 %v5588, %v5702
  %v5725 = vmul.f32 %v5590, %v5702
  %v5726 = vmul.f32 %v5592, %v5703
  %v5727 = vmul.f32 %v5594, %v5703
  %v5728 = vld [vmem:[%s1] sm:$0xf]
  %v5729 = vld [vmem:[%s1 + $0x4] sm:$0xf]
  %v5730 = vld [vmem:[%s1 + $0x8] sm:$0xf]
  %v5731 = vld [vmem:[%s1 + $0xc] sm:$0xf]
  %v5732 = vld [vmem:[%s1 + $0x10] sm:$0xf]
  %v5733 = vld [vmem:[%s1 + $0x14] sm:$0xf]
  %v5734 = vld [vmem:[%s1 + $0x18] sm:$0xf]
  %v5735 = vld [vmem:[%s1 + $0x1c] sm:$0xf]
  %v5736 = vld [vmem:[%s1 + $0x20] sm:$0xf]
  %v5737 = vld [vmem:[%s1 + $0x24] sm:$0xf]
  %v5738 = vld [vmem:[%s1 + $0x28] sm:$0xf]
  %v5739 = vld [vmem:[%s1 + $0x2c] sm:$0xf]
  %v5740 = vld [vmem:[%s1 + $0x30] sm:$0xf]
  %v5741 = vld [vmem:[%s1 + $0x34] sm:$0xf]
  %v5742 = vld [vmem:[%s1 + $0x38] sm:$0xf]
  %v5743 = vld [vmem:[%s1 + $0x3c] sm:$0xf]
  %v5744 = vunpack.c.l.bf16 %v5728
  %v5745 = vunpack.c.l.bf16 %v5729
  %v5746 = vunpack.c.l.bf16 %v5730
  %v5747 = vunpack.c.l.bf16 %v5731
  %v5748 = vunpack.c.l.bf16 %v5732
  %v5749 = vunpack.c.l.bf16 %v5733
  %v5750 = vunpack.c.l.bf16 %v5734
  %v5751 = vunpack.c.l.bf16 %v5735
  %v5752 = vunpack.c.l.bf16 %v5736
  %v5753 = vunpack.c.l.bf16 %v5737
  %v5754 = vunpack.c.l.bf16 %v5738
  %v5755 = vunpack.c.l.bf16 %v5739
  %v5756 = vunpack.c.l.bf16 %v5740
  %v5757 = vunpack.c.l.bf16 %v5741
  %v5758 = vunpack.c.l.bf16 %v5742
  %v5759 = vunpack.c.l.bf16 %v5743
  %5761 = vset.pattern.permute.xlu0 0
  %5762 = vperm.xlu0 %5761, %v5712
  %v5763 = vpop.permute.xlu0 %5762
  %5766 = vset.pattern.permute.xlu0 0
  %5767 = vperm.xlu0 %5766, %v5713
  %v5768 = vpop.permute.xlu0 %5767
  %5771 = vset.pattern.permute.xlu0 0
  %5772 = vperm.xlu0 %5771, %v5714
  %v5773 = vpop.permute.xlu0 %5772
  %5776 = vset.pattern.permute.xlu0 0
  %5777 = vperm.xlu0 %5776, %v5715
  %v5778 = vpop.permute.xlu0 %5777
  %5781 = vset.pattern.permute.xlu0 0
  %5782 = vperm.xlu0 %5781, %v5716
  %v5783 = vpop.permute.xlu0 %5782
  %5786 = vset.pattern.permute.xlu0 0
  %5787 = vperm.xlu0 %5786, %v5717
  %v5788 = vpop.permute.xlu0 %5787
  %5791 = vset.pattern.permute.xlu0 0
  %5792 = vperm.xlu0 %5791, %v5718
  %v5793 = vpop.permute.xlu0 %5792
  %5796 = vset.pattern.permute.xlu0 0
  %5797 = vperm.xlu0 %5796, %v5719
  %v5798 = vpop.permute.xlu0 %5797
  %5801 = vset.pattern.permute.xlu0 0
  %5802 = vperm.xlu0 %5801, %v5720
  %v5803 = vpop.permute.xlu0 %5802
  %5806 = vset.pattern.permute.xlu0 0
  %5807 = vperm.xlu0 %5806, %v5721
  %v5808 = vpop.permute.xlu0 %5807
  %5811 = vset.pattern.permute.xlu0 0
  %5812 = vperm.xlu0 %5811, %v5722
  %v5813 = vpop.permute.xlu0 %5812
  %5816 = vset.pattern.permute.xlu0 0
  %5817 = vperm.xlu0 %5816, %v5723
  %v5818 = vpop.permute.xlu0 %5817
  %5821 = vset.pattern.permute.xlu0 0
  %5822 = vperm.xlu0 %5821, %v5724
  %v5823 = vpop.permute.xlu0 %5822
  %5826 = vset.pattern.permute.xlu0 0
  %5827 = vperm.xlu0 %5826, %v5725
  %v5828 = vpop.permute.xlu0 %5827
  %5831 = vset.pattern.permute.xlu0 0
  %5832 = vperm.xlu0 %5831, %v5726
  %v5833 = vpop.permute.xlu0 %5832
  %5836 = vset.pattern.permute.xlu0 0
  %5837 = vperm.xlu0 %5836, %v5727
  %v5838 = vpop.permute.xlu0 %5837
  %v5840 = vmul.f32 %v5744, %v5763
  %v5841 = vmul.f32 %v5745, %v5768
  %v5842 = vmul.f32 %v5746, %v5773
  %v5843 = vmul.f32 %v5747, %v5778
  %v5844 = vmul.f32 %v5748, %v5783
  %v5845 = vmul.f32 %v5749, %v5788
  %v5846 = vmul.f32 %v5750, %v5793
  %v5847 = vmul.f32 %v5751, %v5798
  %v5848 = vmul.f32 %v5752, %v5803
  %v5849 = vmul.f32 %v5753, %v5808
  %v5850 = vmul.f32 %v5754, %v5813
  %v5851 = vmul.f32 %v5755, %v5818
  %v5852 = vmul.f32 %v5756, %v5823
  %v5853 = vmul.f32 %v5757, %v5828
  %v5854 = vmul.f32 %v5758, %v5833
  %v5855 = vmul.f32 %v5759, %v5838
  %v5856 = vsel %vm641, %v5840, 0.0
  %v5857 = vsel %vm641, %v5841, 0.0
  %v5858 = vadd.f32 %v5856, %v5857
  %v5859 = vrot.slane %v5858, 4
  %v5860 = vadd.f32 %v5858, %v5859
  %v5861 = vrot.slane %v5860, 2
  %v5862 = vadd.f32 %v5860, %v5861
  %v5863 = vrot.slane %v5862, 1
  %v5864 = vadd.f32 %v5862, %v5863
  %v5865 = vsel %vm641, %v5842, 0.0
  %v5866 = vsel %vm641, %v5843, 0.0
  %v5867 = vadd.f32 %v5865, %v5866
  %v5868 = vrot.slane %v5867, 4
  %v5869 = vadd.f32 %v5867, %v5868
  %v5870 = vrot.slane %v5869, 2
  %v5871 = vadd.f32 %v5869, %v5870
  %v5872 = vrot.slane %v5871, 1
  %v5873 = vadd.f32 %v5871, %v5872
  %v5874 = vsel %vm641, %v5844, 0.0
  %v5875 = vsel %vm641, %v5845, 0.0
  %v5876 = vadd.f32 %v5874, %v5875
  %v5877 = vrot.slane %v5876, 4
  %v5878 = vadd.f32 %v5876, %v5877
  %v5879 = vrot.slane %v5878, 2
  %v5880 = vadd.f32 %v5878, %v5879
  %v5881 = vrot.slane %v5880, 1
  %v5882 = vadd.f32 %v5880, %v5881
  %v5883 = vsel %vm641, %v5846, 0.0
  %v5884 = vsel %vm641, %v5847, 0.0
  %v5885 = vadd.f32 %v5883, %v5884
  %v5886 = vrot.slane %v5885, 4
  %v5887 = vadd.f32 %v5885, %v5886
  %v5888 = vrot.slane %v5887, 2
  %v5889 = vadd.f32 %v5887, %v5888
  %v5890 = vrot.slane %v5889, 1
  %v5891 = vadd.f32 %v5889, %v5890
  %v5892 = vsel %vm641, %v5848, 0.0
  %v5893 = vsel %vm641, %v5849, 0.0
  %v5894 = vadd.f32 %v5892, %v5893
  %v5895 = vrot.slane %v5894, 4
  %v5896 = vadd.f32 %v5894, %v5895
  %v5897 = vrot.slane %v5896, 2
  %v5898 = vadd.f32 %v5896, %v5897
  %v5899 = vrot.slane %v5898, 1
  %v5900 = vadd.f32 %v5898, %v5899
  %v5901 = vsel %vm641, %v5850, 0.0
  %v5902 = vsel %vm641, %v5851, 0.0
  %v5903 = vadd.f32 %v5901, %v5902
  %v5904 = vrot.slane %v5903, 4
  %v5905 = vadd.f32 %v5903, %v5904
  %v5906 = vrot.slane %v5905, 2
  %v5907 = vadd.f32 %v5905, %v5906
  %v5908 = vrot.slane %v5907, 1
  %v5909 = vadd.f32 %v5907, %v5908
  %v5910 = vsel %vm641, %v5852, 0.0
  %v5911 = vsel %vm641, %v5853, 0.0
  %v5912 = vadd.f32 %v5910, %v5911
  %v5913 = vrot.slane %v5912, 4
  %v5914 = vadd.f32 %v5912, %v5913
  %v5915 = vrot.slane %v5914, 2
  %v5916 = vadd.f32 %v5914, %v5915
  %v5917 = vrot.slane %v5916, 1
  %v5918 = vadd.f32 %v5916, %v5917
  %v5919 = vsel %vm641, %v5854, 0.0
  %v5920 = vsel %vm641, %v5855, 0.0
  %v5921 = vadd.f32 %v5919, %v5920
  %v5922 = vrot.slane %v5921, 4
  %v5923 = vadd.f32 %v5921, %v5922
  %v5924 = vrot.slane %v5923, 2
  %v5925 = vadd.f32 %v5923, %v5924
  %v5926 = vrot.slane %v5925, 1
  %v5927 = vadd.f32 %v5925, %v5926
  %v5928 = vpack.c.bf16 %v5864, %v5864
  %v5929 = vpack.c.bf16 %v5873, %v5873
  %v5930 = vpack.c.bf16 %v5882, %v5882
  %v5931 = vpack.c.bf16 %v5891, %v5891
  %v5932 = vpack.c.bf16 %v5900, %v5900
  %v5933 = vpack.c.bf16 %v5909, %v5909
  %v5934 = vpack.c.bf16 %v5918, %v5918
  %v5935 = vpack.c.bf16 %v5927, %v5927
  %v5944 = vunpack.c.l.b16 %v5928
  %v5945 = vunpack.c.l.b16 %v5929
  %v5946 = vunpack.c.l.b16 %v5930
  %v5947 = vunpack.c.l.b16 %v5931
  %v5948 = vunpack.c.l.b16 %v5932
  %v5949 = vunpack.c.l.b16 %v5933
  %v5950 = vunpack.c.l.b16 %v5934
  %v5951 = vunpack.c.l.b16 %v5935
  %v5952 = vsel %vm296, %v5945, %v5944
  %v5953 = vsel %vm298, %v5946, %v5952
  %v5954 = vsel %vm300, %v5947, %v5953
  %v5955 = vsel %vm302, %v5948, %v5954
  %v5956 = vsel %vm304, %v5949, %v5955
  %v5957 = vsel %vm306, %v5950, %v5956
  %v5958 = vsel %vm308, %v5951, %v5957
  %v5959 = vpack.c.b16 %v5958, %v5958
  %5961 = vst.msk [vmem:[#allocation2] sm:$0xf] %vm747, %v5959
  %5962 = vst [vmem:[#allocation2 + $0x4] sm:$0xf] %v5265
  %s5963 = scalar_lea.vmem %s2, 64
  %v5964 = vld [vmem:[%s5963] sm:$0xff]
  %v5965 = vld [vmem:[%s5963 + $0x8] sm:$0xff]
  %v5966 = vunpack.c.l.bf16 %v5964
  %v5967 = vunpack.c.h.bf16 %v5964
  %v5968 = vunpack.c.l.bf16 %v5965
  %v5969 = vunpack.c.h.bf16 %v5965
  %v5970 = vld [vmem:[#allocation2] sm:$0xff]
  %v5971 = vld [vmem:[%s5] sm:$0xff]
  %v5972 = vld [vmem:[%s5 + $0x8] sm:$0xff]
  %v5973 = vld [vmem:[%s5 + $0x10] sm:$0xff]
  %v5974 = vld [vmem:[%s5 + $0x18] sm:$0xff]
  %v5975 = vld [vmem:[%s5 + $0x20] sm:$0xff]
  %v5976 = vld [vmem:[%s5 + $0x28] sm:$0xff]
  %v5977 = vld [vmem:[%s5 + $0x30] sm:$0xff]
  %v5978 = vld [vmem:[%s5 + $0x38] sm:$0xff]
  %v5979 = vld [vmem:[%s5 + $0x40] sm:$0xff]
  %v5980 = vld [vmem:[%s5 + $0x48] sm:$0xff]
  %v5981 = vld [vmem:[%s5 + $0x50] sm:$0xff]
  %v5982 = vld [vmem:[%s5 + $0x58] sm:$0xff]
  %v5983 = vld [vmem:[%s5 + $0x60] sm:$0xff]
  %v5984 = vld [vmem:[%s5 + $0x68] sm:$0xff]
  %v5985 = vld [vmem:[%s5 + $0x70] sm:$0xff]
  %v5986 = vld [vmem:[%s5 + $0x78] sm:$0xff]
  %v5987 = vld [vmem:[%s5 + $0x80] sm:$0xff]
  %v5988 = vld [vmem:[%s5 + $0x88] sm:$0xff]
  %v5989 = vld [vmem:[%s5 + $0x90] sm:$0xff]
  %v5990 = vld [vmem:[%s5 + $0x98] sm:$0xff]
  %v5991 = vld [vmem:[%s5 + $0xa0] sm:$0xff]
  %v5992 = vld [vmem:[%s5 + $0xa8] sm:$0xff]
  %v5993 = vld [vmem:[%s5 + $0xb0] sm:$0xff]
  %v5994 = vld [vmem:[%s5 + $0xb8] sm:$0xff]
  %v5995 = vld [vmem:[%s5 + $0xc0] sm:$0xff]
  %v5996 = vld [vmem:[%s5 + $0xc8] sm:$0xff]
  %v5997 = vld [vmem:[%s5 + $0xd0] sm:$0xff]
  %v5998 = vld [vmem:[%s5 + $0xd8] sm:$0xff]
  %v5999 = vld [vmem:[%s5 + $0xe0] sm:$0xff]
  %v6000 = vld [vmem:[%s5 + $0xe8] sm:$0xff]
  %v6001 = vld [vmem:[%s5 + $0xf0] sm:$0xff]
  %v6002 = vld [vmem:[%s5 + $0xf8] sm:$0xff]
  %v6003 = vld [vmem:[%s5 + $0x100] sm:$0xff]
  %v6004 = vld [vmem:[%s5 + $0x108] sm:$0xff]
  %v6005 = vld [vmem:[%s5 + $0x110] sm:$0xff]
  %v6006 = vld [vmem:[%s5 + $0x118] sm:$0xff]
  %v6007 = vld [vmem:[%s5 + $0x120] sm:$0xff]
  %v6008 = vld [vmem:[%s5 + $0x128] sm:$0xff]
  %v6009 = vld [vmem:[%s5 + $0x130] sm:$0xff]
  %v6010 = vld [vmem:[%s5 + $0x138] sm:$0xff]
  %v6011 = vld [vmem:[%s5 + $0x140] sm:$0xff]
  %v6012 = vld [vmem:[%s5 + $0x148] sm:$0xff]
  %v6013 = vld [vmem:[%s5 + $0x150] sm:$0xff]
  %v6014 = vld [vmem:[%s5 + $0x158] sm:$0xff]
  %v6015 = vld [vmem:[%s5 + $0x160] sm:$0xff]
  %v6016 = vld [vmem:[%s5 + $0x168] sm:$0xff]
  %v6017 = vld [vmem:[%s5 + $0x170] sm:$0xff]
  %v6018 = vld [vmem:[%s5 + $0x178] sm:$0xff]
  %v6019 = vld [vmem:[%s5 + $0x180] sm:$0xff]
  %v6020 = vld [vmem:[%s5 + $0x188] sm:$0xff]
  %v6021 = vld [vmem:[%s5 + $0x190] sm:$0xff]
  %v6022 = vld [vmem:[%s5 + $0x198] sm:$0xff]
  %v6023 = vld [vmem:[%s5 + $0x1a0] sm:$0xff]
  %v6024 = vld [vmem:[%s5 + $0x1a8] sm:$0xff]
  %v6025 = vld [vmem:[%s5 + $0x1b0] sm:$0xff]
  %v6026 = vld [vmem:[%s5 + $0x1b8] sm:$0xff]
  %v6027 = vld [vmem:[%s5 + $0x1c0] sm:$0xff]
  %v6028 = vld [vmem:[%s5 + $0x1c8] sm:$0xff]
  %v6029 = vld [vmem:[%s5 + $0x1d0] sm:$0xff]
  %v6030 = vld [vmem:[%s5 + $0x1d8] sm:$0xff]
  %v6031 = vld [vmem:[%s5 + $0x1e0] sm:$0xff]
  %v6032 = vld [vmem:[%s5 + $0x1e8] sm:$0xff]
  %v6033 = vld [vmem:[%s5 + $0x1f0] sm:$0xff]
  %v6034 = vld [vmem:[%s5 + $0x1f8] sm:$0xff]
  %v6036 = vunpack.c.l.b16 %v5970
  %v6037 = vunpack.c.h.b16 %v5970
  %v6038 = vpack.c.b16 %v6036, %v6036
  %v6039 = vpack.c.b16 %v6037, %v6037
  %v6106 = vunpack.c.l.b16 %v5971
  %v6107 = vunpack.c.h.b16 %v5971
  %v6108 = vunpack.c.l.b16 %v5972
  %v6109 = vunpack.c.h.b16 %v5972
  %v6110 = vunpack.c.l.b16 %v5973
  %v6111 = vunpack.c.h.b16 %v5973
  %v6112 = vunpack.c.l.b16 %v5974
  %v6113 = vunpack.c.h.b16 %v5974
  %v6114 = vunpack.c.l.b16 %v5975
  %v6115 = vunpack.c.h.b16 %v5975
  %v6116 = vunpack.c.l.b16 %v5976
  %v6117 = vunpack.c.h.b16 %v5976
  %v6118 = vunpack.c.l.b16 %v5977
  %v6119 = vunpack.c.h.b16 %v5977
  %v6120 = vunpack.c.l.b16 %v5978
  %v6121 = vunpack.c.h.b16 %v5978
  %v6122 = vunpack.c.l.b16 %v5979
  %v6123 = vunpack.c.h.b16 %v5979
  %v6124 = vunpack.c.l.b16 %v5980
  %v6125 = vunpack.c.h.b16 %v5980
  %v6126 = vunpack.c.l.b16 %v5981
  %v6127 = vunpack.c.h.b16 %v5981
  %v6128 = vunpack.c.l.b16 %v5982
  %v6129 = vunpack.c.h.b16 %v5982
  %v6130 = vunpack.c.l.b16 %v5983
  %v6131 = vunpack.c.h.b16 %v5983
  %v6132 = vunpack.c.l.b16 %v5984
  %v6133 = vunpack.c.h.b16 %v5984
  %v6134 = vunpack.c.l.b16 %v5985
  %v6135 = vunpack.c.h.b16 %v5985
  %v6136 = vunpack.c.l.b16 %v5986
  %v6137 = vunpack.c.h.b16 %v5986
  %v6138 = vunpack.c.l.b16 %v5987
  %v6139 = vunpack.c.h.b16 %v5987
  %v6140 = vunpack.c.l.b16 %v5988
  %v6141 = vunpack.c.h.b16 %v5988
  %v6142 = vunpack.c.l.b16 %v5989
  %v6143 = vunpack.c.h.b16 %v5989
  %v6144 = vunpack.c.l.b16 %v5990
  %v6145 = vunpack.c.h.b16 %v5990
  %v6146 = vunpack.c.l.b16 %v5991
  %v6147 = vunpack.c.h.b16 %v5991
  %v6148 = vunpack.c.l.b16 %v5992
  %v6149 = vunpack.c.h.b16 %v5992
  %v6150 = vunpack.c.l.b16 %v5993
  %v6151 = vunpack.c.h.b16 %v5993
  %v6152 = vunpack.c.l.b16 %v5994
  %v6153 = vunpack.c.h.b16 %v5994
  %v6154 = vunpack.c.l.b16 %v5995
  %v6155 = vunpack.c.h.b16 %v5995
  %v6156 = vunpack.c.l.b16 %v5996
  %v6157 = vunpack.c.h.b16 %v5996
  %v6158 = vunpack.c.l.b16 %v5997
  %v6159 = vunpack.c.h.b16 %v5997
  %v6160 = vunpack.c.l.b16 %v5998
  %v6161 = vunpack.c.h.b16 %v5998
  %v6162 = vunpack.c.l.b16 %v5999
  %v6163 = vunpack.c.h.b16 %v5999
  %v6164 = vunpack.c.l.b16 %v6000
  %v6165 = vunpack.c.h.b16 %v6000
  %v6166 = vunpack.c.l.b16 %v6001
  %v6167 = vunpack.c.h.b16 %v6001
  %v6168 = vunpack.c.l.b16 %v6002
  %v6169 = vunpack.c.h.b16 %v6002
  %v6170 = vunpack.c.l.b16 %v6003
  %v6171 = vunpack.c.h.b16 %v6003
  %v6172 = vunpack.c.l.b16 %v6004
  %v6173 = vunpack.c.h.b16 %v6004
  %v6174 = vunpack.c.l.b16 %v6005
  %v6175 = vunpack.c.h.b16 %v6005
  %v6176 = vunpack.c.l.b16 %v6006
  %v6177 = vunpack.c.h.b16 %v6006
  %v6178 = vunpack.c.l.b16 %v6007
  %v6179 = vunpack.c.h.b16 %v6007
  %v6180 = vunpack.c.l.b16 %v6008
  %v6181 = vunpack.c.h.b16 %v6008
  %v6182 = vunpack.c.l.b16 %v6009
  %v6183 = vunpack.c.h.b16 %v6009
  %v6184 = vunpack.c.l.b16 %v6010
  %v6185 = vunpack.c.h.b16 %v6010
  %v6186 = vunpack.c.l.b16 %v6011
  %v6187 = vunpack.c.h.b16 %v6011
  %v6188 = vunpack.c.l.b16 %v6012
  %v6189 = vunpack.c.h.b16 %v6012
  %v6190 = vunpack.c.l.b16 %v6013
  %v6191 = vunpack.c.h.b16 %v6013
  %v6192 = vunpack.c.l.b16 %v6014
  %v6193 = vunpack.c.h.b16 %v6014
  %v6194 = vunpack.c.l.b16 %v6015
  %v6195 = vunpack.c.h.b16 %v6015
  %v6196 = vunpack.c.l.b16 %v6016
  %v6197 = vunpack.c.h.b16 %v6016
  %v6198 = vunpack.c.l.b16 %v6017
  %v6199 = vunpack.c.h.b16 %v6017
  %v6200 = vunpack.c.l.b16 %v6018
  %v6201 = vunpack.c.h.b16 %v6018
  %v6202 = vunpack.c.l.b16 %v6019
  %v6203 = vunpack.c.h.b16 %v6019
  %v6204 = vunpack.c.l.b16 %v6020
  %v6205 = vunpack.c.h.b16 %v6020
  %v6206 = vunpack.c.l.b16 %v6021
  %v6207 = vunpack.c.h.b16 %v6021
  %v6208 = vunpack.c.l.b16 %v6022
  %v6209 = vunpack.c.h.b16 %v6022
  %v6210 = vunpack.c.l.b16 %v6023
  %v6211 = vunpack.c.h.b16 %v6023
  %v6212 = vunpack.c.l.b16 %v6024
  %v6213 = vunpack.c.h.b16 %v6024
  %v6214 = vunpack.c.l.b16 %v6025
  %v6215 = vunpack.c.h.b16 %v6025
  %v6216 = vunpack.c.l.b16 %v6026
  %v6217 = vunpack.c.h.b16 %v6026
  %v6218 = vunpack.c.l.b16 %v6027
  %v6219 = vunpack.c.h.b16 %v6027
  %v6220 = vunpack.c.l.b16 %v6028
  %v6221 = vunpack.c.h.b16 %v6028
  %v6222 = vunpack.c.l.b16 %v6029
  %v6223 = vunpack.c.h.b16 %v6029
  %v6224 = vunpack.c.l.b16 %v6030
  %v6225 = vunpack.c.h.b16 %v6030
  %v6226 = vunpack.c.l.b16 %v6031
  %v6227 = vunpack.c.h.b16 %v6031
  %v6228 = vunpack.c.l.b16 %v6032
  %v6229 = vunpack.c.h.b16 %v6032
  %v6230 = vunpack.c.l.b16 %v6033
  %v6231 = vunpack.c.h.b16 %v6033
  %v6232 = vunpack.c.l.b16 %v6034
  %v6233 = vunpack.c.h.b16 %v6034
  %v6234 = vpack.c.b16 %v6110, %v6106
  %v6235 = vpack.c.b16 %v6111, %v6107
  %v6236 = vpack.c.b16 %v6112, %v6108
  %v6237 = vpack.c.b16 %v6113, %v6109
  %v6238 = vpack.c.b16 %v6118, %v6114
  %v6239 = vpack.c.b16 %v6119, %v6115
  %v6240 = vpack.c.b16 %v6120, %v6116
  %v6241 = vpack.c.b16 %v6121, %v6117
  %v6242 = vpack.c.b16 %v6126, %v6122
  %v6243 = vpack.c.b16 %v6127, %v6123
  %v6244 = vpack.c.b16 %v6128, %v6124
  %v6245 = vpack.c.b16 %v6129, %v6125
  %v6246 = vpack.c.b16 %v6134, %v6130
  %v6247 = vpack.c.b16 %v6135, %v6131
  %v6248 = vpack.c.b16 %v6136, %v6132
  %v6249 = vpack.c.b16 %v6137, %v6133
  %v6250 = vpack.c.b16 %v6142, %v6138
  %v6251 = vpack.c.b16 %v6143, %v6139
  %v6252 = vpack.c.b16 %v6144, %v6140
  %v6253 = vpack.c.b16 %v6145, %v6141
  %v6254 = vpack.c.b16 %v6150, %v6146
  %v6255 = vpack.c.b16 %v6151, %v6147
  %v6256 = vpack.c.b16 %v6152, %v6148
  %v6257 = vpack.c.b16 %v6153, %v6149
  %v6258 = vpack.c.b16 %v6158, %v6154
  %v6259 = vpack.c.b16 %v6159, %v6155
  %v6260 = vpack.c.b16 %v6160, %v6156
  %v6261 = vpack.c.b16 %v6161, %v6157
  %v6262 = vpack.c.b16 %v6166, %v6162
  %v6263 = vpack.c.b16 %v6167, %v6163
  %v6264 = vpack.c.b16 %v6168, %v6164
  %v6265 = vpack.c.b16 %v6169, %v6165
  %v6266 = vpack.c.b16 %v6174, %v6170
  %v6267 = vpack.c.b16 %v6175, %v6171
  %v6268 = vpack.c.b16 %v6176, %v6172
  %v6269 = vpack.c.b16 %v6177, %v6173
  %v6270 = vpack.c.b16 %v6182, %v6178
  %v6271 = vpack.c.b16 %v6183, %v6179
  %v6272 = vpack.c.b16 %v6184, %v6180
  %v6273 = vpack.c.b16 %v6185, %v6181
  %v6274 = vpack.c.b16 %v6190, %v6186
  %v6275 = vpack.c.b16 %v6191, %v6187
  %v6276 = vpack.c.b16 %v6192, %v6188
  %v6277 = vpack.c.b16 %v6193, %v6189
  %v6278 = vpack.c.b16 %v6198, %v6194
  %v6279 = vpack.c.b16 %v6199, %v6195
  %v6280 = vpack.c.b16 %v6200, %v6196
  %v6281 = vpack.c.b16 %v6201, %v6197
  %v6282 = vpack.c.b16 %v6206, %v6202
  %v6283 = vpack.c.b16 %v6207, %v6203
  %v6284 = vpack.c.b16 %v6208, %v6204
  %v6285 = vpack.c.b16 %v6209, %v6205
  %v6286 = vpack.c.b16 %v6214, %v6210
  %v6287 = vpack.c.b16 %v6215, %v6211
  %v6288 = vpack.c.b16 %v6216, %v6212
  %v6289 = vpack.c.b16 %v6217, %v6213
  %v6290 = vpack.c.b16 %v6222, %v6218
  %v6291 = vpack.c.b16 %v6223, %v6219
  %v6292 = vpack.c.b16 %v6224, %v6220
  %v6293 = vpack.c.b16 %v6225, %v6221
  %v6294 = vpack.c.b16 %v6230, %v6226
  %v6295 = vpack.c.b16 %v6231, %v6227
  %v6296 = vpack.c.b16 %v6232, %v6228
  %v6297 = vpack.c.b16 %v6233, %v6229
  %6362 = vmatpush.bf16.msra.mxu0 %v6262
  %6363 = vmatpush.bf16.msra.mxu0 %v6258
  %6364 = vmatpush.bf16.msra.mxu0 %v6254
  %6365 = vmatpush.bf16.msra.mxu0 %v6250
  %6366 = vmatpush.bf16.msra.mxu0 %v6246
  %6367 = vmatpush.bf16.msra.mxu0 %v6242
  %6368 = vmatpush.bf16.msra.mxu0 %v6238
  %6369 = vmatpush.bf16.msra.mxu0 %v6234
  %6370 = vmatmul.bf16.gmra.mxu0 %v6038
  %v6371 = vpop.f32.mrf.mxu0
  %v6372 = vadd.f32 0.0, %v6371
  %v6373 = vpop.f32.mrf.mxu0
  %6374 = vdwg.mxu0
  %6375 = vmatpush.bf16.msra.mxu0 %v6294
  %6376 = vmatpush.bf16.msra.mxu0 %v6290
  %6377 = vmatpush.bf16.msra.mxu0 %v6286
  %6378 = vmatpush.bf16.msra.mxu0 %v6282
  %6379 = vmatpush.bf16.msra.mxu0 %v6278
  %6380 = vmatpush.bf16.msra.mxu0 %v6274
  %6381 = vmatpush.bf16.msra.mxu0 %v6270
  %6382 = vmatpush.bf16.msra.mxu0 %v6266
  %6383 = vmatmul.bf16.gmra.mxu0 %v6039
  %v6384 = vpop.f32.mrf.mxu0
  %v6385 = vadd.f32 %v6372, %v6384
  %v6386 = vpop.f32.mrf.mxu0
  %6387 = vdwg.mxu0
  %6388 = vmatpush.bf16.msra.mxu0 %v6263
  %6389 = vmatpush.bf16.msra.mxu0 %v6259
  %6390 = vmatpush.bf16.msra.mxu0 %v6255
  %6391 = vmatpush.bf16.msra.mxu0 %v6251
  %6392 = vmatpush.bf16.msra.mxu0 %v6247
  %6393 = vmatpush.bf16.msra.mxu0 %v6243
  %6394 = vmatpush.bf16.msra.mxu0 %v6239
  %6395 = vmatpush.bf16.msra.mxu0 %v6235
  %6396 = vmatmul.bf16.gmra.mxu0 %v6038
  %v6397 = vpop.f32.mrf.mxu0
  %v6398 = vadd.f32 0.0, %v6397
  %v6399 = vpop.f32.mrf.mxu0
  %6400 = vdwg.mxu0
  %6401 = vmatpush.bf16.msra.mxu0 %v6295
  %6402 = vmatpush.bf16.msra.mxu0 %v6291
  %6403 = vmatpush.bf16.msra.mxu0 %v6287
  %6404 = vmatpush.bf16.msra.mxu0 %v6283
  %6405 = vmatpush.bf16.msra.mxu0 %v6279
  %6406 = vmatpush.bf16.msra.mxu0 %v6275
  %6407 = vmatpush.bf16.msra.mxu0 %v6271
  %6408 = vmatpush.bf16.msra.mxu0 %v6267
  %6409 = vmatmul.bf16.gmra.mxu0 %v6039
  %v6410 = vpop.f32.mrf.mxu0
  %v6411 = vadd.f32 %v6398, %v6410
  %v6412 = vpop.f32.mrf.mxu0
  %6413 = vdwg.mxu0
  %6414 = vmatpush.bf16.msra.mxu0 %v6264
  %6415 = vmatpush.bf16.msra.mxu0 %v6260
  %6416 = vmatpush.bf16.msra.mxu0 %v6256
  %6417 = vmatpush.bf16.msra.mxu0 %v6252
  %6418 = vmatpush.bf16.msra.mxu0 %v6248
  %6419 = vmatpush.bf16.msra.mxu0 %v6244
  %6420 = vmatpush.bf16.msra.mxu0 %v6240
  %6421 = vmatpush.bf16.msra.mxu0 %v6236
  %6422 = vmatmul.bf16.gmra.mxu0 %v6038
  %v6423 = vpop.f32.mrf.mxu0
  %v6424 = vadd.f32 0.0, %v6423
  %v6425 = vpop.f32.mrf.mxu0
  %6426 = vdwg.mxu0
  %6427 = vmatpush.bf16.msra.mxu0 %v6296
  %6428 = vmatpush.bf16.msra.mxu0 %v6292
  %6429 = vmatpush.bf16.msra.mxu0 %v6288
  %6430 = vmatpush.bf16.msra.mxu0 %v6284
  %6431 = vmatpush.bf16.msra.mxu0 %v6280
  %6432 = vmatpush.bf16.msra.mxu0 %v6276
  %6433 = vmatpush.bf16.msra.mxu0 %v6272
  %6434 = vmatpush.bf16.msra.mxu0 %v6268
  %6435 = vmatmul.bf16.gmra.mxu0 %v6039
  %v6436 = vpop.f32.mrf.mxu0
  %v6437 = vadd.f32 %v6424, %v6436
  %v6438 = vpop.f32.mrf.mxu0
  %6439 = vdwg.mxu0
  %6440 = vmatpush.bf16.msra.mxu0 %v6265
  %6441 = vmatpush.bf16.msra.mxu0 %v6261
  %6442 = vmatpush.bf16.msra.mxu0 %v6257
  %6443 = vmatpush.bf16.msra.mxu0 %v6253
  %6444 = vmatpush.bf16.msra.mxu0 %v6249
  %6445 = vmatpush.bf16.msra.mxu0 %v6245
  %6446 = vmatpush.bf16.msra.mxu0 %v6241
  %6447 = vmatpush.bf16.msra.mxu0 %v6237
  %6448 = vmatmul.bf16.gmra.mxu0 %v6038
  %v6449 = vpop.f32.mrf.mxu0
  %v6450 = vadd.f32 0.0, %v6449
  %v6451 = vpop.f32.mrf.mxu0
  %6452 = vdwg.mxu0
  %6453 = vmatpush.bf16.msra.mxu0 %v6297
  %6454 = vmatpush.bf16.msra.mxu0 %v6293
  %6455 = vmatpush.bf16.msra.mxu0 %v6289
  %6456 = vmatpush.bf16.msra.mxu0 %v6285
  %6457 = vmatpush.bf16.msra.mxu0 %v6281
  %6458 = vmatpush.bf16.msra.mxu0 %v6277
  %6459 = vmatpush.bf16.msra.mxu0 %v6273
  %6460 = vmatpush.bf16.msra.mxu0 %v6269
  %6461 = vmatmul.bf16.gmra.mxu0 %v6039
  %v6462 = vpop.f32.mrf.mxu0
  %v6463 = vadd.f32 %v6450, %v6462
  %v6464 = vpop.f32.mrf.mxu0
  %6465 = vdwg.mxu0
  %v6466 = vadd.f32 %v5966, %v6385
  %v6467 = vadd.f32 %v5967, %v6411
  %v6468 = vadd.f32 %v5968, %v6437
  %v6469 = vadd.f32 %v5969, %v6463
  %v6470 = vxor.u32 %v6466, 2147483648
  %v6471 = vmul.f32 %v6470, 1.442695
  %v6472 = vpow.pop %v6471
  %v6473 = vadd.f32 %v6472, 1.0
  %v6474 = vrcp.pop %v6473
  %v6475 = vmul.f32 %v6473, %v6474
  %v6476 = vsub.f32 1.0, %v6475
  %v6477 = vmul.f32 %v6474, %v6476
  %v6478 = vadd.f32 %v6474, %v6477
  %vm6479 = vweird.f32 %v6473
  %vm6480 = vweird.f32 %v6474
  %vm6481 = vmor %vm6479, %vm6480
  %v6482 = vsel %vm6481, %v6474, %v6478
  %v6483 = vand.u32 2147483647, %v6473
  %vm6484 = vcmp.eq.f32.partialorder %v6483, 8.507059e+37
  %v6485 = vand.u32 %v6473, 2147483648
  %v6486 = vor.u32 1.1754944e-38, %v6485
  %v6487 = vsel %vm6484, %v6486, %v6482
  %v6488 = vmul.f32 1.0, %v6487
  %v6489 = vxor.u32 %v6467, 2147483648
  %v6490 = vmul.f32 %v6489, 1.442695
  %v6491 = vpow.pop %v6490
  %v6492 = vadd.f32 %v6491, 1.0
  %v6493 = vrcp.pop %v6492
  %v6494 = vmul.f32 %v6492, %v6493
  %v6495 = vsub.f32 1.0, %v6494
  %v6496 = vmul.f32 %v6493, %v6495
  %v6497 = vadd.f32 %v6493, %v6496
  %vm6498 = vweird.f32 %v6492
  %vm6499 = vweird.f32 %v6493
  %vm6500 = vmor %vm6498, %vm6499
  %v6501 = vsel %vm6500, %v6493, %v6497
  %v6502 = vand.u32 2147483647, %v6492
  %vm6503 = vcmp.eq.f32.partialorder %v6502, 8.507059e+37
  %v6504 = vand.u32 %v6492, 2147483648
  %v6505 = vor.u32 1.1754944e-38, %v6504
  %v6506 = vsel %vm6503, %v6505, %v6501
  %v6507 = vmul.f32 1.0, %v6506
  %v6508 = vtanh.pop %v6468
  %v6509 = vxor.u32 %v6469, 2147483648
  %v6510 = vmul.f32 %v6509, 1.442695
  %v6511 = vpow.pop %v6510
  %v6512 = vadd.f32 %v6511, 1.0
  %v6513 = vrcp.pop %v6512
  %v6514 = vmul.f32 %v6512, %v6513
  %v6515 = vsub.f32 1.0, %v6514
  %v6516 = vmul.f32 %v6513, %v6515
  %v6517 = vadd.f32 %v6513, %v6516
  %vm6518 = vweird.f32 %v6512
  %vm6519 = vweird.f32 %v6513
  %vm6520 = vmor %vm6518, %vm6519
  %v6521 = vsel %vm6520, %v6513, %v6517
  %v6522 = vand.u32 2147483647, %v6512
  %vm6523 = vcmp.eq.f32.partialorder %v6522, 8.507059e+37
  %v6524 = vand.u32 %v6512, 2147483648
  %v6525 = vor.u32 1.1754944e-38, %v6524
  %v6526 = vsel %vm6523, %v6525, %v6521
  %v6527 = vmul.f32 1.0, %v6526
  %v6528 = vmul.f32 %v6507, %v5226
  %v6529 = vmul.f32 %v6488, %v6508
  %v6530 = vadd.f32 %v6528, %v6529
  %v6531 = vtanh.pop %v6530
  %v6532 = vmul.f32 %v6527, %v6531
  %s6533 = scalar_lea.vmem %s6, 32
  %6534 = vst [vmem:[%s6533] sm:$0xff] %v6532
  %v6535 = vperm.slane %v5763, %v269
  %v6536 = vperm.slane %v5768, %v271
  %v6537 = vsel %vm273, %v6536, %v6535
  %v6538 = vperm.slane %v5773, %v269
  %v6539 = vperm.slane %v5778, %v271
  %v6540 = vsel %vm273, %v6539, %v6538
  %v6541 = vperm.slane %v5783, %v269
  %v6542 = vperm.slane %v5788, %v271
  %v6543 = vsel %vm273, %v6542, %v6541
  %v6544 = vperm.slane %v5793, %v269
  %v6545 = vperm.slane %v5798, %v271
  %v6546 = vsel %vm273, %v6545, %v6544
  %v6547 = vperm.slane %v5803, %v269
  %v6548 = vperm.slane %v5808, %v271
  %v6549 = vsel %vm273, %v6548, %v6547
  %v6550 = vperm.slane %v5813, %v269
  %v6551 = vperm.slane %v5818, %v271
  %v6552 = vsel %vm273, %v6551, %v6550
  %v6553 = vperm.slane %v5823, %v269
  %v6554 = vperm.slane %v5828, %v271
  %v6555 = vsel %vm273, %v6554, %v6553
  %v6556 = vperm.slane %v5833, %v269
  %v6557 = vperm.slane %v5838, %v271
  %v6558 = vsel %vm273, %v6557, %v6556
  %v6559 = vsel %vm296, %v6540, %v6537
  %v6560 = vsel %vm298, %v6543, %v6559
  %v6561 = vsel %vm300, %v6546, %v6560
  %v6562 = vsel %vm302, %v6549, %v6561
  %v6563 = vsel %vm304, %v6552, %v6562
  %v6564 = vsel %vm306, %v6555, %v6563
  %v6565 = vsel %vm308, %v6558, %v6564
  %s6567 = scalar_lea.vmem %s7, 32
  %6568 = vst.msk [vmem:[%s6567] sm:$0xff] %vm311, %v6565
  %v6569 = vpack.c.bf16 %v6532, %v6532
  %v6570 = vld [vmem:[%s3] sm:$0xf]
  %v6571 = vld [vmem:[%s3 + $0x4] sm:$0xf]
  %v6572 = vld [vmem:[%s3 + $0x8] sm:$0xf]
  %v6573 = vld [vmem:[%s3 + $0xc] sm:$0xf]
  %v6574 = vld [vmem:[%s3 + $0x10] sm:$0xf]
  %v6575 = vld [vmem:[%s3 + $0x14] sm:$0xf]
  %v6576 = vld [vmem:[%s3 + $0x18] sm:$0xf]
  %v6577 = vld [vmem:[%s3 + $0x1c] sm:$0xf]
  %v6578 = vld [vmem:[%s3 + $0x20] sm:$0xf]
  %v6579 = vld [vmem:[%s3 + $0x24] sm:$0xf]
  %v6580 = vld [vmem:[%s3 + $0x28] sm:$0xf]
  %v6581 = vld [vmem:[%s3 + $0x2c] sm:$0xf]
  %v6582 = vld [vmem:[%s3 + $0x30] sm:$0xf]
  %v6583 = vld [vmem:[%s3 + $0x34] sm:$0xf]
  %v6584 = vld [vmem:[%s3 + $0x38] sm:$0xf]
  %v6585 = vld [vmem:[%s3 + $0x3c] sm:$0xf]
  %v6602 = vunpack.c.l.b16 %v6570
  %v6603 = vunpack.c.l.b16 %v6571
  %v6604 = vunpack.c.l.b16 %v6572
  %v6605 = vunpack.c.l.b16 %v6573
  %v6606 = vunpack.c.l.b16 %v6574
  %v6607 = vunpack.c.l.b16 %v6575
  %v6608 = vunpack.c.l.b16 %v6576
  %v6609 = vunpack.c.l.b16 %v6577
  %v6610 = vunpack.c.l.b16 %v6578
  %v6611 = vunpack.c.l.b16 %v6579
  %v6612 = vunpack.c.l.b16 %v6580
  %v6613 = vunpack.c.l.b16 %v6581
  %v6614 = vunpack.c.l.b16 %v6582
  %v6615 = vunpack.c.l.b16 %v6583
  %v6616 = vunpack.c.l.b16 %v6584
  %v6617 = vunpack.c.l.b16 %v6585
  %v6618 = vpack.c.b16 %v6603, %v6602
  %v6619 = vpack.c.b16 %v6605, %v6604
  %v6620 = vpack.c.b16 %v6607, %v6606
  %v6621 = vpack.c.b16 %v6609, %v6608
  %v6622 = vpack.c.b16 %v6611, %v6610
  %v6623 = vpack.c.b16 %v6613, %v6612
  %v6624 = vpack.c.b16 %v6615, %v6614
  %v6625 = vpack.c.b16 %v6617, %v6616
  %6634 = vmatpush.bf16.msra.mxu0 %v6625
  %6635 = vmatpush.bf16.msra.mxu0 %v6624
  %6636 = vmatpush.bf16.msra.mxu0 %v6623
  %6637 = vmatpush.bf16.msra.mxu0 %v6622
  %6638 = vmatpush.bf16.msra.mxu0 %v6621
  %6639 = vmatpush.bf16.msra.mxu0 %v6620
  %6640 = vmatpush.bf16.msra.mxu0 %v6619
  %6641 = vmatpush.bf16.msra.mxu0 %v6618
  %6642 = vmatmul.bf16.gmra.mxu0 %v6569
  %v6643 = vpop.f32.mrf.mxu0
  %v6644 = vadd.f32 0.0, %v6643
  %v6645 = vpop.f32.mrf.mxu0
  %6646 = vdwg.mxu0
  %v6647 = vld [vmem:[%s0] sm:$0xf]
  %v6648 = vld [vmem:[%s0 + $0x4] sm:$0xf]
  %v6649 = vld [vmem:[%s0 + $0x8] sm:$0xf]
  %v6650 = vld [vmem:[%s0 + $0xc] sm:$0xf]
  %v6651 = vld [vmem:[%s0 + $0x10] sm:$0xf]
  %v6652 = vld [vmem:[%s0 + $0x14] sm:$0xf]
  %v6653 = vld [vmem:[%s0 + $0x18] sm:$0xf]
  %v6654 = vld [vmem:[%s0 + $0x1c] sm:$0xf]
  %v6655 = vld [vmem:[%s0 + $0x20] sm:$0xf]
  %v6656 = vld [vmem:[%s0 + $0x24] sm:$0xf]
  %v6657 = vld [vmem:[%s0 + $0x28] sm:$0xf]
  %v6658 = vld [vmem:[%s0 + $0x2c] sm:$0xf]
  %v6659 = vld [vmem:[%s0 + $0x30] sm:$0xf]
  %v6660 = vld [vmem:[%s0 + $0x34] sm:$0xf]
  %v6661 = vld [vmem:[%s0 + $0x38] sm:$0xf]
  %v6662 = vld [vmem:[%s0 + $0x3c] sm:$0xf]
  %v6663 = vunpack.c.l.bf16 %v6647
  %v6664 = vunpack.c.l.bf16 %v6648
  %v6665 = vunpack.c.l.bf16 %v6649
  %v6666 = vunpack.c.l.bf16 %v6650
  %v6667 = vunpack.c.l.bf16 %v6651
  %v6668 = vunpack.c.l.bf16 %v6652
  %v6669 = vunpack.c.l.bf16 %v6653
  %v6670 = vunpack.c.l.bf16 %v6654
  %v6671 = vunpack.c.l.bf16 %v6655
  %v6672 = vunpack.c.l.bf16 %v6656
  %v6673 = vunpack.c.l.bf16 %v6657
  %v6674 = vunpack.c.l.bf16 %v6658
  %v6675 = vunpack.c.l.bf16 %v6659
  %v6676 = vunpack.c.l.bf16 %v6660
  %v6677 = vunpack.c.l.bf16 %v6661
  %v6678 = vunpack.c.l.bf16 %v6662
  %v6680 = vrot.slane %v6644, 1
  %v6681 = vrot.slane %v6644, 2
  %v6682 = vrot.slane %v6644, 3
  %v6683 = vrot.slane %v6644, 4
  %v6684 = vrot.slane %v6644, 5
  %v6685 = vrot.slane %v6644, 6
  %v6686 = vrot.slane %v6644, 7
  %v6687 = vperm.slane %v6644, 0
  %v6688 = vperm.slane %v6680, 0
  %v6689 = vperm.slane %v6681, 0
  %v6690 = vperm.slane %v6682, 0
  %v6691 = vperm.slane %v6683, 0
  %v6692 = vperm.slane %v6684, 0
  %v6693 = vperm.slane %v6685, 0
  %v6694 = vperm.slane %v6686, 0
  %v6703 = vadd.f32 %v6663, %v6687
  %v6704 = vadd.f32 %v6664, %v6687
  %v6705 = vadd.f32 %v6665, %v6688
  %v6706 = vadd.f32 %v6666, %v6688
  %v6707 = vadd.f32 %v6667, %v6689
  %v6708 = vadd.f32 %v6668, %v6689
  %v6709 = vadd.f32 %v6669, %v6690
  %v6710 = vadd.f32 %v6670, %v6690
  %v6711 = vadd.f32 %v6671, %v6691
  %v6712 = vadd.f32 %v6672, %v6691
  %v6713 = vadd.f32 %v6673, %v6692
  %v6714 = vadd.f32 %v6674, %v6692
  %v6715 = vadd.f32 %v6675, %v6693
  %v6716 = vadd.f32 %v6676, %v6693
  %v6717 = vadd.f32 %v6677, %v6694
  %v6718 = vadd.f32 %v6678, %v6694
  %v6719 = vtanh.pop %v6703
  %v6720 = vtanh.pop %v6704
  %v6721 = vtanh.pop %v6705
  %v6722 = vtanh.pop %v6706
  %v6723 = vtanh.pop %v6707
  %v6724 = vtanh.pop %v6708
  %v6725 = vtanh.pop %v6709
  %v6726 = vtanh.pop %v6710
  %v6727 = vtanh.pop %v6711
  %v6728 = vtanh.pop %v6712
  %v6729 = vtanh.pop %v6713
  %v6730 = vtanh.pop %v6714
  %v6731 = vtanh.pop %v6715
  %v6732 = vtanh.pop %v6716
  %v6733 = vtanh.pop %v6717
  %v6734 = vtanh.pop %v6718
  %v6735 = vmul.f32 %v6719, %v37
  %v6736 = vmul.f32 %v6720, %v37
  %v6737 = vmul.f32 %v6721, %v37
  %v6738 = vmul.f32 %v6722, %v37
  %v6739 = vmul.f32 %v6723, %v37
  %v6740 = vmul.f32 %v6724, %v37
  %v6741 = vmul.f32 %v6725, %v37
  %v6742 = vmul.f32 %v6726, %v37
  %v6743 = vmul.f32 %v6727, %v37
  %v6744 = vmul.f32 %v6728, %v37
  %v6745 = vmul.f32 %v6729, %v37
  %v6746 = vmul.f32 %v6730, %v37
  %v6747 = vmul.f32 %v6731, %v37
  %v6748 = vmul.f32 %v6732, %v37
  %v6749 = vmul.f32 %v6733, %v37
  %v6750 = vmul.f32 %v6734, %v37
  %6751 = vadd.xlane.f32.xlu0 %v6735
  %v6752 = vpop.xlane.xlu0 %6751
  %6753 = vadd.xlane.f32.xlu0 %v6736
  %v6754 = vpop.xlane.xlu0 %6753
  %6755 = vadd.xlane.f32.xlu0 %v6737
  %v6756 = vpop.xlane.xlu0 %6755
  %6757 = vadd.xlane.f32.xlu0 %v6738
  %v6758 = vpop.xlane.xlu0 %6757
  %6759 = vadd.xlane.f32.xlu0 %v6739
  %v6760 = vpop.xlane.xlu0 %6759
  %6761 = vadd.xlane.f32.xlu0 %v6740
  %v6762 = vpop.xlane.xlu0 %6761
  %6763 = vadd.xlane.f32.xlu0 %v6741
  %v6764 = vpop.xlane.xlu0 %6763
  %6765 = vadd.xlane.f32.xlu0 %v6742
  %v6766 = vpop.xlane.xlu0 %6765
  %6767 = vadd.xlane.f32.xlu0 %v6743
  %v6768 = vpop.xlane.xlu0 %6767
  %6769 = vadd.xlane.f32.xlu0 %v6744
  %v6770 = vpop.xlane.xlu0 %6769
  %6771 = vadd.xlane.f32.xlu0 %v6745
  %v6772 = vpop.xlane.xlu0 %6771
  %6773 = vadd.xlane.f32.xlu0 %v6746
  %v6774 = vpop.xlane.xlu0 %6773
  %6775 = vadd.xlane.f32.xlu0 %v6747
  %v6776 = vpop.xlane.xlu0 %6775
  %6777 = vadd.xlane.f32.xlu0 %v6748
  %v6778 = vpop.xlane.xlu0 %6777
  %6779 = vadd.xlane.f32.xlu0 %v6749
  %v6780 = vpop.xlane.xlu0 %6779
  %6781 = vadd.xlane.f32.xlu0 %v6750
  %v6782 = vpop.xlane.xlu0 %6781
  %v6799 = vperm.slane %v6752, %v269
  %v6800 = vperm.slane %v6754, %v271
  %v6801 = vsel %vm273, %v6800, %v6799
  %v6802 = vperm.slane %v6756, %v269
  %v6803 = vperm.slane %v6758, %v271
  %v6804 = vsel %vm273, %v6803, %v6802
  %v6805 = vperm.slane %v6760, %v269
  %v6806 = vperm.slane %v6762, %v271
  %v6807 = vsel %vm273, %v6806, %v6805
  %v6808 = vperm.slane %v6764, %v269
  %v6809 = vperm.slane %v6766, %v271
  %v6810 = vsel %vm273, %v6809, %v6808
  %v6811 = vperm.slane %v6768, %v269
  %v6812 = vperm.slane %v6770, %v271
  %v6813 = vsel %vm273, %v6812, %v6811
  %v6814 = vperm.slane %v6772, %v269
  %v6815 = vperm.slane %v6774, %v271
  %v6816 = vsel %vm273, %v6815, %v6814
  %v6817 = vperm.slane %v6776, %v269
  %v6818 = vperm.slane %v6778, %v271
  %v6819 = vsel %vm273, %v6818, %v6817
  %v6820 = vperm.slane %v6780, %v269
  %v6821 = vperm.slane %v6782, %v271
  %v6822 = vsel %vm273, %v6821, %v6820
  %v6823 = vsel %vm296, %v6804, %v6801
  %v6824 = vsel %vm298, %v6807, %v6823
  %v6825 = vsel %vm300, %v6810, %v6824
  %v6826 = vsel %vm302, %v6813, %v6825
  %v6827 = vsel %vm304, %v6816, %v6826
  %v6828 = vsel %vm306, %v6819, %v6827
  %v6829 = vsel %vm308, %v6822, %v6828
  %v6831 = vsel %vm311, %v6829, -inf
  %6832 = vmax.xlane.f32.xlu0 %v6831
  %v6833 = vpop.xlane.xlu0 %6832
  %v6835 = vperm.slane %v6833, 0
  %v6836 = vperm.slane %v6833, 1
  %v6837 = vperm.slane %v6833, 2
  %v6838 = vperm.slane %v6833, 3
  %v6839 = vperm.slane %v6833, 4
  %v6840 = vperm.slane %v6833, 5
  %v6841 = vperm.slane %v6833, 6
  %v6842 = vperm.slane %v6833, 7
  %v6851 = vsub.f32 %v6752, %v6835
  %v6852 = vsub.f32 %v6754, %v6835
  %v6853 = vsub.f32 %v6756, %v6836
  %v6854 = vsub.f32 %v6758, %v6836
  %v6855 = vsub.f32 %v6760, %v6837
  %v6856 = vsub.f32 %v6762, %v6837
  %v6857 = vsub.f32 %v6764, %v6838
  %v6858 = vsub.f32 %v6766, %v6838
  %v6859 = vsub.f32 %v6768, %v6839
  %v6860 = vsub.f32 %v6770, %v6839
  %v6861 = vsub.f32 %v6772, %v6840
  %v6862 = vsub.f32 %v6774, %v6840
  %v6863 = vsub.f32 %v6776, %v6841
  %v6864 = vsub.f32 %v6778, %v6841
  %v6865 = vsub.f32 %v6780, %v6842
  %v6866 = vsub.f32 %v6782, %v6842
  %v6867 = vmul.f32 %v6851, 1.442695
  %v6868 = vpow.pop %v6867
  %v6869 = vmul.f32 %v6852, 1.442695
  %v6870 = vpow.pop %v6869
  %v6871 = vmul.f32 %v6853, 1.442695
  %v6872 = vpow.pop %v6871
  %v6873 = vmul.f32 %v6854, 1.442695
  %v6874 = vpow.pop %v6873
  %v6875 = vmul.f32 %v6855, 1.442695
  %v6876 = vpow.pop %v6875
  %v6877 = vmul.f32 %v6856, 1.442695
  %v6878 = vpow.pop %v6877
  %v6879 = vmul.f32 %v6857, 1.442695
  %v6880 = vpow.pop %v6879
  %v6881 = vmul.f32 %v6858, 1.442695
  %v6882 = vpow.pop %v6881
  %v6883 = vmul.f32 %v6859, 1.442695
  %v6884 = vpow.pop %v6883
  %v6885 = vmul.f32 %v6860, 1.442695
  %v6886 = vpow.pop %v6885
  %v6887 = vmul.f32 %v6861, 1.442695
  %v6888 = vpow.pop %v6887
  %v6889 = vmul.f32 %v6862, 1.442695
  %v6890 = vpow.pop %v6889
  %v6891 = vmul.f32 %v6863, 1.442695
  %v6892 = vpow.pop %v6891
  %v6893 = vmul.f32 %v6864, 1.442695
  %v6894 = vpow.pop %v6893
  %v6895 = vmul.f32 %v6865, 1.442695
  %v6896 = vpow.pop %v6895
  %v6897 = vmul.f32 %v6866, 1.442695
  %v6898 = vpow.pop %v6897
  %6915 = vset.pattern.permute.xlu0 0
  %6916 = vperm.xlu0 %6915, %v6868
  %v6917 = vpop.permute.xlu0 %6916
  %6918 = vset.pattern.permute.xlu0 0
  %6919 = vperm.xlu0 %6918, %v6870
  %v6920 = vpop.permute.xlu0 %6919
  %6921 = vset.pattern.permute.xlu0 0
  %6922 = vperm.xlu0 %6921, %v6872
  %v6923 = vpop.permute.xlu0 %6922
  %6924 = vset.pattern.permute.xlu0 0
  %6925 = vperm.xlu0 %6924, %v6874
  %v6926 = vpop.permute.xlu0 %6925
  %6927 = vset.pattern.permute.xlu0 0
  %6928 = vperm.xlu0 %6927, %v6876
  %v6929 = vpop.permute.xlu0 %6928
  %6930 = vset.pattern.permute.xlu0 0
  %6931 = vperm.xlu0 %6930, %v6878
  %v6932 = vpop.permute.xlu0 %6931
  %6933 = vset.pattern.permute.xlu0 0
  %6934 = vperm.xlu0 %6933, %v6880
  %v6935 = vpop.permute.xlu0 %6934
  %6936 = vset.pattern.permute.xlu0 0
  %6937 = vperm.xlu0 %6936, %v6882
  %v6938 = vpop.permute.xlu0 %6937
  %6939 = vset.pattern.permute.xlu0 0
  %6940 = vperm.xlu0 %6939, %v6884
  %v6941 = vpop.permute.xlu0 %6940
  %6942 = vset.pattern.permute.xlu0 0
  %6943 = vperm.xlu0 %6942, %v6886
  %v6944 = vpop.permute.xlu0 %6943
  %6945 = vset.pattern.permute.xlu0 0
  %6946 = vperm.xlu0 %6945, %v6888
  %v6947 = vpop.permute.xlu0 %6946
  %6948 = vset.pattern.permute.xlu0 0
  %6949 = vperm.xlu0 %6948, %v6890
  %v6950 = vpop.permute.xlu0 %6949
  %6951 = vset.pattern.permute.xlu0 0
  %6952 = vperm.xlu0 %6951, %v6892
  %v6953 = vpop.permute.xlu0 %6952
  %6954 = vset.pattern.permute.xlu0 0
  %6955 = vperm.xlu0 %6954, %v6894
  %v6956 = vpop.permute.xlu0 %6955
  %6957 = vset.pattern.permute.xlu0 0
  %6958 = vperm.xlu0 %6957, %v6896
  %v6959 = vpop.permute.xlu0 %6958
  %6960 = vset.pattern.permute.xlu0 0
  %6961 = vperm.xlu0 %6960, %v6898
  %v6962 = vpop.permute.xlu0 %6961
  %v6963 = vperm.slane %v6917, %v269
  %v6964 = vperm.slane %v6920, %v271
  %v6965 = vsel %vm273, %v6964, %v6963
  %v6966 = vperm.slane %v6923, %v269
  %v6967 = vperm.slane %v6926, %v271
  %v6968 = vsel %vm273, %v6967, %v6966
  %v6969 = vperm.slane %v6929, %v269
  %v6970 = vperm.slane %v6932, %v271
  %v6971 = vsel %vm273, %v6970, %v6969
  %v6972 = vperm.slane %v6935, %v269
  %v6973 = vperm.slane %v6938, %v271
  %v6974 = vsel %vm273, %v6973, %v6972
  %v6975 = vperm.slane %v6941, %v269
  %v6976 = vperm.slane %v6944, %v271
  %v6977 = vsel %vm273, %v6976, %v6975
  %v6978 = vperm.slane %v6947, %v269
  %v6979 = vperm.slane %v6950, %v271
  %v6980 = vsel %vm273, %v6979, %v6978
  %v6981 = vperm.slane %v6953, %v269
  %v6982 = vperm.slane %v6956, %v271
  %v6983 = vsel %vm273, %v6982, %v6981
  %v6984 = vperm.slane %v6959, %v269
  %v6985 = vperm.slane %v6962, %v271
  %v6986 = vsel %vm273, %v6985, %v6984
  %v6987 = vsel %vm296, %v6968, %v6965
  %v6988 = vsel %vm298, %v6971, %v6987
  %v6989 = vsel %vm300, %v6974, %v6988
  %v6990 = vsel %vm302, %v6977, %v6989
  %v6991 = vsel %vm304, %v6980, %v6990
  %v6992 = vsel %vm306, %v6983, %v6991
  %v6993 = vsel %vm308, %v6986, %v6992
  %v6995 = vsel %vm311, %v6993, 0.0
  %6996 = vadd.xlane.f32.xlu0 %v6995
  %v6997 = vpop.xlane.xlu0 %6996
  %v6998 = vrcp.pop %v6997
  %v7000 = vperm.slane %v6998, 0
  %v7001 = vperm.slane %v6998, 1
  %v7002 = vperm.slane %v6998, 2
  %v7003 = vperm.slane %v6998, 3
  %v7004 = vperm.slane %v6998, 4
  %v7005 = vperm.slane %v6998, 5
  %v7006 = vperm.slane %v6998, 6
  %v7007 = vperm.slane %v6998, 7
  %v7016 = vmul.f32 %v6868, %v7000
  %v7017 = vmul.f32 %v6870, %v7000
  %v7018 = vmul.f32 %v6872, %v7001
  %v7019 = vmul.f32 %v6874, %v7001
  %v7020 = vmul.f32 %v6876, %v7002
  %v7021 = vmul.f32 %v6878, %v7002
  %v7022 = vmul.f32 %v6880, %v7003
  %v7023 = vmul.f32 %v6882, %v7003
  %v7024 = vmul.f32 %v6884, %v7004
  %v7025 = vmul.f32 %v6886, %v7004
  %v7026 = vmul.f32 %v6888, %v7005
  %v7027 = vmul.f32 %v6890, %v7005
  %v7028 = vmul.f32 %v6892, %v7006
  %v7029 = vmul.f32 %v6894, %v7006
  %v7030 = vmul.f32 %v6896, %v7007
  %v7031 = vmul.f32 %v6898, %v7007
  %v7032 = vld [vmem:[%s1] sm:$0xf]
  %v7033 = vld [vmem:[%s1 + $0x4] sm:$0xf]
  %v7034 = vld [vmem:[%s1 + $0x8] sm:$0xf]
  %v7035 = vld [vmem:[%s1 + $0xc] sm:$0xf]
  %v7036 = vld [vmem:[%s1 + $0x10] sm:$0xf]
  %v7037 = vld [vmem:[%s1 + $0x14] sm:$0xf]
  %v7038 = vld [vmem:[%s1 + $0x18] sm:$0xf]
  %v7039 = vld [vmem:[%s1 + $0x1c] sm:$0xf]
  %v7040 = vld [vmem:[%s1 + $0x20] sm:$0xf]
  %v7041 = vld [vmem:[%s1 + $0x24] sm:$0xf]
  %v7042 = vld [vmem:[%s1 + $0x28] sm:$0xf]
  %v7043 = vld [vmem:[%s1 + $0x2c] sm:$0xf]
  %v7044 = vld [vmem:[%s1 + $0x30] sm:$0xf]
  %v7045 = vld [vmem:[%s1 + $0x34] sm:$0xf]
  %v7046 = vld [vmem:[%s1 + $0x38] sm:$0xf]
  %v7047 = vld [vmem:[%s1 + $0x3c] sm:$0xf]
  %v7048 = vunpack.c.l.bf16 %v7032
  %v7049 = vunpack.c.l.bf16 %v7033
  %v7050 = vunpack.c.l.bf16 %v7034
  %v7051 = vunpack.c.l.bf16 %v7035
  %v7052 = vunpack.c.l.bf16 %v7036
  %v7053 = vunpack.c.l.bf16 %v7037
  %v7054 = vunpack.c.l.bf16 %v7038
  %v7055 = vunpack.c.l.bf16 %v7039
  %v7056 = vunpack.c.l.bf16 %v7040
  %v7057 = vunpack.c.l.bf16 %v7041
  %v7058 = vunpack.c.l.bf16 %v7042
  %v7059 = vunpack.c.l.bf16 %v7043
  %v7060 = vunpack.c.l.bf16 %v7044
  %v7061 = vunpack.c.l.bf16 %v7045
  %v7062 = vunpack.c.l.bf16 %v7046
  %v7063 = vunpack.c.l.bf16 %v7047
  %7065 = vset.pattern.permute.xlu0 0
  %7066 = vperm.xlu0 %7065, %v7016
  %v7067 = vpop.permute.xlu0 %7066
  %7070 = vset.pattern.permute.xlu0 0
  %7071 = vperm.xlu0 %7070, %v7017
  %v7072 = vpop.permute.xlu0 %7071
  %7075 = vset.pattern.permute.xlu0 0
  %7076 = vperm.xlu0 %7075, %v7018
  %v7077 = vpop.permute.xlu0 %7076
  %7080 = vset.pattern.permute.xlu0 0
  %7081 = vperm.xlu0 %7080, %v7019
  %v7082 = vpop.permute.xlu0 %7081
  %7085 = vset.pattern.permute.xlu0 0
  %7086 = vperm.xlu0 %7085, %v7020
  %v7087 = vpop.permute.xlu0 %7086
  %7090 = vset.pattern.permute.xlu0 0
  %7091 = vperm.xlu0 %7090, %v7021
  %v7092 = vpop.permute.xlu0 %7091
  %7095 = vset.pattern.permute.xlu0 0
  %7096 = vperm.xlu0 %7095, %v7022
  %v7097 = vpop.permute.xlu0 %7096
  %7100 = vset.pattern.permute.xlu0 0
  %7101 = vperm.xlu0 %7100, %v7023
  %v7102 = vpop.permute.xlu0 %7101
  %7105 = vset.pattern.permute.xlu0 0
  %7106 = vperm.xlu0 %7105, %v7024
  %v7107 = vpop.permute.xlu0 %7106
  %7110 = vset.pattern.permute.xlu0 0
  %7111 = vperm.xlu0 %7110, %v7025
  %v7112 = vpop.permute.xlu0 %7111
  %7115 = vset.pattern.permute.xlu0 0
  %7116 = vperm.xlu0 %7115, %v7026
  %v7117 = vpop.permute.xlu0 %7116
  %7120 = vset.pattern.permute.xlu0 0
  %7121 = vperm.xlu0 %7120, %v7027
  %v7122 = vpop.permute.xlu0 %7121
  %7125 = vset.pattern.permute.xlu0 0
  %7126 = vperm.xlu0 %7125, %v7028
  %v7127 = vpop.permute.xlu0 %7126
  %7130 = vset.pattern.permute.xlu0 0
  %7131 = vperm.xlu0 %7130, %v7029
  %v7132 = vpop.permute.xlu0 %7131
  %7135 = vset.pattern.permute.xlu0 0
  %7136 = vperm.xlu0 %7135, %v7030
  %v7137 = vpop.permute.xlu0 %7136
  %7140 = vset.pattern.permute.xlu0 0
  %7141 = vperm.xlu0 %7140, %v7031
  %v7142 = vpop.permute.xlu0 %7141
  %v7144 = vmul.f32 %v7048, %v7067
  %v7145 = vmul.f32 %v7049, %v7072
  %v7146 = vmul.f32 %v7050, %v7077
  %v7147 = vmul.f32 %v7051, %v7082
  %v7148 = vmul.f32 %v7052, %v7087
  %v7149 = vmul.f32 %v7053, %v7092
  %v7150 = vmul.f32 %v7054, %v7097
  %v7151 = vmul.f32 %v7055, %v7102
  %v7152 = vmul.f32 %v7056, %v7107
  %v7153 = vmul.f32 %v7057, %v7112
  %v7154 = vmul.f32 %v7058, %v7117
  %v7155 = vmul.f32 %v7059, %v7122
  %v7156 = vmul.f32 %v7060, %v7127
  %v7157 = vmul.f32 %v7061, %v7132
  %v7158 = vmul.f32 %v7062, %v7137
  %v7159 = vmul.f32 %v7063, %v7142
  %v7160 = vsel %vm641, %v7144, 0.0
  %v7161 = vsel %vm641, %v7145, 0.0
  %v7162 = vadd.f32 %v7160, %v7161
  %v7163 = vrot.slane %v7162, 4
  %v7164 = vadd.f32 %v7162, %v7163
  %v7165 = vrot.slane %v7164, 2
  %v7166 = vadd.f32 %v7164, %v7165
  %v7167 = vrot.slane %v7166, 1
  %v7168 = vadd.f32 %v7166, %v7167
  %v7169 = vsel %vm641, %v7146, 0.0
  %v7170 = vsel %vm641, %v7147, 0.0
  %v7171 = vadd.f32 %v7169, %v7170
  %v7172 = vrot.slane %v7171, 4
  %v7173 = vadd.f32 %v7171, %v7172
  %v7174 = vrot.slane %v7173, 2
  %v7175 = vadd.f32 %v7173, %v7174
  %v7176 = vrot.slane %v7175, 1
  %v7177 = vadd.f32 %v7175, %v7176
  %v7178 = vsel %vm641, %v7148, 0.0
  %v7179 = vsel %vm641, %v7149, 0.0
  %v7180 = vadd.f32 %v7178, %v7179
  %v7181 = vrot.slane %v7180, 4
  %v7182 = vadd.f32 %v7180, %v7181
  %v7183 = vrot.slane %v7182, 2
  %v7184 = vadd.f32 %v7182, %v7183
  %v7185 = vrot.slane %v7184, 1
  %v7186 = vadd.f32 %v7184, %v7185
  %v7187 = vsel %vm641, %v7150, 0.0
  %v7188 = vsel %vm641, %v7151, 0.0
  %v7189 = vadd.f32 %v7187, %v7188
  %v7190 = vrot.slane %v7189, 4
  %v7191 = vadd.f32 %v7189, %v7190
  %v7192 = vrot.slane %v7191, 2
  %v7193 = vadd.f32 %v7191, %v7192
  %v7194 = vrot.slane %v7193, 1
  %v7195 = vadd.f32 %v7193, %v7194
  %v7196 = vsel %vm641, %v7152, 0.0
  %v7197 = vsel %vm641, %v7153, 0.0
  %v7198 = vadd.f32 %v7196, %v7197
  %v7199 = vrot.slane %v7198, 4
  %v7200 = vadd.f32 %v7198, %v7199
  %v7201 = vrot.slane %v7200, 2
  %v7202 = vadd.f32 %v7200, %v7201
  %v7203 = vrot.slane %v7202, 1
  %v7204 = vadd.f32 %v7202, %v7203
  %v7205 = vsel %vm641, %v7154, 0.0
  %v7206 = vsel %vm641, %v7155, 0.0
  %v7207 = vadd.f32 %v7205, %v7206
  %v7208 = vrot.slane %v7207, 4
  %v7209 = vadd.f32 %v7207, %v7208
  %v7210 = vrot.slane %v7209, 2
  %v7211 = vadd.f32 %v7209, %v7210
  %v7212 = vrot.slane %v7211, 1
  %v7213 = vadd.f32 %v7211, %v7212
  %v7214 = vsel %vm641, %v7156, 0.0
  %v7215 = vsel %vm641, %v7157, 0.0
  %v7216 = vadd.f32 %v7214, %v7215
  %v7217 = vrot.slane %v7216, 4
  %v7218 = vadd.f32 %v7216, %v7217
  %v7219 = vrot.slane %v7218, 2
  %v7220 = vadd.f32 %v7218, %v7219
  %v7221 = vrot.slane %v7220, 1
  %v7222 = vadd.f32 %v7220, %v7221
  %v7223 = vsel %vm641, %v7158, 0.0
  %v7224 = vsel %vm641, %v7159, 0.0
  %v7225 = vadd.f32 %v7223, %v7224
  %v7226 = vrot.slane %v7225, 4
  %v7227 = vadd.f32 %v7225, %v7226
  %v7228 = vrot.slane %v7227, 2
  %v7229 = vadd.f32 %v7227, %v7228
  %v7230 = vrot.slane %v7229, 1
  %v7231 = vadd.f32 %v7229, %v7230
  %v7232 = vpack.c.bf16 %v7168, %v7168
  %v7233 = vpack.c.bf16 %v7177, %v7177
  %v7234 = vpack.c.bf16 %v7186, %v7186
  %v7235 = vpack.c.bf16 %v7195, %v7195
  %v7236 = vpack.c.bf16 %v7204, %v7204
  %v7237 = vpack.c.bf16 %v7213, %v7213
  %v7238 = vpack.c.bf16 %v7222, %v7222
  %v7239 = vpack.c.bf16 %v7231, %v7231
  %v7248 = vunpack.c.l.b16 %v7232
  %v7249 = vunpack.c.l.b16 %v7233
  %v7250 = vunpack.c.l.b16 %v7234
  %v7251 = vunpack.c.l.b16 %v7235
  %v7252 = vunpack.c.l.b16 %v7236
  %v7253 = vunpack.c.l.b16 %v7237
  %v7254 = vunpack.c.l.b16 %v7238
  %v7255 = vunpack.c.l.b16 %v7239
  %v7256 = vsel %vm296, %v7249, %v7248
  %v7257 = vsel %vm298, %v7250, %v7256
  %v7258 = vsel %vm300, %v7251, %v7257
  %v7259 = vsel %vm302, %v7252, %v7258
  %v7260 = vsel %vm304, %v7253, %v7259
  %v7261 = vsel %vm306, %v7254, %v7260
  %v7262 = vsel %vm308, %v7255, %v7261
  %v7263 = vpack.c.b16 %v7262, %v7262
  %7265 = vst.msk [vmem:[#allocation2] sm:$0xf] %vm747, %v7263
  %7266 = vst [vmem:[#allocation2 + $0x4] sm:$0xf] %v6569
  %s7267 = scalar_lea.vmem %s2, 80
  %v7268 = vld [vmem:[%s7267] sm:$0xff]
  %v7269 = vld [vmem:[%s7267 + $0x8] sm:$0xff]
  %v7270 = vunpack.c.l.bf16 %v7268
  %v7271 = vunpack.c.h.bf16 %v7268
  %v7272 = vunpack.c.l.bf16 %v7269
  %v7273 = vunpack.c.h.bf16 %v7269
  %v7274 = vld [vmem:[#allocation2] sm:$0xff]
  %v7275 = vld [vmem:[%s5] sm:$0xff]
  %v7276 = vld [vmem:[%s5 + $0x8] sm:$0xff]
  %v7277 = vld [vmem:[%s5 + $0x10] sm:$0xff]
  %v7278 = vld [vmem:[%s5 + $0x18] sm:$0xff]
  %v7279 = vld [vmem:[%s5 + $0x20] sm:$0xff]
  %v7280 = vld [vmem:[%s5 + $0x28] sm:$0xff]
  %v7281 = vld [vmem:[%s5 + $0x30] sm:$0xff]
  %v7282 = vld [vmem:[%s5 + $0x38] sm:$0xff]
  %v7283 = vld [vmem:[%s5 + $0x40] sm:$0xff]
  %v7284 = vld [vmem:[%s5 + $0x48] sm:$0xff]
  %v7285 = vld [vmem:[%s5 + $0x50] sm:$0xff]
  %v7286 = vld [vmem:[%s5 + $0x58] sm:$0xff]
  %v7287 = vld [vmem:[%s5 + $0x60] sm:$0xff]
  %v7288 = vld [vmem:[%s5 + $0x68] sm:$0xff]
  %v7289 = vld [vmem:[%s5 + $0x70] sm:$0xff]
  %v7290 = vld [vmem:[%s5 + $0x78] sm:$0xff]
  %v7291 = vld [vmem:[%s5 + $0x80] sm:$0xff]
  %v7292 = vld [vmem:[%s5 + $0x88] sm:$0xff]
  %v7293 = vld [vmem:[%s5 + $0x90] sm:$0xff]
  %v7294 = vld [vmem:[%s5 + $0x98] sm:$0xff]
  %v7295 = vld [vmem:[%s5 + $0xa0] sm:$0xff]
  %v7296 = vld [vmem:[%s5 + $0xa8] sm:$0xff]
  %v7297 = vld [vmem:[%s5 + $0xb0] sm:$0xff]
  %v7298 = vld [vmem:[%s5 + $0xb8] sm:$0xff]
  %v7299 = vld [vmem:[%s5 + $0xc0] sm:$0xff]
  %v7300 = vld [vmem:[%s5 + $0xc8] sm:$0xff]
  %v7301 = vld [vmem:[%s5 + $0xd0] sm:$0xff]
  %v7302 = vld [vmem:[%s5 + $0xd8] sm:$0xff]
  %v7303 = vld [vmem:[%s5 + $0xe0] sm:$0xff]
  %v7304 = vld [vmem:[%s5 + $0xe8] sm:$0xff]
  %v7305 = vld [vmem:[%s5 + $0xf0] sm:$0xff]
  %v7306 = vld [vmem:[%s5 + $0xf8] sm:$0xff]
  %v7307 = vld [vmem:[%s5 + $0x100] sm:$0xff]
  %v7308 = vld [vmem:[%s5 + $0x108] sm:$0xff]
  %v7309 = vld [vmem:[%s5 + $0x110] sm:$0xff]
  %v7310 = vld [vmem:[%s5 + $0x118] sm:$0xff]
  %v7311 = vld [vmem:[%s5 + $0x120] sm:$0xff]
  %v7312 = vld [vmem:[%s5 + $0x128] sm:$0xff]
  %v7313 = vld [vmem:[%s5 + $0x130] sm:$0xff]
  %v7314 = vld [vmem:[%s5 + $0x138] sm:$0xff]
  %v7315 = vld [vmem:[%s5 + $0x140] sm:$0xff]
  %v7316 = vld [vmem:[%s5 + $0x148] sm:$0xff]
  %v7317 = vld [vmem:[%s5 + $0x150] sm:$0xff]
  %v7318 = vld [vmem:[%s5 + $0x158] sm:$0xff]
  %v7319 = vld [vmem:[%s5 + $0x160] sm:$0xff]
  %v7320 = vld [vmem:[%s5 + $0x168] sm:$0xff]
  %v7321 = vld [vmem:[%s5 + $0x170] sm:$0xff]
  %v7322 = vld [vmem:[%s5 + $0x178] sm:$0xff]
  %v7323 = vld [vmem:[%s5 + $0x180] sm:$0xff]
  %v7324 = vld [vmem:[%s5 + $0x188] sm:$0xff]
  %v7325 = vld [vmem:[%s5 + $0x190] sm:$0xff]
  %v7326 = vld [vmem:[%s5 + $0x198] sm:$0xff]
  %v7327 = vld [vmem:[%s5 + $0x1a0] sm:$0xff]
  %v7328 = vld [vmem:[%s5 + $0x1a8] sm:$0xff]
  %v7329 = vld [vmem:[%s5 + $0x1b0] sm:$0xff]
  %v7330 = vld [vmem:[%s5 + $0x1b8] sm:$0xff]
  %v7331 = vld [vmem:[%s5 + $0x1c0] sm:$0xff]
  %v7332 = vld [vmem:[%s5 + $0x1c8] sm:$0xff]
  %v7333 = vld [vmem:[%s5 + $0x1d0] sm:$0xff]
  %v7334 = vld [vmem:[%s5 + $0x1d8] sm:$0xff]
  %v7335 = vld [vmem:[%s5 + $0x1e0] sm:$0xff]
  %v7336 = vld [vmem:[%s5 + $0x1e8] sm:$0xff]
  %v7337 = vld [vmem:[%s5 + $0x1f0] sm:$0xff]
  %v7338 = vld [vmem:[%s5 + $0x1f8] sm:$0xff]
  %v7340 = vunpack.c.l.b16 %v7274
  %v7341 = vunpack.c.h.b16 %v7274
  %v7342 = vpack.c.b16 %v7340, %v7340
  %v7343 = vpack.c.b16 %v7341, %v7341
  %v7410 = vunpack.c.l.b16 %v7275
  %v7411 = vunpack.c.h.b16 %v7275
  %v7412 = vunpack.c.l.b16 %v7276
  %v7413 = vunpack.c.h.b16 %v7276
  %v7414 = vunpack.c.l.b16 %v7277
  %v7415 = vunpack.c.h.b16 %v7277
  %v7416 = vunpack.c.l.b16 %v7278
  %v7417 = vunpack.c.h.b16 %v7278
  %v7418 = vunpack.c.l.b16 %v7279
  %v7419 = vunpack.c.h.b16 %v7279
  %v7420 = vunpack.c.l.b16 %v7280
  %v7421 = vunpack.c.h.b16 %v7280
  %v7422 = vunpack.c.l.b16 %v7281
  %v7423 = vunpack.c.h.b16 %v7281
  %v7424 = vunpack.c.l.b16 %v7282
  %v7425 = vunpack.c.h.b16 %v7282
  %v7426 = vunpack.c.l.b16 %v7283
  %v7427 = vunpack.c.h.b16 %v7283
  %v7428 = vunpack.c.l.b16 %v7284
  %v7429 = vunpack.c.h.b16 %v7284
  %v7430 = vunpack.c.l.b16 %v7285
  %v7431 = vunpack.c.h.b16 %v7285
  %v7432 = vunpack.c.l.b16 %v7286
  %v7433 = vunpack.c.h.b16 %v7286
  %v7434 = vunpack.c.l.b16 %v7287
  %v7435 = vunpack.c.h.b16 %v7287
  %v7436 = vunpack.c.l.b16 %v7288
  %v7437 = vunpack.c.h.b16 %v7288
  %v7438 = vunpack.c.l.b16 %v7289
  %v7439 = vunpack.c.h.b16 %v7289
  %v7440 = vunpack.c.l.b16 %v7290
  %v7441 = vunpack.c.h.b16 %v7290
  %v7442 = vunpack.c.l.b16 %v7291
  %v7443 = vunpack.c.h.b16 %v7291
  %v7444 = vunpack.c.l.b16 %v7292
  %v7445 = vunpack.c.h.b16 %v7292
  %v7446 = vunpack.c.l.b16 %v7293
  %v7447 = vunpack.c.h.b16 %v7293
  %v7448 = vunpack.c.l.b16 %v7294
  %v7449 = vunpack.c.h.b16 %v7294
  %v7450 = vunpack.c.l.b16 %v7295
  %v7451 = vunpack.c.h.b16 %v7295
  %v7452 = vunpack.c.l.b16 %v7296
  %v7453 = vunpack.c.h.b16 %v7296
  %v7454 = vunpack.c.l.b16 %v7297
  %v7455 = vunpack.c.h.b16 %v7297
  %v7456 = vunpack.c.l.b16 %v7298
  %v7457 = vunpack.c.h.b16 %v7298
  %v7458 = vunpack.c.l.b16 %v7299
  %v7459 = vunpack.c.h.b16 %v7299
  %v7460 = vunpack.c.l.b16 %v7300
  %v7461 = vunpack.c.h.b16 %v7300
  %v7462 = vunpack.c.l.b16 %v7301
  %v7463 = vunpack.c.h.b16 %v7301
  %v7464 = vunpack.c.l.b16 %v7302
  %v7465 = vunpack.c.h.b16 %v7302
  %v7466 = vunpack.c.l.b16 %v7303
  %v7467 = vunpack.c.h.b16 %v7303
  %v7468 = vunpack.c.l.b16 %v7304
  %v7469 = vunpack.c.h.b16 %v7304
  %v7470 = vunpack.c.l.b16 %v7305
  %v7471 = vunpack.c.h.b16 %v7305
  %v7472 = vunpack.c.l.b16 %v7306
  %v7473 = vunpack.c.h.b16 %v7306
  %v7474 = vunpack.c.l.b16 %v7307
  %v7475 = vunpack.c.h.b16 %v7307
  %v7476 = vunpack.c.l.b16 %v7308
  %v7477 = vunpack.c.h.b16 %v7308
  %v7478 = vunpack.c.l.b16 %v7309
  %v7479 = vunpack.c.h.b16 %v7309
  %v7480 = vunpack.c.l.b16 %v7310
  %v7481 = vunpack.c.h.b16 %v7310
  %v7482 = vunpack.c.l.b16 %v7311
  %v7483 = vunpack.c.h.b16 %v7311
  %v7484 = vunpack.c.l.b16 %v7312
  %v7485 = vunpack.c.h.b16 %v7312
  %v7486 = vunpack.c.l.b16 %v7313
  %v7487 = vunpack.c.h.b16 %v7313
  %v7488 = vunpack.c.l.b16 %v7314
  %v7489 = vunpack.c.h.b16 %v7314
  %v7490 = vunpack.c.l.b16 %v7315
  %v7491 = vunpack.c.h.b16 %v7315
  %v7492 = vunpack.c.l.b16 %v7316
  %v7493 = vunpack.c.h.b16 %v7316
  %v7494 = vunpack.c.l.b16 %v7317
  %v7495 = vunpack.c.h.b16 %v7317
  %v7496 = vunpack.c.l.b16 %v7318
  %v7497 = vunpack.c.h.b16 %v7318
  %v7498 = vunpack.c.l.b16 %v7319
  %v7499 = vunpack.c.h.b16 %v7319
  %v7500 = vunpack.c.l.b16 %v7320
  %v7501 = vunpack.c.h.b16 %v7320
  %v7502 = vunpack.c.l.b16 %v7321
  %v7503 = vunpack.c.h.b16 %v7321
  %v7504 = vunpack.c.l.b16 %v7322
  %v7505 = vunpack.c.h.b16 %v7322
  %v7506 = vunpack.c.l.b16 %v7323
  %v7507 = vunpack.c.h.b16 %v7323
  %v7508 = vunpack.c.l.b16 %v7324
  %v7509 = vunpack.c.h.b16 %v7324
  %v7510 = vunpack.c.l.b16 %v7325
  %v7511 = vunpack.c.h.b16 %v7325
  %v7512 = vunpack.c.l.b16 %v7326
  %v7513 = vunpack.c.h.b16 %v7326
  %v7514 = vunpack.c.l.b16 %v7327
  %v7515 = vunpack.c.h.b16 %v7327
  %v7516 = vunpack.c.l.b16 %v7328
  %v7517 = vunpack.c.h.b16 %v7328
  %v7518 = vunpack.c.l.b16 %v7329
  %v7519 = vunpack.c.h.b16 %v7329
  %v7520 = vunpack.c.l.b16 %v7330
  %v7521 = vunpack.c.h.b16 %v7330
  %v7522 = vunpack.c.l.b16 %v7331
  %v7523 = vunpack.c.h.b16 %v7331
  %v7524 = vunpack.c.l.b16 %v7332
  %v7525 = vunpack.c.h.b16 %v7332
  %v7526 = vunpack.c.l.b16 %v7333
  %v7527 = vunpack.c.h.b16 %v7333
  %v7528 = vunpack.c.l.b16 %v7334
  %v7529 = vunpack.c.h.b16 %v7334
  %v7530 = vunpack.c.l.b16 %v7335
  %v7531 = vunpack.c.h.b16 %v7335
  %v7532 = vunpack.c.l.b16 %v7336
  %v7533 = vunpack.c.h.b16 %v7336
  %v7534 = vunpack.c.l.b16 %v7337
  %v7535 = vunpack.c.h.b16 %v7337
  %v7536 = vunpack.c.l.b16 %v7338
  %v7537 = vunpack.c.h.b16 %v7338
  %v7538 = vpack.c.b16 %v7414, %v7410
  %v7539 = vpack.c.b16 %v7415, %v7411
  %v7540 = vpack.c.b16 %v7416, %v7412
  %v7541 = vpack.c.b16 %v7417, %v7413
  %v7542 = vpack.c.b16 %v7422, %v7418
  %v7543 = vpack.c.b16 %v7423, %v7419
  %v7544 = vpack.c.b16 %v7424, %v7420
  %v7545 = vpack.c.b16 %v7425, %v7421
  %v7546 = vpack.c.b16 %v7430, %v7426
  %v7547 = vpack.c.b16 %v7431, %v7427
  %v7548 = vpack.c.b16 %v7432, %v7428
  %v7549 = vpack.c.b16 %v7433, %v7429
  %v7550 = vpack.c.b16 %v7438, %v7434
  %v7551 = vpack.c.b16 %v7439, %v7435
  %v7552 = vpack.c.b16 %v7440, %v7436
  %v7553 = vpack.c.b16 %v7441, %v7437
  %v7554 = vpack.c.b16 %v7446, %v7442
  %v7555 = vpack.c.b16 %v7447, %v7443
  %v7556 = vpack.c.b16 %v7448, %v7444
  %v7557 = vpack.c.b16 %v7449, %v7445
  %v7558 = vpack.c.b16 %v7454, %v7450
  %v7559 = vpack.c.b16 %v7455, %v7451
  %v7560 = vpack.c.b16 %v7456, %v7452
  %v7561 = vpack.c.b16 %v7457, %v7453
  %v7562 = vpack.c.b16 %v7462, %v7458
  %v7563 = vpack.c.b16 %v7463, %v7459
  %v7564 = vpack.c.b16 %v7464, %v7460
  %v7565 = vpack.c.b16 %v7465, %v7461
  %v7566 = vpack.c.b16 %v7470, %v7466
  %v7567 = vpack.c.b16 %v7471, %v7467
  %v7568 = vpack.c.b16 %v7472, %v7468
  %v7569 = vpack.c.b16 %v7473, %v7469
  %v7570 = vpack.c.b16 %v7478, %v7474
  %v7571 = vpack.c.b16 %v7479, %v7475
  %v7572 = vpack.c.b16 %v7480, %v7476
  %v7573 = vpack.c.b16 %v7481, %v7477
  %v7574 = vpack.c.b16 %v7486, %v7482
  %v7575 = vpack.c.b16 %v7487, %v7483
  %v7576 = vpack.c.b16 %v7488, %v7484
  %v7577 = vpack.c.b16 %v7489, %v7485
  %v7578 = vpack.c.b16 %v7494, %v7490
  %v7579 = vpack.c.b16 %v7495, %v7491
  %v7580 = vpack.c.b16 %v7496, %v7492
  %v7581 = vpack.c.b16 %v7497, %v7493
  %v7582 = vpack.c.b16 %v7502, %v7498
  %v7583 = vpack.c.b16 %v7503, %v7499
  %v7584 = vpack.c.b16 %v7504, %v7500
  %v7585 = vpack.c.b16 %v7505, %v7501
  %v7586 = vpack.c.b16 %v7510, %v7506
  %v7587 = vpack.c.b16 %v7511, %v7507
  %v7588 = vpack.c.b16 %v7512, %v7508
  %v7589 = vpack.c.b16 %v7513, %v7509
  %v7590 = vpack.c.b16 %v7518, %v7514
  %v7591 = vpack.c.b16 %v7519, %v7515
  %v7592 = vpack.c.b16 %v7520, %v7516
  %v7593 = vpack.c.b16 %v7521, %v7517
  %v7594 = vpack.c.b16 %v7526, %v7522
  %v7595 = vpack.c.b16 %v7527, %v7523
  %v7596 = vpack.c.b16 %v7528, %v7524
  %v7597 = vpack.c.b16 %v7529, %v7525
  %v7598 = vpack.c.b16 %v7534, %v7530
  %v7599 = vpack.c.b16 %v7535, %v7531
  %v7600 = vpack.c.b16 %v7536, %v7532
  %v7601 = vpack.c.b16 %v7537, %v7533
  %7666 = vmatpush.bf16.msra.mxu0 %v7566
  %7667 = vmatpush.bf16.msra.mxu0 %v7562
  %7668 = vmatpush.bf16.msra.mxu0 %v7558
  %7669 = vmatpush.bf16.msra.mxu0 %v7554
  %7670 = vmatpush.bf16.msra.mxu0 %v7550
  %7671 = vmatpush.bf16.msra.mxu0 %v7546
  %7672 = vmatpush.bf16.msra.mxu0 %v7542
  %7673 = vmatpush.bf16.msra.mxu0 %v7538
  %7674 = vmatmul.bf16.gmra.mxu0 %v7342
  %v7675 = vpop.f32.mrf.mxu0
  %v7676 = vadd.f32 0.0, %v7675
  %v7677 = vpop.f32.mrf.mxu0
  %7678 = vdwg.mxu0
  %7679 = vmatpush.bf16.msra.mxu0 %v7598
  %7680 = vmatpush.bf16.msra.mxu0 %v7594
  %7681 = vmatpush.bf16.msra.mxu0 %v7590
  %7682 = vmatpush.bf16.msra.mxu0 %v7586
  %7683 = vmatpush.bf16.msra.mxu0 %v7582
  %7684 = vmatpush.bf16.msra.mxu0 %v7578
  %7685 = vmatpush.bf16.msra.mxu0 %v7574
  %7686 = vmatpush.bf16.msra.mxu0 %v7570
  %7687 = vmatmul.bf16.gmra.mxu0 %v7343
  %v7688 = vpop.f32.mrf.mxu0
  %v7689 = vadd.f32 %v7676, %v7688
  %v7690 = vpop.f32.mrf.mxu0
  %7691 = vdwg.mxu0
  %7692 = vmatpush.bf16.msra.mxu0 %v7567
  %7693 = vmatpush.bf16.msra.mxu0 %v7563
  %7694 = vmatpush.bf16.msra.mxu0 %v7559
  %7695 = vmatpush.bf16.msra.mxu0 %v7555
  %7696 = vmatpush.bf16.msra.mxu0 %v7551
  %7697 = vmatpush.bf16.msra.mxu0 %v7547
  %7698 = vmatpush.bf16.msra.mxu0 %v7543
  %7699 = vmatpush.bf16.msra.mxu0 %v7539
  %7700 = vmatmul.bf16.gmra.mxu0 %v7342
  %v7701 = vpop.f32.mrf.mxu0
  %v7702 = vadd.f32 0.0, %v7701
  %v7703 = vpop.f32.mrf.mxu0
  %7704 = vdwg.mxu0
  %7705 = vmatpush.bf16.msra.mxu0 %v7599
  %7706 = vmatpush.bf16.msra.mxu0 %v7595
  %7707 = vmatpush.bf16.msra.mxu0 %v7591
  %7708 = vmatpush.bf16.msra.mxu0 %v7587
  %7709 = vmatpush.bf16.msra.mxu0 %v7583
  %7710 = vmatpush.bf16.msra.mxu0 %v7579
  %7711 = vmatpush.bf16.msra.mxu0 %v7575
  %7712 = vmatpush.bf16.msra.mxu0 %v7571
  %7713 = vmatmul.bf16.gmra.mxu0 %v7343
  %v7714 = vpop.f32.mrf.mxu0
  %v7715 = vadd.f32 %v7702, %v7714
  %v7716 = vpop.f32.mrf.mxu0
  %7717 = vdwg.mxu0
  %7718 = vmatpush.bf16.msra.mxu0 %v7568
  %7719 = vmatpush.bf16.msra.mxu0 %v7564
  %7720 = vmatpush.bf16.msra.mxu0 %v7560
  %7721 = vmatpush.bf16.msra.mxu0 %v7556
  %7722 = vmatpush.bf16.msra.mxu0 %v7552
  %7723 = vmatpush.bf16.msra.mxu0 %v7548
  %7724 = vmatpush.bf16.msra.mxu0 %v7544
  %7725 = vmatpush.bf16.msra.mxu0 %v7540
  %7726 = vmatmul.bf16.gmra.mxu0 %v7342
  %v7727 = vpop.f32.mrf.mxu0
  %v7728 = vadd.f32 0.0, %v7727
  %v7729 = vpop.f32.mrf.mxu0
  %7730 = vdwg.mxu0
  %7731 = vmatpush.bf16.msra.mxu0 %v7600
  %7732 = vmatpush.bf16.msra.mxu0 %v7596
  %7733 = vmatpush.bf16.msra.mxu0 %v7592
  %7734 = vmatpush.bf16.msra.mxu0 %v7588
  %7735 = vmatpush.bf16.msra.mxu0 %v7584
  %7736 = vmatpush.bf16.msra.mxu0 %v7580
  %7737 = vmatpush.bf16.msra.mxu0 %v7576
  %7738 = vmatpush.bf16.msra.mxu0 %v7572
  %7739 = vmatmul.bf16.gmra.mxu0 %v7343
  %v7740 = vpop.f32.mrf.mxu0
  %v7741 = vadd.f32 %v7728, %v7740
  %v7742 = vpop.f32.mrf.mxu0
  %7743 = vdwg.mxu0
  %7744 = vmatpush.bf16.msra.mxu0 %v7569
  %7745 = vmatpush.bf16.msra.mxu0 %v7565
  %7746 = vmatpush.bf16.msra.mxu0 %v7561
  %7747 = vmatpush.bf16.msra.mxu0 %v7557
  %7748 = vmatpush.bf16.msra.mxu0 %v7553
  %7749 = vmatpush.bf16.msra.mxu0 %v7549
  %7750 = vmatpush.bf16.msra.mxu0 %v7545
  %7751 = vmatpush.bf16.msra.mxu0 %v7541
  %7752 = vmatmul.bf16.gmra.mxu0 %v7342
  %v7753 = vpop.f32.mrf.mxu0
  %v7754 = vadd.f32 0.0, %v7753
  %v7755 = vpop.f32.mrf.mxu0
  %7756 = vdwg.mxu0
  %7757 = vmatpush.bf16.msra.mxu0 %v7601
  %7758 = vmatpush.bf16.msra.mxu0 %v7597
  %7759 = vmatpush.bf16.msra.mxu0 %v7593
  %7760 = vmatpush.bf16.msra.mxu0 %v7589
  %7761 = vmatpush.bf16.msra.mxu0 %v7585
  %7762 = vmatpush.bf16.msra.mxu0 %v7581
  %7763 = vmatpush.bf16.msra.mxu0 %v7577
  %7764 = vmatpush.bf16.msra.mxu0 %v7573
  %7765 = vmatmul.bf16.gmra.mxu0 %v7343
  %v7766 = vpop.f32.mrf.mxu0
  %v7767 = vadd.f32 %v7754, %v7766
  %v7768 = vpop.f32.mrf.mxu0
  %7769 = vdwg.mxu0
  %v7770 = vadd.f32 %v7270, %v7689
  %v7771 = vadd.f32 %v7271, %v7715
  %v7772 = vadd.f32 %v7272, %v7741
  %v7773 = vadd.f32 %v7273, %v7767
  %v7774 = vxor.u32 %v7770, 2147483648
  %v7775 = vmul.f32 %v7774, 1.442695
  %v7776 = vpow.pop %v7775
  %v7777 = vadd.f32 %v7776, 1.0
  %v7778 = vrcp.pop %v7777
  %v7779 = vmul.f32 %v7777, %v7778
  %v7780 = vsub.f32 1.0, %v7779
  %v7781 = vmul.f32 %v7778, %v7780
  %v7782 = vadd.f32 %v7778, %v7781
  %vm7783 = vweird.f32 %v7777
  %vm7784 = vweird.f32 %v7778
  %vm7785 = vmor %vm7783, %vm7784
  %v7786 = vsel %vm7785, %v7778, %v7782
  %v7787 = vand.u32 2147483647, %v7777
  %vm7788 = vcmp.eq.f32.partialorder %v7787, 8.507059e+37
  %v7789 = vand.u32 %v7777, 2147483648
  %v7790 = vor.u32 1.1754944e-38, %v7789
  %v7791 = vsel %vm7788, %v7790, %v7786
  %v7792 = vmul.f32 1.0, %v7791
  %v7793 = vxor.u32 %v7771, 2147483648
  %v7794 = vmul.f32 %v7793, 1.442695
  %v7795 = vpow.pop %v7794
  %v7796 = vadd.f32 %v7795, 1.0
  %v7797 = vrcp.pop %v7796
  %v7798 = vmul.f32 %v7796, %v7797
  %v7799 = vsub.f32 1.0, %v7798
  %v7800 = vmul.f32 %v7797, %v7799
  %v7801 = vadd.f32 %v7797, %v7800
  %vm7802 = vweird.f32 %v7796
  %vm7803 = vweird.f32 %v7797
  %vm7804 = vmor %vm7802, %vm7803
  %v7805 = vsel %vm7804, %v7797, %v7801
  %v7806 = vand.u32 2147483647, %v7796
  %vm7807 = vcmp.eq.f32.partialorder %v7806, 8.507059e+37
  %v7808 = vand.u32 %v7796, 2147483648
  %v7809 = vor.u32 1.1754944e-38, %v7808
  %v7810 = vsel %vm7807, %v7809, %v7805
  %v7811 = vmul.f32 1.0, %v7810
  %v7812 = vtanh.pop %v7772
  %v7813 = vxor.u32 %v7773, 2147483648
  %v7814 = vmul.f32 %v7813, 1.442695
  %v7815 = vpow.pop %v7814
  %v7816 = vadd.f32 %v7815, 1.0
  %v7817 = vrcp.pop %v7816
  %v7818 = vmul.f32 %v7816, %v7817
  %v7819 = vsub.f32 1.0, %v7818
  %v7820 = vmul.f32 %v7817, %v7819
  %v7821 = vadd.f32 %v7817, %v7820
  %vm7822 = vweird.f32 %v7816
  %vm7823 = vweird.f32 %v7817
  %vm7824 = vmor %vm7822, %vm7823
  %v7825 = vsel %vm7824, %v7817, %v7821
  %v7826 = vand.u32 2147483647, %v7816
  %vm7827 = vcmp.eq.f32.partialorder %v7826, 8.507059e+37
  %v7828 = vand.u32 %v7816, 2147483648
  %v7829 = vor.u32 1.1754944e-38, %v7828
  %v7830 = vsel %vm7827, %v7829, %v7825
  %v7831 = vmul.f32 1.0, %v7830
  %v7832 = vmul.f32 %v7811, %v6530
  %v7833 = vmul.f32 %v7792, %v7812
  %v7834 = vadd.f32 %v7832, %v7833
  %v7835 = vtanh.pop %v7834
  %v7836 = vmul.f32 %v7831, %v7835
  %s7837 = scalar_lea.vmem %s6, 40
  %7838 = vst [vmem:[%s7837] sm:$0xff] %v7836
  %v7839 = vperm.slane %v7067, %v269
  %v7840 = vperm.slane %v7072, %v271
  %v7841 = vsel %vm273, %v7840, %v7839
  %v7842 = vperm.slane %v7077, %v269
  %v7843 = vperm.slane %v7082, %v271
  %v7844 = vsel %vm273, %v7843, %v7842
  %v7845 = vperm.slane %v7087, %v269
  %v7846 = vperm.slane %v7092, %v271
  %v7847 = vsel %vm273, %v7846, %v7845
  %v7848 = vperm.slane %v7097, %v269
  %v7849 = vperm.slane %v7102, %v271
  %v7850 = vsel %vm273, %v7849, %v7848
  %v7851 = vperm.slane %v7107, %v269
  %v7852 = vperm.slane %v7112, %v271
  %v7853 = vsel %vm273, %v7852, %v7851
  %v7854 = vperm.slane %v7117, %v269
  %v7855 = vperm.slane %v7122, %v271
  %v7856 = vsel %vm273, %v7855, %v7854
  %v7857 = vperm.slane %v7127, %v269
  %v7858 = vperm.slane %v7132, %v271
  %v7859 = vsel %vm273, %v7858, %v7857
  %v7860 = vperm.slane %v7137, %v269
  %v7861 = vperm.slane %v7142, %v271
  %v7862 = vsel %vm273, %v7861, %v7860
  %v7863 = vsel %vm296, %v7844, %v7841
  %v7864 = vsel %vm298, %v7847, %v7863
  %v7865 = vsel %vm300, %v7850, %v7864
  %v7866 = vsel %vm302, %v7853, %v7865
  %v7867 = vsel %vm304, %v7856, %v7866
  %v7868 = vsel %vm306, %v7859, %v7867
  %v7869 = vsel %vm308, %v7862, %v7868
  %s7871 = scalar_lea.vmem %s7, 40
  %7872 = vst.msk [vmem:[%s7871] sm:$0xff] %vm311, %v7869
  %v7873 = vpack.c.bf16 %v7836, %v7836
  %v7874 = vld [vmem:[%s3] sm:$0xf]
  %v7875 = vld [vmem:[%s3 + $0x4] sm:$0xf]
  %v7876 = vld [vmem:[%s3 + $0x8] sm:$0xf]
  %v7877 = vld [vmem:[%s3 + $0xc] sm:$0xf]
  %v7878 = vld [vmem:[%s3 + $0x10] sm:$0xf]
  %v7879 = vld [vmem:[%s3 + $0x14] sm:$0xf]
  %v7880 = vld [vmem:[%s3 + $0x18] sm:$0xf]
  %v7881 = vld [vmem:[%s3 + $0x1c] sm:$0xf]
  %v7882 = vld [vmem:[%s3 + $0x20] sm:$0xf]
  %v7883 = vld [vmem:[%s3 + $0x24] sm:$0xf]
  %v7884 = vld [vmem:[%s3 + $0x28] sm:$0xf]
  %v7885 = vld [vmem:[%s3 + $0x2c] sm:$0xf]
  %v7886 = vld [vmem:[%s3 + $0x30] sm:$0xf]
  %v7887 = vld [vmem:[%s3 + $0x34] sm:$0xf]
  %v7888 = vld [vmem:[%s3 + $0x38] sm:$0xf]
  %v7889 = vld [vmem:[%s3 + $0x3c] sm:$0xf]
  %v7906 = vunpack.c.l.b16 %v7874
  %v7907 = vunpack.c.l.b16 %v7875
  %v7908 = vunpack.c.l.b16 %v7876
  %v7909 = vunpack.c.l.b16 %v7877
  %v7910 = vunpack.c.l.b16 %v7878
  %v7911 = vunpack.c.l.b16 %v7879
  %v7912 = vunpack.c.l.b16 %v7880
  %v7913 = vunpack.c.l.b16 %v7881
  %v7914 = vunpack.c.l.b16 %v7882
  %v7915 = vunpack.c.l.b16 %v7883
  %v7916 = vunpack.c.l.b16 %v7884
  %v7917 = vunpack.c.l.b16 %v7885
  %v7918 = vunpack.c.l.b16 %v7886
  %v7919 = vunpack.c.l.b16 %v7887
  %v7920 = vunpack.c.l.b16 %v7888
  %v7921 = vunpack.c.l.b16 %v7889
  %v7922 = vpack.c.b16 %v7907, %v7906
  %v7923 = vpack.c.b16 %v7909, %v7908
  %v7924 = vpack.c.b16 %v7911, %v7910
  %v7925 = vpack.c.b16 %v7913, %v7912
  %v7926 = vpack.c.b16 %v7915, %v7914
  %v7927 = vpack.c.b16 %v7917, %v7916
  %v7928 = vpack.c.b16 %v7919, %v7918
  %v7929 = vpack.c.b16 %v7921, %v7920
  %7938 = vmatpush.bf16.msra.mxu0 %v7929
  %7939 = vmatpush.bf16.msra.mxu0 %v7928
  %7940 = vmatpush.bf16.msra.mxu0 %v7927
  %7941 = vmatpush.bf16.msra.mxu0 %v7926
  %7942 = vmatpush.bf16.msra.mxu0 %v7925
  %7943 = vmatpush.bf16.msra.mxu0 %v7924
  %7944 = vmatpush.bf16.msra.mxu0 %v7923
  %7945 = vmatpush.bf16.msra.mxu0 %v7922
  %7946 = vmatmul.bf16.gmra.mxu0 %v7873
  %v7947 = vpop.f32.mrf.mxu0
  %v7948 = vadd.f32 0.0, %v7947
  %v7949 = vpop.f32.mrf.mxu0
  %7950 = vdwg.mxu0
  %v7951 = vld [vmem:[%s0] sm:$0xf]
  %v7952 = vld [vmem:[%s0 + $0x4] sm:$0xf]
  %v7953 = vld [vmem:[%s0 + $0x8] sm:$0xf]
  %v7954 = vld [vmem:[%s0 + $0xc] sm:$0xf]
  %v7955 = vld [vmem:[%s0 + $0x10] sm:$0xf]
  %v7956 = vld [vmem:[%s0 + $0x14] sm:$0xf]
  %v7957 = vld [vmem:[%s0 + $0x18] sm:$0xf]
  %v7958 = vld [vmem:[%s0 + $0x1c] sm:$0xf]
  %v7959 = vld [vmem:[%s0 + $0x20] sm:$0xf]
  %v7960 = vld [vmem:[%s0 + $0x24] sm:$0xf]
  %v7961 = vld [vmem:[%s0 + $0x28] sm:$0xf]
  %v7962 = vld [vmem:[%s0 + $0x2c] sm:$0xf]
  %v7963 = vld [vmem:[%s0 + $0x30] sm:$0xf]
  %v7964 = vld [vmem:[%s0 + $0x34] sm:$0xf]
  %v7965 = vld [vmem:[%s0 + $0x38] sm:$0xf]
  %v7966 = vld [vmem:[%s0 + $0x3c] sm:$0xf]
  %v7967 = vunpack.c.l.bf16 %v7951
  %v7968 = vunpack.c.l.bf16 %v7952
  %v7969 = vunpack.c.l.bf16 %v7953
  %v7970 = vunpack.c.l.bf16 %v7954
  %v7971 = vunpack.c.l.bf16 %v7955
  %v7972 = vunpack.c.l.bf16 %v7956
  %v7973 = vunpack.c.l.bf16 %v7957
  %v7974 = vunpack.c.l.bf16 %v7958
  %v7975 = vunpack.c.l.bf16 %v7959
  %v7976 = vunpack.c.l.bf16 %v7960
  %v7977 = vunpack.c.l.bf16 %v7961
  %v7978 = vunpack.c.l.bf16 %v7962
  %v7979 = vunpack.c.l.bf16 %v7963
  %v7980 = vunpack.c.l.bf16 %v7964
  %v7981 = vunpack.c.l.bf16 %v7965
  %v7982 = vunpack.c.l.bf16 %v7966
  %v7984 = vrot.slane %v7948, 1
  %v7985 = vrot.slane %v7948, 2
  %v7986 = vrot.slane %v7948, 3
  %v7987 = vrot.slane %v7948, 4
  %v7988 = vrot.slane %v7948, 5
  %v7989 = vrot.slane %v7948, 6
  %v7990 = vrot.slane %v7948, 7
  %v7991 = vperm.slane %v7948, 0
  %v7992 = vperm.slane %v7984, 0
  %v7993 = vperm.slane %v7985, 0
  %v7994 = vperm.slane %v7986, 0
  %v7995 = vperm.slane %v7987, 0
  %v7996 = vperm.slane %v7988, 0
  %v7997 = vperm.slane %v7989, 0
  %v7998 = vperm.slane %v7990, 0
  %v8007 = vadd.f32 %v7967, %v7991
  %v8008 = vadd.f32 %v7968, %v7991
  %v8009 = vadd.f32 %v7969, %v7992
  %v8010 = vadd.f32 %v7970, %v7992
  %v8011 = vadd.f32 %v7971, %v7993
  %v8012 = vadd.f32 %v7972, %v7993
  %v8013 = vadd.f32 %v7973, %v7994
  %v8014 = vadd.f32 %v7974, %v7994
  %v8015 = vadd.f32 %v7975, %v7995
  %v8016 = vadd.f32 %v7976, %v7995
  %v8017 = vadd.f32 %v7977, %v7996
  %v8018 = vadd.f32 %v7978, %v7996
  %v8019 = vadd.f32 %v7979, %v7997
  %v8020 = vadd.f32 %v7980, %v7997
  %v8021 = vadd.f32 %v7981, %v7998
  %v8022 = vadd.f32 %v7982, %v7998
  %v8023 = vtanh.pop %v8007
  %v8024 = vtanh.pop %v8008
  %v8025 = vtanh.pop %v8009
  %v8026 = vtanh.pop %v8010
  %v8027 = vtanh.pop %v8011
  %v8028 = vtanh.pop %v8012
  %v8029 = vtanh.pop %v8013
  %v8030 = vtanh.pop %v8014
  %v8031 = vtanh.pop %v8015
  %v8032 = vtanh.pop %v8016
  %v8033 = vtanh.pop %v8017
  %v8034 = vtanh.pop %v8018
  %v8035 = vtanh.pop %v8019
  %v8036 = vtanh.pop %v8020
  %v8037 = vtanh.pop %v8021
  %v8038 = vtanh.pop %v8022
  %v8039 = vmul.f32 %v8023, %v37
  %v8040 = vmul.f32 %v8024, %v37
  %v8041 = vmul.f32 %v8025, %v37
  %v8042 = vmul.f32 %v8026, %v37
  %v8043 = vmul.f32 %v8027, %v37
  %v8044 = vmul.f32 %v8028, %v37
  %v8045 = vmul.f32 %v8029, %v37
  %v8046 = vmul.f32 %v8030, %v37
  %v8047 = vmul.f32 %v8031, %v37
  %v8048 = vmul.f32 %v8032, %v37
  %v8049 = vmul.f32 %v8033, %v37
  %v8050 = vmul.f32 %v8034, %v37
  %v8051 = vmul.f32 %v8035, %v37
  %v8052 = vmul.f32 %v8036, %v37
  %v8053 = vmul.f32 %v8037, %v37
  %v8054 = vmul.f32 %v8038, %v37
  %8055 = vadd.xlane.f32.xlu0 %v8039
  %v8056 = vpop.xlane.xlu0 %8055
  %8057 = vadd.xlane.f32.xlu0 %v8040
  %v8058 = vpop.xlane.xlu0 %8057
  %8059 = vadd.xlane.f32.xlu0 %v8041
  %v8060 = vpop.xlane.xlu0 %8059
  %8061 = vadd.xlane.f32.xlu0 %v8042
  %v8062 = vpop.xlane.xlu0 %8061
  %8063 = vadd.xlane.f32.xlu0 %v8043
  %v8064 = vpop.xlane.xlu0 %8063
  %8065 = vadd.xlane.f32.xlu0 %v8044
  %v8066 = vpop.xlane.xlu0 %8065
  %8067 = vadd.xlane.f32.xlu0 %v8045
  %v8068 = vpop.xlane.xlu0 %8067
  %8069 = vadd.xlane.f32.xlu0 %v8046
  %v8070 = vpop.xlane.xlu0 %8069
  %8071 = vadd.xlane.f32.xlu0 %v8047
  %v8072 = vpop.xlane.xlu0 %8071
  %8073 = vadd.xlane.f32.xlu0 %v8048
  %v8074 = vpop.xlane.xlu0 %8073
  %8075 = vadd.xlane.f32.xlu0 %v8049
  %v8076 = vpop.xlane.xlu0 %8075
  %8077 = vadd.xlane.f32.xlu0 %v8050
  %v8078 = vpop.xlane.xlu0 %8077
  %8079 = vadd.xlane.f32.xlu0 %v8051
  %v8080 = vpop.xlane.xlu0 %8079
  %8081 = vadd.xlane.f32.xlu0 %v8052
  %v8082 = vpop.xlane.xlu0 %8081
  %8083 = vadd.xlane.f32.xlu0 %v8053
  %v8084 = vpop.xlane.xlu0 %8083
  %8085 = vadd.xlane.f32.xlu0 %v8054
  %v8086 = vpop.xlane.xlu0 %8085
  %v8103 = vperm.slane %v8056, %v269
  %v8104 = vperm.slane %v8058, %v271
  %v8105 = vsel %vm273, %v8104, %v8103
  %v8106 = vperm.slane %v8060, %v269
  %v8107 = vperm.slane %v8062, %v271
  %v8108 = vsel %vm273, %v8107, %v8106
  %v8109 = vperm.slane %v8064, %v269
  %v8110 = vperm.slane %v8066, %v271
  %v8111 = vsel %vm273, %v8110, %v8109
  %v8112 = vperm.slane %v8068, %v269
  %v8113 = vperm.slane %v8070, %v271
  %v8114 = vsel %vm273, %v8113, %v8112
  %v8115 = vperm.slane %v8072, %v269
  %v8116 = vperm.slane %v8074, %v271
  %v8117 = vsel %vm273, %v8116, %v8115
  %v8118 = vperm.slane %v8076, %v269
  %v8119 = vperm.slane %v8078, %v271
  %v8120 = vsel %vm273, %v8119, %v8118
  %v8121 = vperm.slane %v8080, %v269
  %v8122 = vperm.slane %v8082, %v271
  %v8123 = vsel %vm273, %v8122, %v8121
  %v8124 = vperm.slane %v8084, %v269
  %v8125 = vperm.slane %v8086, %v271
  %v8126 = vsel %vm273, %v8125, %v8124
  %v8127 = vsel %vm296, %v8108, %v8105
  %v8128 = vsel %vm298, %v8111, %v8127
  %v8129 = vsel %vm300, %v8114, %v8128
  %v8130 = vsel %vm302, %v8117, %v8129
  %v8131 = vsel %vm304, %v8120, %v8130
  %v8132 = vsel %vm306, %v8123, %v8131
  %v8133 = vsel %vm308, %v8126, %v8132
  %v8135 = vsel %vm311, %v8133, -inf
  %8136 = vmax.xlane.f32.xlu0 %v8135
  %v8137 = vpop.xlane.xlu0 %8136
  %v8139 = vperm.slane %v8137, 0
  %v8140 = vperm.slane %v8137, 1
  %v8141 = vperm.slane %v8137, 2
  %v8142 = vperm.slane %v8137, 3
  %v8143 = vperm.slane %v8137, 4
  %v8144 = vperm.slane %v8137, 5
  %v8145 = vperm.slane %v8137, 6
  %v8146 = vperm.slane %v8137, 7
  %v8155 = vsub.f32 %v8056, %v8139
  %v8156 = vsub.f32 %v8058, %v8139
  %v8157 = vsub.f32 %v8060, %v8140
  %v8158 = vsub.f32 %v8062, %v8140
  %v8159 = vsub.f32 %v8064, %v8141
  %v8160 = vsub.f32 %v8066, %v8141
  %v8161 = vsub.f32 %v8068, %v8142
  %v8162 = vsub.f32 %v8070, %v8142
  %v8163 = vsub.f32 %v8072, %v8143
  %v8164 = vsub.f32 %v8074, %v8143
  %v8165 = vsub.f32 %v8076, %v8144
  %v8166 = vsub.f32 %v8078, %v8144
  %v8167 = vsub.f32 %v8080, %v8145
  %v8168 = vsub.f32 %v8082, %v8145
  %v8169 = vsub.f32 %v8084, %v8146
  %v8170 = vsub.f32 %v8086, %v8146
  %v8171 = vmul.f32 %v8155, 1.442695
  %v8172 = vpow.pop %v8171
  %v8173 = vmul.f32 %v8156, 1.442695
  %v8174 = vpow.pop %v8173
  %v8175 = vmul.f32 %v8157, 1.442695
  %v8176 = vpow.pop %v8175
  %v8177 = vmul.f32 %v8158, 1.442695
  %v8178 = vpow.pop %v8177
  %v8179 = vmul.f32 %v8159, 1.442695
  %v8180 = vpow.pop %v8179
  %v8181 = vmul.f32 %v8160, 1.442695
  %v8182 = vpow.pop %v8181
  %v8183 = vmul.f32 %v8161, 1.442695
  %v8184 = vpow.pop %v8183
  %v8185 = vmul.f32 %v8162, 1.442695
  %v8186 = vpow.pop %v8185
  %v8187 = vmul.f32 %v8163, 1.442695
  %v8188 = vpow.pop %v8187
  %v8189 = vmul.f32 %v8164, 1.442695
  %v8190 = vpow.pop %v8189
  %v8191 = vmul.f32 %v8165, 1.442695
  %v8192 = vpow.pop %v8191
  %v8193 = vmul.f32 %v8166, 1.442695
  %v8194 = vpow.pop %v8193
  %v8195 = vmul.f32 %v8167, 1.442695
  %v8196 = vpow.pop %v8195
  %v8197 = vmul.f32 %v8168, 1.442695
  %v8198 = vpow.pop %v8197
  %v8199 = vmul.f32 %v8169, 1.442695
  %v8200 = vpow.pop %v8199
  %v8201 = vmul.f32 %v8170, 1.442695
  %v8202 = vpow.pop %v8201
  %8219 = vset.pattern.permute.xlu0 0
  %8220 = vperm.xlu0 %8219, %v8172
  %v8221 = vpop.permute.xlu0 %8220
  %8222 = vset.pattern.permute.xlu0 0
  %8223 = vperm.xlu0 %8222, %v8174
  %v8224 = vpop.permute.xlu0 %8223
  %8225 = vset.pattern.permute.xlu0 0
  %8226 = vperm.xlu0 %8225, %v8176
  %v8227 = vpop.permute.xlu0 %8226
  %8228 = vset.pattern.permute.xlu0 0
  %8229 = vperm.xlu0 %8228, %v8178
  %v8230 = vpop.permute.xlu0 %8229
  %8231 = vset.pattern.permute.xlu0 0
  %8232 = vperm.xlu0 %8231, %v8180
  %v8233 = vpop.permute.xlu0 %8232
  %8234 = vset.pattern.permute.xlu0 0
  %8235 = vperm.xlu0 %8234, %v8182
  %v8236 = vpop.permute.xlu0 %8235
  %8237 = vset.pattern.permute.xlu0 0
  %8238 = vperm.xlu0 %8237, %v8184
  %v8239 = vpop.permute.xlu0 %8238
  %8240 = vset.pattern.permute.xlu0 0
  %8241 = vperm.xlu0 %8240, %v8186
  %v8242 = vpop.permute.xlu0 %8241
  %8243 = vset.pattern.permute.xlu0 0
  %8244 = vperm.xlu0 %8243, %v8188
  %v8245 = vpop.permute.xlu0 %8244
  %8246 = vset.pattern.permute.xlu0 0
  %8247 = vperm.xlu0 %8246, %v8190
  %v8248 = vpop.permute.xlu0 %8247
  %8249 = vset.pattern.permute.xlu0 0
  %8250 = vperm.xlu0 %8249, %v8192
  %v8251 = vpop.permute.xlu0 %8250
  %8252 = vset.pattern.permute.xlu0 0
  %8253 = vperm.xlu0 %8252, %v8194
  %v8254 = vpop.permute.xlu0 %8253
  %8255 = vset.pattern.permute.xlu0 0
  %8256 = vperm.xlu0 %8255, %v8196
  %v8257 = vpop.permute.xlu0 %8256
  %8258 = vset.pattern.permute.xlu0 0
  %8259 = vperm.xlu0 %8258, %v8198
  %v8260 = vpop.permute.xlu0 %8259
  %8261 = vset.pattern.permute.xlu0 0
  %8262 = vperm.xlu0 %8261, %v8200
  %v8263 = vpop.permute.xlu0 %8262
  %8264 = vset.pattern.permute.xlu0 0
  %8265 = vperm.xlu0 %8264, %v8202
  %v8266 = vpop.permute.xlu0 %8265
  %v8267 = vperm.slane %v8221, %v269
  %v8268 = vperm.slane %v8224, %v271
  %v8269 = vsel %vm273, %v8268, %v8267
  %v8270 = vperm.slane %v8227, %v269
  %v8271 = vperm.slane %v8230, %v271
  %v8272 = vsel %vm273, %v8271, %v8270
  %v8273 = vperm.slane %v8233, %v269
  %v8274 = vperm.slane %v8236, %v271
  %v8275 = vsel %vm273, %v8274, %v8273
  %v8276 = vperm.slane %v8239, %v269
  %v8277 = vperm.slane %v8242, %v271
  %v8278 = vsel %vm273, %v8277, %v8276
  %v8279 = vperm.slane %v8245, %v269
  %v8280 = vperm.slane %v8248, %v271
  %v8281 = vsel %vm273, %v8280, %v8279
  %v8282 = vperm.slane %v8251, %v269
  %v8283 = vperm.slane %v8254, %v271
  %v8284 = vsel %vm273, %v8283, %v8282
  %v8285 = vperm.slane %v8257, %v269
  %v8286 = vperm.slane %v8260, %v271
  %v8287 = vsel %vm273, %v8286, %v8285
  %v8288 = vperm.slane %v8263, %v269
  %v8289 = vperm.slane %v8266, %v271
  %v8290 = vsel %vm273, %v8289, %v8288
  %v8291 = vsel %vm296, %v8272, %v8269
  %v8292 = vsel %vm298, %v8275, %v8291
  %v8293 = vsel %vm300, %v8278, %v8292
  %v8294 = vsel %vm302, %v8281, %v8293
  %v8295 = vsel %vm304, %v8284, %v8294
  %v8296 = vsel %vm306, %v8287, %v8295
  %v8297 = vsel %vm308, %v8290, %v8296
  %v8299 = vsel %vm311, %v8297, 0.0
  %8300 = vadd.xlane.f32.xlu0 %v8299
  %v8301 = vpop.xlane.xlu0 %8300
  %v8302 = vrcp.pop %v8301
  %v8304 = vperm.slane %v8302, 0
  %v8305 = vperm.slane %v8302, 1
  %v8306 = vperm.slane %v8302, 2
  %v8307 = vperm.slane %v8302, 3
  %v8308 = vperm.slane %v8302, 4
  %v8309 = vperm.slane %v8302, 5
  %v8310 = vperm.slane %v8302, 6
  %v8311 = vperm.slane %v8302, 7
  %v8320 = vmul.f32 %v8172, %v8304
  %v8321 = vmul.f32 %v8174, %v8304
  %v8322 = vmul.f32 %v8176, %v8305
  %v8323 = vmul.f32 %v8178, %v8305
  %v8324 = vmul.f32 %v8180, %v8306
  %v8325 = vmul.f32 %v8182, %v8306
  %v8326 = vmul.f32 %v8184, %v8307
  %v8327 = vmul.f32 %v8186, %v8307
  %v8328 = vmul.f32 %v8188, %v8308
  %v8329 = vmul.f32 %v8190, %v8308
  %v8330 = vmul.f32 %v8192, %v8309
  %v8331 = vmul.f32 %v8194, %v8309
  %v8332 = vmul.f32 %v8196, %v8310
  %v8333 = vmul.f32 %v8198, %v8310
  %v8334 = vmul.f32 %v8200, %v8311
  %v8335 = vmul.f32 %v8202, %v8311
  %v8336 = vld [vmem:[%s1] sm:$0xf]
  %v8337 = vld [vmem:[%s1 + $0x4] sm:$0xf]
  %v8338 = vld [vmem:[%s1 + $0x8] sm:$0xf]
  %v8339 = vld [vmem:[%s1 + $0xc] sm:$0xf]
  %v8340 = vld [vmem:[%s1 + $0x10] sm:$0xf]
  %v8341 = vld [vmem:[%s1 + $0x14] sm:$0xf]
  %v8342 = vld [vmem:[%s1 + $0x18] sm:$0xf]
  %v8343 = vld [vmem:[%s1 + $0x1c] sm:$0xf]
  %v8344 = vld [vmem:[%s1 + $0x20] sm:$0xf]
  %v8345 = vld [vmem:[%s1 + $0x24] sm:$0xf]
  %v8346 = vld [vmem:[%s1 + $0x28] sm:$0xf]
  %v8347 = vld [vmem:[%s1 + $0x2c] sm:$0xf]
  %v8348 = vld [vmem:[%s1 + $0x30] sm:$0xf]
  %v8349 = vld [vmem:[%s1 + $0x34] sm:$0xf]
  %v8350 = vld [vmem:[%s1 + $0x38] sm:$0xf]
  %v8351 = vld [vmem:[%s1 + $0x3c] sm:$0xf]
  %v8352 = vunpack.c.l.bf16 %v8336
  %v8353 = vunpack.c.l.bf16 %v8337
  %v8354 = vunpack.c.l.bf16 %v8338
  %v8355 = vunpack.c.l.bf16 %v8339
  %v8356 = vunpack.c.l.bf16 %v8340
  %v8357 = vunpack.c.l.bf16 %v8341
  %v8358 = vunpack.c.l.bf16 %v8342
  %v8359 = vunpack.c.l.bf16 %v8343
  %v8360 = vunpack.c.l.bf16 %v8344
  %v8361 = vunpack.c.l.bf16 %v8345
  %v8362 = vunpack.c.l.bf16 %v8346
  %v8363 = vunpack.c.l.bf16 %v8347
  %v8364 = vunpack.c.l.bf16 %v8348
  %v8365 = vunpack.c.l.bf16 %v8349
  %v8366 = vunpack.c.l.bf16 %v8350
  %v8367 = vunpack.c.l.bf16 %v8351
  %8369 = vset.pattern.permute.xlu0 0
  %8370 = vperm.xlu0 %8369, %v8320
  %v8371 = vpop.permute.xlu0 %8370
  %8374 = vset.pattern.permute.xlu0 0
  %8375 = vperm.xlu0 %8374, %v8321
  %v8376 = vpop.permute.xlu0 %8375
  %8379 = vset.pattern.permute.xlu0 0
  %8380 = vperm.xlu0 %8379, %v8322
  %v8381 = vpop.permute.xlu0 %8380
  %8384 = vset.pattern.permute.xlu0 0
  %8385 = vperm.xlu0 %8384, %v8323
  %v8386 = vpop.permute.xlu0 %8385
  %8389 = vset.pattern.permute.xlu0 0
  %8390 = vperm.xlu0 %8389, %v8324
  %v8391 = vpop.permute.xlu0 %8390
  %8394 = vset.pattern.permute.xlu0 0
  %8395 = vperm.xlu0 %8394, %v8325
  %v8396 = vpop.permute.xlu0 %8395
  %8399 = vset.pattern.permute.xlu0 0
  %8400 = vperm.xlu0 %8399, %v8326
  %v8401 = vpop.permute.xlu0 %8400
  %8404 = vset.pattern.permute.xlu0 0
  %8405 = vperm.xlu0 %8404, %v8327
  %v8406 = vpop.permute.xlu0 %8405
  %8409 = vset.pattern.permute.xlu0 0
  %8410 = vperm.xlu0 %8409, %v8328
  %v8411 = vpop.permute.xlu0 %8410
  %8414 = vset.pattern.permute.xlu0 0
  %8415 = vperm.xlu0 %8414, %v8329
  %v8416 = vpop.permute.xlu0 %8415
  %8419 = vset.pattern.permute.xlu0 0
  %8420 = vperm.xlu0 %8419, %v8330
  %v8421 = vpop.permute.xlu0 %8420
  %8424 = vset.pattern.permute.xlu0 0
  %8425 = vperm.xlu0 %8424, %v8331
  %v8426 = vpop.permute.xlu0 %8425
  %8429 = vset.pattern.permute.xlu0 0
  %8430 = vperm.xlu0 %8429, %v8332
  %v8431 = vpop.permute.xlu0 %8430
  %8434 = vset.pattern.permute.xlu0 0
  %8435 = vperm.xlu0 %8434, %v8333
  %v8436 = vpop.permute.xlu0 %8435
  %8439 = vset.pattern.permute.xlu0 0
  %8440 = vperm.xlu0 %8439, %v8334
  %v8441 = vpop.permute.xlu0 %8440
  %8444 = vset.pattern.permute.xlu0 0
  %8445 = vperm.xlu0 %8444, %v8335
  %v8446 = vpop.permute.xlu0 %8445
  %v8448 = vmul.f32 %v8352, %v8371
  %v8449 = vmul.f32 %v8353, %v8376
  %v8450 = vmul.f32 %v8354, %v8381
  %v8451 = vmul.f32 %v8355, %v8386
  %v8452 = vmul.f32 %v8356, %v8391
  %v8453 = vmul.f32 %v8357, %v8396
  %v8454 = vmul.f32 %v8358, %v8401
  %v8455 = vmul.f32 %v8359, %v8406
  %v8456 = vmul.f32 %v8360, %v8411
  %v8457 = vmul.f32 %v8361, %v8416
  %v8458 = vmul.f32 %v8362, %v8421
  %v8459 = vmul.f32 %v8363, %v8426
  %v8460 = vmul.f32 %v8364, %v8431
  %v8461 = vmul.f32 %v8365, %v8436
  %v8462 = vmul.f32 %v8366, %v8441
  %v8463 = vmul.f32 %v8367, %v8446
  %v8464 = vsel %vm641, %v8448, 0.0
  %v8465 = vsel %vm641, %v8449, 0.0
  %v8466 = vadd.f32 %v8464, %v8465
  %v8467 = vrot.slane %v8466, 4
  %v8468 = vadd.f32 %v8466, %v8467
  %v8469 = vrot.slane %v8468, 2
  %v8470 = vadd.f32 %v8468, %v8469
  %v8471 = vrot.slane %v8470, 1
  %v8472 = vadd.f32 %v8470, %v8471
  %v8473 = vsel %vm641, %v8450, 0.0
  %v8474 = vsel %vm641, %v8451, 0.0
  %v8475 = vadd.f32 %v8473, %v8474
  %v8476 = vrot.slane %v8475, 4
  %v8477 = vadd.f32 %v8475, %v8476
  %v8478 = vrot.slane %v8477, 2
  %v8479 = vadd.f32 %v8477, %v8478
  %v8480 = vrot.slane %v8479, 1
  %v8481 = vadd.f32 %v8479, %v8480
  %v8482 = vsel %vm641, %v8452, 0.0
  %v8483 = vsel %vm641, %v8453, 0.0
  %v8484 = vadd.f32 %v8482, %v8483
  %v8485 = vrot.slane %v8484, 4
  %v8486 = vadd.f32 %v8484, %v8485
  %v8487 = vrot.slane %v8486, 2
  %v8488 = vadd.f32 %v8486, %v8487
  %v8489 = vrot.slane %v8488, 1
  %v8490 = vadd.f32 %v8488, %v8489
  %v8491 = vsel %vm641, %v8454, 0.0
  %v8492 = vsel %vm641, %v8455, 0.0
  %v8493 = vadd.f32 %v8491, %v8492
  %v8494 = vrot.slane %v8493, 4
  %v8495 = vadd.f32 %v8493, %v8494
  %v8496 = vrot.slane %v8495, 2
  %v8497 = vadd.f32 %v8495, %v8496
  %v8498 = vrot.slane %v8497, 1
  %v8499 = vadd.f32 %v8497, %v8498
  %v8500 = vsel %vm641, %v8456, 0.0
  %v8501 = vsel %vm641, %v8457, 0.0
  %v8502 = vadd.f32 %v8500, %v8501
  %v8503 = vrot.slane %v8502, 4
  %v8504 = vadd.f32 %v8502, %v8503
  %v8505 = vrot.slane %v8504, 2
  %v8506 = vadd.f32 %v8504, %v8505
  %v8507 = vrot.slane %v8506, 1
  %v8508 = vadd.f32 %v8506, %v8507
  %v8509 = vsel %vm641, %v8458, 0.0
  %v8510 = vsel %vm641, %v8459, 0.0
  %v8511 = vadd.f32 %v8509, %v8510
  %v8512 = vrot.slane %v8511, 4
  %v8513 = vadd.f32 %v8511, %v8512
  %v8514 = vrot.slane %v8513, 2
  %v8515 = vadd.f32 %v8513, %v8514
  %v8516 = vrot.slane %v8515, 1
  %v8517 = vadd.f32 %v8515, %v8516
  %v8518 = vsel %vm641, %v8460, 0.0
  %v8519 = vsel %vm641, %v8461, 0.0
  %v8520 = vadd.f32 %v8518, %v8519
  %v8521 = vrot.slane %v8520, 4
  %v8522 = vadd.f32 %v8520, %v8521
  %v8523 = vrot.slane %v8522, 2
  %v8524 = vadd.f32 %v8522, %v8523
  %v8525 = vrot.slane %v8524, 1
  %v8526 = vadd.f32 %v8524, %v8525
  %v8527 = vsel %vm641, %v8462, 0.0
  %v8528 = vsel %vm641, %v8463, 0.0
  %v8529 = vadd.f32 %v8527, %v8528
  %v8530 = vrot.slane %v8529, 4
  %v8531 = vadd.f32 %v8529, %v8530
  %v8532 = vrot.slane %v8531, 2
  %v8533 = vadd.f32 %v8531, %v8532
  %v8534 = vrot.slane %v8533, 1
  %v8535 = vadd.f32 %v8533, %v8534
  %v8536 = vpack.c.bf16 %v8472, %v8472
  %v8537 = vpack.c.bf16 %v8481, %v8481
  %v8538 = vpack.c.bf16 %v8490, %v8490
  %v8539 = vpack.c.bf16 %v8499, %v8499
  %v8540 = vpack.c.bf16 %v8508, %v8508
  %v8541 = vpack.c.bf16 %v8517, %v8517
  %v8542 = vpack.c.bf16 %v8526, %v8526
  %v8543 = vpack.c.bf16 %v8535, %v8535
  %v8552 = vunpack.c.l.b16 %v8536
  %v8553 = vunpack.c.l.b16 %v8537
  %v8554 = vunpack.c.l.b16 %v8538
  %v8555 = vunpack.c.l.b16 %v8539
  %v8556 = vunpack.c.l.b16 %v8540
  %v8557 = vunpack.c.l.b16 %v8541
  %v8558 = vunpack.c.l.b16 %v8542
  %v8559 = vunpack.c.l.b16 %v8543
  %v8560 = vsel %vm296, %v8553, %v8552
  %v8561 = vsel %vm298, %v8554, %v8560
  %v8562 = vsel %vm300, %v8555, %v8561
  %v8563 = vsel %vm302, %v8556, %v8562
  %v8564 = vsel %vm304, %v8557, %v8563
  %v8565 = vsel %vm306, %v8558, %v8564
  %v8566 = vsel %vm308, %v8559, %v8565
  %v8567 = vpack.c.b16 %v8566, %v8566
  %8569 = vst.msk [vmem:[#allocation2] sm:$0xf] %vm747, %v8567
  %8570 = vst [vmem:[#allocation2 + $0x4] sm:$0xf] %v7873
  %s8571 = scalar_lea.vmem %s2, 96
  %v8572 = vld [vmem:[%s8571] sm:$0xff]
  %v8573 = vld [vmem:[%s8571 + $0x8] sm:$0xff]
  %v8574 = vunpack.c.l.bf16 %v8572
  %v8575 = vunpack.c.h.bf16 %v8572
  %v8576 = vunpack.c.l.bf16 %v8573
  %v8577 = vunpack.c.h.bf16 %v8573
  %v8578 = vld [vmem:[#allocation2] sm:$0xff]
  %v8579 = vld [vmem:[%s5] sm:$0xff]
  %v8580 = vld [vmem:[%s5 + $0x8] sm:$0xff]
  %v8581 = vld [vmem:[%s5 + $0x10] sm:$0xff]
  %v8582 = vld [vmem:[%s5 + $0x18] sm:$0xff]
  %v8583 = vld [vmem:[%s5 + $0x20] sm:$0xff]
  %v8584 = vld [vmem:[%s5 + $0x28] sm:$0xff]
  %v8585 = vld [vmem:[%s5 + $0x30] sm:$0xff]
  %v8586 = vld [vmem:[%s5 + $0x38] sm:$0xff]
  %v8587 = vld [vmem:[%s5 + $0x40] sm:$0xff]
  %v8588 = vld [vmem:[%s5 + $0x48] sm:$0xff]
  %v8589 = vld [vmem:[%s5 + $0x50] sm:$0xff]
  %v8590 = vld [vmem:[%s5 + $0x58] sm:$0xff]
  %v8591 = vld [vmem:[%s5 + $0x60] sm:$0xff]
  %v8592 = vld [vmem:[%s5 + $0x68] sm:$0xff]
  %v8593 = vld [vmem:[%s5 + $0x70] sm:$0xff]
  %v8594 = vld [vmem:[%s5 + $0x78] sm:$0xff]
  %v8595 = vld [vmem:[%s5 + $0x80] sm:$0xff]
  %v8596 = vld [vmem:[%s5 + $0x88] sm:$0xff]
  %v8597 = vld [vmem:[%s5 + $0x90] sm:$0xff]
  %v8598 = vld [vmem:[%s5 + $0x98] sm:$0xff]
  %v8599 = vld [vmem:[%s5 + $0xa0] sm:$0xff]
  %v8600 = vld [vmem:[%s5 + $0xa8] sm:$0xff]
  %v8601 = vld [vmem:[%s5 + $0xb0] sm:$0xff]
  %v8602 = vld [vmem:[%s5 + $0xb8] sm:$0xff]
  %v8603 = vld [vmem:[%s5 + $0xc0] sm:$0xff]
  %v8604 = vld [vmem:[%s5 + $0xc8] sm:$0xff]
  %v8605 = vld [vmem:[%s5 + $0xd0] sm:$0xff]
  %v8606 = vld [vmem:[%s5 + $0xd8] sm:$0xff]
  %v8607 = vld [vmem:[%s5 + $0xe0] sm:$0xff]
  %v8608 = vld [vmem:[%s5 + $0xe8] sm:$0xff]
  %v8609 = vld [vmem:[%s5 + $0xf0] sm:$0xff]
  %v8610 = vld [vmem:[%s5 + $0xf8] sm:$0xff]
  %v8611 = vld [vmem:[%s5 + $0x100] sm:$0xff]
  %v8612 = vld [vmem:[%s5 + $0x108] sm:$0xff]
  %v8613 = vld [vmem:[%s5 + $0x110] sm:$0xff]
  %v8614 = vld [vmem:[%s5 + $0x118] sm:$0xff]
  %v8615 = vld [vmem:[%s5 + $0x120] sm:$0xff]
  %v8616 = vld [vmem:[%s5 + $0x128] sm:$0xff]
  %v8617 = vld [vmem:[%s5 + $0x130] sm:$0xff]
  %v8618 = vld [vmem:[%s5 + $0x138] sm:$0xff]
  %v8619 = vld [vmem:[%s5 + $0x140] sm:$0xff]
  %v8620 = vld [vmem:[%s5 + $0x148] sm:$0xff]
  %v8621 = vld [vmem:[%s5 + $0x150] sm:$0xff]
  %v8622 = vld [vmem:[%s5 + $0x158] sm:$0xff]
  %v8623 = vld [vmem:[%s5 + $0x160] sm:$0xff]
  %v8624 = vld [vmem:[%s5 + $0x168] sm:$0xff]
  %v8625 = vld [vmem:[%s5 + $0x170] sm:$0xff]
  %v8626 = vld [vmem:[%s5 + $0x178] sm:$0xff]
  %v8627 = vld [vmem:[%s5 + $0x180] sm:$0xff]
  %v8628 = vld [vmem:[%s5 + $0x188] sm:$0xff]
  %v8629 = vld [vmem:[%s5 + $0x190] sm:$0xff]
  %v8630 = vld [vmem:[%s5 + $0x198] sm:$0xff]
  %v8631 = vld [vmem:[%s5 + $0x1a0] sm:$0xff]
  %v8632 = vld [vmem:[%s5 + $0x1a8] sm:$0xff]
  %v8633 = vld [vmem:[%s5 + $0x1b0] sm:$0xff]
  %v8634 = vld [vmem:[%s5 + $0x1b8] sm:$0xff]
  %v8635 = vld [vmem:[%s5 + $0x1c0] sm:$0xff]
  %v8636 = vld [vmem:[%s5 + $0x1c8] sm:$0xff]
  %v8637 = vld [vmem:[%s5 + $0x1d0] sm:$0xff]
  %v8638 = vld [vmem:[%s5 + $0x1d8] sm:$0xff]
  %v8639 = vld [vmem:[%s5 + $0x1e0] sm:$0xff]
  %v8640 = vld [vmem:[%s5 + $0x1e8] sm:$0xff]
  %v8641 = vld [vmem:[%s5 + $0x1f0] sm:$0xff]
  %v8642 = vld [vmem:[%s5 + $0x1f8] sm:$0xff]
  %v8644 = vunpack.c.l.b16 %v8578
  %v8645 = vunpack.c.h.b16 %v8578
  %v8646 = vpack.c.b16 %v8644, %v8644
  %v8647 = vpack.c.b16 %v8645, %v8645
  %v8714 = vunpack.c.l.b16 %v8579
  %v8715 = vunpack.c.h.b16 %v8579
  %v8716 = vunpack.c.l.b16 %v8580
  %v8717 = vunpack.c.h.b16 %v8580
  %v8718 = vunpack.c.l.b16 %v8581
  %v8719 = vunpack.c.h.b16 %v8581
  %v8720 = vunpack.c.l.b16 %v8582
  %v8721 = vunpack.c.h.b16 %v8582
  %v8722 = vunpack.c.l.b16 %v8583
  %v8723 = vunpack.c.h.b16 %v8583
  %v8724 = vunpack.c.l.b16 %v8584
  %v8725 = vunpack.c.h.b16 %v8584
  %v8726 = vunpack.c.l.b16 %v8585
  %v8727 = vunpack.c.h.b16 %v8585
  %v8728 = vunpack.c.l.b16 %v8586
  %v8729 = vunpack.c.h.b16 %v8586
  %v8730 = vunpack.c.l.b16 %v8587
  %v8731 = vunpack.c.h.b16 %v8587
  %v8732 = vunpack.c.l.b16 %v8588
  %v8733 = vunpack.c.h.b16 %v8588
  %v8734 = vunpack.c.l.b16 %v8589
  %v8735 = vunpack.c.h.b16 %v8589
  %v8736 = vunpack.c.l.b16 %v8590
  %v8737 = vunpack.c.h.b16 %v8590
  %v8738 = vunpack.c.l.b16 %v8591
  %v8739 = vunpack.c.h.b16 %v8591
  %v8740 = vunpack.c.l.b16 %v8592
  %v8741 = vunpack.c.h.b16 %v8592
  %v8742 = vunpack.c.l.b16 %v8593
  %v8743 = vunpack.c.h.b16 %v8593
  %v8744 = vunpack.c.l.b16 %v8594
  %v8745 = vunpack.c.h.b16 %v8594
  %v8746 = vunpack.c.l.b16 %v8595
  %v8747 = vunpack.c.h.b16 %v8595
  %v8748 = vunpack.c.l.b16 %v8596
  %v8749 = vunpack.c.h.b16 %v8596
  %v8750 = vunpack.c.l.b16 %v8597
  %v8751 = vunpack.c.h.b16 %v8597
  %v8752 = vunpack.c.l.b16 %v8598
  %v8753 = vunpack.c.h.b16 %v8598
  %v8754 = vunpack.c.l.b16 %v8599
  %v8755 = vunpack.c.h.b16 %v8599
  %v8756 = vunpack.c.l.b16 %v8600
  %v8757 = vunpack.c.h.b16 %v8600
  %v8758 = vunpack.c.l.b16 %v8601
  %v8759 = vunpack.c.h.b16 %v8601
  %v8760 = vunpack.c.l.b16 %v8602
  %v8761 = vunpack.c.h.b16 %v8602
  %v8762 = vunpack.c.l.b16 %v8603
  %v8763 = vunpack.c.h.b16 %v8603
  %v8764 = vunpack.c.l.b16 %v8604
  %v8765 = vunpack.c.h.b16 %v8604
  %v8766 = vunpack.c.l.b16 %v8605
  %v8767 = vunpack.c.h.b16 %v8605
  %v8768 = vunpack.c.l.b16 %v8606
  %v8769 = vunpack.c.h.b16 %v8606
  %v8770 = vunpack.c.l.b16 %v8607
  %v8771 = vunpack.c.h.b16 %v8607
  %v8772 = vunpack.c.l.b16 %v8608
  %v8773 = vunpack.c.h.b16 %v8608
  %v8774 = vunpack.c.l.b16 %v8609
  %v8775 = vunpack.c.h.b16 %v8609
  %v8776 = vunpack.c.l.b16 %v8610
  %v8777 = vunpack.c.h.b16 %v8610
  %v8778 = vunpack.c.l.b16 %v8611
  %v8779 = vunpack.c.h.b16 %v8611
  %v8780 = vunpack.c.l.b16 %v8612
  %v8781 = vunpack.c.h.b16 %v8612
  %v8782 = vunpack.c.l.b16 %v8613
  %v8783 = vunpack.c.h.b16 %v8613
  %v8784 = vunpack.c.l.b16 %v8614
  %v8785 = vunpack.c.h.b16 %v8614
  %v8786 = vunpack.c.l.b16 %v8615
  %v8787 = vunpack.c.h.b16 %v8615
  %v8788 = vunpack.c.l.b16 %v8616
  %v8789 = vunpack.c.h.b16 %v8616
  %v8790 = vunpack.c.l.b16 %v8617
  %v8791 = vunpack.c.h.b16 %v8617
  %v8792 = vunpack.c.l.b16 %v8618
  %v8793 = vunpack.c.h.b16 %v8618
  %v8794 = vunpack.c.l.b16 %v8619
  %v8795 = vunpack.c.h.b16 %v8619
  %v8796 = vunpack.c.l.b16 %v8620
  %v8797 = vunpack.c.h.b16 %v8620
  %v8798 = vunpack.c.l.b16 %v8621
  %v8799 = vunpack.c.h.b16 %v8621
  %v8800 = vunpack.c.l.b16 %v8622
  %v8801 = vunpack.c.h.b16 %v8622
  %v8802 = vunpack.c.l.b16 %v8623
  %v8803 = vunpack.c.h.b16 %v8623
  %v8804 = vunpack.c.l.b16 %v8624
  %v8805 = vunpack.c.h.b16 %v8624
  %v8806 = vunpack.c.l.b16 %v8625
  %v8807 = vunpack.c.h.b16 %v8625
  %v8808 = vunpack.c.l.b16 %v8626
  %v8809 = vunpack.c.h.b16 %v8626
  %v8810 = vunpack.c.l.b16 %v8627
  %v8811 = vunpack.c.h.b16 %v8627
  %v8812 = vunpack.c.l.b16 %v8628
  %v8813 = vunpack.c.h.b16 %v8628
  %v8814 = vunpack.c.l.b16 %v8629
  %v8815 = vunpack.c.h.b16 %v8629
  %v8816 = vunpack.c.l.b16 %v8630
  %v8817 = vunpack.c.h.b16 %v8630
  %v8818 = vunpack.c.l.b16 %v8631
  %v8819 = vunpack.c.h.b16 %v8631
  %v8820 = vunpack.c.l.b16 %v8632
  %v8821 = vunpack.c.h.b16 %v8632
  %v8822 = vunpack.c.l.b16 %v8633
  %v8823 = vunpack.c.h.b16 %v8633
  %v8824 = vunpack.c.l.b16 %v8634
  %v8825 = vunpack.c.h.b16 %v8634
  %v8826 = vunpack.c.l.b16 %v8635
  %v8827 = vunpack.c.h.b16 %v8635
  %v8828 = vunpack.c.l.b16 %v8636
  %v8829 = vunpack.c.h.b16 %v8636
  %v8830 = vunpack.c.l.b16 %v8637
  %v8831 = vunpack.c.h.b16 %v8637
  %v8832 = vunpack.c.l.b16 %v8638
  %v8833 = vunpack.c.h.b16 %v8638
  %v8834 = vunpack.c.l.b16 %v8639
  %v8835 = vunpack.c.h.b16 %v8639
  %v8836 = vunpack.c.l.b16 %v8640
  %v8837 = vunpack.c.h.b16 %v8640
  %v8838 = vunpack.c.l.b16 %v8641
  %v8839 = vunpack.c.h.b16 %v8641
  %v8840 = vunpack.c.l.b16 %v8642
  %v8841 = vunpack.c.h.b16 %v8642
  %v8842 = vpack.c.b16 %v8718, %v8714
  %v8843 = vpack.c.b16 %v8719, %v8715
  %v8844 = vpack.c.b16 %v8720, %v8716
  %v8845 = vpack.c.b16 %v8721, %v8717
  %v8846 = vpack.c.b16 %v8726, %v8722
  %v8847 = vpack.c.b16 %v8727, %v8723
  %v8848 = vpack.c.b16 %v8728, %v8724
  %v8849 = vpack.c.b16 %v8729, %v8725
  %v8850 = vpack.c.b16 %v8734, %v8730
  %v8851 = vpack.c.b16 %v8735, %v8731
  %v8852 = vpack.c.b16 %v8736, %v8732
  %v8853 = vpack.c.b16 %v8737, %v8733
  %v8854 = vpack.c.b16 %v8742, %v8738
  %v8855 = vpack.c.b16 %v8743, %v8739
  %v8856 = vpack.c.b16 %v8744, %v8740
  %v8857 = vpack.c.b16 %v8745, %v8741
  %v8858 = vpack.c.b16 %v8750, %v8746
  %v8859 = vpack.c.b16 %v8751, %v8747
  %v8860 = vpack.c.b16 %v8752, %v8748
  %v8861 = vpack.c.b16 %v8753, %v8749
  %v8862 = vpack.c.b16 %v8758, %v8754
  %v8863 = vpack.c.b16 %v8759, %v8755
  %v8864 = vpack.c.b16 %v8760, %v8756
  %v8865 = vpack.c.b16 %v8761, %v8757
  %v8866 = vpack.c.b16 %v8766, %v8762
  %v8867 = vpack.c.b16 %v8767, %v8763
  %v8868 = vpack.c.b16 %v8768, %v8764
  %v8869 = vpack.c.b16 %v8769, %v8765
  %v8870 = vpack.c.b16 %v8774, %v8770
  %v8871 = vpack.c.b16 %v8775, %v8771
  %v8872 = vpack.c.b16 %v8776, %v8772
  %v8873 = vpack.c.b16 %v8777, %v8773
  %v8874 = vpack.c.b16 %v8782, %v8778
  %v8875 = vpack.c.b16 %v8783, %v8779
  %v8876 = vpack.c.b16 %v8784, %v8780
  %v8877 = vpack.c.b16 %v8785, %v8781
  %v8878 = vpack.c.b16 %v8790, %v8786
  %v8879 = vpack.c.b16 %v8791, %v8787
  %v8880 = vpack.c.b16 %v8792, %v8788
  %v8881 = vpack.c.b16 %v8793, %v8789
  %v8882 = vpack.c.b16 %v8798, %v8794
  %v8883 = vpack.c.b16 %v8799, %v8795
  %v8884 = vpack.c.b16 %v8800, %v8796
  %v8885 = vpack.c.b16 %v8801, %v8797
  %v8886 = vpack.c.b16 %v8806, %v8802
  %v8887 = vpack.c.b16 %v8807, %v8803
  %v8888 = vpack.c.b16 %v8808, %v8804
  %v8889 = vpack.c.b16 %v8809, %v8805
  %v8890 = vpack.c.b16 %v8814, %v8810
  %v8891 = vpack.c.b16 %v8815, %v8811
  %v8892 = vpack.c.b16 %v8816, %v8812
  %v8893 = vpack.c.b16 %v8817, %v8813
  %v8894 = vpack.c.b16 %v8822, %v8818
  %v8895 = vpack.c.b16 %v8823, %v8819
  %v8896 = vpack.c.b16 %v8824, %v8820
  %v8897 = vpack.c.b16 %v8825, %v8821
  %v8898 = vpack.c.b16 %v8830, %v8826
  %v8899 = vpack.c.b16 %v8831, %v8827
  %v8900 = vpack.c.b16 %v8832, %v8828
  %v8901 = vpack.c.b16 %v8833, %v8829
  %v8902 = vpack.c.b16 %v8838, %v8834
  %v8903 = vpack.c.b16 %v8839, %v8835
  %v8904 = vpack.c.b16 %v8840, %v8836
  %v8905 = vpack.c.b16 %v8841, %v8837
  %8970 = vmatpush.bf16.msra.mxu0 %v8870
  %8971 = vmatpush.bf16.msra.mxu0 %v8866
  %8972 = vmatpush.bf16.msra.mxu0 %v8862
  %8973 = vmatpush.bf16.msra.mxu0 %v8858
  %8974 = vmatpush.bf16.msra.mxu0 %v8854
  %8975 = vmatpush.bf16.msra.mxu0 %v8850
  %8976 = vmatpush.bf16.msra.mxu0 %v8846
  %8977 = vmatpush.bf16.msra.mxu0 %v8842
  %8978 = vmatmul.bf16.gmra.mxu0 %v8646
  %v8979 = vpop.f32.mrf.mxu0
  %v8980 = vadd.f32 0.0, %v8979
  %v8981 = vpop.f32.mrf.mxu0
  %8982 = vdwg.mxu0
  %8983 = vmatpush.bf16.msra.mxu0 %v8902
  %8984 = vmatpush.bf16.msra.mxu0 %v8898
  %8985 = vmatpush.bf16.msra.mxu0 %v8894
  %8986 = vmatpush.bf16.msra.mxu0 %v8890
  %8987 = vmatpush.bf16.msra.mxu0 %v8886
  %8988 = vmatpush.bf16.msra.mxu0 %v8882
  %8989 = vmatpush.bf16.msra.mxu0 %v8878
  %8990 = vmatpush.bf16.msra.mxu0 %v8874
  %8991 = vmatmul.bf16.gmra.mxu0 %v8647
  %v8992 = vpop.f32.mrf.mxu0
  %v8993 = vadd.f32 %v8980, %v8992
  %v8994 = vpop.f32.mrf.mxu0
  %8995 = vdwg.mxu0
  %8996 = vmatpush.bf16.msra.mxu0 %v8871
  %8997 = vmatpush.bf16.msra.mxu0 %v8867
  %8998 = vmatpush.bf16.msra.mxu0 %v8863
  %8999 = vmatpush.bf16.msra.mxu0 %v8859
  %9000 = vmatpush.bf16.msra.mxu0 %v8855
  %9001 = vmatpush.bf16.msra.mxu0 %v8851
  %9002 = vmatpush.bf16.msra.mxu0 %v8847
  %9003 = vmatpush.bf16.msra.mxu0 %v8843
  %9004 = vmatmul.bf16.gmra.mxu0 %v8646
  %v9005 = vpop.f32.mrf.mxu0
  %v9006 = vadd.f32 0.0, %v9005
  %v9007 = vpop.f32.mrf.mxu0
  %9008 = vdwg.mxu0
  %9009 = vmatpush.bf16.msra.mxu0 %v8903
  %9010 = vmatpush.bf16.msra.mxu0 %v8899
  %9011 = vmatpush.bf16.msra.mxu0 %v8895
  %9012 = vmatpush.bf16.msra.mxu0 %v8891
  %9013 = vmatpush.bf16.msra.mxu0 %v8887
  %9014 = vmatpush.bf16.msra.mxu0 %v8883
  %9015 = vmatpush.bf16.msra.mxu0 %v8879
  %9016 = vmatpush.bf16.msra.mxu0 %v8875
  %9017 = vmatmul.bf16.gmra.mxu0 %v8647
  %v9018 = vpop.f32.mrf.mxu0
  %v9019 = vadd.f32 %v9006, %v9018
  %v9020 = vpop.f32.mrf.mxu0
  %9021 = vdwg.mxu0
  %9022 = vmatpush.bf16.msra.mxu0 %v8872
  %9023 = vmatpush.bf16.msra.mxu0 %v8868
  %9024 = vmatpush.bf16.msra.mxu0 %v8864
  %9025 = vmatpush.bf16.msra.mxu0 %v8860
  %9026 = vmatpush.bf16.msra.mxu0 %v8856
  %9027 = vmatpush.bf16.msra.mxu0 %v8852
  %9028 = vmatpush.bf16.msra.mxu0 %v8848
  %9029 = vmatpush.bf16.msra.mxu0 %v8844
  %9030 = vmatmul.bf16.gmra.mxu0 %v8646
  %v9031 = vpop.f32.mrf.mxu0
  %v9032 = vadd.f32 0.0, %v9031
  %v9033 = vpop.f32.mrf.mxu0
  %9034 = vdwg.mxu0
  %9035 = vmatpush.bf16.msra.mxu0 %v8904
  %9036 = vmatpush.bf16.msra.mxu0 %v8900
  %9037 = vmatpush.bf16.msra.mxu0 %v8896
  %9038 = vmatpush.bf16.msra.mxu0 %v8892
  %9039 = vmatpush.bf16.msra.mxu0 %v8888
  %9040 = vmatpush.bf16.msra.mxu0 %v8884
  %9041 = vmatpush.bf16.msra.mxu0 %v8880
  %9042 = vmatpush.bf16.msra.mxu0 %v8876
  %9043 = vmatmul.bf16.gmra.mxu0 %v8647
  %v9044 = vpop.f32.mrf.mxu0
  %v9045 = vadd.f32 %v9032, %v9044
  %v9046 = vpop.f32.mrf.mxu0
  %9047 = vdwg.mxu0
  %9048 = vmatpush.bf16.msra.mxu0 %v8873
  %9049 = vmatpush.bf16.msra.mxu0 %v8869
  %9050 = vmatpush.bf16.msra.mxu0 %v8865
  %9051 = vmatpush.bf16.msra.mxu0 %v8861
  %9052 = vmatpush.bf16.msra.mxu0 %v8857
  %9053 = vmatpush.bf16.msra.mxu0 %v8853
  %9054 = vmatpush.bf16.msra.mxu0 %v8849
  %9055 = vmatpush.bf16.msra.mxu0 %v8845
  %9056 = vmatmul.bf16.gmra.mxu0 %v8646
  %v9057 = vpop.f32.mrf.mxu0
  %v9058 = vadd.f32 0.0, %v9057
  %v9059 = vpop.f32.mrf.mxu0
  %9060 = vdwg.mxu0
  %9061 = vmatpush.bf16.msra.mxu0 %v8905
  %9062 = vmatpush.bf16.msra.mxu0 %v8901
  %9063 = vmatpush.bf16.msra.mxu0 %v8897
  %9064 = vmatpush.bf16.msra.mxu0 %v8893
  %9065 = vmatpush.bf16.msra.mxu0 %v8889
  %9066 = vmatpush.bf16.msra.mxu0 %v8885
  %9067 = vmatpush.bf16.msra.mxu0 %v8881
  %9068 = vmatpush.bf16.msra.mxu0 %v8877
  %9069 = vmatmul.bf16.gmra.mxu0 %v8647
  %v9070 = vpop.f32.mrf.mxu0
  %v9071 = vadd.f32 %v9058, %v9070
  %v9072 = vpop.f32.mrf.mxu0
  %9073 = vdwg.mxu0
  %v9074 = vadd.f32 %v8574, %v8993
  %v9075 = vadd.f32 %v8575, %v9019
  %v9076 = vadd.f32 %v8576, %v9045
  %v9077 = vadd.f32 %v8577, %v9071
  %v9078 = vxor.u32 %v9074, 2147483648
  %v9079 = vmul.f32 %v9078, 1.442695
  %v9080 = vpow.pop %v9079
  %v9081 = vadd.f32 %v9080, 1.0
  %v9082 = vrcp.pop %v9081
  %v9083 = vmul.f32 %v9081, %v9082
  %v9084 = vsub.f32 1.0, %v9083
  %v9085 = vmul.f32 %v9082, %v9084
  %v9086 = vadd.f32 %v9082, %v9085
  %vm9087 = vweird.f32 %v9081
  %vm9088 = vweird.f32 %v9082
  %vm9089 = vmor %vm9087, %vm9088
  %v9090 = vsel %vm9089, %v9082, %v9086
  %v9091 = vand.u32 2147483647, %v9081
  %vm9092 = vcmp.eq.f32.partialorder %v9091, 8.507059e+37
  %v9093 = vand.u32 %v9081, 2147483648
  %v9094 = vor.u32 1.1754944e-38, %v9093
  %v9095 = vsel %vm9092, %v9094, %v9090
  %v9096 = vmul.f32 1.0, %v9095
  %v9097 = vxor.u32 %v9075, 2147483648
  %v9098 = vmul.f32 %v9097, 1.442695
  %v9099 = vpow.pop %v9098
  %v9100 = vadd.f32 %v9099, 1.0
  %v9101 = vrcp.pop %v9100
  %v9102 = vmul.f32 %v9100, %v9101
  %v9103 = vsub.f32 1.0, %v9102
  %v9104 = vmul.f32 %v9101, %v9103
  %v9105 = vadd.f32 %v9101, %v9104
  %vm9106 = vweird.f32 %v9100
  %vm9107 = vweird.f32 %v9101
  %vm9108 = vmor %vm9106, %vm9107
  %v9109 = vsel %vm9108, %v9101, %v9105
  %v9110 = vand.u32 2147483647, %v9100
  %vm9111 = vcmp.eq.f32.partialorder %v9110, 8.507059e+37
  %v9112 = vand.u32 %v9100, 2147483648
  %v9113 = vor.u32 1.1754944e-38, %v9112
  %v9114 = vsel %vm9111, %v9113, %v9109
  %v9115 = vmul.f32 1.0, %v9114
  %v9116 = vtanh.pop %v9076
  %v9117 = vxor.u32 %v9077, 2147483648
  %v9118 = vmul.f32 %v9117, 1.442695
  %v9119 = vpow.pop %v9118
  %v9120 = vadd.f32 %v9119, 1.0
  %v9121 = vrcp.pop %v9120
  %v9122 = vmul.f32 %v9120, %v9121
  %v9123 = vsub.f32 1.0, %v9122
  %v9124 = vmul.f32 %v9121, %v9123
  %v9125 = vadd.f32 %v9121, %v9124
  %vm9126 = vweird.f32 %v9120
  %vm9127 = vweird.f32 %v9121
  %vm9128 = vmor %vm9126, %vm9127
  %v9129 = vsel %vm9128, %v9121, %v9125
  %v9130 = vand.u32 2147483647, %v9120
  %vm9131 = vcmp.eq.f32.partialorder %v9130, 8.507059e+37
  %v9132 = vand.u32 %v9120, 2147483648
  %v9133 = vor.u32 1.1754944e-38, %v9132
  %v9134 = vsel %vm9131, %v9133, %v9129
  %v9135 = vmul.f32 1.0, %v9134
  %v9136 = vmul.f32 %v9115, %v7834
  %v9137 = vmul.f32 %v9096, %v9116
  %v9138 = vadd.f32 %v9136, %v9137
  %v9139 = vtanh.pop %v9138
  %v9140 = vmul.f32 %v9135, %v9139
  %s9141 = scalar_lea.vmem %s6, 48
  %9142 = vst [vmem:[%s9141] sm:$0xff] %v9140
  %v9143 = vperm.slane %v8371, %v269
  %v9144 = vperm.slane %v8376, %v271
  %v9145 = vsel %vm273, %v9144, %v9143
  %v9146 = vperm.slane %v8381, %v269
  %v9147 = vperm.slane %v8386, %v271
  %v9148 = vsel %vm273, %v9147, %v9146
  %v9149 = vperm.slane %v8391, %v269
  %v9150 = vperm.slane %v8396, %v271
  %v9151 = vsel %vm273, %v9150, %v9149
  %v9152 = vperm.slane %v8401, %v269
  %v9153 = vperm.slane %v8406, %v271
  %v9154 = vsel %vm273, %v9153, %v9152
  %v9155 = vperm.slane %v8411, %v269
  %v9156 = vperm.slane %v8416, %v271
  %v9157 = vsel %vm273, %v9156, %v9155
  %v9158 = vperm.slane %v8421, %v269
  %v9159 = vperm.slane %v8426, %v271
  %v9160 = vsel %vm273, %v9159, %v9158
  %v9161 = vperm.slane %v8431, %v269
  %v9162 = vperm.slane %v8436, %v271
  %v9163 = vsel %vm273, %v9162, %v9161
  %v9164 = vperm.slane %v8441, %v269
  %v9165 = vperm.slane %v8446, %v271
  %v9166 = vsel %vm273, %v9165, %v9164
  %v9167 = vsel %vm296, %v9148, %v9145
  %v9168 = vsel %vm298, %v9151, %v9167
  %v9169 = vsel %vm300, %v9154, %v9168
  %v9170 = vsel %vm302, %v9157, %v9169
  %v9171 = vsel %vm304, %v9160, %v9170
  %v9172 = vsel %vm306, %v9163, %v9171
  %v9173 = vsel %vm308, %v9166, %v9172
  %s9175 = scalar_lea.vmem %s7, 48
  %9176 = vst.msk [vmem:[%s9175] sm:$0xff] %vm311, %v9173
  %v9177 = vpack.c.bf16 %v9140, %v9140
  %v9178 = vld [vmem:[%s3] sm:$0xf]
  %v9179 = vld [vmem:[%s3 + $0x4] sm:$0xf]
  %v9180 = vld [vmem:[%s3 + $0x8] sm:$0xf]
  %v9181 = vld [vmem:[%s3 + $0xc] sm:$0xf]
  %v9182 = vld [vmem:[%s3 + $0x10] sm:$0xf]
  %v9183 = vld [vmem:[%s3 + $0x14] sm:$0xf]
  %v9184 = vld [vmem:[%s3 + $0x18] sm:$0xf]
  %v9185 = vld [vmem:[%s3 + $0x1c] sm:$0xf]
  %v9186 = vld [vmem:[%s3 + $0x20] sm:$0xf]
  %v9187 = vld [vmem:[%s3 + $0x24] sm:$0xf]
  %v9188 = vld [vmem:[%s3 + $0x28] sm:$0xf]
  %v9189 = vld [vmem:[%s3 + $0x2c] sm:$0xf]
  %v9190 = vld [vmem:[%s3 + $0x30] sm:$0xf]
  %v9191 = vld [vmem:[%s3 + $0x34] sm:$0xf]
  %v9192 = vld [vmem:[%s3 + $0x38] sm:$0xf]
  %v9193 = vld [vmem:[%s3 + $0x3c] sm:$0xf]
  %v9210 = vunpack.c.l.b16 %v9178
  %v9211 = vunpack.c.l.b16 %v9179
  %v9212 = vunpack.c.l.b16 %v9180
  %v9213 = vunpack.c.l.b16 %v9181
  %v9214 = vunpack.c.l.b16 %v9182
  %v9215 = vunpack.c.l.b16 %v9183
  %v9216 = vunpack.c.l.b16 %v9184
  %v9217 = vunpack.c.l.b16 %v9185
  %v9218 = vunpack.c.l.b16 %v9186
  %v9219 = vunpack.c.l.b16 %v9187
  %v9220 = vunpack.c.l.b16 %v9188
  %v9221 = vunpack.c.l.b16 %v9189
  %v9222 = vunpack.c.l.b16 %v9190
  %v9223 = vunpack.c.l.b16 %v9191
  %v9224 = vunpack.c.l.b16 %v9192
  %v9225 = vunpack.c.l.b16 %v9193
  %v9226 = vpack.c.b16 %v9211, %v9210
  %v9227 = vpack.c.b16 %v9213, %v9212
  %v9228 = vpack.c.b16 %v9215, %v9214
  %v9229 = vpack.c.b16 %v9217, %v9216
  %v9230 = vpack.c.b16 %v9219, %v9218
  %v9231 = vpack.c.b16 %v9221, %v9220
  %v9232 = vpack.c.b16 %v9223, %v9222
  %v9233 = vpack.c.b16 %v9225, %v9224
  %9242 = vmatpush.bf16.msra.mxu0 %v9233
  %9243 = vmatpush.bf16.msra.mxu0 %v9232
  %9244 = vmatpush.bf16.msra.mxu0 %v9231
  %9245 = vmatpush.bf16.msra.mxu0 %v9230
  %9246 = vmatpush.bf16.msra.mxu0 %v9229
  %9247 = vmatpush.bf16.msra.mxu0 %v9228
  %9248 = vmatpush.bf16.msra.mxu0 %v9227
  %9249 = vmatpush.bf16.msra.mxu0 %v9226
  %9250 = vmatmul.bf16.gmra.mxu0 %v9177
  %v9251 = vpop.f32.mrf.mxu0
  %v9252 = vadd.f32 0.0, %v9251
  %v9253 = vpop.f32.mrf.mxu0
  %9254 = vdwg.mxu0
  %v9255 = vld [vmem:[%s0] sm:$0xf]
  %v9256 = vld [vmem:[%s0 + $0x4] sm:$0xf]
  %v9257 = vld [vmem:[%s0 + $0x8] sm:$0xf]
  %v9258 = vld [vmem:[%s0 + $0xc] sm:$0xf]
  %v9259 = vld [vmem:[%s0 + $0x10] sm:$0xf]
  %v9260 = vld [vmem:[%s0 + $0x14] sm:$0xf]
  %v9261 = vld [vmem:[%s0 + $0x18] sm:$0xf]
  %v9262 = vld [vmem:[%s0 + $0x1c] sm:$0xf]
  %v9263 = vld [vmem:[%s0 + $0x20] sm:$0xf]
  %v9264 = vld [vmem:[%s0 + $0x24] sm:$0xf]
  %v9265 = vld [vmem:[%s0 + $0x28] sm:$0xf]
  %v9266 = vld [vmem:[%s0 + $0x2c] sm:$0xf]
  %v9267 = vld [vmem:[%s0 + $0x30] sm:$0xf]
  %v9268 = vld [vmem:[%s0 + $0x34] sm:$0xf]
  %v9269 = vld [vmem:[%s0 + $0x38] sm:$0xf]
  %v9270 = vld [vmem:[%s0 + $0x3c] sm:$0xf]
  %v9271 = vunpack.c.l.bf16 %v9255
  %v9272 = vunpack.c.l.bf16 %v9256
  %v9273 = vunpack.c.l.bf16 %v9257
  %v9274 = vunpack.c.l.bf16 %v9258
  %v9275 = vunpack.c.l.bf16 %v9259
  %v9276 = vunpack.c.l.bf16 %v9260
  %v9277 = vunpack.c.l.bf16 %v9261
  %v9278 = vunpack.c.l.bf16 %v9262
  %v9279 = vunpack.c.l.bf16 %v9263
  %v9280 = vunpack.c.l.bf16 %v9264
  %v9281 = vunpack.c.l.bf16 %v9265
  %v9282 = vunpack.c.l.bf16 %v9266
  %v9283 = vunpack.c.l.bf16 %v9267
  %v9284 = vunpack.c.l.bf16 %v9268
  %v9285 = vunpack.c.l.bf16 %v9269
  %v9286 = vunpack.c.l.bf16 %v9270
  %v9288 = vrot.slane %v9252, 1
  %v9289 = vrot.slane %v9252, 2
  %v9290 = vrot.slane %v9252, 3
  %v9291 = vrot.slane %v9252, 4
  %v9292 = vrot.slane %v9252, 5
  %v9293 = vrot.slane %v9252, 6
  %v9294 = vrot.slane %v9252, 7
  %v9295 = vperm.slane %v9252, 0
  %v9296 = vperm.slane %v9288, 0
  %v9297 = vperm.slane %v9289, 0
  %v9298 = vperm.slane %v9290, 0
  %v9299 = vperm.slane %v9291, 0
  %v9300 = vperm.slane %v9292, 0
  %v9301 = vperm.slane %v9293, 0
  %v9302 = vperm.slane %v9294, 0
  %v9311 = vadd.f32 %v9271, %v9295
  %v9312 = vadd.f32 %v9272, %v9295
  %v9313 = vadd.f32 %v9273, %v9296
  %v9314 = vadd.f32 %v9274, %v9296
  %v9315 = vadd.f32 %v9275, %v9297
  %v9316 = vadd.f32 %v9276, %v9297
  %v9317 = vadd.f32 %v9277, %v9298
  %v9318 = vadd.f32 %v9278, %v9298
  %v9319 = vadd.f32 %v9279, %v9299
  %v9320 = vadd.f32 %v9280, %v9299
  %v9321 = vadd.f32 %v9281, %v9300
  %v9322 = vadd.f32 %v9282, %v9300
  %v9323 = vadd.f32 %v9283, %v9301
  %v9324 = vadd.f32 %v9284, %v9301
  %v9325 = vadd.f32 %v9285, %v9302
  %v9326 = vadd.f32 %v9286, %v9302
  %v9327 = vtanh.pop %v9311
  %v9328 = vtanh.pop %v9312
  %v9329 = vtanh.pop %v9313
  %v9330 = vtanh.pop %v9314
  %v9331 = vtanh.pop %v9315
  %v9332 = vtanh.pop %v9316
  %v9333 = vtanh.pop %v9317
  %v9334 = vtanh.pop %v9318
  %v9335 = vtanh.pop %v9319
  %v9336 = vtanh.pop %v9320
  %v9337 = vtanh.pop %v9321
  %v9338 = vtanh.pop %v9322
  %v9339 = vtanh.pop %v9323
  %v9340 = vtanh.pop %v9324
  %v9341 = vtanh.pop %v9325
  %v9342 = vtanh.pop %v9326
  %v9343 = vmul.f32 %v9327, %v37
  %v9344 = vmul.f32 %v9328, %v37
  %v9345 = vmul.f32 %v9329, %v37
  %v9346 = vmul.f32 %v9330, %v37
  %v9347 = vmul.f32 %v9331, %v37
  %v9348 = vmul.f32 %v9332, %v37
  %v9349 = vmul.f32 %v9333, %v37
  %v9350 = vmul.f32 %v9334, %v37
  %v9351 = vmul.f32 %v9335, %v37
  %v9352 = vmul.f32 %v9336, %v37
  %v9353 = vmul.f32 %v9337, %v37
  %v9354 = vmul.f32 %v9338, %v37
  %v9355 = vmul.f32 %v9339, %v37
  %v9356 = vmul.f32 %v9340, %v37
  %v9357 = vmul.f32 %v9341, %v37
  %v9358 = vmul.f32 %v9342, %v37
  %9359 = vadd.xlane.f32.xlu0 %v9343
  %v9360 = vpop.xlane.xlu0 %9359
  %9361 = vadd.xlane.f32.xlu0 %v9344
  %v9362 = vpop.xlane.xlu0 %9361
  %9363 = vadd.xlane.f32.xlu0 %v9345
  %v9364 = vpop.xlane.xlu0 %9363
  %9365 = vadd.xlane.f32.xlu0 %v9346
  %v9366 = vpop.xlane.xlu0 %9365
  %9367 = vadd.xlane.f32.xlu0 %v9347
  %v9368 = vpop.xlane.xlu0 %9367
  %9369 = vadd.xlane.f32.xlu0 %v9348
  %v9370 = vpop.xlane.xlu0 %9369
  %9371 = vadd.xlane.f32.xlu0 %v9349
  %v9372 = vpop.xlane.xlu0 %9371
  %9373 = vadd.xlane.f32.xlu0 %v9350
  %v9374 = vpop.xlane.xlu0 %9373
  %9375 = vadd.xlane.f32.xlu0 %v9351
  %v9376 = vpop.xlane.xlu0 %9375
  %9377 = vadd.xlane.f32.xlu0 %v9352
  %v9378 = vpop.xlane.xlu0 %9377
  %9379 = vadd.xlane.f32.xlu0 %v9353
  %v9380 = vpop.xlane.xlu0 %9379
  %9381 = vadd.xlane.f32.xlu0 %v9354
  %v9382 = vpop.xlane.xlu0 %9381
  %9383 = vadd.xlane.f32.xlu0 %v9355
  %v9384 = vpop.xlane.xlu0 %9383
  %9385 = vadd.xlane.f32.xlu0 %v9356
  %v9386 = vpop.xlane.xlu0 %9385
  %9387 = vadd.xlane.f32.xlu0 %v9357
  %v9388 = vpop.xlane.xlu0 %9387
  %9389 = vadd.xlane.f32.xlu0 %v9358
  %v9390 = vpop.xlane.xlu0 %9389
  %v9407 = vperm.slane %v9360, %v269
  %v9408 = vperm.slane %v9362, %v271
  %v9409 = vsel %vm273, %v9408, %v9407
  %v9410 = vperm.slane %v9364, %v269
  %v9411 = vperm.slane %v9366, %v271
  %v9412 = vsel %vm273, %v9411, %v9410
  %v9413 = vperm.slane %v9368, %v269
  %v9414 = vperm.slane %v9370, %v271
  %v9415 = vsel %vm273, %v9414, %v9413
  %v9416 = vperm.slane %v9372, %v269
  %v9417 = vperm.slane %v9374, %v271
  %v9418 = vsel %vm273, %v9417, %v9416
  %v9419 = vperm.slane %v9376, %v269
  %v9420 = vperm.slane %v9378, %v271
  %v9421 = vsel %vm273, %v9420, %v9419
  %v9422 = vperm.slane %v9380, %v269
  %v9423 = vperm.slane %v9382, %v271
  %v9424 = vsel %vm273, %v9423, %v9422
  %v9425 = vperm.slane %v9384, %v269
  %v9426 = vperm.slane %v9386, %v271
  %v9427 = vsel %vm273, %v9426, %v9425
  %v9428 = vperm.slane %v9388, %v269
  %v9429 = vperm.slane %v9390, %v271
  %v9430 = vsel %vm273, %v9429, %v9428
  %v9431 = vsel %vm296, %v9412, %v9409
  %v9432 = vsel %vm298, %v9415, %v9431
  %v9433 = vsel %vm300, %v9418, %v9432
  %v9434 = vsel %vm302, %v9421, %v9433
  %v9435 = vsel %vm304, %v9424, %v9434
  %v9436 = vsel %vm306, %v9427, %v9435
  %v9437 = vsel %vm308, %v9430, %v9436
  %v9439 = vsel %vm311, %v9437, -inf
  %9440 = vmax.xlane.f32.xlu0 %v9439
  %v9441 = vpop.xlane.xlu0 %9440
  %v9443 = vperm.slane %v9441, 0
  %v9444 = vperm.slane %v9441, 1
  %v9445 = vperm.slane %v9441, 2
  %v9446 = vperm.slane %v9441, 3
  %v9447 = vperm.slane %v9441, 4
  %v9448 = vperm.slane %v9441, 5
  %v9449 = vperm.slane %v9441, 6
  %v9450 = vperm.slane %v9441, 7
  %v9459 = vsub.f32 %v9360, %v9443
  %v9460 = vsub.f32 %v9362, %v9443
  %v9461 = vsub.f32 %v9364, %v9444
  %v9462 = vsub.f32 %v9366, %v9444
  %v9463 = vsub.f32 %v9368, %v9445
  %v9464 = vsub.f32 %v9370, %v9445
  %v9465 = vsub.f32 %v9372, %v9446
  %v9466 = vsub.f32 %v9374, %v9446
  %v9467 = vsub.f32 %v9376, %v9447
  %v9468 = vsub.f32 %v9378, %v9447
  %v9469 = vsub.f32 %v9380, %v9448
  %v9470 = vsub.f32 %v9382, %v9448
  %v9471 = vsub.f32 %v9384, %v9449
  %v9472 = vsub.f32 %v9386, %v9449
  %v9473 = vsub.f32 %v9388, %v9450
  %v9474 = vsub.f32 %v9390, %v9450
  %v9475 = vmul.f32 %v9459, 1.442695
  %v9476 = vpow.pop %v9475
  %v9477 = vmul.f32 %v9460, 1.442695
  %v9478 = vpow.pop %v9477
  %v9479 = vmul.f32 %v9461, 1.442695
  %v9480 = vpow.pop %v9479
  %v9481 = vmul.f32 %v9462, 1.442695
  %v9482 = vpow.pop %v9481
  %v9483 = vmul.f32 %v9463, 1.442695
  %v9484 = vpow.pop %v9483
  %v9485 = vmul.f32 %v9464, 1.442695
  %v9486 = vpow.pop %v9485
  %v9487 = vmul.f32 %v9465, 1.442695
  %v9488 = vpow.pop %v9487
  %v9489 = vmul.f32 %v9466, 1.442695
  %v9490 = vpow.pop %v9489
  %v9491 = vmul.f32 %v9467, 1.442695
  %v9492 = vpow.pop %v9491
  %v9493 = vmul.f32 %v9468, 1.442695
  %v9494 = vpow.pop %v9493
  %v9495 = vmul.f32 %v9469, 1.442695
  %v9496 = vpow.pop %v9495
  %v9497 = vmul.f32 %v9470, 1.442695
  %v9498 = vpow.pop %v9497
  %v9499 = vmul.f32 %v9471, 1.442695
  %v9500 = vpow.pop %v9499
  %v9501 = vmul.f32 %v9472, 1.442695
  %v9502 = vpow.pop %v9501
  %v9503 = vmul.f32 %v9473, 1.442695
  %v9504 = vpow.pop %v9503
  %v9505 = vmul.f32 %v9474, 1.442695
  %v9506 = vpow.pop %v9505
  %9523 = vset.pattern.permute.xlu0 0
  %9524 = vperm.xlu0 %9523, %v9476
  %v9525 = vpop.permute.xlu0 %9524
  %9526 = vset.pattern.permute.xlu0 0
  %9527 = vperm.xlu0 %9526, %v9478
  %v9528 = vpop.permute.xlu0 %9527
  %9529 = vset.pattern.permute.xlu0 0
  %9530 = vperm.xlu0 %9529, %v9480
  %v9531 = vpop.permute.xlu0 %9530
  %9532 = vset.pattern.permute.xlu0 0
  %9533 = vperm.xlu0 %9532, %v9482
  %v9534 = vpop.permute.xlu0 %9533
  %9535 = vset.pattern.permute.xlu0 0
  %9536 = vperm.xlu0 %9535, %v9484
  %v9537 = vpop.permute.xlu0 %9536
  %9538 = vset.pattern.permute.xlu0 0
  %9539 = vperm.xlu0 %9538, %v9486
  %v9540 = vpop.permute.xlu0 %9539
  %9541 = vset.pattern.permute.xlu0 0
  %9542 = vperm.xlu0 %9541, %v9488
  %v9543 = vpop.permute.xlu0 %9542
  %9544 = vset.pattern.permute.xlu0 0
  %9545 = vperm.xlu0 %9544, %v9490
  %v9546 = vpop.permute.xlu0 %9545
  %9547 = vset.pattern.permute.xlu0 0
  %9548 = vperm.xlu0 %9547, %v9492
  %v9549 = vpop.permute.xlu0 %9548
  %9550 = vset.pattern.permute.xlu0 0
  %9551 = vperm.xlu0 %9550, %v9494
  %v9552 = vpop.permute.xlu0 %9551
  %9553 = vset.pattern.permute.xlu0 0
  %9554 = vperm.xlu0 %9553, %v9496
  %v9555 = vpop.permute.xlu0 %9554
  %9556 = vset.pattern.permute.xlu0 0
  %9557 = vperm.xlu0 %9556, %v9498
  %v9558 = vpop.permute.xlu0 %9557
  %9559 = vset.pattern.permute.xlu0 0
  %9560 = vperm.xlu0 %9559, %v9500
  %v9561 = vpop.permute.xlu0 %9560
  %9562 = vset.pattern.permute.xlu0 0
  %9563 = vperm.xlu0 %9562, %v9502
  %v9564 = vpop.permute.xlu0 %9563
  %9565 = vset.pattern.permute.xlu0 0
  %9566 = vperm.xlu0 %9565, %v9504
  %v9567 = vpop.permute.xlu0 %9566
  %9568 = vset.pattern.permute.xlu0 0
  %9569 = vperm.xlu0 %9568, %v9506
  %v9570 = vpop.permute.xlu0 %9569
  %v9571 = vperm.slane %v9525, %v269
  %v9572 = vperm.slane %v9528, %v271
  %v9573 = vsel %vm273, %v9572, %v9571
  %v9574 = vperm.slane %v9531, %v269
  %v9575 = vperm.slane %v9534, %v271
  %v9576 = vsel %vm273, %v9575, %v9574
  %v9577 = vperm.slane %v9537, %v269
  %v9578 = vperm.slane %v9540, %v271
  %v9579 = vsel %vm273, %v9578, %v9577
  %v9580 = vperm.slane %v9543, %v269
  %v9581 = vperm.slane %v9546, %v271
  %v9582 = vsel %vm273, %v9581, %v9580
  %v9583 = vperm.slane %v9549, %v269
  %v9584 = vperm.slane %v9552, %v271
  %v9585 = vsel %vm273, %v9584, %v9583
  %v9586 = vperm.slane %v9555, %v269
  %v9587 = vperm.slane %v9558, %v271
  %v9588 = vsel %vm273, %v9587, %v9586
  %v9589 = vperm.slane %v9561, %v269
  %v9590 = vperm.slane %v9564, %v271
  %v9591 = vsel %vm273, %v9590, %v9589
  %v9592 = vperm.slane %v9567, %v269
  %v9593 = vperm.slane %v9570, %v271
  %v9594 = vsel %vm273, %v9593, %v9592
  %v9595 = vsel %vm296, %v9576, %v9573
  %v9596 = vsel %vm298, %v9579, %v9595
  %v9597 = vsel %vm300, %v9582, %v9596
  %v9598 = vsel %vm302, %v9585, %v9597
  %v9599 = vsel %vm304, %v9588, %v9598
  %v9600 = vsel %vm306, %v9591, %v9599
  %v9601 = vsel %vm308, %v9594, %v9600
  %v9603 = vsel %vm311, %v9601, 0.0
  %9604 = vadd.xlane.f32.xlu0 %v9603
  %v9605 = vpop.xlane.xlu0 %9604
  %v9606 = vrcp.pop %v9605
  %v9608 = vperm.slane %v9606, 0
  %v9609 = vperm.slane %v9606, 1
  %v9610 = vperm.slane %v9606, 2
  %v9611 = vperm.slane %v9606, 3
  %v9612 = vperm.slane %v9606, 4
  %v9613 = vperm.slane %v9606, 5
  %v9614 = vperm.slane %v9606, 6
  %v9615 = vperm.slane %v9606, 7
  %v9624 = vmul.f32 %v9476, %v9608
  %v9625 = vmul.f32 %v9478, %v9608
  %v9626 = vmul.f32 %v9480, %v9609
  %v9627 = vmul.f32 %v9482, %v9609
  %v9628 = vmul.f32 %v9484, %v9610
  %v9629 = vmul.f32 %v9486, %v9610
  %v9630 = vmul.f32 %v9488, %v9611
  %v9631 = vmul.f32 %v9490, %v9611
  %v9632 = vmul.f32 %v9492, %v9612
  %v9633 = vmul.f32 %v9494, %v9612
  %v9634 = vmul.f32 %v9496, %v9613
  %v9635 = vmul.f32 %v9498, %v9613
  %v9636 = vmul.f32 %v9500, %v9614
  %v9637 = vmul.f32 %v9502, %v9614
  %v9638 = vmul.f32 %v9504, %v9615
  %v9639 = vmul.f32 %v9506, %v9615
  %v9640 = vld [vmem:[%s1] sm:$0xf]
  %v9641 = vld [vmem:[%s1 + $0x4] sm:$0xf]
  %v9642 = vld [vmem:[%s1 + $0x8] sm:$0xf]
  %v9643 = vld [vmem:[%s1 + $0xc] sm:$0xf]
  %v9644 = vld [vmem:[%s1 + $0x10] sm:$0xf]
  %v9645 = vld [vmem:[%s1 + $0x14] sm:$0xf]
  %v9646 = vld [vmem:[%s1 + $0x18] sm:$0xf]
  %v9647 = vld [vmem:[%s1 + $0x1c] sm:$0xf]
  %v9648 = vld [vmem:[%s1 + $0x20] sm:$0xf]
  %v9649 = vld [vmem:[%s1 + $0x24] sm:$0xf]
  %v9650 = vld [vmem:[%s1 + $0x28] sm:$0xf]
  %v9651 = vld [vmem:[%s1 + $0x2c] sm:$0xf]
  %v9652 = vld [vmem:[%s1 + $0x30] sm:$0xf]
  %v9653 = vld [vmem:[%s1 + $0x34] sm:$0xf]
  %v9654 = vld [vmem:[%s1 + $0x38] sm:$0xf]
  %v9655 = vld [vmem:[%s1 + $0x3c] sm:$0xf]
  %v9656 = vunpack.c.l.bf16 %v9640
  %v9657 = vunpack.c.l.bf16 %v9641
  %v9658 = vunpack.c.l.bf16 %v9642
  %v9659 = vunpack.c.l.bf16 %v9643
  %v9660 = vunpack.c.l.bf16 %v9644
  %v9661 = vunpack.c.l.bf16 %v9645
  %v9662 = vunpack.c.l.bf16 %v9646
  %v9663 = vunpack.c.l.bf16 %v9647
  %v9664 = vunpack.c.l.bf16 %v9648
  %v9665 = vunpack.c.l.bf16 %v9649
  %v9666 = vunpack.c.l.bf16 %v9650
  %v9667 = vunpack.c.l.bf16 %v9651
  %v9668 = vunpack.c.l.bf16 %v9652
  %v9669 = vunpack.c.l.bf16 %v9653
  %v9670 = vunpack.c.l.bf16 %v9654
  %v9671 = vunpack.c.l.bf16 %v9655
  %9673 = vset.pattern.permute.xlu0 0
  %9674 = vperm.xlu0 %9673, %v9624
  %v9675 = vpop.permute.xlu0 %9674
  %9678 = vset.pattern.permute.xlu0 0
  %9679 = vperm.xlu0 %9678, %v9625
  %v9680 = vpop.permute.xlu0 %9679
  %9683 = vset.pattern.permute.xlu0 0
  %9684 = vperm.xlu0 %9683, %v9626
  %v9685 = vpop.permute.xlu0 %9684
  %9688 = vset.pattern.permute.xlu0 0
  %9689 = vperm.xlu0 %9688, %v9627
  %v9690 = vpop.permute.xlu0 %9689
  %9693 = vset.pattern.permute.xlu0 0
  %9694 = vperm.xlu0 %9693, %v9628
  %v9695 = vpop.permute.xlu0 %9694
  %9698 = vset.pattern.permute.xlu0 0
  %9699 = vperm.xlu0 %9698, %v9629
  %v9700 = vpop.permute.xlu0 %9699
  %9703 = vset.pattern.permute.xlu0 0
  %9704 = vperm.xlu0 %9703, %v9630
  %v9705 = vpop.permute.xlu0 %9704
  %9708 = vset.pattern.permute.xlu0 0
  %9709 = vperm.xlu0 %9708, %v9631
  %v9710 = vpop.permute.xlu0 %9709
  %9713 = vset.pattern.permute.xlu0 0
  %9714 = vperm.xlu0 %9713, %v9632
  %v9715 = vpop.permute.xlu0 %9714
  %9718 = vset.pattern.permute.xlu0 0
  %9719 = vperm.xlu0 %9718, %v9633
  %v9720 = vpop.permute.xlu0 %9719
  %9723 = vset.pattern.permute.xlu0 0
  %9724 = vperm.xlu0 %9723, %v9634
  %v9725 = vpop.permute.xlu0 %9724
  %9728 = vset.pattern.permute.xlu0 0
  %9729 = vperm.xlu0 %9728, %v9635
  %v9730 = vpop.permute.xlu0 %9729
  %9733 = vset.pattern.permute.xlu0 0
  %9734 = vperm.xlu0 %9733, %v9636
  %v9735 = vpop.permute.xlu0 %9734
  %9738 = vset.pattern.permute.xlu0 0
  %9739 = vperm.xlu0 %9738, %v9637
  %v9740 = vpop.permute.xlu0 %9739
  %9743 = vset.pattern.permute.xlu0 0
  %9744 = vperm.xlu0 %9743, %v9638
  %v9745 = vpop.permute.xlu0 %9744
  %9748 = vset.pattern.permute.xlu0 0
  %9749 = vperm.xlu0 %9748, %v9639
  %v9750 = vpop.permute.xlu0 %9749
  %v9752 = vmul.f32 %v9656, %v9675
  %v9753 = vmul.f32 %v9657, %v9680
  %v9754 = vmul.f32 %v9658, %v9685
  %v9755 = vmul.f32 %v9659, %v9690
  %v9756 = vmul.f32 %v9660, %v9695
  %v9757 = vmul.f32 %v9661, %v9700
  %v9758 = vmul.f32 %v9662, %v9705
  %v9759 = vmul.f32 %v9663, %v9710
  %v9760 = vmul.f32 %v9664, %v9715
  %v9761 = vmul.f32 %v9665, %v9720
  %v9762 = vmul.f32 %v9666, %v9725
  %v9763 = vmul.f32 %v9667, %v9730
  %v9764 = vmul.f32 %v9668, %v9735
  %v9765 = vmul.f32 %v9669, %v9740
  %v9766 = vmul.f32 %v9670, %v9745
  %v9767 = vmul.f32 %v9671, %v9750
  %v9768 = vsel %vm641, %v9752, 0.0
  %v9769 = vsel %vm641, %v9753, 0.0
  %v9770 = vadd.f32 %v9768, %v9769
  %v9771 = vrot.slane %v9770, 4
  %v9772 = vadd.f32 %v9770, %v9771
  %v9773 = vrot.slane %v9772, 2
  %v9774 = vadd.f32 %v9772, %v9773
  %v9775 = vrot.slane %v9774, 1
  %v9776 = vadd.f32 %v9774, %v9775
  %v9777 = vsel %vm641, %v9754, 0.0
  %v9778 = vsel %vm641, %v9755, 0.0
  %v9779 = vadd.f32 %v9777, %v9778
  %v9780 = vrot.slane %v9779, 4
  %v9781 = vadd.f32 %v9779, %v9780
  %v9782 = vrot.slane %v9781, 2
  %v9783 = vadd.f32 %v9781, %v9782
  %v9784 = vrot.slane %v9783, 1
  %v9785 = vadd.f32 %v9783, %v9784
  %v9786 = vsel %vm641, %v9756, 0.0
  %v9787 = vsel %vm641, %v9757, 0.0
  %v9788 = vadd.f32 %v9786, %v9787
  %v9789 = vrot.slane %v9788, 4
  %v9790 = vadd.f32 %v9788, %v9789
  %v9791 = vrot.slane %v9790, 2
  %v9792 = vadd.f32 %v9790, %v9791
  %v9793 = vrot.slane %v9792, 1
  %v9794 = vadd.f32 %v9792, %v9793
  %v9795 = vsel %vm641, %v9758, 0.0
  %v9796 = vsel %vm641, %v9759, 0.0
  %v9797 = vadd.f32 %v9795, %v9796
  %v9798 = vrot.slane %v9797, 4
  %v9799 = vadd.f32 %v9797, %v9798
  %v9800 = vrot.slane %v9799, 2
  %v9801 = vadd.f32 %v9799, %v9800
  %v9802 = vrot.slane %v9801, 1
  %v9803 = vadd.f32 %v9801, %v9802
  %v9804 = vsel %vm641, %v9760, 0.0
  %v9805 = vsel %vm641, %v9761, 0.0
  %v9806 = vadd.f32 %v9804, %v9805
  %v9807 = vrot.slane %v9806, 4
  %v9808 = vadd.f32 %v9806, %v9807
  %v9809 = vrot.slane %v9808, 2
  %v9810 = vadd.f32 %v9808, %v9809
  %v9811 = vrot.slane %v9810, 1
  %v9812 = vadd.f32 %v9810, %v9811
  %v9813 = vsel %vm641, %v9762, 0.0
  %v9814 = vsel %vm641, %v9763, 0.0
  %v9815 = vadd.f32 %v9813, %v9814
  %v9816 = vrot.slane %v9815, 4
  %v9817 = vadd.f32 %v9815, %v9816
  %v9818 = vrot.slane %v9817, 2
  %v9819 = vadd.f32 %v9817, %v9818
  %v9820 = vrot.slane %v9819, 1
  %v9821 = vadd.f32 %v9819, %v9820
  %v9822 = vsel %vm641, %v9764, 0.0
  %v9823 = vsel %vm641, %v9765, 0.0
  %v9824 = vadd.f32 %v9822, %v9823
  %v9825 = vrot.slane %v9824, 4
  %v9826 = vadd.f32 %v9824, %v9825
  %v9827 = vrot.slane %v9826, 2
  %v9828 = vadd.f32 %v9826, %v9827
  %v9829 = vrot.slane %v9828, 1
  %v9830 = vadd.f32 %v9828, %v9829
  %v9831 = vsel %vm641, %v9766, 0.0
  %v9832 = vsel %vm641, %v9767, 0.0
  %v9833 = vadd.f32 %v9831, %v9832
  %v9834 = vrot.slane %v9833, 4
  %v9835 = vadd.f32 %v9833, %v9834
  %v9836 = vrot.slane %v9835, 2
  %v9837 = vadd.f32 %v9835, %v9836
  %v9838 = vrot.slane %v9837, 1
  %v9839 = vadd.f32 %v9837, %v9838
  %v9840 = vpack.c.bf16 %v9776, %v9776
  %v9841 = vpack.c.bf16 %v9785, %v9785
  %v9842 = vpack.c.bf16 %v9794, %v9794
  %v9843 = vpack.c.bf16 %v9803, %v9803
  %v9844 = vpack.c.bf16 %v9812, %v9812
  %v9845 = vpack.c.bf16 %v9821, %v9821
  %v9846 = vpack.c.bf16 %v9830, %v9830
  %v9847 = vpack.c.bf16 %v9839, %v9839
  %v9856 = vunpack.c.l.b16 %v9840
  %v9857 = vunpack.c.l.b16 %v9841
  %v9858 = vunpack.c.l.b16 %v9842
  %v9859 = vunpack.c.l.b16 %v9843
  %v9860 = vunpack.c.l.b16 %v9844
  %v9861 = vunpack.c.l.b16 %v9845
  %v9862 = vunpack.c.l.b16 %v9846
  %v9863 = vunpack.c.l.b16 %v9847
  %v9864 = vsel %vm296, %v9857, %v9856
  %v9865 = vsel %vm298, %v9858, %v9864
  %v9866 = vsel %vm300, %v9859, %v9865
  %v9867 = vsel %vm302, %v9860, %v9866
  %v9868 = vsel %vm304, %v9861, %v9867
  %v9869 = vsel %vm306, %v9862, %v9868
  %v9870 = vsel %vm308, %v9863, %v9869
  %v9871 = vpack.c.b16 %v9870, %v9870
  %9873 = vst.msk [vmem:[#allocation2] sm:$0xf] %vm747, %v9871
  %9874 = vst [vmem:[#allocation2 + $0x4] sm:$0xf] %v9177
  %s9875 = scalar_lea.vmem %s2, 112
  %v9876 = vld [vmem:[%s9875] sm:$0xff]
  %v9877 = vld [vmem:[%s9875 + $0x8] sm:$0xff]
  %v9878 = vunpack.c.l.bf16 %v9876
  %v9879 = vunpack.c.h.bf16 %v9876
  %v9880 = vunpack.c.l.bf16 %v9877
  %v9881 = vunpack.c.h.bf16 %v9877
  %v9882 = vld [vmem:[#allocation2] sm:$0xff]
  %v9883 = vld [vmem:[%s5] sm:$0xff]
  %v9884 = vld [vmem:[%s5 + $0x8] sm:$0xff]
  %v9885 = vld [vmem:[%s5 + $0x10] sm:$0xff]
  %v9886 = vld [vmem:[%s5 + $0x18] sm:$0xff]
  %v9887 = vld [vmem:[%s5 + $0x20] sm:$0xff]
  %v9888 = vld [vmem:[%s5 + $0x28] sm:$0xff]
  %v9889 = vld [vmem:[%s5 + $0x30] sm:$0xff]
  %v9890 = vld [vmem:[%s5 + $0x38] sm:$0xff]
  %v9891 = vld [vmem:[%s5 + $0x40] sm:$0xff]
  %v9892 = vld [vmem:[%s5 + $0x48] sm:$0xff]
  %v9893 = vld [vmem:[%s5 + $0x50] sm:$0xff]
  %v9894 = vld [vmem:[%s5 + $0x58] sm:$0xff]
  %v9895 = vld [vmem:[%s5 + $0x60] sm:$0xff]
  %v9896 = vld [vmem:[%s5 + $0x68] sm:$0xff]
  %v9897 = vld [vmem:[%s5 + $0x70] sm:$0xff]
  %v9898 = vld [vmem:[%s5 + $0x78] sm:$0xff]
  %v9899 = vld [vmem:[%s5 + $0x80] sm:$0xff]
  %v9900 = vld [vmem:[%s5 + $0x88] sm:$0xff]
  %v9901 = vld [vmem:[%s5 + $0x90] sm:$0xff]
  %v9902 = vld [vmem:[%s5 + $0x98] sm:$0xff]
  %v9903 = vld [vmem:[%s5 + $0xa0] sm:$0xff]
  %v9904 = vld [vmem:[%s5 + $0xa8] sm:$0xff]
  %v9905 = vld [vmem:[%s5 + $0xb0] sm:$0xff]
  %v9906 = vld [vmem:[%s5 + $0xb8] sm:$0xff]
  %v9907 = vld [vmem:[%s5 + $0xc0] sm:$0xff]
  %v9908 = vld [vmem:[%s5 + $0xc8] sm:$0xff]
  %v9909 = vld [vmem:[%s5 + $0xd0] sm:$0xff]
  %v9910 = vld [vmem:[%s5 + $0xd8] sm:$0xff]
  %v9911 = vld [vmem:[%s5 + $0xe0] sm:$0xff]
  %v9912 = vld [vmem:[%s5 + $0xe8] sm:$0xff]
  %v9913 = vld [vmem:[%s5 + $0xf0] sm:$0xff]
  %v9914 = vld [vmem:[%s5 + $0xf8] sm:$0xff]
  %v9915 = vld [vmem:[%s5 + $0x100] sm:$0xff]
  %v9916 = vld [vmem:[%s5 + $0x108] sm:$0xff]
  %v9917 = vld [vmem:[%s5 + $0x110] sm:$0xff]
  %v9918 = vld [vmem:[%s5 + $0x118] sm:$0xff]
  %v9919 = vld [vmem:[%s5 + $0x120] sm:$0xff]
  %v9920 = vld [vmem:[%s5 + $0x128] sm:$0xff]
  %v9921 = vld [vmem:[%s5 + $0x130] sm:$0xff]
  %v9922 = vld [vmem:[%s5 + $0x138] sm:$0xff]
  %v9923 = vld [vmem:[%s5 + $0x140] sm:$0xff]
  %v9924 = vld [vmem:[%s5 + $0x148] sm:$0xff]
  %v9925 = vld [vmem:[%s5 + $0x150] sm:$0xff]
  %v9926 = vld [vmem:[%s5 + $0x158] sm:$0xff]
  %v9927 = vld [vmem:[%s5 + $0x160] sm:$0xff]
  %v9928 = vld [vmem:[%s5 + $0x168] sm:$0xff]
  %v9929 = vld [vmem:[%s5 + $0x170] sm:$0xff]
  %v9930 = vld [vmem:[%s5 + $0x178] sm:$0xff]
  %v9931 = vld [vmem:[%s5 + $0x180] sm:$0xff]
  %v9932 = vld [vmem:[%s5 + $0x188] sm:$0xff]
  %v9933 = vld [vmem:[%s5 + $0x190] sm:$0xff]
  %v9934 = vld [vmem:[%s5 + $0x198] sm:$0xff]
  %v9935 = vld [vmem:[%s5 + $0x1a0] sm:$0xff]
  %v9936 = vld [vmem:[%s5 + $0x1a8] sm:$0xff]
  %v9937 = vld [vmem:[%s5 + $0x1b0] sm:$0xff]
  %v9938 = vld [vmem:[%s5 + $0x1b8] sm:$0xff]
  %v9939 = vld [vmem:[%s5 + $0x1c0] sm:$0xff]
  %v9940 = vld [vmem:[%s5 + $0x1c8] sm:$0xff]
  %v9941 = vld [vmem:[%s5 + $0x1d0] sm:$0xff]
  %v9942 = vld [vmem:[%s5 + $0x1d8] sm:$0xff]
  %v9943 = vld [vmem:[%s5 + $0x1e0] sm:$0xff]
  %v9944 = vld [vmem:[%s5 + $0x1e8] sm:$0xff]
  %v9945 = vld [vmem:[%s5 + $0x1f0] sm:$0xff]
  %v9946 = vld [vmem:[%s5 + $0x1f8] sm:$0xff]
  %v9948 = vunpack.c.l.b16 %v9882
  %v9949 = vunpack.c.h.b16 %v9882
  %v9950 = vpack.c.b16 %v9948, %v9948
  %v9951 = vpack.c.b16 %v9949, %v9949
  %v10018 = vunpack.c.l.b16 %v9883
  %v10019 = vunpack.c.h.b16 %v9883
  %v10020 = vunpack.c.l.b16 %v9884
  %v10021 = vunpack.c.h.b16 %v9884
  %v10022 = vunpack.c.l.b16 %v9885
  %v10023 = vunpack.c.h.b16 %v9885
  %v10024 = vunpack.c.l.b16 %v9886
  %v10025 = vunpack.c.h.b16 %v9886
  %v10026 = vunpack.c.l.b16 %v9887
  %v10027 = vunpack.c.h.b16 %v9887
  %v10028 = vunpack.c.l.b16 %v9888
  %v10029 = vunpack.c.h.b16 %v9888
  %v10030 = vunpack.c.l.b16 %v9889
  %v10031 = vunpack.c.h.b16 %v9889
  %v10032 = vunpack.c.l.b16 %v9890
  %v10033 = vunpack.c.h.b16 %v9890
  %v10034 = vunpack.c.l.b16 %v9891
  %v10035 = vunpack.c.h.b16 %v9891
  %v10036 = vunpack.c.l.b16 %v9892
  %v10037 = vunpack.c.h.b16 %v9892
  %v10038 = vunpack.c.l.b16 %v9893
  %v10039 = vunpack.c.h.b16 %v9893
  %v10040 = vunpack.c.l.b16 %v9894
  %v10041 = vunpack.c.h.b16 %v9894
  %v10042 = vunpack.c.l.b16 %v9895
  %v10043 = vunpack.c.h.b16 %v9895
  %v10044 = vunpack.c.l.b16 %v9896
  %v10045 = vunpack.c.h.b16 %v9896
  %v10046 = vunpack.c.l.b16 %v9897
  %v10047 = vunpack.c.h.b16 %v9897
  %v10048 = vunpack.c.l.b16 %v9898
  %v10049 = vunpack.c.h.b16 %v9898
  %v10050 = vunpack.c.l.b16 %v9899
  %v10051 = vunpack.c.h.b16 %v9899
  %v10052 = vunpack.c.l.b16 %v9900
  %v10053 = vunpack.c.h.b16 %v9900
  %v10054 = vunpack.c.l.b16 %v9901
  %v10055 = vunpack.c.h.b16 %v9901
  %v10056 = vunpack.c.l.b16 %v9902
  %v10057 = vunpack.c.h.b16 %v9902
  %v10058 = vunpack.c.l.b16 %v9903
  %v10059 = vunpack.c.h.b16 %v9903
  %v10060 = vunpack.c.l.b16 %v9904
  %v10061 = vunpack.c.h.b16 %v9904
  %v10062 = vunpack.c.l.b16 %v9905
  %v10063 = vunpack.c.h.b16 %v9905
  %v10064 = vunpack.c.l.b16 %v9906
  %v10065 = vunpack.c.h.b16 %v9906
  %v10066 = vunpack.c.l.b16 %v9907
  %v10067 = vunpack.c.h.b16 %v9907
  %v10068 = vunpack.c.l.b16 %v9908
  %v10069 = vunpack.c.h.b16 %v9908
  %v10070 = vunpack.c.l.b16 %v9909
  %v10071 = vunpack.c.h.b16 %v9909
  %v10072 = vunpack.c.l.b16 %v9910
  %v10073 = vunpack.c.h.b16 %v9910
  %v10074 = vunpack.c.l.b16 %v9911
  %v10075 = vunpack.c.h.b16 %v9911
  %v10076 = vunpack.c.l.b16 %v9912
  %v10077 = vunpack.c.h.b16 %v9912
  %v10078 = vunpack.c.l.b16 %v9913
  %v10079 = vunpack.c.h.b16 %v9913
  %v10080 = vunpack.c.l.b16 %v9914
  %v10081 = vunpack.c.h.b16 %v9914
  %v10082 = vunpack.c.l.b16 %v9915
  %v10083 = vunpack.c.h.b16 %v9915
  %v10084 = vunpack.c.l.b16 %v9916
  %v10085 = vunpack.c.h.b16 %v9916
  %v10086 = vunpack.c.l.b16 %v9917
  %v10087 = vunpack.c.h.b16 %v9917
  %v10088 = vunpack.c.l.b16 %v9918
  %v10089 = vunpack.c.h.b16 %v9918
  %v10090 = vunpack.c.l.b16 %v9919
  %v10091 = vunpack.c.h.b16 %v9919
  %v10092 = vunpack.c.l.b16 %v9920
  %v10093 = vunpack.c.h.b16 %v9920
  %v10094 = vunpack.c.l.b16 %v9921
  %v10095 = vunpack.c.h.b16 %v9921
  %v10096 = vunpack.c.l.b16 %v9922
  %v10097 = vunpack.c.h.b16 %v9922
  %v10098 = vunpack.c.l.b16 %v9923
  %v10099 = vunpack.c.h.b16 %v9923
  %v10100 = vunpack.c.l.b16 %v9924
  %v10101 = vunpack.c.h.b16 %v9924
  %v10102 = vunpack.c.l.b16 %v9925
  %v10103 = vunpack.c.h.b16 %v9925
  %v10104 = vunpack.c.l.b16 %v9926
  %v10105 = vunpack.c.h.b16 %v9926
  %v10106 = vunpack.c.l.b16 %v9927
  %v10107 = vunpack.c.h.b16 %v9927
  %v10108 = vunpack.c.l.b16 %v9928
  %v10109 = vunpack.c.h.b16 %v9928
  %v10110 = vunpack.c.l.b16 %v9929
  %v10111 = vunpack.c.h.b16 %v9929
  %v10112 = vunpack.c.l.b16 %v9930
  %v10113 = vunpack.c.h.b16 %v9930
  %v10114 = vunpack.c.l.b16 %v9931
  %v10115 = vunpack.c.h.b16 %v9931
  %v10116 = vunpack.c.l.b16 %v9932
  %v10117 = vunpack.c.h.b16 %v9932
  %v10118 = vunpack.c.l.b16 %v9933
  %v10119 = vunpack.c.h.b16 %v9933
  %v10120 = vunpack.c.l.b16 %v9934
  %v10121 = vunpack.c.h.b16 %v9934
  %v10122 = vunpack.c.l.b16 %v9935
  %v10123 = vunpack.c.h.b16 %v9935
  %v10124 = vunpack.c.l.b16 %v9936
  %v10125 = vunpack.c.h.b16 %v9936
  %v10126 = vunpack.c.l.b16 %v9937
  %v10127 = vunpack.c.h.b16 %v9937
  %v10128 = vunpack.c.l.b16 %v9938
  %v10129 = vunpack.c.h.b16 %v9938
  %v10130 = vunpack.c.l.b16 %v9939
  %v10131 = vunpack.c.h.b16 %v9939
  %v10132 = vunpack.c.l.b16 %v9940
  %v10133 = vunpack.c.h.b16 %v9940
  %v10134 = vunpack.c.l.b16 %v9941
  %v10135 = vunpack.c.h.b16 %v9941
  %v10136 = vunpack.c.l.b16 %v9942
  %v10137 = vunpack.c.h.b16 %v9942
  %v10138 = vunpack.c.l.b16 %v9943
  %v10139 = vunpack.c.h.b16 %v9943
  %v10140 = vunpack.c.l.b16 %v9944
  %v10141 = vunpack.c.h.b16 %v9944
  %v10142 = vunpack.c.l.b16 %v9945
  %v10143 = vunpack.c.h.b16 %v9945
  %v10144 = vunpack.c.l.b16 %v9946
  %v10145 = vunpack.c.h.b16 %v9946
  %v10146 = vpack.c.b16 %v10022, %v10018
  %v10147 = vpack.c.b16 %v10023, %v10019
  %v10148 = vpack.c.b16 %v10024, %v10020
  %v10149 = vpack.c.b16 %v10025, %v10021
  %v10150 = vpack.c.b16 %v10030, %v10026
  %v10151 = vpack.c.b16 %v10031, %v10027
  %v10152 = vpack.c.b16 %v10032, %v10028
  %v10153 = vpack.c.b16 %v10033, %v10029
  %v10154 = vpack.c.b16 %v10038, %v10034
  %v10155 = vpack.c.b16 %v10039, %v10035
  %v10156 = vpack.c.b16 %v10040, %v10036
  %v10157 = vpack.c.b16 %v10041, %v10037
  %v10158 = vpack.c.b16 %v10046, %v10042
  %v10159 = vpack.c.b16 %v10047, %v10043
  %v10160 = vpack.c.b16 %v10048, %v10044
  %v10161 = vpack.c.b16 %v10049, %v10045
  %v10162 = vpack.c.b16 %v10054, %v10050
  %v10163 = vpack.c.b16 %v10055, %v10051
  %v10164 = vpack.c.b16 %v10056, %v10052
  %v10165 = vpack.c.b16 %v10057, %v10053
  %v10166 = vpack.c.b16 %v10062, %v10058
  %v10167 = vpack.c.b16 %v10063, %v10059
  %v10168 = vpack.c.b16 %v10064, %v10060
  %v10169 = vpack.c.b16 %v10065, %v10061
  %v10170 = vpack.c.b16 %v10070, %v10066
  %v10171 = vpack.c.b16 %v10071, %v10067
  %v10172 = vpack.c.b16 %v10072, %v10068
  %v10173 = vpack.c.b16 %v10073, %v10069
  %v10174 = vpack.c.b16 %v10078, %v10074
  %v10175 = vpack.c.b16 %v10079, %v10075
  %v10176 = vpack.c.b16 %v10080, %v10076
  %v10177 = vpack.c.b16 %v10081, %v10077
  %v10178 = vpack.c.b16 %v10086, %v10082
  %v10179 = vpack.c.b16 %v10087, %v10083
  %v10180 = vpack.c.b16 %v10088, %v10084
  %v10181 = vpack.c.b16 %v10089, %v10085
  %v10182 = vpack.c.b16 %v10094, %v10090
  %v10183 = vpack.c.b16 %v10095, %v10091
  %v10184 = vpack.c.b16 %v10096, %v10092
  %v10185 = vpack.c.b16 %v10097, %v10093
  %v10186 = vpack.c.b16 %v10102, %v10098
  %v10187 = vpack.c.b16 %v10103, %v10099
  %v10188 = vpack.c.b16 %v10104, %v10100
  %v10189 = vpack.c.b16 %v10105, %v10101
  %v10190 = vpack.c.b16 %v10110, %v10106
  %v10191 = vpack.c.b16 %v10111, %v10107
  %v10192 = vpack.c.b16 %v10112, %v10108
  %v10193 = vpack.c.b16 %v10113, %v10109
  %v10194 = vpack.c.b16 %v10118, %v10114
  %v10195 = vpack.c.b16 %v10119, %v10115
  %v10196 = vpack.c.b16 %v10120, %v10116
  %v10197 = vpack.c.b16 %v10121, %v10117
  %v10198 = vpack.c.b16 %v10126, %v10122
  %v10199 = vpack.c.b16 %v10127, %v10123
  %v10200 = vpack.c.b16 %v10128, %v10124
  %v10201 = vpack.c.b16 %v10129, %v10125
  %v10202 = vpack.c.b16 %v10134, %v10130
  %v10203 = vpack.c.b16 %v10135, %v10131
  %v10204 = vpack.c.b16 %v10136, %v10132
  %v10205 = vpack.c.b16 %v10137, %v10133
  %v10206 = vpack.c.b16 %v10142, %v10138
  %v10207 = vpack.c.b16 %v10143, %v10139
  %v10208 = vpack.c.b16 %v10144, %v10140
  %v10209 = vpack.c.b16 %v10145, %v10141
  %10274 = vmatpush.bf16.msra.mxu0 %v10174
  %10275 = vmatpush.bf16.msra.mxu0 %v10170
  %10276 = vmatpush.bf16.msra.mxu0 %v10166
  %10277 = vmatpush.bf16.msra.mxu0 %v10162
  %10278 = vmatpush.bf16.msra.mxu0 %v10158
  %10279 = vmatpush.bf16.msra.mxu0 %v10154
  %10280 = vmatpush.bf16.msra.mxu0 %v10150
  %10281 = vmatpush.bf16.msra.mxu0 %v10146
  %10282 = vmatmul.bf16.gmra.mxu0 %v9950
  %v10283 = vpop.f32.mrf.mxu0
  %v10284 = vadd.f32 0.0, %v10283
  %v10285 = vpop.f32.mrf.mxu0
  %10286 = vdwg.mxu0
  %10287 = vmatpush.bf16.msra.mxu0 %v10206
  %10288 = vmatpush.bf16.msra.mxu0 %v10202
  %10289 = vmatpush.bf16.msra.mxu0 %v10198
  %10290 = vmatpush.bf16.msra.mxu0 %v10194
  %10291 = vmatpush.bf16.msra.mxu0 %v10190
  %10292 = vmatpush.bf16.msra.mxu0 %v10186
  %10293 = vmatpush.bf16.msra.mxu0 %v10182
  %10294 = vmatpush.bf16.msra.mxu0 %v10178
  %10295 = vmatmul.bf16.gmra.mxu0 %v9951
  %v10296 = vpop.f32.mrf.mxu0
  %v10297 = vadd.f32 %v10284, %v10296
  %v10298 = vpop.f32.mrf.mxu0
  %10299 = vdwg.mxu0
  %10300 = vmatpush.bf16.msra.mxu0 %v10175
  %10301 = vmatpush.bf16.msra.mxu0 %v10171
  %10302 = vmatpush.bf16.msra.mxu0 %v10167
  %10303 = vmatpush.bf16.msra.mxu0 %v10163
  %10304 = vmatpush.bf16.msra.mxu0 %v10159
  %10305 = vmatpush.bf16.msra.mxu0 %v10155
  %10306 = vmatpush.bf16.msra.mxu0 %v10151
  %10307 = vmatpush.bf16.msra.mxu0 %v10147
  %10308 = vmatmul.bf16.gmra.mxu0 %v9950
  %v10309 = vpop.f32.mrf.mxu0
  %v10310 = vadd.f32 0.0, %v10309
  %v10311 = vpop.f32.mrf.mxu0
  %10312 = vdwg.mxu0
  %10313 = vmatpush.bf16.msra.mxu0 %v10207
  %10314 = vmatpush.bf16.msra.mxu0 %v10203
  %10315 = vmatpush.bf16.msra.mxu0 %v10199
  %10316 = vmatpush.bf16.msra.mxu0 %v10195
  %10317 = vmatpush.bf16.msra.mxu0 %v10191
  %10318 = vmatpush.bf16.msra.mxu0 %v10187
  %10319 = vmatpush.bf16.msra.mxu0 %v10183
  %10320 = vmatpush.bf16.msra.mxu0 %v10179
  %10321 = vmatmul.bf16.gmra.mxu0 %v9951
  %v10322 = vpop.f32.mrf.mxu0
  %v10323 = vadd.f32 %v10310, %v10322
  %v10324 = vpop.f32.mrf.mxu0
  %10325 = vdwg.mxu0
  %10326 = vmatpush.bf16.msra.mxu0 %v10176
  %10327 = vmatpush.bf16.msra.mxu0 %v10172
  %10328 = vmatpush.bf16.msra.mxu0 %v10168
  %10329 = vmatpush.bf16.msra.mxu0 %v10164
  %10330 = vmatpush.bf16.msra.mxu0 %v10160
  %10331 = vmatpush.bf16.msra.mxu0 %v10156
  %10332 = vmatpush.bf16.msra.mxu0 %v10152
  %10333 = vmatpush.bf16.msra.mxu0 %v10148
  %10334 = vmatmul.bf16.gmra.mxu0 %v9950
  %v10335 = vpop.f32.mrf.mxu0
  %v10336 = vadd.f32 0.0, %v10335
  %v10337 = vpop.f32.mrf.mxu0
  %10338 = vdwg.mxu0
  %10339 = vmatpush.bf16.msra.mxu0 %v10208
  %10340 = vmatpush.bf16.msra.mxu0 %v10204
  %10341 = vmatpush.bf16.msra.mxu0 %v10200
  %10342 = vmatpush.bf16.msra.mxu0 %v10196
  %10343 = vmatpush.bf16.msra.mxu0 %v10192
  %10344 = vmatpush.bf16.msra.mxu0 %v10188
  %10345 = vmatpush.bf16.msra.mxu0 %v10184
  %10346 = vmatpush.bf16.msra.mxu0 %v10180
  %10347 = vmatmul.bf16.gmra.mxu0 %v9951
  %v10348 = vpop.f32.mrf.mxu0
  %v10349 = vadd.f32 %v10336, %v10348
  %v10350 = vpop.f32.mrf.mxu0
  %10351 = vdwg.mxu0
  %10352 = vmatpush.bf16.msra.mxu0 %v10177
  %10353 = vmatpush.bf16.msra.mxu0 %v10173
  %10354 = vmatpush.bf16.msra.mxu0 %v10169
  %10355 = vmatpush.bf16.msra.mxu0 %v10165
  %10356 = vmatpush.bf16.msra.mxu0 %v10161
  %10357 = vmatpush.bf16.msra.mxu0 %v10157
  %10358 = vmatpush.bf16.msra.mxu0 %v10153
  %10359 = vmatpush.bf16.msra.mxu0 %v10149
  %10360 = vmatmul.bf16.gmra.mxu0 %v9950
  %v10361 = vpop.f32.mrf.mxu0
  %v10362 = vadd.f32 0.0, %v10361
  %v10363 = vpop.f32.mrf.mxu0
  %10364 = vdwg.mxu0
  %10365 = vmatpush.bf16.msra.mxu0 %v10209
  %10366 = vmatpush.bf16.msra.mxu0 %v10205
  %10367 = vmatpush.bf16.msra.mxu0 %v10201
  %10368 = vmatpush.bf16.msra.mxu0 %v10197
  %10369 = vmatpush.bf16.msra.mxu0 %v10193
  %10370 = vmatpush.bf16.msra.mxu0 %v10189
  %10371 = vmatpush.bf16.msra.mxu0 %v10185
  %10372 = vmatpush.bf16.msra.mxu0 %v10181
  %10373 = vmatmul.bf16.gmra.mxu0 %v9951
  %v10374 = vpop.f32.mrf.mxu0
  %v10375 = vadd.f32 %v10362, %v10374
  %v10376 = vpop.f32.mrf.mxu0
  %10377 = vdwg.mxu0
  %v10378 = vadd.f32 %v9878, %v10297
  %v10379 = vadd.f32 %v9879, %v10323
  %v10380 = vadd.f32 %v9880, %v10349
  %v10381 = vadd.f32 %v9881, %v10375
  %v10382 = vxor.u32 %v10378, 2147483648
  %v10383 = vmul.f32 %v10382, 1.442695
  %v10384 = vpow.pop %v10383
  %v10385 = vadd.f32 %v10384, 1.0
  %v10386 = vrcp.pop %v10385
  %v10387 = vmul.f32 %v10385, %v10386
  %v10388 = vsub.f32 1.0, %v10387
  %v10389 = vmul.f32 %v10386, %v10388
  %v10390 = vadd.f32 %v10386, %v10389
  %vm10391 = vweird.f32 %v10385
  %vm10392 = vweird.f32 %v10386
  %vm10393 = vmor %vm10391, %vm10392
  %v10394 = vsel %vm10393, %v10386, %v10390
  %v10395 = vand.u32 2147483647, %v10385
  %vm10396 = vcmp.eq.f32.partialorder %v10395, 8.507059e+37
  %v10397 = vand.u32 %v10385, 2147483648
  %v10398 = vor.u32 1.1754944e-38, %v10397
  %v10399 = vsel %vm10396, %v10398, %v10394
  %v10400 = vmul.f32 1.0, %v10399
  %v10401 = vxor.u32 %v10379, 2147483648
  %v10402 = vmul.f32 %v10401, 1.442695
  %v10403 = vpow.pop %v10402
  %v10404 = vadd.f32 %v10403, 1.0
  %v10405 = vrcp.pop %v10404
  %v10406 = vmul.f32 %v10404, %v10405
  %v10407 = vsub.f32 1.0, %v10406
  %v10408 = vmul.f32 %v10405, %v10407
  %v10409 = vadd.f32 %v10405, %v10408
  %vm10410 = vweird.f32 %v10404
  %vm10411 = vweird.f32 %v10405
  %vm10412 = vmor %vm10410, %vm10411
  %v10413 = vsel %vm10412, %v10405, %v10409
  %v10414 = vand.u32 2147483647, %v10404
  %vm10415 = vcmp.eq.f32.partialorder %v10414, 8.507059e+37
  %v10416 = vand.u32 %v10404, 2147483648
  %v10417 = vor.u32 1.1754944e-38, %v10416
  %v10418 = vsel %vm10415, %v10417, %v10413
  %v10419 = vmul.f32 1.0, %v10418
  %v10420 = vtanh.pop %v10380
  %v10421 = vxor.u32 %v10381, 2147483648
  %v10422 = vmul.f32 %v10421, 1.442695
  %v10423 = vpow.pop %v10422
  %v10424 = vadd.f32 %v10423, 1.0
  %v10425 = vrcp.pop %v10424
  %v10426 = vmul.f32 %v10424, %v10425
  %v10427 = vsub.f32 1.0, %v10426
  %v10428 = vmul.f32 %v10425, %v10427
  %v10429 = vadd.f32 %v10425, %v10428
  %vm10430 = vweird.f32 %v10424
  %vm10431 = vweird.f32 %v10425
  %vm10432 = vmor %vm10430, %vm10431
  %v10433 = vsel %vm10432, %v10425, %v10429
  %v10434 = vand.u32 2147483647, %v10424
  %vm10435 = vcmp.eq.f32.partialorder %v10434, 8.507059e+37
  %v10436 = vand.u32 %v10424, 2147483648
  %v10437 = vor.u32 1.1754944e-38, %v10436
  %v10438 = vsel %vm10435, %v10437, %v10433
  %v10439 = vmul.f32 1.0, %v10438
  %v10440 = vmul.f32 %v10419, %v9138
  %v10441 = vmul.f32 %v10400, %v10420
  %v10442 = vadd.f32 %v10440, %v10441
  %v10443 = vtanh.pop %v10442
  %v10444 = vmul.f32 %v10439, %v10443
  %s10445 = scalar_lea.vmem %s6, 56
  %10446 = vst [vmem:[%s10445] sm:$0xff] %v10444
  %v10447 = vperm.slane %v9675, %v269
  %v10448 = vperm.slane %v9680, %v271
  %v10449 = vsel %vm273, %v10448, %v10447
  %v10450 = vperm.slane %v9685, %v269
  %v10451 = vperm.slane %v9690, %v271
  %v10452 = vsel %vm273, %v10451, %v10450
  %v10453 = vperm.slane %v9695, %v269
  %v10454 = vperm.slane %v9700, %v271
  %v10455 = vsel %vm273, %v10454, %v10453
  %v10456 = vperm.slane %v9705, %v269
  %v10457 = vperm.slane %v9710, %v271
  %v10458 = vsel %vm273, %v10457, %v10456
  %v10459 = vperm.slane %v9715, %v269
  %v10460 = vperm.slane %v9720, %v271
  %v10461 = vsel %vm273, %v10460, %v10459
  %v10462 = vperm.slane %v9725, %v269
  %v10463 = vperm.slane %v9730, %v271
  %v10464 = vsel %vm273, %v10463, %v10462
  %v10465 = vperm.slane %v9735, %v269
  %v10466 = vperm.slane %v9740, %v271
  %v10467 = vsel %vm273, %v10466, %v10465
  %v10468 = vperm.slane %v9745, %v269
  %v10469 = vperm.slane %v9750, %v271
  %v10470 = vsel %vm273, %v10469, %v10468
  %v10471 = vsel %vm296, %v10452, %v10449
  %v10472 = vsel %vm298, %v10455, %v10471
  %v10473 = vsel %vm300, %v10458, %v10472
  %v10474 = vsel %vm302, %v10461, %v10473
  %v10475 = vsel %vm304, %v10464, %v10474
  %v10476 = vsel %vm306, %v10467, %v10475
  %v10477 = vsel %vm308, %v10470, %v10476
  %s10479 = scalar_lea.vmem %s7, 56
  %10480 = vst.msk [vmem:[%s10479] sm:$0xff] %vm311, %v10477
  // Predicated region
  $region26: #{lstm_decoder_forward.1} parent=0 // pred_check
    _
  $region27: #{lstm_decoder_forward.1} parent=0 // pred_check_branch
    %10482 = sbr.rel (0) target = $region29
  $region28: #{lstm_decoder_forward.1} parent=0 // pred_region
    _
  $region29: #{lstm_decoder_forward.1} parent=0 // pred_fallthru
    _
  // Predicated region
  $region30: #{lstm_decoder_forward.1} parent=0 // pred_check
    _
  $region31: #{lstm_decoder_forward.1} parent=0 // pred_check_branch
    %10484 = sbr.rel (0) target = $region33
  $region32: #{lstm_decoder_forward.1} parent=0 // pred_region
    _
  $region33: #{lstm_decoder_forward.1} parent=0 // pred_fallthru
    _
  // Predicated region
  $region34: #{lstm_decoder_forward.1} parent=0 // pred_check
    _
  $region35: #{lstm_decoder_forward.1} parent=0 // pred_check_branch
    %10486 = sbr.rel (0) target = $region37
  $region36: #{lstm_decoder_forward.1} parent=0 // pred_region
    _
  $region37: #{lstm_decoder_forward.1} parent=0 // pred_fallthru
    _
  // Predicated region
  $region38: #{lstm_decoder_forward.1} parent=0 // pred_check
    _
  $region39: #{lstm_decoder_forward.1} parent=0 // pred_check_branch
    %10488 = sbr.rel (0) target = $region41
  $region40: #{lstm_decoder_forward.1} parent=0 // pred_region
    _
  $region41: #{lstm_decoder_forward.1} parent=0 // pred_fallthru
    _

</llo_original>
